<compile_context>
chip_gen: v6e
topology: v6e:2x2x1
jax: 0.10.0
libtpu: 0.0.40
codegen_flags: <defaults>
</compile_context>

<pallas_src>
import functools

import numpy as np
import jax
import jax.numpy as jnp
from jax.experimental import pallas as pl
from jax.experimental.pallas import tpu as pltpu

# ---- hyperparameters (MyViT defaults) -------------------------------------
CHW = (4, 14, 14)                 # (C, H, W); H=W=14 divisible by n_patches=7
N_PATCHES = 7
N_BLOCKS = 2
HIDDEN_D = 8
N_HEADS = 2
OUT_D = 10
OUT_PAD = 128                     # lane-dense padded head width
PATCH = CHW[1] // N_PATCHES       # 2
IN_D = CHW[0] * PATCH * PATCH     # 16
S_P = N_PATCHES * N_PATCHES       # 49 patch tokens
S = S_P + 1                       # 50 tokens incl. class token
S_PAD = 56                        # padded sequence length (multiple of 8)
D_HEAD = HIDDEN_D // N_HEADS      # 4
MLP_D = 4 * HIDDEN_D              # 32
LN_EPS = 1e-5
INV_SQRT_DH = 1.0 / float(np.sqrt(D_HEAD))
INV_SQRT2 = 1.0 / float(np.sqrt(2.0))


def _layernorm(x, g, b):
    mu = jnp.mean(x, axis=-1, keepdims=True)
    var = jnp.mean((x - mu) ** 2, axis=-1, keepdims=True)
    return (x - mu) / jnp.sqrt(var + LN_EPS) * g + b


def _softmax_last(x):
    x = x - jnp.max(x, axis=-1, keepdims=True)
    e = jnp.exp(x)
    return e / jnp.sum(e, axis=-1, keepdims=True)


def _erf_approx(x):
    # Abramowitz & Stegun 7.1.26, |err| < 1.5e-7.  Built only from exp / mul /
    # add / where so it is guaranteed to lower in Mosaic.
    ax = jnp.abs(x)
    t = 1.0 / (1.0 + 0.3275911 * ax)
    poly = t * (0.254829592 + t * (-0.284496736 + t * (1.421413741
              + t * (-1.453152027 + t * 1.061405429))))
    y = 1.0 - poly * jnp.exp(-ax * ax)
    return jnp.where(x < 0.0, -y, y)


def _gelu_kernel(x):
    # exact-erf GELU via the polynomial above (deviation from torch < 2e-7)
    return 0.5 * x * (1.0 + _erf_approx(x * INV_SQRT2))


def _gelu_ref(x):
    # torch nn.GELU() default (exact erf) for the pure-XLA reference
    return 0.5 * x * (1.0 + jax.scipy.special.erf(x * INV_SQRT2))


# ---------------------------------------------------------------------------
# Pallas kernel factory: one block of TB samples per grid step
# ---------------------------------------------------------------------------
def _make_kernel(tb):
    m = tb * S_PAD                                             # rows per grid step

    def kernel(patch_ref, lm_w_ref, embadd_ref,
               ln1g_ref, ln1b_ref, qkvw_ref, qkvb_ref,
               ln2g_ref, ln2b_ref, w1_ref, b1_ref, w2_ref, b2_ref,
               hw_ref, hb_ref, out_ref, x_sc, cls_sc):
        # ---- patch embedding: one big (m, IN_D) @ (IN_D, D) MXU matmul -----
        # embadd already contains pos-emb + lm bias, and (cls + pos[0]) on the
        # class-token row of every sample.
        x = jnp.dot(patch_ref[...], lm_w_ref[...],
                    preferred_element_type=jnp.float32) + embadd_ref[...]     # (m, D)

        # key-padding mask: padded sequence slots (>= S) never receive attention
        key_ids = jax.lax.broadcasted_iota(jnp.int32, (1, 1, S_PAD), 2)
        neg_mask = jnp.where(key_ids >= S, -1e30, 0.0)                        # (1,1,S_PAD)

        for blk in range(N_BLOCKS):                            # static unroll
            # --- MSA branch --------------------------------------------------
            xn = _layernorm(x, ln1g_ref[blk], ln1b_ref[blk])
            qkv = jnp.dot(xn, qkvw_ref[blk],
                          preferred_element_type=jnp.float32) + qkvb_ref[blk]  # (m, 3D) [Q|K|V]
            qkv3 = qkv.reshape(tb, S_PAD, 3 * HIDDEN_D)        # tile-aligned split
            head_outs = []
            for h in range(N_HEADS):                           # static unroll
                q = qkv3[:, :, h * D_HEAD:(h + 1) * D_HEAD]
                k = qkv3[:, :, HIDDEN_D + h * D_HEAD:HIDDEN_D + (h + 1) * D_HEAD]
                v = qkv3[:, :, 2 * HIDDEN_D + h * D_HEAD:2 * HIDDEN_D + (h + 1) * D_HEAD]
                # contract last dims directly (no transpose of k)
                scores = jnp.einsum("bqd,bkd->bqk", q, k,
                                    preferred_element_type=jnp.float32) * INV_SQRT_DH
                attn = _softmax_last(scores + neg_mask)
                head_outs.append(jnp.einsum("bqk,bkd->bqd", attn, v,
                                            preferred_element_type=jnp.float32))
            msa = jnp.concatenate(head_outs, axis=-1).reshape(m, HIDDEN_D)
            x = x + msa

            # --- MLP branch --------------------------------------------------
            xn2 = _layernorm(x, ln2g_ref[blk], ln2b_ref[blk])
            h1 = _gelu_kernel(jnp.dot(xn2, w1_ref[blk],
                                      preferred_element_type=jnp.float32) + b1_ref[blk])
            x = x + jnp.dot(h1, w2_ref[blk],
                            preferred_element_type=jnp.float32) + b2_ref[blk]

        # ---- gather class-token rows (row b*S_PAD) then classify ------------
        x_sc[...] = x
        for b in range(tb):                                    # static row copies
            cls_sc[pl.ds(b, 1), :] = x_sc[pl.ds(b * S_PAD, 1), :]

        logits = jnp.dot(cls_sc[...], hw_ref[...],
                         preferred_element_type=jnp.float32) + hb_ref[...]    # (tb, OUT_PAD)
        out_ref[...] = _softmax_last(logits)                   # lane-dense (tb, 128) store

    return kernel


# ---------------------------------------------------------------------------
# Wrapper: patchify glue, padding, parameter layout prep + pallas_call
# ---------------------------------------------------------------------------
def patchify(images):
    n = images.shape[0]
    p = images.reshape(n, CHW[0], N_PATCHES, PATCH, N_PATCHES, PATCH)
    p = p.transpose(0, 2, 4, 1, 3, 5)                 # torch unfold order
    return p.reshape(n, S_P, IN_D)


@functools.partial(jax.jit, static_argnames=("tb_max",))
def vit_pallas(images, p, tb_max=32):
    n = images.shape[0]
    tb = int(min(tb_max, n))                          # samples per grid step
    n_steps = -(-n // tb)
    n_pad = tb * n_steps
    m = tb * S_PAD

    # ---- patch extraction + padding (pure data movement, done in XLA) ------
    patches = patchify(images.astype(jnp.float32))                            # (n, 49, IN_D)
    patches = jnp.concatenate(
        [jnp.zeros((n, 1, IN_D), jnp.float32),                               # class-token slot
         patches,
         jnp.zeros((n, S_PAD - 1 - S_P, IN_D), jnp.float32)], axis=1)        # seq pad -> 56
    if n_pad > n:
        patches = jnp.concatenate(
            [patches, jnp.zeros((n_pad - n, S_PAD, IN_D), jnp.float32)], axis=0)
    patches_flat = patches.reshape(n_pad * S_PAD, IN_D)

    # ---- parameter/layout preprocessing (weights only) ---------------------
    # pos-emb + linear-mapper bias + class token folded into one per-row add.
    pos_pad = jnp.zeros((S_PAD, HIDDEN_D), jnp.float32).at[:S, :].set(p["pos"])
    embed_add = jnp.tile(pos_pad + p["lm_b"], (tb, 1))                       # (m, D)
    cls_row = jnp.broadcast_to(p["cls"] + pos_pad[0:1, :], (tb, HIDDEN_D))
    embed_add = embed_add.at[::S_PAD, :].set(cls_row)

    # regroup qkv columns: PyTorch per-head [q|k|v] -> grouped [Q_all|K_all|V_all]
    perm = np.array([h * 3 * D_HEAD + part * D_HEAD + j
                     for part in range(3) for h in range(N_HEADS) for j in range(D_HEAD)])
    qkv_w = p["qkv_w"][:, :, perm]
    qkv_b = p["qkv_b"][:, :, perm]

    # lane-dense classification head: pad to 128 cols, padded bias = -1e30 so
    # the in-kernel softmax gives exactly zero weight to padded classes.
    hw_pad = jnp.zeros((HIDDEN_D, OUT_PAD), jnp.float32).at[:, :OUT_D].set(p["head_w"])
    hb_pad = jnp.full((1, OUT_PAD), -1e30, jnp.float32).at[:, :OUT_D].set(p["head_b"])

    def full(shape):
        nd = len(shape)
        return pl.BlockSpec(shape, lambda i, _nd=nd: (0,) * _nd)

    in_specs = [
        pl.BlockSpec((m, IN_D), lambda i: (i, 0)),                 # patches (per-step block)
        full((IN_D, HIDDEN_D)),                                    # lm_w
        full((m, HIDDEN_D)),                                       # embed_add
        full((N_BLOCKS, 1, HIDDEN_D)), full((N_BLOCKS, 1, HIDDEN_D)),       # ln1 g/b
        full((N_BLOCKS, HIDDEN_D, 3 * HIDDEN_D)),                  # qkv W (grouped)
        full((N_BLOCKS, 1, 3 * HIDDEN_D)),                         # qkv b (grouped)
        full((N_BLOCKS, 1, HIDDEN_D)), full((N_BLOCKS, 1, HIDDEN_D)),       # ln2 g/b
        full((N_BLOCKS, HIDDEN_D, MLP_D)), full((N_BLOCKS, 1, MLP_D)),      # mlp W1/b1
        full((N_BLOCKS, MLP_D, HIDDEN_D)), full((N_BLOCKS, 1, HIDDEN_D)),   # mlp W2/b2
        full((HIDDEN_D, OUT_PAD)), full((1, OUT_PAD)),             # head W/b (padded)
    ]

    out_pad = pl.pallas_call(
        _make_kernel(tb),
        out_shape=jax.ShapeDtypeStruct((n_pad, OUT_PAD), jnp.float32),
        grid_spec=pltpu.PrefetchScalarGridSpec(
            num_scalar_prefetch=0,
            grid=(n_steps,),
            in_specs=in_specs,
            out_specs=pl.BlockSpec((tb, OUT_PAD), lambda i: (i, 0)),
            scratch_shapes=[pltpu.VMEM((m, HIDDEN_D), jnp.float32),   # final token features
                            pltpu.VMEM((tb, HIDDEN_D), jnp.float32)]  # gathered class tokens
        ),
        compiler_params=pltpu.CompilerParams(
            dimension_semantics=("parallel",),
            vmem_limit_bytes=32 * 1024 * 1024),
    )(patches_flat, p["lm_w"], embed_add,
      p["ln1_g"], p["ln1_b"], qkv_w, qkv_b,
      p["ln2_g"], p["ln2_b"], p["mlp_w1"], p["mlp_b1"], p["mlp_w2"], p["mlp_b2"],
      hw_pad, hb_pad)

    return out_pad[:n, :OUT_D]


# ---------------------------------------------------------------------------
# Pure-JAX reference (mirrors the PyTorch forward exactly; original layouts)
# ---------------------------------------------------------------------------
def vit_ref(images, p):
    n = images.shape[0]
    patches = patchify(images)
    tok = patches @ p["lm_w"] + p["lm_b"]                       # (n, 49, D)
    cls = jnp.broadcast_to(p["cls"], (n, 1, HIDDEN_D))
    x = jnp.concatenate([cls, tok], axis=1) + p["pos"][None]    # (n, S, D)
    for blk in range(N_BLOCKS):
        xn = _layernorm(x, p["ln1_g"][blk], p["ln1_b"][blk])
        qkv = xn @ p["qkv_w"][blk] + p["qkv_b"][blk]            # (n, S, 3D)
        qkv = qkv.reshape(n, S, N_HEADS, 3 * D_HEAD)
        q, k, v = jnp.split(qkv, 3, axis=-1)
        q, k, v = (t.transpose(0, 2, 1, 3) for t in (q, k, v))  # (n, H, S, dh)
        scores = jnp.einsum("nhqd,nhkd->nhqk", q, k) * INV_SQRT_DH
        attn = _softmax_last(scores)
        o = jnp.einsum("nhqk,nhkd->nhqd", attn, v)
        o = o.transpose(0, 2, 1, 3).reshape(n, S, HIDDEN_D)
        x = x + o
        xn2 = _layernorm(x, p["ln2_g"][blk], p["ln2_b"][blk])
        h1 = _gelu_ref(xn2 @ p["mlp_w1"][blk] + p["mlp_b1"][blk])
        x = x + h1 @ p["mlp_w2"][blk] + p["mlp_b2"][blk]
    logits = x[:, 0] @ p["head_w"] + p["head_b"]
    return _softmax_last(logits)


# ---------------------------------------------------------------------------
def make_params():
    # deterministic synthetic init (no checkpoint loading)
    key = jax.random.PRNGKey(0)
    ks = jax.random.split(key, 12)

    def rnd(k, shape, scale=0.1):
        return scale * jax.random.normal(k, shape, jnp.float32)

    pos_np = np.zeros((S, HIDDEN_D), np.float32)
    for i in range(S):
        for j in range(HIDDEN_D):
            denom = 10000.0 ** (2.0 * j / HIDDEN_D)
            pos_np[i, j] = np.sin(i / denom) if j % 2 == 0 else np.cos(i / denom)

    return {
        "lm_w": rnd(ks[0], (IN_D, HIDDEN_D)),
        "lm_b": rnd(ks[1], (1, HIDDEN_D)),
        "cls": rnd(ks[2], (1, HIDDEN_D)),
        "pos": jnp.asarray(pos_np),
        "ln1_g": jnp.ones((N_BLOCKS, 1, HIDDEN_D), jnp.float32),
        "ln1_b": jnp.zeros((N_BLOCKS, 1, HIDDEN_D), jnp.float32),
        "qkv_w": rnd(ks[3], (N_BLOCKS, HIDDEN_D, 3 * HIDDEN_D)),
        "qkv_b": rnd(ks[4], (N_BLOCKS, 1, 3 * HIDDEN_D)),
        "ln2_g": jnp.ones((N_BLOCKS, 1, HIDDEN_D), jnp.float32),
        "ln2_b": jnp.zeros((N_BLOCKS, 1, HIDDEN_D), jnp.float32),
        "mlp_w1": rnd(ks[5], (N_BLOCKS, HIDDEN_D, MLP_D)),
        "mlp_b1": rnd(ks[6], (N_BLOCKS, 1, MLP_D)),
        "mlp_w2": rnd(ks[7], (N_BLOCKS, MLP_D, HIDDEN_D)),
        "mlp_b2": rnd(ks[8], (N_BLOCKS, 1, HIDDEN_D)),
        "head_w": rnd(ks[9], (HIDDEN_D, OUT_D)),
        "head_b": rnd(ks[10], (1, OUT_D)),
    }


if __name__ == "__main__":
    key = jax.random.PRNGKey(0)
    params = make_params()

    # small demo batch (module default chw = (4, 14, 14))
    images = jax.random.normal(jax.random.fold_in(key, 123),
                               (2,) + CHW, jnp.float32)          # NCHW, (2, 4, 14, 14)
    out = jax.block_until_ready(vit_pallas(images, params))
    ref = jax.block_until_ready(vit_ref(images, params))
    np.testing.assert_allclose(np.asarray(out), np.asarray(ref), rtol=1e-4, atol=1e-4)
    np.testing.assert_allclose(np.asarray(out).sum(-1), np.ones(out.shape[0]), atol=1e-5)

    # exercise the batched multi-step grid path (batch padding + 3 grid steps)
    images2 = jax.random.normal(jax.random.fold_in(key, 7),
                                (20,) + CHW, jnp.float32)
    out2 = jax.block_until_ready(vit_pallas(images2, params, tb_max=8))
    ref2 = jax.block_until_ready(vit_ref(images2, params))
    np.testing.assert_allclose(np.asarray(out2), np.asarray(ref2), rtol=1e-4, atol=1e-4)

    print("KERNEL_OK")
</pallas_src>

<mosaic_0001>
module attributes {stable_mosaic.version = 11 : i64} {
  func.func @kernel(%arg0: i32, %arg1: memref<112x16xf32, #tpu.memory_space<vmem>>, %arg2: memref<16x8xf32, #tpu.memory_space<vmem>>, %arg3: memref<112x8xf32, #tpu.memory_space<vmem>>, %arg4: memref<2x1x8xf32, #tpu.memory_space<vmem>>, %arg5: memref<2x1x8xf32, #tpu.memory_space<vmem>>, %arg6: memref<2x8x24xf32, #tpu.memory_space<vmem>>, %arg7: memref<2x1x24xf32, #tpu.memory_space<vmem>>, %arg8: memref<2x1x8xf32, #tpu.memory_space<vmem>>, %arg9: memref<2x1x8xf32, #tpu.memory_space<vmem>>, %arg10: memref<2x8x32xf32, #tpu.memory_space<vmem>>, %arg11: memref<2x1x32xf32, #tpu.memory_space<vmem>>, %arg12: memref<2x32x8xf32, #tpu.memory_space<vmem>>, %arg13: memref<2x1x8xf32, #tpu.memory_space<vmem>>, %arg14: memref<8x128xf32, #tpu.memory_space<vmem>>, %arg15: memref<1x128xf32, #tpu.memory_space<vmem>>, %arg16: memref<2x128xf32, #tpu.memory_space<vmem>>, %arg17: memref<112x8xf32, #tpu.memory_space<vmem>>, %arg18: memref<2x8xf32, #tpu.memory_space<vmem>>) attributes {dimension_semantics = [#tpu.dimension_semantics<parallel>], iteration_bounds = array<i64: 1>, scalar_prefetch = 0 : i64, scratch_operands = 2 : i64, tpu.core_type = #tpu.core_type<tc>, window_params = [{transform_indices = @transform_0, window_bounds = array<i64: 112, 16>}, {pipeline_mode = #tpu.pipeline_mode<synchronous>, transform_indices = @transform_1, window_bounds = array<i64: 16, 8>}, {pipeline_mode = #tpu.pipeline_mode<synchronous>, transform_indices = @transform_2, window_bounds = array<i64: 112, 8>}, {pipeline_mode = #tpu.pipeline_mode<synchronous>, transform_indices = @transform_3, window_bounds = array<i64: 2, 1, 8>}, {pipeline_mode = #tpu.pipeline_mode<synchronous>, transform_indices = @transform_4, window_bounds = array<i64: 2, 1, 8>}, {pipeline_mode = #tpu.pipeline_mode<synchronous>, transform_indices = @transform_5, window_bounds = array<i64: 2, 8, 24>}, {pipeline_mode = #tpu.pipeline_mode<synchronous>, transform_indices = @transform_6, window_bounds = array<i64: 2, 1, 24>}, {pipeline_mode = #tpu.pipeline_mode<synchronous>, transform_indices = @transform_7, window_bounds = array<i64: 2, 1, 8>}, {pipeline_mode = #tpu.pipeline_mode<synchronous>, transform_indices = @transform_8, window_bounds = array<i64: 2, 1, 8>}, {pipeline_mode = #tpu.pipeline_mode<synchronous>, transform_indices = @transform_9, window_bounds = array<i64: 2, 8, 32>}, {pipeline_mode = #tpu.pipeline_mode<synchronous>, transform_indices = @transform_10, window_bounds = array<i64: 2, 1, 32>}, {pipeline_mode = #tpu.pipeline_mode<synchronous>, transform_indices = @transform_11, window_bounds = array<i64: 2, 32, 8>}, {pipeline_mode = #tpu.pipeline_mode<synchronous>, transform_indices = @transform_12, window_bounds = array<i64: 2, 1, 8>}, {pipeline_mode = #tpu.pipeline_mode<synchronous>, transform_indices = @transform_13, window_bounds = array<i64: 8, 128>}, {pipeline_mode = #tpu.pipeline_mode<synchronous>, transform_indices = @transform_14, window_bounds = array<i64: 1, 128>}, {transform_indices = @transform_15, window_bounds = array<i64: 2, 128>}]} {
    %c0 = arith.constant 0 : index
    %c0_0 = arith.constant 0 : index
    %0 = vector.load %arg1[%c0, %c0_0] : memref<112x16xf32, #tpu.memory_space<vmem>>, vector<112x16xf32>
    %c0_1 = arith.constant 0 : index
    %c0_2 = arith.constant 0 : index
    %1 = vector.load %arg2[%c0_1, %c0_2] : memref<16x8xf32, #tpu.memory_space<vmem>>, vector<16x8xf32>
    %cst = arith.constant dense<0.000000e+00> : vector<112x8xf32>
    %2 = tpu.matmul %0, %1, %cst {dimension_numbers = #tpu.dot_dimension_numbers<[1], [0], [0], [1], [0, 0, 1, 1], [], []>} : vector<112x16xf32>, vector<16x8xf32>, vector<112x8xf32> -> vector<112x8xf32>
    %c0_3 = arith.constant 0 : index
    %c0_4 = arith.constant 0 : index
    %3 = vector.load %arg3[%c0_3, %c0_4] : memref<112x8xf32, #tpu.memory_space<vmem>>, vector<112x8xf32>
    %4 = arith.addf %2, %3 : vector<112x8xf32>
    %5 = tpu.iota {dimensions = array<i32: 2>} : vector<1x1x56xi32>
    %c50_i32 = arith.constant 50 : i32
    %6 = vector.broadcast %c50_i32 : i32 to vector<1x1x56xi32>
    %7 = arith.cmpi sge, %5, %6 : vector<1x1x56xi32>
    %cst_5 = arith.constant -1.000000e+30 : f32
    %cst_6 = arith.constant 0.000000e+00 : f32
    %8 = vector.broadcast %cst_5 : f32 to vector<1x1x56xf32>
    %9 = vector.broadcast %cst_6 : f32 to vector<1x1x56xf32>
    %10 = arith.select %7, %8, %9 : vector<1x1x56xi1>, vector<1x1x56xf32>
    %c0_7 = arith.constant 0 : index
    %c0_8 = arith.constant 0 : index
    %c0_9 = arith.constant 0 : index
    %11 = vector.load %arg4[%c0_7, %c0_8, %c0_9] : memref<2x1x8xf32, #tpu.memory_space<vmem>>, vector<1x1x8xf32>
    %12 = vector.shape_cast %11 : vector<1x1x8xf32> to vector<1x8xf32>
    %c0_10 = arith.constant 0 : index
    %c0_11 = arith.constant 0 : index
    %c0_12 = arith.constant 0 : index
    %13 = vector.load %arg5[%c0_10, %c0_11, %c0_12] : memref<2x1x8xf32, #tpu.memory_space<vmem>>, vector<1x1x8xf32>
    %14 = vector.shape_cast %13 : vector<1x1x8xf32> to vector<1x8xf32>
    %cst_13 = arith.constant dense<0.000000e+00> : vector<112xf32>
    %15 = vector.multi_reduction <add>, %4, %cst_13 [1] : vector<112x8xf32> to vector<112xf32>
    %16 = vector.shape_cast %15 : vector<112xf32> to vector<112x1xf32>
    %cst_14 = arith.constant 8.000000e+00 : f32
    %17 = vector.broadcast %cst_14 : f32 to vector<112x1xf32>
    %18 = arith.divf %16, %17 : vector<112x1xf32>
    %19 = vector.broadcast %18 : vector<112x1xf32> to vector<112x8xf32>
    %20 = arith.subf %4, %19 : vector<112x8xf32>
    %21 = arith.mulf %20, %20 : vector<112x8xf32>
    %cst_15 = arith.constant dense<0.000000e+00> : vector<112xf32>
    %22 = vector.multi_reduction <add>, %21, %cst_15 [1] : vector<112x8xf32> to vector<112xf32>
    %23 = vector.shape_cast %22 : vector<112xf32> to vector<112x1xf32>
    %cst_16 = arith.constant 8.000000e+00 : f32
    %24 = vector.broadcast %cst_16 : f32 to vector<112x1xf32>
    %25 = arith.divf %23, %24 : vector<112x1xf32>
    %26 = vector.broadcast %18 : vector<112x1xf32> to vector<112x8xf32>
    %27 = arith.subf %4, %26 : vector<112x8xf32>
    %cst_17 = arith.constant 9.99999974E-6 : f32
    %28 = vector.broadcast %cst_17 : f32 to vector<112x1xf32>
    %29 = arith.addf %25, %28 : vector<112x1xf32>
    %30 = math.sqrt %29 : vector<112x1xf32>
    %31 = vector.broadcast %30 : vector<112x1xf32> to vector<112x8xf32>
    %32 = arith.divf %27, %31 : vector<112x8xf32>
    %33 = vector.broadcast %12 : vector<1x8xf32> to vector<112x8xf32>
    %34 = arith.mulf %32, %33 : vector<112x8xf32>
    %35 = vector.broadcast %14 : vector<1x8xf32> to vector<112x8xf32>
    %36 = arith.addf %34, %35 : vector<112x8xf32>
    %c0_18 = arith.constant 0 : index
    %c0_19 = arith.constant 0 : index
    %c0_20 = arith.constant 0 : index
    %37 = vector.load %arg6[%c0_18, %c0_19, %c0_20] : memref<2x8x24xf32, #tpu.memory_space<vmem>>, vector<1x8x24xf32>
    %38 = vector.shape_cast %37 : vector<1x8x24xf32> to vector<8x24xf32>
    %cst_21 = arith.constant dense<0.000000e+00> : vector<112x24xf32>
    %39 = tpu.matmul %36, %38, %cst_21 {dimension_numbers = #tpu.dot_dimension_numbers<[1], [0], [0], [1], [0, 0, 1, 1], [], []>} : vector<112x8xf32>, vector<8x24xf32>, vector<112x24xf32> -> vector<112x24xf32>
    %c0_22 = arith.constant 0 : index
    %c0_23 = arith.constant 0 : index
    %c0_24 = arith.constant 0 : index
    %40 = vector.load %arg7[%c0_22, %c0_23, %c0_24] : memref<2x1x24xf32, #tpu.memory_space<vmem>>, vector<1x1x24xf32>
    %41 = vector.shape_cast %40 : vector<1x1x24xf32> to vector<1x24xf32>
    %42 = vector.broadcast %41 : vector<1x24xf32> to vector<112x24xf32>
    %43 = arith.addf %39, %42 : vector<112x24xf32>
    %44 = vector.shape_cast %43 : vector<112x24xf32> to vector<2x56x24xf32>
    %45 = vector.extract_strided_slice %44 {offsets = [0, 0, 0], sizes = [2, 56, 4], strides = [1, 1, 1]} : vector<2x56x24xf32> to vector<2x56x4xf32>
    %46 = vector.extract_strided_slice %44 {offsets = [0, 0, 8], sizes = [2, 56, 4], strides = [1, 1, 1]} : vector<2x56x24xf32> to vector<2x56x4xf32>
    %47 = vector.extract_strided_slice %44 {offsets = [0, 0, 16], sizes = [2, 56, 4], strides = [1, 1, 1]} : vector<2x56x24xf32> to vector<2x56x4xf32>
    "tpu.trace_start"() <{level = 10 : i32, message = "bqd,bkd->bqk"}> : () -> ()
    %cst_25 = arith.constant dense<0.000000e+00> : vector<2x56x56xf32>
    %48 = tpu.matmul %45, %46, %cst_25 {dimension_numbers = #tpu.dot_dimension_numbers<[2], [2], [1], [1], [0, 0, 0, 1, 1, 1], [0], [0]>} : vector<2x56x4xf32>, vector<2x56x4xf32>, vector<2x56x56xf32> -> vector<2x56x56xf32>
    "tpu.trace_stop"() : () -> ()
    %cst_26 = arith.constant 5.000000e-01 : f32
    %49 = vector.broadcast %cst_26 : f32 to vector<2x56x56xf32>
    %50 = arith.mulf %48, %49 : vector<2x56x56xf32>
    %51 = vector.broadcast %10 : vector<1x1x56xf32> to vector<2x56x56xf32>
    %52 = arith.addf %50, %51 : vector<2x56x56xf32>
    %cst_27 = arith.constant dense<0xFF800000> : vector<2x56xf32>
    %53 = vector.multi_reduction <maximumf>, %52, %cst_27 [2] : vector<2x56x56xf32> to vector<2x56xf32>
    %54 = vector.shape_cast %53 : vector<2x56xf32> to vector<2x56x1xf32>
    %55 = vector.broadcast %54 : vector<2x56x1xf32> to vector<2x56x56xf32>
    %56 = arith.subf %52, %55 : vector<2x56x56xf32>
    %57 = math.exp %56 : vector<2x56x56xf32>
    %cst_28 = arith.constant dense<0.000000e+00> : vector<2x56xf32>
    %58 = vector.multi_reduction <add>, %57, %cst_28 [2] : vector<2x56x56xf32> to vector<2x56xf32>
    %59 = vector.shape_cast %58 : vector<2x56xf32> to vector<2x56x1xf32>
    %60 = vector.broadcast %59 : vector<2x56x1xf32> to vector<2x56x56xf32>
    %61 = arith.divf %57, %60 : vector<2x56x56xf32>
    "tpu.trace_start"() <{level = 10 : i32, message = "bqk,bkd->bqd"}> : () -> ()
    %cst_29 = arith.constant dense<0.000000e+00> : vector<2x56x4xf32>
    %62 = tpu.matmul %61, %47, %cst_29 {dimension_numbers = #tpu.dot_dimension_numbers<[2], [1], [1], [2], [0, 0, 0, 1, 1, 2], [0], [0]>} : vector<2x56x56xf32>, vector<2x56x4xf32>, vector<2x56x4xf32> -> vector<2x56x4xf32>
    "tpu.trace_stop"() : () -> ()
    %63 = vector.extract_strided_slice %44 {offsets = [0, 0, 4], sizes = [2, 56, 4], strides = [1, 1, 1]} : vector<2x56x24xf32> to vector<2x56x4xf32>
    %64 = vector.extract_strided_slice %44 {offsets = [0, 0, 12], sizes = [2, 56, 4], strides = [1, 1, 1]} : vector<2x56x24xf32> to vector<2x56x4xf32>
    %65 = vector.extract_strided_slice %44 {offsets = [0, 0, 20], sizes = [2, 56, 4], strides = [1, 1, 1]} : vector<2x56x24xf32> to vector<2x56x4xf32>
    "tpu.trace_start"() <{level = 10 : i32, message = "bqd,bkd->bqk"}> : () -> ()
    %cst_30 = arith.constant dense<0.000000e+00> : vector<2x56x56xf32>
    %66 = tpu.matmul %63, %64, %cst_30 {dimension_numbers = #tpu.dot_dimension_numbers<[2], [2], [1], [1], [0, 0, 0, 1, 1, 1], [0], [0]>} : vector<2x56x4xf32>, vector<2x56x4xf32>, vector<2x56x56xf32> -> vector<2x56x56xf32>
    "tpu.trace_stop"() : () -> ()
    %cst_31 = arith.constant 5.000000e-01 : f32
    %67 = vector.broadcast %cst_31 : f32 to vector<2x56x56xf32>
    %68 = arith.mulf %66, %67 : vector<2x56x56xf32>
    %69 = vector.broadcast %10 : vector<1x1x56xf32> to vector<2x56x56xf32>
    %70 = arith.addf %68, %69 : vector<2x56x56xf32>
    %cst_32 = arith.constant dense<0xFF800000> : vector<2x56xf32>
    %71 = vector.multi_reduction <maximumf>, %70, %cst_32 [2] : vector<2x56x56xf32> to vector<2x56xf32>
    %72 = vector.shape_cast %71 : vector<2x56xf32> to vector<2x56x1xf32>
    %73 = vector.broadcast %72 : vector<2x56x1xf32> to vector<2x56x56xf32>
    %74 = arith.subf %70, %73 : vector<2x56x56xf32>
    %75 = math.exp %74 : vector<2x56x56xf32>
    %cst_33 = arith.constant dense<0.000000e+00> : vector<2x56xf32>
    %76 = vector.multi_reduction <add>, %75, %cst_33 [2] : vector<2x56x56xf32> to vector<2x56xf32>
    %77 = vector.shape_cast %76 : vector<2x56xf32> to vector<2x56x1xf32>
    %78 = vector.broadcast %77 : vector<2x56x1xf32> to vector<2x56x56xf32>
    %79 = arith.divf %75, %78 : vector<2x56x56xf32>
    "tpu.trace_start"() <{level = 10 : i32, message = "bqk,bkd->bqd"}> : () -> ()
    %cst_34 = arith.constant dense<0.000000e+00> : vector<2x56x4xf32>
    %80 = tpu.matmul %79, %65, %cst_34 {dimension_numbers = #tpu.dot_dimension_numbers<[2], [1], [1], [2], [0, 0, 0, 1, 1, 2], [0], [0]>} : vector<2x56x56xf32>, vector<2x56x4xf32>, vector<2x56x4xf32> -> vector<2x56x4xf32>
    "tpu.trace_stop"() : () -> ()
    %81 = tpu.concatenate %62, %80 in 2 : vector<2x56x4xf32>, vector<2x56x4xf32> -> vector<2x56x8xf32>
    %82 = vector.shape_cast %81 : vector<2x56x8xf32> to vector<112x8xf32>
    %83 = arith.addf %4, %82 : vector<112x8xf32>
    %c0_35 = arith.constant 0 : index
    %c0_36 = arith.constant 0 : index
    %c0_37 = arith.constant 0 : index
    %84 = vector.load %arg8[%c0_35, %c0_36, %c0_37] : memref<2x1x8xf32, #tpu.memory_space<vmem>>, vector<1x1x8xf32>
    %85 = vector.shape_cast %84 : vector<1x1x8xf32> to vector<1x8xf32>
    %c0_38 = arith.constant 0 : index
    %c0_39 = arith.constant 0 : index
    %c0_40 = arith.constant 0 : index
    %86 = vector.load %arg9[%c0_38, %c0_39, %c0_40] : memref<2x1x8xf32, #tpu.memory_space<vmem>>, vector<1x1x8xf32>
    %87 = vector.shape_cast %86 : vector<1x1x8xf32> to vector<1x8xf32>
    %cst_41 = arith.constant dense<0.000000e+00> : vector<112xf32>
    %88 = vector.multi_reduction <add>, %83, %cst_41 [1] : vector<112x8xf32> to vector<112xf32>
    %89 = vector.shape_cast %88 : vector<112xf32> to vector<112x1xf32>
    %cst_42 = arith.constant 8.000000e+00 : f32
    %90 = vector.broadcast %cst_42 : f32 to vector<112x1xf32>
    %91 = arith.divf %89, %90 : vector<112x1xf32>
    %92 = vector.broadcast %91 : vector<112x1xf32> to vector<112x8xf32>
    %93 = arith.subf %83, %92 : vector<112x8xf32>
    %94 = arith.mulf %93, %93 : vector<112x8xf32>
    %cst_43 = arith.constant dense<0.000000e+00> : vector<112xf32>
    %95 = vector.multi_reduction <add>, %94, %cst_43 [1] : vector<112x8xf32> to vector<112xf32>
    %96 = vector.shape_cast %95 : vector<112xf32> to vector<112x1xf32>
    %cst_44 = arith.constant 8.000000e+00 : f32
    %97 = vector.broadcast %cst_44 : f32 to vector<112x1xf32>
    %98 = arith.divf %96, %97 : vector<112x1xf32>
    %99 = vector.broadcast %91 : vector<112x1xf32> to vector<112x8xf32>
    %100 = arith.subf %83, %99 : vector<112x8xf32>
    %cst_45 = arith.constant 9.99999974E-6 : f32
    %101 = vector.broadcast %cst_45 : f32 to vector<112x1xf32>
    %102 = arith.addf %98, %101 : vector<112x1xf32>
    %103 = math.sqrt %102 : vector<112x1xf32>
    %104 = vector.broadcast %103 : vector<112x1xf32> to vector<112x8xf32>
    %105 = arith.divf %100, %104 : vector<112x8xf32>
    %106 = vector.broadcast %85 : vector<1x8xf32> to vector<112x8xf32>
    %107 = arith.mulf %105, %106 : vector<112x8xf32>
    %108 = vector.broadcast %87 : vector<1x8xf32> to vector<112x8xf32>
    %109 = arith.addf %107, %108 : vector<112x8xf32>
    %c0_46 = arith.constant 0 : index
    %c0_47 = arith.constant 0 : index
    %c0_48 = arith.constant 0 : index
    %110 = vector.load %arg10[%c0_46, %c0_47, %c0_48] : memref<2x8x32xf32, #tpu.memory_space<vmem>>, vector<1x8x32xf32>
    %111 = vector.shape_cast %110 : vector<1x8x32xf32> to vector<8x32xf32>
    %cst_49 = arith.constant dense<0.000000e+00> : vector<112x32xf32>
    %112 = tpu.matmul %109, %111, %cst_49 {dimension_numbers = #tpu.dot_dimension_numbers<[1], [0], [0], [1], [0, 0, 1, 1], [], []>} : vector<112x8xf32>, vector<8x32xf32>, vector<112x32xf32> -> vector<112x32xf32>
    %c0_50 = arith.constant 0 : index
    %c0_51 = arith.constant 0 : index
    %c0_52 = arith.constant 0 : index
    %113 = vector.load %arg11[%c0_50, %c0_51, %c0_52] : memref<2x1x32xf32, #tpu.memory_space<vmem>>, vector<1x1x32xf32>
    %114 = vector.shape_cast %113 : vector<1x1x32xf32> to vector<1x32xf32>
    %115 = vector.broadcast %114 : vector<1x32xf32> to vector<112x32xf32>
    %116 = arith.addf %112, %115 : vector<112x32xf32>
    %cst_53 = arith.constant 5.000000e-01 : f32
    %117 = vector.broadcast %cst_53 : f32 to vector<112x32xf32>
    %118 = arith.mulf %117, %116 : vector<112x32xf32>
    %cst_54 = arith.constant 0.707106769 : f32
    %119 = vector.broadcast %cst_54 : f32 to vector<112x32xf32>
    %120 = arith.mulf %116, %119 : vector<112x32xf32>
    %121 = math.absf %120 : vector<112x32xf32>
    %cst_55 = arith.constant 0.327591091 : f32
    %122 = vector.broadcast %cst_55 : f32 to vector<112x32xf32>
    %123 = arith.mulf %122, %121 : vector<112x32xf32>
    %cst_56 = arith.constant 1.000000e+00 : f32
    %124 = vector.broadcast %cst_56 : f32 to vector<112x32xf32>
    %125 = arith.addf %124, %123 : vector<112x32xf32>
    %cst_57 = arith.constant 1.000000e+00 : f32
    %126 = vector.broadcast %cst_57 : f32 to vector<112x32xf32>
    %127 = arith.divf %126, %125 : vector<112x32xf32>
    %cst_58 = arith.constant 1.06140542 : f32
    %128 = vector.broadcast %cst_58 : f32 to vector<112x32xf32>
    %129 = arith.mulf %127, %128 : vector<112x32xf32>
    %cst_59 = arith.constant -1.45315206 : f32
    %130 = vector.broadcast %cst_59 : f32 to vector<112x32xf32>
    %131 = arith.addf %130, %129 : vector<112x32xf32>
    %132 = arith.mulf %127, %131 : vector<112x32xf32>
    %cst_60 = arith.constant 1.42141378 : f32
    %133 = vector.broadcast %cst_60 : f32 to vector<112x32xf32>
    %134 = arith.addf %133, %132 : vector<112x32xf32>
    %135 = arith.mulf %127, %134 : vector<112x32xf32>
    %cst_61 = arith.constant -0.284496725 : f32
    %136 = vector.broadcast %cst_61 : f32 to vector<112x32xf32>
    %137 = arith.addf %136, %135 : vector<112x32xf32>
    %138 = arith.mulf %127, %137 : vector<112x32xf32>
    %cst_62 = arith.constant 0.254829586 : f32
    %139 = vector.broadcast %cst_62 : f32 to vector<112x32xf32>
    %140 = arith.addf %139, %138 : vector<112x32xf32>
    %141 = arith.mulf %127, %140 : vector<112x32xf32>
    %cst_63 = arith.constant 0.000000e+00 : f32
    %142 = vector.broadcast %cst_63 : f32 to vector<112x32xf32>
    %143 = arith.subf %142, %121 : vector<112x32xf32>
    %144 = arith.mulf %143, %121 : vector<112x32xf32>
    %145 = math.exp %144 : vector<112x32xf32>
    %146 = arith.mulf %141, %145 : vector<112x32xf32>
    %cst_64 = arith.constant 1.000000e+00 : f32
    %147 = vector.broadcast %cst_64 : f32 to vector<112x32xf32>
    %148 = arith.subf %147, %146 : vector<112x32xf32>
    %cst_65 = arith.constant 0.000000e+00 : f32
    %149 = vector.broadcast %cst_65 : f32 to vector<112x32xf32>
    %150 = arith.cmpf olt, %120, %149 : vector<112x32xf32>
    %cst_66 = arith.constant 0.000000e+00 : f32
    %151 = vector.broadcast %cst_66 : f32 to vector<112x32xf32>
    %152 = arith.subf %151, %148 : vector<112x32xf32>
    %153 = arith.select %150, %152, %148 : vector<112x32xi1>, vector<112x32xf32>
    %cst_67 = arith.constant 1.000000e+00 : f32
    %154 = vector.broadcast %cst_67 : f32 to vector<112x32xf32>
    %155 = arith.addf %154, %153 : vector<112x32xf32>
    %156 = arith.mulf %118, %155 : vector<112x32xf32>
    %c0_68 = arith.constant 0 : index
    %c0_69 = arith.constant 0 : index
    %c0_70 = arith.constant 0 : index
    %157 = vector.load %arg12[%c0_68, %c0_69, %c0_70] : memref<2x32x8xf32, #tpu.memory_space<vmem>>, vector<1x32x8xf32>
    %158 = vector.shape_cast %157 : vector<1x32x8xf32> to vector<32x8xf32>
    %cst_71 = arith.constant dense<0.000000e+00> : vector<112x8xf32>
    %159 = tpu.matmul %156, %158, %cst_71 {dimension_numbers = #tpu.dot_dimension_numbers<[1], [0], [0], [1], [0, 0, 1, 1], [], []>} : vector<112x32xf32>, vector<32x8xf32>, vector<112x8xf32> -> vector<112x8xf32>
    %160 = arith.addf %83, %159 : vector<112x8xf32>
    %c0_72 = arith.constant 0 : index
    %c0_73 = arith.constant 0 : index
    %c0_74 = arith.constant 0 : index
    %161 = vector.load %arg13[%c0_72, %c0_73, %c0_74] : memref<2x1x8xf32, #tpu.memory_space<vmem>>, vector<1x1x8xf32>
    %162 = vector.shape_cast %161 : vector<1x1x8xf32> to vector<1x8xf32>
    %163 = vector.broadcast %162 : vector<1x8xf32> to vector<112x8xf32>
    %164 = arith.addf %160, %163 : vector<112x8xf32>
    %c1 = arith.constant 1 : index
    %c0_75 = arith.constant 0 : index
    %c0_76 = arith.constant 0 : index
    %165 = vector.load %arg4[%c1, %c0_75, %c0_76] : memref<2x1x8xf32, #tpu.memory_space<vmem>>, vector<1x1x8xf32>
    %166 = vector.shape_cast %165 : vector<1x1x8xf32> to vector<1x8xf32>
    %c1_77 = arith.constant 1 : index
    %c0_78 = arith.constant 0 : index
    %c0_79 = arith.constant 0 : index
    %167 = vector.load %arg5[%c1_77, %c0_78, %c0_79] : memref<2x1x8xf32, #tpu.memory_space<vmem>>, vector<1x1x8xf32>
    %168 = vector.shape_cast %167 : vector<1x1x8xf32> to vector<1x8xf32>
    %cst_80 = arith.constant dense<0.000000e+00> : vector<112xf32>
    %169 = vector.multi_reduction <add>, %164, %cst_80 [1] : vector<112x8xf32> to vector<112xf32>
    %170 = vector.shape_cast %169 : vector<112xf32> to vector<112x1xf32>
    %cst_81 = arith.constant 8.000000e+00 : f32
    %171 = vector.broadcast %cst_81 : f32 to vector<112x1xf32>
    %172 = arith.divf %170, %171 : vector<112x1xf32>
    %173 = vector.broadcast %172 : vector<112x1xf32> to vector<112x8xf32>
    %174 = arith.subf %164, %173 : vector<112x8xf32>
    %175 = arith.mulf %174, %174 : vector<112x8xf32>
    %cst_82 = arith.constant dense<0.000000e+00> : vector<112xf32>
    %176 = vector.multi_reduction <add>, %175, %cst_82 [1] : vector<112x8xf32> to vector<112xf32>
    %177 = vector.shape_cast %176 : vector<112xf32> to vector<112x1xf32>
    %cst_83 = arith.constant 8.000000e+00 : f32
    %178 = vector.broadcast %cst_83 : f32 to vector<112x1xf32>
    %179 = arith.divf %177, %178 : vector<112x1xf32>
    %180 = vector.broadcast %172 : vector<112x1xf32> to vector<112x8xf32>
    %181 = arith.subf %164, %180 : vector<112x8xf32>
    %cst_84 = arith.constant 9.99999974E-6 : f32
    %182 = vector.broadcast %cst_84 : f32 to vector<112x1xf32>
    %183 = arith.addf %179, %182 : vector<112x1xf32>
    %184 = math.sqrt %183 : vector<112x1xf32>
    %185 = vector.broadcast %184 : vector<112x1xf32> to vector<112x8xf32>
    %186 = arith.divf %181, %185 : vector<112x8xf32>
    %187 = vector.broadcast %166 : vector<1x8xf32> to vector<112x8xf32>
    %188 = arith.mulf %186, %187 : vector<112x8xf32>
    %189 = vector.broadcast %168 : vector<1x8xf32> to vector<112x8xf32>
    %190 = arith.addf %188, %189 : vector<112x8xf32>
    %c1_85 = arith.constant 1 : index
    %c0_86 = arith.constant 0 : index
    %c0_87 = arith.constant 0 : index
    %191 = vector.load %arg6[%c1_85, %c0_86, %c0_87] : memref<2x8x24xf32, #tpu.memory_space<vmem>>, vector<1x8x24xf32>
    %192 = vector.shape_cast %191 : vector<1x8x24xf32> to vector<8x24xf32>
    %cst_88 = arith.constant dense<0.000000e+00> : vector<112x24xf32>
    %193 = tpu.matmul %190, %192, %cst_88 {dimension_numbers = #tpu.dot_dimension_numbers<[1], [0], [0], [1], [0, 0, 1, 1], [], []>} : vector<112x8xf32>, vector<8x24xf32>, vector<112x24xf32> -> vector<112x24xf32>
    %c1_89 = arith.constant 1 : index
    %c0_90 = arith.constant 0 : index
    %c0_91 = arith.constant 0 : index
    %194 = vector.load %arg7[%c1_89, %c0_90, %c0_91] : memref<2x1x24xf32, #tpu.memory_space<vmem>>, vector<1x1x24xf32>
    %195 = vector.shape_cast %194 : vector<1x1x24xf32> to vector<1x24xf32>
    %196 = vector.broadcast %195 : vector<1x24xf32> to vector<112x24xf32>
    %197 = arith.addf %193, %196 : vector<112x24xf32>
    %198 = vector.shape_cast %197 : vector<112x24xf32> to vector<2x56x24xf32>
    %199 = vector.extract_strided_slice %198 {offsets = [0, 0, 0], sizes = [2, 56, 4], strides = [1, 1, 1]} : vector<2x56x24xf32> to vector<2x56x4xf32>
    %200 = vector.extract_strided_slice %198 {offsets = [0, 0, 8], sizes = [2, 56, 4], strides = [1, 1, 1]} : vector<2x56x24xf32> to vector<2x56x4xf32>
    %201 = vector.extract_strided_slice %198 {offsets = [0, 0, 16], sizes = [2, 56, 4], strides = [1, 1, 1]} : vector<2x56x24xf32> to vector<2x56x4xf32>
    "tpu.trace_start"() <{level = 10 : i32, message = "bqd,bkd->bqk"}> : () -> ()
    %cst_92 = arith.constant dense<0.000000e+00> : vector<2x56x56xf32>
    %202 = tpu.matmul %199, %200, %cst_92 {dimension_numbers = #tpu.dot_dimension_numbers<[2], [2], [1], [1], [0, 0, 0, 1, 1, 1], [0], [0]>} : vector<2x56x4xf32>, vector<2x56x4xf32>, vector<2x56x56xf32> -> vector<2x56x56xf32>
    "tpu.trace_stop"() : () -> ()
    %cst_93 = arith.constant 5.000000e-01 : f32
    %203 = vector.broadcast %cst_93 : f32 to vector<2x56x56xf32>
    %204 = arith.mulf %202, %203 : vector<2x56x56xf32>
    %205 = vector.broadcast %10 : vector<1x1x56xf32> to vector<2x56x56xf32>
    %206 = arith.addf %204, %205 : vector<2x56x56xf32>
    %cst_94 = arith.constant dense<0xFF800000> : vector<2x56xf32>
    %207 = vector.multi_reduction <maximumf>, %206, %cst_94 [2] : vector<2x56x56xf32> to vector<2x56xf32>
    %208 = vector.shape_cast %207 : vector<2x56xf32> to vector<2x56x1xf32>
    %209 = vector.broadcast %208 : vector<2x56x1xf32> to vector<2x56x56xf32>
    %210 = arith.subf %206, %209 : vector<2x56x56xf32>
    %211 = math.exp %210 : vector<2x56x56xf32>
    %cst_95 = arith.constant dense<0.000000e+00> : vector<2x56xf32>
    %212 = vector.multi_reduction <add>, %211, %cst_95 [2] : vector<2x56x56xf32> to vector<2x56xf32>
    %213 = vector.shape_cast %212 : vector<2x56xf32> to vector<2x56x1xf32>
    %214 = vector.broadcast %213 : vector<2x56x1xf32> to vector<2x56x56xf32>
    %215 = arith.divf %211, %214 : vector<2x56x56xf32>
    "tpu.trace_start"() <{level = 10 : i32, message = "bqk,bkd->bqd"}> : () -> ()
    %cst_96 = arith.constant dense<0.000000e+00> : vector<2x56x4xf32>
    %216 = tpu.matmul %215, %201, %cst_96 {dimension_numbers = #tpu.dot_dimension_numbers<[2], [1], [1], [2], [0, 0, 0, 1, 1, 2], [0], [0]>} : vector<2x56x56xf32>, vector<2x56x4xf32>, vector<2x56x4xf32> -> vector<2x56x4xf32>
    "tpu.trace_stop"() : () -> ()
    %217 = vector.extract_strided_slice %198 {offsets = [0, 0, 4], sizes = [2, 56, 4], strides = [1, 1, 1]} : vector<2x56x24xf32> to vector<2x56x4xf32>
    %218 = vector.extract_strided_slice %198 {offsets = [0, 0, 12], sizes = [2, 56, 4], strides = [1, 1, 1]} : vector<2x56x24xf32> to vector<2x56x4xf32>
    %219 = vector.extract_strided_slice %198 {offsets = [0, 0, 20], sizes = [2, 56, 4], strides = [1, 1, 1]} : vector<2x56x24xf32> to vector<2x56x4xf32>
    "tpu.trace_start"() <{level = 10 : i32, message = "bqd,bkd->bqk"}> : () -> ()
    %cst_97 = arith.constant dense<0.000000e+00> : vector<2x56x56xf32>
    %220 = tpu.matmul %217, %218, %cst_97 {dimension_numbers = #tpu.dot_dimension_numbers<[2], [2], [1], [1], [0, 0, 0, 1, 1, 1], [0], [0]>} : vector<2x56x4xf32>, vector<2x56x4xf32>, vector<2x56x56xf32> -> vector<2x56x56xf32>
    "tpu.trace_stop"() : () -> ()
    %cst_98 = arith.constant 5.000000e-01 : f32
    %221 = vector.broadcast %cst_98 : f32 to vector<2x56x56xf32>
    %222 = arith.mulf %220, %221 : vector<2x56x56xf32>
    %223 = vector.broadcast %10 : vector<1x1x56xf32> to vector<2x56x56xf32>
    %224 = arith.addf %222, %223 : vector<2x56x56xf32>
    %cst_99 = arith.constant dense<0xFF800000> : vector<2x56xf32>
    %225 = vector.multi_reduction <maximumf>, %224, %cst_99 [2] : vector<2x56x56xf32> to vector<2x56xf32>
    %226 = vector.shape_cast %225 : vector<2x56xf32> to vector<2x56x1xf32>
    %227 = vector.broadcast %226 : vector<2x56x1xf32> to vector<2x56x56xf32>
    %228 = arith.subf %224, %227 : vector<2x56x56xf32>
    %229 = math.exp %228 : vector<2x56x56xf32>
    %cst_100 = arith.constant dense<0.000000e+00> : vector<2x56xf32>
    %230 = vector.multi_reduction <add>, %229, %cst_100 [2] : vector<2x56x56xf32> to vector<2x56xf32>
    %231 = vector.shape_cast %230 : vector<2x56xf32> to vector<2x56x1xf32>
    %232 = vector.broadcast %231 : vector<2x56x1xf32> to vector<2x56x56xf32>
    %233 = arith.divf %229, %232 : vector<2x56x56xf32>
    "tpu.trace_start"() <{level = 10 : i32, message = "bqk,bkd->bqd"}> : () -> ()
    %cst_101 = arith.constant dense<0.000000e+00> : vector<2x56x4xf32>
    %234 = tpu.matmul %233, %219, %cst_101 {dimension_numbers = #tpu.dot_dimension_numbers<[2], [1], [1], [2], [0, 0, 0, 1, 1, 2], [0], [0]>} : vector<2x56x56xf32>, vector<2x56x4xf32>, vector<2x56x4xf32> -> vector<2x56x4xf32>
    "tpu.trace_stop"() : () -> ()
    %235 = tpu.concatenate %216, %234 in 2 : vector<2x56x4xf32>, vector<2x56x4xf32> -> vector<2x56x8xf32>
    %236 = vector.shape_cast %235 : vector<2x56x8xf32> to vector<112x8xf32>
    %237 = arith.addf %164, %236 : vector<112x8xf32>
    %c1_102 = arith.constant 1 : index
    %c0_103 = arith.constant 0 : index
    %c0_104 = arith.constant 0 : index
    %238 = vector.load %arg8[%c1_102, %c0_103, %c0_104] : memref<2x1x8xf32, #tpu.memory_space<vmem>>, vector<1x1x8xf32>
    %239 = vector.shape_cast %238 : vector<1x1x8xf32> to vector<1x8xf32>
    %c1_105 = arith.constant 1 : index
    %c0_106 = arith.constant 0 : index
    %c0_107 = arith.constant 0 : index
    %240 = vector.load %arg9[%c1_105, %c0_106, %c0_107] : memref<2x1x8xf32, #tpu.memory_space<vmem>>, vector<1x1x8xf32>
    %241 = vector.shape_cast %240 : vector<1x1x8xf32> to vector<1x8xf32>
    %cst_108 = arith.constant dense<0.000000e+00> : vector<112xf32>
    %242 = vector.multi_reduction <add>, %237, %cst_108 [1] : vector<112x8xf32> to vector<112xf32>
    %243 = vector.shape_cast %242 : vector<112xf32> to vector<112x1xf32>
    %cst_109 = arith.constant 8.000000e+00 : f32
    %244 = vector.broadcast %cst_109 : f32 to vector<112x1xf32>
    %245 = arith.divf %243, %244 : vector<112x1xf32>
    %246 = vector.broadcast %245 : vector<112x1xf32> to vector<112x8xf32>
    %247 = arith.subf %237, %246 : vector<112x8xf32>
    %248 = arith.mulf %247, %247 : vector<112x8xf32>
    %cst_110 = arith.constant dense<0.000000e+00> : vector<112xf32>
    %249 = vector.multi_reduction <add>, %248, %cst_110 [1] : vector<112x8xf32> to vector<112xf32>
    %250 = vector.shape_cast %249 : vector<112xf32> to vector<112x1xf32>
    %cst_111 = arith.constant 8.000000e+00 : f32
    %251 = vector.broadcast %cst_111 : f32 to vector<112x1xf32>
    %252 = arith.divf %250, %251 : vector<112x1xf32>
    %253 = vector.broadcast %245 : vector<112x1xf32> to vector<112x8xf32>
    %254 = arith.subf %237, %253 : vector<112x8xf32>
    %cst_112 = arith.constant 9.99999974E-6 : f32
    %255 = vector.broadcast %cst_112 : f32 to vector<112x1xf32>
    %256 = arith.addf %252, %255 : vector<112x1xf32>
    %257 = math.sqrt %256 : vector<112x1xf32>
    %258 = vector.broadcast %257 : vector<112x1xf32> to vector<112x8xf32>
    %259 = arith.divf %254, %258 : vector<112x8xf32>
    %260 = vector.broadcast %239 : vector<1x8xf32> to vector<112x8xf32>
    %261 = arith.mulf %259, %260 : vector<112x8xf32>
    %262 = vector.broadcast %241 : vector<1x8xf32> to vector<112x8xf32>
    %263 = arith.addf %261, %262 : vector<112x8xf32>
    %c1_113 = arith.constant 1 : index
    %c0_114 = arith.constant 0 : index
    %c0_115 = arith.constant 0 : index
    %264 = vector.load %arg10[%c1_113, %c0_114, %c0_115] : memref<2x8x32xf32, #tpu.memory_space<vmem>>, vector<1x8x32xf32>
    %265 = vector.shape_cast %264 : vector<1x8x32xf32> to vector<8x32xf32>
    %cst_116 = arith.constant dense<0.000000e+00> : vector<112x32xf32>
    %266 = tpu.matmul %263, %265, %cst_116 {dimension_numbers = #tpu.dot_dimension_numbers<[1], [0], [0], [1], [0, 0, 1, 1], [], []>} : vector<112x8xf32>, vector<8x32xf32>, vector<112x32xf32> -> vector<112x32xf32>
    %c1_117 = arith.constant 1 : index
    %c0_118 = arith.constant 0 : index
    %c0_119 = arith.constant 0 : index
    %267 = vector.load %arg11[%c1_117, %c0_118, %c0_119] : memref<2x1x32xf32, #tpu.memory_space<vmem>>, vector<1x1x32xf32>
    %268 = vector.shape_cast %267 : vector<1x1x32xf32> to vector<1x32xf32>
    %269 = vector.broadcast %268 : vector<1x32xf32> to vector<112x32xf32>
    %270 = arith.addf %266, %269 : vector<112x32xf32>
    %cst_120 = arith.constant 5.000000e-01 : f32
    %271 = vector.broadcast %cst_120 : f32 to vector<112x32xf32>
    %272 = arith.mulf %271, %270 : vector<112x32xf32>
    %cst_121 = arith.constant 0.707106769 : f32
    %273 = vector.broadcast %cst_121 : f32 to vector<112x32xf32>
    %274 = arith.mulf %270, %273 : vector<112x32xf32>
    %275 = math.absf %274 : vector<112x32xf32>
    %cst_122 = arith.constant 0.327591091 : f32
    %276 = vector.broadcast %cst_122 : f32 to vector<112x32xf32>
    %277 = arith.mulf %276, %275 : vector<112x32xf32>
    %cst_123 = arith.constant 1.000000e+00 : f32
    %278 = vector.broadcast %cst_123 : f32 to vector<112x32xf32>
    %279 = arith.addf %278, %277 : vector<112x32xf32>
    %cst_124 = arith.constant 1.000000e+00 : f32
    %280 = vector.broadcast %cst_124 : f32 to vector<112x32xf32>
    %281 = arith.divf %280, %279 : vector<112x32xf32>
    %cst_125 = arith.constant 1.06140542 : f32
    %282 = vector.broadcast %cst_125 : f32 to vector<112x32xf32>
    %283 = arith.mulf %281, %282 : vector<112x32xf32>
    %cst_126 = arith.constant -1.45315206 : f32
    %284 = vector.broadcast %cst_126 : f32 to vector<112x32xf32>
    %285 = arith.addf %284, %283 : vector<112x32xf32>
    %286 = arith.mulf %281, %285 : vector<112x32xf32>
    %cst_127 = arith.constant 1.42141378 : f32
    %287 = vector.broadcast %cst_127 : f32 to vector<112x32xf32>
    %288 = arith.addf %287, %286 : vector<112x32xf32>
    %289 = arith.mulf %281, %288 : vector<112x32xf32>
    %cst_128 = arith.constant -0.284496725 : f32
    %290 = vector.broadcast %cst_128 : f32 to vector<112x32xf32>
    %291 = arith.addf %290, %289 : vector<112x32xf32>
    %292 = arith.mulf %281, %291 : vector<112x32xf32>
    %cst_129 = arith.constant 0.254829586 : f32
    %293 = vector.broadcast %cst_129 : f32 to vector<112x32xf32>
    %294 = arith.addf %293, %292 : vector<112x32xf32>
    %295 = arith.mulf %281, %294 : vector<112x32xf32>
    %cst_130 = arith.constant 0.000000e+00 : f32
    %296 = vector.broadcast %cst_130 : f32 to vector<112x32xf32>
    %297 = arith.subf %296, %275 : vector<112x32xf32>
    %298 = arith.mulf %297, %275 : vector<112x32xf32>
    %299 = math.exp %298 : vector<112x32xf32>
    %300 = arith.mulf %295, %299 : vector<112x32xf32>
    %cst_131 = arith.constant 1.000000e+00 : f32
    %301 = vector.broadcast %cst_131 : f32 to vector<112x32xf32>
    %302 = arith.subf %301, %300 : vector<112x32xf32>
    %cst_132 = arith.constant 0.000000e+00 : f32
    %303 = vector.broadcast %cst_132 : f32 to vector<112x32xf32>
    %304 = arith.cmpf olt, %274, %303 : vector<112x32xf32>
    %cst_133 = arith.constant 0.000000e+00 : f32
    %305 = vector.broadcast %cst_133 : f32 to vector<112x32xf32>
    %306 = arith.subf %305, %302 : vector<112x32xf32>
    %307 = arith.select %304, %306, %302 : vector<112x32xi1>, vector<112x32xf32>
    %cst_134 = arith.constant 1.000000e+00 : f32
    %308 = vector.broadcast %cst_134 : f32 to vector<112x32xf32>
    %309 = arith.addf %308, %307 : vector<112x32xf32>
    %310 = arith.mulf %272, %309 : vector<112x32xf32>
    %c1_135 = arith.constant 1 : index
    %c0_136 = arith.constant 0 : index
    %c0_137 = arith.constant 0 : index
    %311 = vector.load %arg12[%c1_135, %c0_136, %c0_137] : memref<2x32x8xf32, #tpu.memory_space<vmem>>, vector<1x32x8xf32>
    %312 = vector.shape_cast %311 : vector<1x32x8xf32> to vector<32x8xf32>
    %cst_138 = arith.constant dense<0.000000e+00> : vector<112x8xf32>
    %313 = tpu.matmul %310, %312, %cst_138 {dimension_numbers = #tpu.dot_dimension_numbers<[1], [0], [0], [1], [0, 0, 1, 1], [], []>} : vector<112x32xf32>, vector<32x8xf32>, vector<112x8xf32> -> vector<112x8xf32>
    %314 = arith.addf %237, %313 : vector<112x8xf32>
    %c1_139 = arith.constant 1 : index
    %c0_140 = arith.constant 0 : index
    %c0_141 = arith.constant 0 : index
    %315 = vector.load %arg13[%c1_139, %c0_140, %c0_141] : memref<2x1x8xf32, #tpu.memory_space<vmem>>, vector<1x1x8xf32>
    %316 = vector.shape_cast %315 : vector<1x1x8xf32> to vector<1x8xf32>
    %317 = vector.broadcast %316 : vector<1x8xf32> to vector<112x8xf32>
    %318 = arith.addf %314, %317 : vector<112x8xf32>
    %c0_142 = arith.constant 0 : index
    %c0_143 = arith.constant 0 : index
    %319 = vector.load %arg17[%c0_142, %c0_143] : memref<112x8xf32, #tpu.memory_space<vmem>>, vector<112x8xf32>
    tpu.vector_store %arg17[%c0_142, %c0_143], %318 {strides = array<i32>} : memref<112x8xf32, #tpu.memory_space<vmem>>, vector<112x8xf32>,
    %c0_144 = arith.constant 0 : index
    %c0_145 = arith.constant 0 : index
    %320 = vector.load %arg17[%c0_144, %c0_145] : memref<112x8xf32, #tpu.memory_space<vmem>>, vector<1x8xf32>
    %c0_146 = arith.constant 0 : index
    %c0_147 = arith.constant 0 : index
    %321 = vector.load %arg18[%c0_146, %c0_147] : memref<2x8xf32, #tpu.memory_space<vmem>>, vector<1x8xf32>
    tpu.vector_store %arg18[%c0_146, %c0_147], %320 {strides = array<i32>} : memref<2x8xf32, #tpu.memory_space<vmem>>, vector<1x8xf32>,
    %c56 = arith.constant 56 : index
    %c0_148 = arith.constant 0 : index
    %322 = vector.load %arg17[%c56, %c0_148] : memref<112x8xf32, #tpu.memory_space<vmem>>, vector<1x8xf32>
    %c1_149 = arith.constant 1 : index
    %c0_150 = arith.constant 0 : index
    %323 = vector.load %arg18[%c1_149, %c0_150] : memref<2x8xf32, #tpu.memory_space<vmem>>, vector<1x8xf32>
    tpu.vector_store %arg18[%c1_149, %c0_150], %322 {strides = array<i32>} : memref<2x8xf32, #tpu.memory_space<vmem>>, vector<1x8xf32>,
    %c0_151 = arith.constant 0 : index
    %c0_152 = arith.constant 0 : index
    %324 = vector.load %arg18[%c0_151, %c0_152] : memref<2x8xf32, #tpu.memory_space<vmem>>, vector<2x8xf32>
    %c0_153 = arith.constant 0 : index
    %c0_154 = arith.constant 0 : index
    %325 = vector.load %arg14[%c0_153, %c0_154] : memref<8x128xf32, #tpu.memory_space<vmem>>, vector<8x128xf32>
    %cst_155 = arith.constant dense<0.000000e+00> : vector<2x128xf32>
    %326 = tpu.matmul %324, %325, %cst_155 {dimension_numbers = #tpu.dot_dimension_numbers<[1], [0], [0], [1], [0, 0, 1, 1], [], []>} : vector<2x8xf32>, vector<8x128xf32>, vector<2x128xf32> -> vector<2x128xf32>
    %c0_156 = arith.constant 0 : index
    %c0_157 = arith.constant 0 : index
    %327 = vector.load %arg15[%c0_156, %c0_157] : memref<1x128xf32, #tpu.memory_space<vmem>>, vector<1x128xf32>
    %328 = vector.broadcast %327 : vector<1x128xf32> to vector<2x128xf32>
    %329 = arith.addf %326, %328 : vector<2x128xf32>
    %cst_158 = arith.constant dense<0xFF800000> : vector<2xf32>
    %330 = vector.multi_reduction <maximumf>, %329, %cst_158 [1] : vector<2x128xf32> to vector<2xf32>
    %331 = vector.shape_cast %330 : vector<2xf32> to vector<2x1xf32>
    %332 = vector.broadcast %331 : vector<2x1xf32> to vector<2x128xf32>
    %333 = arith.subf %329, %332 : vector<2x128xf32>
    %334 = math.exp %333 : vector<2x128xf32>
    %cst_159 = arith.constant dense<0.000000e+00> : vector<2xf32>
    %335 = vector.multi_reduction <add>, %334, %cst_159 [1] : vector<2x128xf32> to vector<2xf32>
    %336 = vector.shape_cast %335 : vector<2xf32> to vector<2x1xf32>
    %337 = vector.broadcast %336 : vector<2x1xf32> to vector<2x128xf32>
    %338 = arith.divf %334, %337 : vector<2x128xf32>
    %c0_160 = arith.constant 0 : index
    %c0_161 = arith.constant 0 : index
    %339 = vector.load %arg16[%c0_160, %c0_161] : memref<2x128xf32, #tpu.memory_space<vmem>>, vector<2x128xf32>
    tpu.vector_store %arg16[%c0_160, %c0_161], %338 {strides = array<i32>} : memref<2x128xf32, #tpu.memory_space<vmem>>, vector<2x128xf32>,
    return
  }
  func.func @transform_0(%arg0: i32) -> (i32, i32) {
    %c0_i32 = arith.constant 0 : i32
    %c0_i32_0 = arith.constant 0 : i32
    return %arg0, %c0_i32 : i32, i32
  }
  func.func @transform_1(%arg0: i32) -> (i32, i32) {
    %c0_i32 = arith.constant 0 : i32
    %c0_i32_0 = arith.constant 0 : i32
    %c0_i32_1 = arith.constant 0 : i32
    return %c0_i32, %c0_i32_0 : i32, i32
  }
  func.func @transform_2(%arg0: i32) -> (i32, i32) {
    %c0_i32 = arith.constant 0 : i32
    %c0_i32_0 = arith.constant 0 : i32
    %c0_i32_1 = arith.constant 0 : i32
    return %c0_i32, %c0_i32_0 : i32, i32
  }
  func.func @transform_3(%arg0: i32) -> (i32, i32, i32) {
    %c0_i32 = arith.constant 0 : i32
    %c0_i32_0 = arith.constant 0 : i32
    %c0_i32_1 = arith.constant 0 : i32
    %c0_i32_2 = arith.constant 0 : i32
    return %c0_i32, %c0_i32_0, %c0_i32_1 : i32, i32, i32
  }
  func.func @transform_4(%arg0: i32) -> (i32, i32, i32) {
    %c0_i32 = arith.constant 0 : i32
    %c0_i32_0 = arith.constant 0 : i32
    %c0_i32_1 = arith.constant 0 : i32
    %c0_i32_2 = arith.constant 0 : i32
    return %c0_i32, %c0_i32_0, %c0_i32_1 : i32, i32, i32
  }
  func.func @transform_5(%arg0: i32) -> (i32, i32, i32) {
    %c0_i32 = arith.constant 0 : i32
    %c0_i32_0 = arith.constant 0 : i32
    %c0_i32_1 = arith.constant 0 : i32
    %c0_i32_2 = arith.constant 0 : i32
    return %c0_i32, %c0_i32_0, %c0_i32_1 : i32, i32, i32
  }
  func.func @transform_6(%arg0: i32) -> (i32, i32, i32) {
    %c0_i32 = arith.constant 0 : i32
    %c0_i32_0 = arith.constant 0 : i32
    %c0_i32_1 = arith.constant 0 : i32
    %c0_i32_2 = arith.constant 0 : i32
    return %c0_i32, %c0_i32_0, %c0_i32_1 : i32, i32, i32
  }
  func.func @transform_7(%arg0: i32) -> (i32, i32, i32) {
    %c0_i32 = arith.constant 0 : i32
    %c0_i32_0 = arith.constant 0 : i32
    %c0_i32_1 = arith.constant 0 : i32
    %c0_i32_2 = arith.constant 0 : i32
    return %c0_i32, %c0_i32_0, %c0_i32_1 : i32, i32, i32
  }
  func.func @transform_8(%arg0: i32) -> (i32, i32, i32) {
    %c0_i32 = arith.constant 0 : i32
    %c0_i32_0 = arith.constant 0 : i32
    %c0_i32_1 = arith.constant 0 : i32
    %c0_i32_2 = arith.constant 0 : i32
    return %c0_i32, %c0_i32_0, %c0_i32_1 : i32, i32, i32
  }
  func.func @transform_9(%arg0: i32) -> (i32, i32, i32) {
    %c0_i32 = arith.constant 0 : i32
    %c0_i32_0 = arith.constant 0 : i32
    %c0_i32_1 = arith.constant 0 : i32
    %c0_i32_2 = arith.constant 0 : i32
    return %c0_i32, %c0_i32_0, %c0_i32_1 : i32, i32, i32
  }
  func.func @transform_10(%arg0: i32) -> (i32, i32, i32) {
    %c0_i32 = arith.constant 0 : i32
    %c0_i32_0 = arith.constant 0 : i32
    %c0_i32_1 = arith.constant 0 : i32
    %c0_i32_2 = arith.constant 0 : i32
    return %c0_i32, %c0_i32_0, %c0_i32_1 : i32, i32, i32
  }
  func.func @transform_11(%arg0: i32) -> (i32, i32, i32) {
    %c0_i32 = arith.constant 0 : i32
    %c0_i32_0 = arith.constant 0 : i32
    %c0_i32_1 = arith.constant 0 : i32
    %c0_i32_2 = arith.constant 0 : i32
    return %c0_i32, %c0_i32_0, %c0_i32_1 : i32, i32, i32
  }
  func.func @transform_12(%arg0: i32) -> (i32, i32, i32) {
    %c0_i32 = arith.constant 0 : i32
    %c0_i32_0 = arith.constant 0 : i32
    %c0_i32_1 = arith.constant 0 : i32
    %c0_i32_2 = arith.constant 0 : i32
    return %c0_i32, %c0_i32_0, %c0_i32_1 : i32, i32, i32
  }
  func.func @transform_13(%arg0: i32) -> (i32, i32) {
    %c0_i32 = arith.constant 0 : i32
    %c0_i32_0 = arith.constant 0 : i32
    %c0_i32_1 = arith.constant 0 : i32
    return %c0_i32, %c0_i32_0 : i32, i32
  }
  func.func @transform_14(%arg0: i32) -> (i32, i32) {
    %c0_i32 = arith.constant 0 : i32
    %c0_i32_0 = arith.constant 0 : i32
    %c0_i32_1 = arith.constant 0 : i32
    return %c0_i32, %c0_i32_0 : i32, i32
  }
  func.func @transform_15(%arg0: i32) -> (i32, i32) {
    %c0_i32 = arith.constant 0 : i32
    %c0_i32_0 = arith.constant 0 : i32
    return %arg0, %c0_i32 : i32, i32
  }
}

</mosaic_0001>

<llo_original>
// kernel: vit_pallas.1
$region0: #{vit_pallas.1}
  #allocation0 [shape = 'u32[]', space=smem, size = 0x4, offset = 0x4, fixed_abs, tag = 'smem constant byte address 0x4 - core index']
  #allocation1 [shape = 'u32[144,128]{1,0:T(1,128)}', space=vmem, size = 0x12000, scoped, tag = 'internal scratch']
  #allocation2 [shape = 'f32[112,8]{1,0:T(8,128)}', space=vmem, size = 0xe000, scoped, tag = 'scratch operand']
  #allocation3 [shape = 'f32[2,8]{1,0:T(2,128)}', space=vmem, size = 0x400, scoped, tag = 'scratch operand']
  %s0 = inlined_call_operand.vmem [shape: f32[112,16], index: 0, kind: input, shape index: {}]
  %s1 = inlined_call_operand.vmem [shape: f32[16,8], index: 1, kind: input, shape index: {}]
  %s2 = inlined_call_operand.vmem [shape: f32[112,8], index: 2, kind: input, shape index: {}]
  %s3 = inlined_call_operand.vmem [shape: f32[2,1,8], index: 3, kind: input, shape index: {}]
  %s4 = inlined_call_operand.vmem [shape: f32[2,1,8], index: 4, kind: input, shape index: {}]
  %s5 = inlined_call_operand.vmem [shape: f32[2,8,24], index: 5, kind: input, shape index: {}]
  %s6 = inlined_call_operand.vmem [shape: f32[2,1,24], index: 6, kind: input, shape index: {}]
  %s7 = inlined_call_operand.vmem [shape: f32[2,1,8], index: 7, kind: input, shape index: {}]
  %s8 = inlined_call_operand.vmem [shape: f32[2,1,8], index: 8, kind: input, shape index: {}]
  %s9 = inlined_call_operand.vmem [shape: f32[2,8,32], index: 9, kind: input, shape index: {}]
  %s10 = inlined_call_operand.vmem [shape: f32[2,1,32], index: 10, kind: input, shape index: {}]
  %s11 = inlined_call_operand.vmem [shape: f32[2,32,8], index: 11, kind: input, shape index: {}]
  %s12 = inlined_call_operand.vmem [shape: f32[2,1,8], index: 12, kind: input, shape index: {}]
  %s13 = inlined_call_operand.vmem [shape: f32[8,128], index: 13, kind: input, shape index: {}]
  %s14 = inlined_call_operand.vmem [shape: f32[1,128], index: 14, kind: input, shape index: {}]
  %s15 = inlined_call_operand.hbm [shape: f32[2,128], index: 15, kind: output, shape index: {}]
  %s16 = sld [smem:[#allocation0]]
  $region70: #{vit_pallas.1} parent=0
    _
  %s18 = ssub.s32 1, %s16
  %s19 = scalar_select 0, %s18, %s16
  $region1: #{vit_pallas.1} parent=0
    #allocation4 [shape = 'u8[1024]{0}', space=vmem, size = 0x400, scoped, tag = 'output window, operand 0, single buffered']
    #allocation5 [shape = 's32[1]{0}', space=sflag, size = 0x4, scoped, tag = 'scoped memory for vit_pallas.1']
    %20 = vsyncpa [#allocation5], 0
    // Predicated region
    $region2: #{vit_pallas.1} parent=1 // pred_check
      _
    $region3: #{vit_pallas.1} parent=1 // pred_check_branch
      %22 = sbr.rel (0) target = $region5
    $region4: #{vit_pallas.1} parent=1 // pred_region
      _
    $region5: #{vit_pallas.1} parent=1 // pred_fallthru
      _
    // Predicated region
    $region6: #{vit_pallas.1} parent=1 // pred_check
      _
    $region7: #{vit_pallas.1} parent=1 // pred_check_branch
      %24 = sbr.rel (0) target = $region9
    $region8: #{vit_pallas.1} parent=1 // pred_region
      _
    $region9: #{vit_pallas.1} parent=1 // pred_fallthru
      _
    // Predicated region
    $region10: #{vit_pallas.1} parent=1 // pred_check
      _
    $region11: #{vit_pallas.1} parent=1 // pred_check_branch
      %26 = sbr.rel (0) target = $region13
    $region12: #{vit_pallas.1} parent=1 // pred_region
      _
    $region13: #{vit_pallas.1} parent=1 // pred_fallthru
      _
    // Predicated region
    $region14: #{vit_pallas.1} parent=1 // pred_check
      _
    $region15: #{vit_pallas.1} parent=1 // pred_check_branch
      %28 = sbr.rel (0) target = $region17
    $region16: #{vit_pallas.1} parent=1 // pred_region
      _
    $region17: #{vit_pallas.1} parent=1 // pred_fallthru
      _
    // Predicated region
    $region18: #{vit_pallas.1} parent=1 // pred_check
      _
    $region19: #{vit_pallas.1} parent=1 // pred_check_branch
      %30 = sbr.rel (0) target = $region21
    $region20: #{vit_pallas.1} parent=1 // pred_region
      _
    $region21: #{vit_pallas.1} parent=1 // pred_fallthru
      _
    // Predicated region
    $region22: #{vit_pallas.1} parent=1 // pred_check
      _
    $region23: #{vit_pallas.1} parent=1 // pred_check_branch
      %32 = sbr.rel (0) target = $region25
    $region24: #{vit_pallas.1} parent=1 // pred_region
      _
    $region25: #{vit_pallas.1} parent=1 // pred_fallthru
      _
    // Predicated region
    $region26: #{vit_pallas.1} parent=1 // pred_check
      _
    $region27: #{vit_pallas.1} parent=1 // pred_check_branch
      %34 = sbr.rel (0) target = $region29
    $region28: #{vit_pallas.1} parent=1 // pred_region
      _
    $region29: #{vit_pallas.1} parent=1 // pred_fallthru
      _
    // Predicated region
    $region30: #{vit_pallas.1} parent=1 // pred_check
      _
    $region31: #{vit_pallas.1} parent=1 // pred_check_branch
      %36 = sbr.rel (0) target = $region33
    $region32: #{vit_pallas.1} parent=1 // pred_region
      _
    $region33: #{vit_pallas.1} parent=1 // pred_fallthru
      _
    // Predicated region
    $region34: #{vit_pallas.1} parent=1 // pred_check
      _
    $region35: #{vit_pallas.1} parent=1 // pred_check_branch
      %38 = sbr.rel (0) target = $region37
    $region36: #{vit_pallas.1} parent=1 // pred_region
      _
    $region37: #{vit_pallas.1} parent=1 // pred_fallthru
      _
    // Predicated region
    $region38: #{vit_pallas.1} parent=1 // pred_check
      _
    $region39: #{vit_pallas.1} parent=1 // pred_check_branch
      %40 = sbr.rel (0) target = $region41
    $region40: #{vit_pallas.1} parent=1 // pred_region
      _
    $region41: #{vit_pallas.1} parent=1 // pred_fallthru
      _
    // Predicated region
    $region42: #{vit_pallas.1} parent=1 // pred_check
      _
    $region43: #{vit_pallas.1} parent=1 // pred_check_branch
      %42 = sbr.rel (0) target = $region45
    $region44: #{vit_pallas.1} parent=1 // pred_region
      _
    $region45: #{vit_pallas.1} parent=1 // pred_fallthru
      _
    // Predicated region
    $region46: #{vit_pallas.1} parent=1 // pred_check
      _
    $region47: #{vit_pallas.1} parent=1 // pred_check_branch
      %44 = sbr.rel (0) target = $region49
    $region48: #{vit_pallas.1} parent=1 // pred_region
      _
    $region49: #{vit_pallas.1} parent=1 // pred_fallthru
      _
    // Predicated region
    $region50: #{vit_pallas.1} parent=1 // pred_check
      _
    $region51: #{vit_pallas.1} parent=1 // pred_check_branch
      %46 = sbr.rel (0) target = $region53
    $region52: #{vit_pallas.1} parent=1 // pred_region
      _
    $region53: #{vit_pallas.1} parent=1 // pred_fallthru
      _
    // Predicated region
    $region54: #{vit_pallas.1} parent=1 // pred_check
      _
    $region55: #{vit_pallas.1} parent=1 // pred_check_branch
      %48 = sbr.rel (0) target = $region57
    $region56: #{vit_pallas.1} parent=1 // pred_region
      _
    $region57: #{vit_pallas.1} parent=1 // pred_fallthru
      _
    // Predicated region
    $region58: #{vit_pallas.1} parent=1 // pred_check
      _
    $region59: #{vit_pallas.1} parent=1 // pred_check_branch
      %50 = sbr.rel (0) target = $region61
    $region60: #{vit_pallas.1} parent=1 // pred_region
      _
    $region61: #{vit_pallas.1} parent=1 // pred_fallthru
      _
    %v51 = vld [vmem:[%s0] sm:$0xff]
    %v52 = vld [vmem:[%s0 + $0x8] sm:$0xff]
    %v53 = vld [vmem:[%s0 + $0x10] sm:$0xff]
    %v54 = vld [vmem:[%s0 + $0x18] sm:$0xff]
    %v55 = vld [vmem:[%s0 + $0x20] sm:$0xff]
    %v56 = vld [vmem:[%s0 + $0x28] sm:$0xff]
    %v57 = vld [vmem:[%s0 + $0x30] sm:$0xff]
    %v58 = vld [vmem:[%s0 + $0x38] sm:$0xff]
    %v59 = vld [vmem:[%s0 + $0x40] sm:$0xff]
    %v60 = vld [vmem:[%s0 + $0x48] sm:$0xff]
    %v61 = vld [vmem:[%s0 + $0x50] sm:$0xff]
    %v62 = vld [vmem:[%s0 + $0x58] sm:$0xff]
    %v63 = vld [vmem:[%s0 + $0x60] sm:$0xff]
    %v64 = vld [vmem:[%s0 + $0x68] sm:$0xff]
    %v65 = vld [vmem:[%s1] sm:$0xff]
    %v66 = vld [vmem:[%s1 + $0x8] sm:$0xff]
    %v67 = vld [vmem:[%s2] sm:$0xff]
    %v68 = vld [vmem:[%s2 + $0x8] sm:$0xff]
    %v69 = vld [vmem:[%s2 + $0x10] sm:$0xff]
    %v70 = vld [vmem:[%s2 + $0x18] sm:$0xff]
    %v71 = vld [vmem:[%s2 + $0x20] sm:$0xff]
    %v72 = vld [vmem:[%s2 + $0x28] sm:$0xff]
    %v73 = vld [vmem:[%s2 + $0x30] sm:$0xff]
    %v74 = vld [vmem:[%s2 + $0x38] sm:$0xff]
    %v75 = vld [vmem:[%s2 + $0x40] sm:$0xff]
    %v76 = vld [vmem:[%s2 + $0x48] sm:$0xff]
    %v77 = vld [vmem:[%s2 + $0x50] sm:$0xff]
    %v78 = vld [vmem:[%s2 + $0x58] sm:$0xff]
    %v79 = vld [vmem:[%s2 + $0x60] sm:$0xff]
    %v80 = vld [vmem:[%s2 + $0x68] sm:$0xff]
    %vm81 = vcmask 130048
    %v83 = vsel %vm81, %v51, 0
    %v86 = vsel %vm81, %v52, 0
    %v89 = vsel %vm81, %v53, 0
    %v92 = vsel %vm81, %v54, 0
    %v95 = vsel %vm81, %v55, 0
    %v98 = vsel %vm81, %v56, 0
    %v101 = vsel %vm81, %v57, 0
    %v104 = vsel %vm81, %v58, 0
    %v107 = vsel %vm81, %v59, 0
    %v110 = vsel %vm81, %v60, 0
    %v113 = vsel %vm81, %v61, 0
    %v116 = vsel %vm81, %v62, 0
    %v119 = vsel %vm81, %v63, 0
    %v122 = vsel %vm81, %v64, 0
    %124 = vmatprep.subr.mxu0 0.0
    %125 = vmatpush1.msra.mxu0 0.0
    %126 = vmatprep.subr.mxu0 0.0
    %127 = vmatpush1.msra.mxu0 0.0
    %128 = vmatprep.subr.mxu0 0.0
    %129 = vmatpush1.msra.mxu0 0.0
    %130 = vmatprep.subr.mxu0 0.0
    %131 = vmatpush1.msra.mxu0 0.0
    %132 = vmatprep.subr.mxu0 0.0
    %133 = vmatpush1.msra.mxu0 0.0
    %134 = vmatprep.subr.mxu0 0.0
    %135 = vmatpush1.msra.mxu0 0.0
    %136 = vmatprep.subr.mxu0 0.0
    %137 = vmatpush1.msra.mxu0 0.0
    %138 = vmatprep.subr.mxu0 0.0
    %139 = vmatpush1.msra.mxu0 0.0
    %140 = vmatprep.subr.mxu0 0.0
    %141 = vmatpush1.msra.mxu0 0.0
    %142 = vmatprep.subr.mxu0 0.0
    %143 = vmatpush1.msra.mxu0 0.0
    %144 = vmatprep.subr.mxu0 0.0
    %145 = vmatpush1.msra.mxu0 0.0
    %146 = vmatprep.subr.mxu0 0.0
    %147 = vmatpush1.msra.mxu0 0.0
    %148 = vmatprep.subr.mxu0 0.0
    %149 = vmatpush1.msra.mxu0 0.0
    %150 = vmatprep.subr.mxu0 0.0
    %151 = vmatpush1.msra.mxu0 0.0
    %152 = vmatprep.subr.mxu0 0.0
    %153 = vmatpush1.msra.mxu0 %v66
    %154 = vmatprep.subr.mxu0 0.0
    %155 = vmatpush1.msra.mxu0 %v65
    %156 = vmatprep.subr.mxu0 0.0
    %157 = vmatpush2.msra.mxu0 0.0
    %158 = vmatprep.subr.mxu0 0.0
    %159 = vmatpush2.msra.mxu0 0.0
    %160 = vmatprep.subr.mxu0 0.0
    %161 = vmatpush2.msra.mxu0 0.0
    %162 = vmatprep.subr.mxu0 0.0
    %163 = vmatpush2.msra.mxu0 0.0
    %164 = vmatprep.subr.mxu0 0.0
    %165 = vmatpush2.msra.mxu0 0.0
    %166 = vmatprep.subr.mxu0 0.0
    %167 = vmatpush2.msra.mxu0 0.0
    %168 = vmatprep.subr.mxu0 0.0
    %169 = vmatpush2.msra.mxu0 0.0
    %170 = vmatprep.subr.mxu0 0.0
    %171 = vmatpush2.msra.mxu0 0.0
    %172 = vmatprep.subr.mxu0 0.0
    %173 = vmatpush2.msra.mxu0 0.0
    %174 = vmatprep.subr.mxu0 0.0
    %175 = vmatpush2.msra.mxu0 0.0
    %176 = vmatprep.subr.mxu0 0.0
    %177 = vmatpush2.msra.mxu0 0.0
    %178 = vmatprep.subr.mxu0 0.0
    %179 = vmatpush2.msra.mxu0 0.0
    %180 = vmatprep.subr.mxu0 0.0
    %181 = vmatpush2.msra.mxu0 0.0
    %182 = vmatprep.subr.mxu0 0.0
    %183 = vmatpush2.msra.mxu0 0.0
    %184 = vmatprep.subr.mxu0 0.0
    %185 = vmatpush2.msra.mxu0 0.0
    %186 = vmatprep.subr.mxu0 0.0
    %187 = vmatpush2.msra.mxu0 0.0
    %188 = vmatprep.mubr.f32.mxu0 0.0
    %189 = vmatmul.mubr.f32.gmra.mxu0 %v83
    %v190 = vpop.f32.mrf.mxu0
    %v191 = vadd.f32 %v67, %v190
    %v192 = vpop.f32.mrf.mxu0
    %193 = vmatprep.mubr.f32.mxu0 0.0
    %194 = vmatmul.mubr.f32.gmra.mxu0 %v86
    %v195 = vpop.f32.mrf.mxu0
    %v196 = vadd.f32 %v68, %v195
    %v197 = vpop.f32.mrf.mxu0
    %198 = vmatprep.mubr.f32.mxu0 0.0
    %199 = vmatmul.mubr.f32.gmra.mxu0 %v89
    %v200 = vpop.f32.mrf.mxu0
    %v201 = vadd.f32 %v69, %v200
    %v202 = vpop.f32.mrf.mxu0
    %203 = vmatprep.mubr.f32.mxu0 0.0
    %204 = vmatmul.mubr.f32.gmra.mxu0 %v92
    %v205 = vpop.f32.mrf.mxu0
    %v206 = vadd.f32 %v70, %v205
    %v207 = vpop.f32.mrf.mxu0
    %208 = vmatprep.mubr.f32.mxu0 0.0
    %209 = vmatmul.mubr.f32.gmra.mxu0 %v95
    %v210 = vpop.f32.mrf.mxu0
    %v211 = vadd.f32 %v71, %v210
    %v212 = vpop.f32.mrf.mxu0
    %213 = vmatprep.mubr.f32.mxu0 0.0
    %214 = vmatmul.mubr.f32.gmra.mxu0 %v98
    %v215 = vpop.f32.mrf.mxu0
    %v216 = vadd.f32 %v72, %v215
    %v217 = vpop.f32.mrf.mxu0
    %218 = vmatprep.mubr.f32.mxu0 0.0
    %219 = vmatmul.mubr.f32.gmra.mxu0 %v101
    %v220 = vpop.f32.mrf.mxu0
    %v221 = vadd.f32 %v73, %v220
    %v222 = vpop.f32.mrf.mxu0
    %223 = vmatprep.mubr.f32.mxu0 0.0
    %224 = vmatmul.mubr.f32.gmra.mxu0 %v104
    %v225 = vpop.f32.mrf.mxu0
    %v226 = vadd.f32 %v74, %v225
    %v227 = vpop.f32.mrf.mxu0
    %228 = vmatprep.mubr.f32.mxu0 0.0
    %229 = vmatmul.mubr.f32.gmra.mxu0 %v107
    %v230 = vpop.f32.mrf.mxu0
    %v231 = vadd.f32 %v75, %v230
    %v232 = vpop.f32.mrf.mxu0
    %233 = vmatprep.mubr.f32.mxu0 0.0
    %234 = vmatmul.mubr.f32.gmra.mxu0 %v110
    %v235 = vpop.f32.mrf.mxu0
    %v236 = vadd.f32 %v76, %v235
    %v237 = vpop.f32.mrf.mxu0
    %238 = vmatprep.mubr.f32.mxu0 0.0
    %239 = vmatmul.mubr.f32.gmra.mxu0 %v113
    %v240 = vpop.f32.mrf.mxu0
    %v241 = vadd.f32 %v77, %v240
    %v242 = vpop.f32.mrf.mxu0
    %243 = vmatprep.mubr.f32.mxu0 0.0
    %244 = vmatmul.mubr.f32.gmra.mxu0 %v116
    %v245 = vpop.f32.mrf.mxu0
    %v246 = vadd.f32 %v78, %v245
    %v247 = vpop.f32.mrf.mxu0
    %248 = vmatprep.mubr.f32.mxu0 0.0
    %249 = vmatmul.mubr.f32.gmra.mxu0 %v119
    %v250 = vpop.f32.mrf.mxu0
    %v251 = vadd.f32 %v79, %v250
    %v252 = vpop.f32.mrf.mxu0
    %253 = vmatprep.mubr.f32.mxu0 0.0
    %254 = vmatmul.mubr.f32.gmra.mxu0 %v122
    %v255 = vpop.f32.mrf.mxu0
    %v256 = vadd.f32 %v80, %v255
    %v257 = vpop.f32.mrf.mxu0
    %258 = vdwg.mxu0
    %v259 = vlaneseq
    %v260 = vand.u32 %v259, 127
    %vm261 = vcmp.ge.s32.totalorder %v260, 50
    %v262 = vsel %vm261, -1e+30, 0.0
    %v263 = vld [vmem:[%s3] sm:$0x1]
    %v264 = vld [vmem:[%s4] sm:$0x1]
    %vm265 = vcmask 64512
    %v266 = vsel %vm265, %v191, 0.0
    %267 = vadd.xlane.f32.xlu0 %v266
    %v268 = vpop.xlane.xlu0 %267
    %v269 = vsel %vm265, %v196, 0.0
    %270 = vadd.xlane.f32.xlu0 %v269
    %v271 = vpop.xlane.xlu0 %270
    %v272 = vsel %vm265, %v201, 0.0
    %273 = vadd.xlane.f32.xlu0 %v272
    %v274 = vpop.xlane.xlu0 %273
    %v275 = vsel %vm265, %v206, 0.0
    %276 = vadd.xlane.f32.xlu0 %v275
    %v277 = vpop.xlane.xlu0 %276
    %v278 = vsel %vm265, %v211, 0.0
    %279 = vadd.xlane.f32.xlu0 %v278
    %v280 = vpop.xlane.xlu0 %279
    %v281 = vsel %vm265, %v216, 0.0
    %282 = vadd.xlane.f32.xlu0 %v281
    %v283 = vpop.xlane.xlu0 %282
    %v284 = vsel %vm265, %v221, 0.0
    %285 = vadd.xlane.f32.xlu0 %v284
    %v286 = vpop.xlane.xlu0 %285
    %v287 = vsel %vm265, %v226, 0.0
    %288 = vadd.xlane.f32.xlu0 %v287
    %v289 = vpop.xlane.xlu0 %288
    %v290 = vsel %vm265, %v231, 0.0
    %291 = vadd.xlane.f32.xlu0 %v290
    %v292 = vpop.xlane.xlu0 %291
    %v293 = vsel %vm265, %v236, 0.0
    %294 = vadd.xlane.f32.xlu0 %v293
    %v295 = vpop.xlane.xlu0 %294
    %v296 = vsel %vm265, %v241, 0.0
    %297 = vadd.xlane.f32.xlu0 %v296
    %v298 = vpop.xlane.xlu0 %297
    %v299 = vsel %vm265, %v246, 0.0
    %300 = vadd.xlane.f32.xlu0 %v299
    %v301 = vpop.xlane.xlu0 %300
    %v302 = vsel %vm265, %v251, 0.0
    %303 = vadd.xlane.f32.xlu0 %v302
    %v304 = vpop.xlane.xlu0 %303
    %v305 = vsel %vm265, %v256, 0.0
    %306 = vadd.xlane.f32.xlu0 %v305
    %v307 = vpop.xlane.xlu0 %306
    %v308 = vrcp.pop 8.0
    %v309 = vmul.f32 %v268, %v308
    %v310 = vmul.f32 %v271, %v308
    %v311 = vmul.f32 %v274, %v308
    %v312 = vmul.f32 %v277, %v308
    %v313 = vmul.f32 %v280, %v308
    %v314 = vmul.f32 %v283, %v308
    %v315 = vmul.f32 %v286, %v308
    %v316 = vmul.f32 %v289, %v308
    %v317 = vmul.f32 %v292, %v308
    %v318 = vmul.f32 %v295, %v308
    %v319 = vmul.f32 %v298, %v308
    %v320 = vmul.f32 %v301, %v308
    %v321 = vmul.f32 %v304, %v308
    %v322 = vmul.f32 %v307, %v308
    %v323 = vsub.f32 %v191, %v309
    %v324 = vsub.f32 %v196, %v310
    %v325 = vsub.f32 %v201, %v311
    %v326 = vsub.f32 %v206, %v312
    %v327 = vsub.f32 %v211, %v313
    %v328 = vsub.f32 %v216, %v314
    %v329 = vsub.f32 %v221, %v315
    %v330 = vsub.f32 %v226, %v316
    %v331 = vsub.f32 %v231, %v317
    %v332 = vsub.f32 %v236, %v318
    %v333 = vsub.f32 %v241, %v319
    %v334 = vsub.f32 %v246, %v320
    %v335 = vsub.f32 %v251, %v321
    %v336 = vsub.f32 %v256, %v322
    %v337 = vmul.f32 %v323, %v323
    %v338 = vmul.f32 %v324, %v324
    %v339 = vmul.f32 %v325, %v325
    %v340 = vmul.f32 %v326, %v326
    %v341 = vmul.f32 %v327, %v327
    %v342 = vmul.f32 %v328, %v328
    %v343 = vmul.f32 %v329, %v329
    %v344 = vmul.f32 %v330, %v330
    %v345 = vmul.f32 %v331, %v331
    %v346 = vmul.f32 %v332, %v332
    %v347 = vmul.f32 %v333, %v333
    %v348 = vmul.f32 %v334, %v334
    %v349 = vmul.f32 %v335, %v335
    %v350 = vmul.f32 %v336, %v336
    %v351 = vsel %vm265, %v337, 0.0
    %352 = vadd.xlane.f32.xlu0 %v351
    %v353 = vpop.xlane.xlu0 %352
    %v354 = vsel %vm265, %v338, 0.0
    %355 = vadd.xlane.f32.xlu0 %v354
    %v356 = vpop.xlane.xlu0 %355
    %v357 = vsel %vm265, %v339, 0.0
    %358 = vadd.xlane.f32.xlu0 %v357
    %v359 = vpop.xlane.xlu0 %358
    %v360 = vsel %vm265, %v340, 0.0
    %361 = vadd.xlane.f32.xlu0 %v360
    %v362 = vpop.xlane.xlu0 %361
    %v363 = vsel %vm265, %v341, 0.0
    %364 = vadd.xlane.f32.xlu0 %v363
    %v365 = vpop.xlane.xlu0 %364
    %v366 = vsel %vm265, %v342, 0.0
    %367 = vadd.xlane.f32.xlu0 %v366
    %v368 = vpop.xlane.xlu0 %367
    %v369 = vsel %vm265, %v343, 0.0
    %370 = vadd.xlane.f32.xlu0 %v369
    %v371 = vpop.xlane.xlu0 %370
    %v372 = vsel %vm265, %v344, 0.0
    %373 = vadd.xlane.f32.xlu0 %v372
    %v374 = vpop.xlane.xlu0 %373
    %v375 = vsel %vm265, %v345, 0.0
    %376 = vadd.xlane.f32.xlu0 %v375
    %v377 = vpop.xlane.xlu0 %376
    %v378 = vsel %vm265, %v346, 0.0
    %379 = vadd.xlane.f32.xlu0 %v378
    %v380 = vpop.xlane.xlu0 %379
    %v381 = vsel %vm265, %v347, 0.0
    %382 = vadd.xlane.f32.xlu0 %v381
    %v383 = vpop.xlane.xlu0 %382
    %v384 = vsel %vm265, %v348, 0.0
    %385 = vadd.xlane.f32.xlu0 %v384
    %v386 = vpop.xlane.xlu0 %385
    %v387 = vsel %vm265, %v349, 0.0
    %388 = vadd.xlane.f32.xlu0 %v387
    %v389 = vpop.xlane.xlu0 %388
    %v390 = vsel %vm265, %v350, 0.0
    %391 = vadd.xlane.f32.xlu0 %v390
    %v392 = vpop.xlane.xlu0 %391
    %v393 = vmul.f32 %v353, %v308
    %v394 = vmul.f32 %v356, %v308
    %v395 = vmul.f32 %v359, %v308
    %v396 = vmul.f32 %v362, %v308
    %v397 = vmul.f32 %v365, %v308
    %v398 = vmul.f32 %v368, %v308
    %v399 = vmul.f32 %v371, %v308
    %v400 = vmul.f32 %v374, %v308
    %v401 = vmul.f32 %v377, %v308
    %v402 = vmul.f32 %v380, %v308
    %v403 = vmul.f32 %v383, %v308
    %v404 = vmul.f32 %v386, %v308
    %v405 = vmul.f32 %v389, %v308
    %v406 = vmul.f32 %v392, %v308
    %v407 = vadd.f32 %v393, 1e-05
    %v408 = vadd.f32 %v394, 1e-05
    %v409 = vadd.f32 %v395, 1e-05
    %v410 = vadd.f32 %v396, 1e-05
    %v411 = vadd.f32 %v397, 1e-05
    %v412 = vadd.f32 %v398, 1e-05
    %v413 = vadd.f32 %v399, 1e-05
    %v414 = vadd.f32 %v400, 1e-05
    %v415 = vadd.f32 %v401, 1e-05
    %v416 = vadd.f32 %v402, 1e-05
    %v417 = vadd.f32 %v403, 1e-05
    %v418 = vadd.f32 %v404, 1e-05
    %v419 = vadd.f32 %v405, 1e-05
    %v420 = vadd.f32 %v406, 1e-05
    %v421 = vrsqrt.pop %v407
    %v422 = vmul.f32 %v407, %v421
    %vm423 = vcmp.eq.f32.partialorder %v407, inf
    %v424 = vsel %vm423, %v407, %v422
    %vm425 = vcmp.eq.f32.partialorder %v407, 0.0
    %v426 = vand.u32 %v407, 2147483648
    %v427 = vsel %vm425, %v426, %v424
    %v428 = vrsqrt.pop %v408
    %v429 = vmul.f32 %v408, %v428
    %vm430 = vcmp.eq.f32.partialorder %v408, inf
    %v431 = vsel %vm430, %v408, %v429
    %vm432 = vcmp.eq.f32.partialorder %v408, 0.0
    %v433 = vand.u32 %v408, 2147483648
    %v434 = vsel %vm432, %v433, %v431
    %v435 = vrsqrt.pop %v409
    %v436 = vmul.f32 %v409, %v435
    %vm437 = vcmp.eq.f32.partialorder %v409, inf
    %v438 = vsel %vm437, %v409, %v436
    %vm439 = vcmp.eq.f32.partialorder %v409, 0.0
    %v440 = vand.u32 %v409, 2147483648
    %v441 = vsel %vm439, %v440, %v438
    %v442 = vrsqrt.pop %v410
    %v443 = vmul.f32 %v410, %v442
    %vm444 = vcmp.eq.f32.partialorder %v410, inf
    %v445 = vsel %vm444, %v410, %v443
    %vm446 = vcmp.eq.f32.partialorder %v410, 0.0
    %v447 = vand.u32 %v410, 2147483648
    %v448 = vsel %vm446, %v447, %v445
    %v449 = vrsqrt.pop %v411
    %v450 = vmul.f32 %v411, %v449
    %vm451 = vcmp.eq.f32.partialorder %v411, inf
    %v452 = vsel %vm451, %v411, %v450
    %vm453 = vcmp.eq.f32.partialorder %v411, 0.0
    %v454 = vand.u32 %v411, 2147483648
    %v455 = vsel %vm453, %v454, %v452
    %v456 = vrsqrt.pop %v412
    %v457 = vmul.f32 %v412, %v456
    %vm458 = vcmp.eq.f32.partialorder %v412, inf
    %v459 = vsel %vm458, %v412, %v457
    %vm460 = vcmp.eq.f32.partialorder %v412, 0.0
    %v461 = vand.u32 %v412, 2147483648
    %v462 = vsel %vm460, %v461, %v459
    %v463 = vrsqrt.pop %v413
    %v464 = vmul.f32 %v413, %v463
    %vm465 = vcmp.eq.f32.partialorder %v413, inf
    %v466 = vsel %vm465, %v413, %v464
    %vm467 = vcmp.eq.f32.partialorder %v413, 0.0
    %v468 = vand.u32 %v413, 2147483648
    %v469 = vsel %vm467, %v468, %v466
    %v470 = vrsqrt.pop %v414
    %v471 = vmul.f32 %v414, %v470
    %vm472 = vcmp.eq.f32.partialorder %v414, inf
    %v473 = vsel %vm472, %v414, %v471
    %vm474 = vcmp.eq.f32.partialorder %v414, 0.0
    %v475 = vand.u32 %v414, 2147483648
    %v476 = vsel %vm474, %v475, %v473
    %v477 = vrsqrt.pop %v415
    %v478 = vmul.f32 %v415, %v477
    %vm479 = vcmp.eq.f32.partialorder %v415, inf
    %v480 = vsel %vm479, %v415, %v478
    %vm481 = vcmp.eq.f32.partialorder %v415, 0.0
    %v482 = vand.u32 %v415, 2147483648
    %v483 = vsel %vm481, %v482, %v480
    %v484 = vrsqrt.pop %v416
    %v485 = vmul.f32 %v416, %v484
    %vm486 = vcmp.eq.f32.partialorder %v416, inf
    %v487 = vsel %vm486, %v416, %v485
    %vm488 = vcmp.eq.f32.partialorder %v416, 0.0
    %v489 = vand.u32 %v416, 2147483648
    %v490 = vsel %vm488, %v489, %v487
    %v491 = vrsqrt.pop %v417
    %v492 = vmul.f32 %v417, %v491
    %vm493 = vcmp.eq.f32.partialorder %v417, inf
    %v494 = vsel %vm493, %v417, %v492
    %vm495 = vcmp.eq.f32.partialorder %v417, 0.0
    %v496 = vand.u32 %v417, 2147483648
    %v497 = vsel %vm495, %v496, %v494
    %v498 = vrsqrt.pop %v418
    %v499 = vmul.f32 %v418, %v498
    %vm500 = vcmp.eq.f32.partialorder %v418, inf
    %v501 = vsel %vm500, %v418, %v499
    %vm502 = vcmp.eq.f32.partialorder %v418, 0.0
    %v503 = vand.u32 %v418, 2147483648
    %v504 = vsel %vm502, %v503, %v501
    %v505 = vrsqrt.pop %v419
    %v506 = vmul.f32 %v419, %v505
    %vm507 = vcmp.eq.f32.partialorder %v419, inf
    %v508 = vsel %vm507, %v419, %v506
    %vm509 = vcmp.eq.f32.partialorder %v419, 0.0
    %v510 = vand.u32 %v419, 2147483648
    %v511 = vsel %vm509, %v510, %v508
    %v512 = vrsqrt.pop %v420
    %v513 = vmul.f32 %v420, %v512
    %vm514 = vcmp.eq.f32.partialorder %v420, inf
    %v515 = vsel %vm514, %v420, %v513
    %vm516 = vcmp.eq.f32.partialorder %v420, 0.0
    %v517 = vand.u32 %v420, 2147483648
    %v518 = vsel %vm516, %v517, %v515
    %v519 = vrcp.pop %v427
    %v520 = vmul.f32 %v323, %v519
    %v521 = vrcp.pop %v434
    %v522 = vmul.f32 %v324, %v521
    %v523 = vrcp.pop %v441
    %v524 = vmul.f32 %v325, %v523
    %v525 = vrcp.pop %v448
    %v526 = vmul.f32 %v326, %v525
    %v527 = vrcp.pop %v455
    %v528 = vmul.f32 %v327, %v527
    %v529 = vrcp.pop %v462
    %v530 = vmul.f32 %v328, %v529
    %v531 = vrcp.pop %v469
    %v532 = vmul.f32 %v329, %v531
    %v533 = vrcp.pop %v476
    %v534 = vmul.f32 %v330, %v533
    %v535 = vrcp.pop %v483
    %v536 = vmul.f32 %v331, %v535
    %v537 = vrcp.pop %v490
    %v538 = vmul.f32 %v332, %v537
    %v539 = vrcp.pop %v497
    %v540 = vmul.f32 %v333, %v539
    %v541 = vrcp.pop %v504
    %v542 = vmul.f32 %v334, %v541
    %v543 = vrcp.pop %v511
    %v544 = vmul.f32 %v335, %v543
    %v545 = vrcp.pop %v518
    %v546 = vmul.f32 %v336, %v545
    %v548 = vlaneseq
    %v549 = vshrl.u32 %v548, 7
    %v550 = vsub.s32 0, %v549
    %v551 = vrot.slane %v263, %v550
    %v553 = vmul.f32 %v520, %v551
    %v554 = vmul.f32 %v522, %v551
    %v555 = vmul.f32 %v524, %v551
    %v556 = vmul.f32 %v526, %v551
    %v557 = vmul.f32 %v528, %v551
    %v558 = vmul.f32 %v530, %v551
    %v559 = vmul.f32 %v532, %v551
    %v560 = vmul.f32 %v534, %v551
    %v561 = vmul.f32 %v536, %v551
    %v562 = vmul.f32 %v538, %v551
    %v563 = vmul.f32 %v540, %v551
    %v564 = vmul.f32 %v542, %v551
    %v565 = vmul.f32 %v544, %v551
    %v566 = vmul.f32 %v546, %v551
    %v568 = vlaneseq
    %v569 = vshrl.u32 %v568, 7
    %v570 = vsub.s32 0, %v569
    %v571 = vrot.slane %v264, %v570
    %v573 = vadd.f32 %v553, %v571
    %v574 = vadd.f32 %v554, %v571
    %v575 = vadd.f32 %v555, %v571
    %v576 = vadd.f32 %v556, %v571
    %v577 = vadd.f32 %v557, %v571
    %v578 = vadd.f32 %v558, %v571
    %v579 = vadd.f32 %v559, %v571
    %v580 = vadd.f32 %v560, %v571
    %v581 = vadd.f32 %v561, %v571
    %v582 = vadd.f32 %v562, %v571
    %v583 = vadd.f32 %v563, %v571
    %v584 = vadd.f32 %v564, %v571
    %v585 = vadd.f32 %v565, %v571
    %v586 = vadd.f32 %v566, %v571
    %v587 = vld [vmem:[%s5] sm:$0xff]
    %v588 = vld [vmem:[%s6] sm:$0x1]
    %v590 = vlaneseq
    %v591 = vshrl.u32 %v590, 7
    %v592 = vsub.s32 0, %v591
    %v593 = vrot.slane %v588, %v592
    %v596 = vsel %vm265, %v573, 0
    %v599 = vsel %vm265, %v574, 0
    %v602 = vsel %vm265, %v575, 0
    %v605 = vsel %vm265, %v576, 0
    %v608 = vsel %vm265, %v577, 0
    %v611 = vsel %vm265, %v578, 0
    %v614 = vsel %vm265, %v579, 0
    %v617 = vsel %vm265, %v580, 0
    %v620 = vsel %vm265, %v581, 0
    %v623 = vsel %vm265, %v582, 0
    %v626 = vsel %vm265, %v583, 0
    %v629 = vsel %vm265, %v584, 0
    %v632 = vsel %vm265, %v585, 0
    %v635 = vsel %vm265, %v586, 0
    %637 = vmatprep.subr.mxu0 0.0
    %638 = vmatpush1.msra.mxu0 0.0
    %639 = vmatprep.subr.mxu0 0.0
    %640 = vmatpush1.msra.mxu0 0.0
    %641 = vmatprep.subr.mxu0 0.0
    %642 = vmatpush1.msra.mxu0 0.0
    %643 = vmatprep.subr.mxu0 0.0
    %644 = vmatpush1.msra.mxu0 0.0
    %645 = vmatprep.subr.mxu0 0.0
    %646 = vmatpush1.msra.mxu0 0.0
    %647 = vmatprep.subr.mxu0 0.0
    %648 = vmatpush1.msra.mxu0 0.0
    %649 = vmatprep.subr.mxu0 0.0
    %650 = vmatpush1.msra.mxu0 0.0
    %651 = vmatprep.subr.mxu0 0.0
    %652 = vmatpush1.msra.mxu0 0.0
    %653 = vmatprep.subr.mxu0 0.0
    %654 = vmatpush1.msra.mxu0 0.0
    %655 = vmatprep.subr.mxu0 0.0
    %656 = vmatpush1.msra.mxu0 0.0
    %657 = vmatprep.subr.mxu0 0.0
    %658 = vmatpush1.msra.mxu0 0.0
    %659 = vmatprep.subr.mxu0 0.0
    %660 = vmatpush1.msra.mxu0 0.0
    %661 = vmatprep.subr.mxu0 0.0
    %662 = vmatpush1.msra.mxu0 0.0
    %663 = vmatprep.subr.mxu0 0.0
    %664 = vmatpush1.msra.mxu0 0.0
    %665 = vmatprep.subr.mxu0 0.0
    %666 = vmatpush1.msra.mxu0 0.0
    %667 = vmatprep.subr.mxu0 0.0
    %668 = vmatpush1.msra.mxu0 %v587
    %669 = vmatprep.subr.mxu0 0.0
    %670 = vmatpush2.msra.mxu0 0.0
    %671 = vmatprep.subr.mxu0 0.0
    %672 = vmatpush2.msra.mxu0 0.0
    %673 = vmatprep.subr.mxu0 0.0
    %674 = vmatpush2.msra.mxu0 0.0
    %675 = vmatprep.subr.mxu0 0.0
    %676 = vmatpush2.msra.mxu0 0.0
    %677 = vmatprep.subr.mxu0 0.0
    %678 = vmatpush2.msra.mxu0 0.0
    %679 = vmatprep.subr.mxu0 0.0
    %680 = vmatpush2.msra.mxu0 0.0
    %681 = vmatprep.subr.mxu0 0.0
    %682 = vmatpush2.msra.mxu0 0.0
    %683 = vmatprep.subr.mxu0 0.0
    %684 = vmatpush2.msra.mxu0 0.0
    %685 = vmatprep.subr.mxu0 0.0
    %686 = vmatpush2.msra.mxu0 0.0
    %687 = vmatprep.subr.mxu0 0.0
    %688 = vmatpush2.msra.mxu0 0.0
    %689 = vmatprep.subr.mxu0 0.0
    %690 = vmatpush2.msra.mxu0 0.0
    %691 = vmatprep.subr.mxu0 0.0
    %692 = vmatpush2.msra.mxu0 0.0
    %693 = vmatprep.subr.mxu0 0.0
    %694 = vmatpush2.msra.mxu0 0.0
    %695 = vmatprep.subr.mxu0 0.0
    %696 = vmatpush2.msra.mxu0 0.0
    %697 = vmatprep.subr.mxu0 0.0
    %698 = vmatpush2.msra.mxu0 0.0
    %699 = vmatprep.subr.mxu0 0.0
    %700 = vmatpush2.msra.mxu0 0.0
    %701 = vmatprep.mubr.f32.mxu0 0.0
    %702 = vmatmul.mubr.f32.gmra.mxu0 %v596
    %v703 = vpop.f32.mrf.mxu0
    %v704 = vadd.f32 %v593, %v703
    %v705 = vpop.f32.mrf.mxu0
    %706 = vmatprep.mubr.f32.mxu0 0.0
    %707 = vmatmul.mubr.f32.gmra.mxu0 %v599
    %v708 = vpop.f32.mrf.mxu0
    %v709 = vadd.f32 %v593, %v708
    %v710 = vpop.f32.mrf.mxu0
    %711 = vmatprep.mubr.f32.mxu0 0.0
    %712 = vmatmul.mubr.f32.gmra.mxu0 %v602
    %v713 = vpop.f32.mrf.mxu0
    %v714 = vadd.f32 %v593, %v713
    %v715 = vpop.f32.mrf.mxu0
    %716 = vmatprep.mubr.f32.mxu0 0.0
    %717 = vmatmul.mubr.f32.gmra.mxu0 %v605
    %v718 = vpop.f32.mrf.mxu0
    %v719 = vadd.f32 %v593, %v718
    %v720 = vpop.f32.mrf.mxu0
    %721 = vmatprep.mubr.f32.mxu0 0.0
    %722 = vmatmul.mubr.f32.gmra.mxu0 %v608
    %v723 = vpop.f32.mrf.mxu0
    %v724 = vadd.f32 %v593, %v723
    %v725 = vpop.f32.mrf.mxu0
    %726 = vmatprep.mubr.f32.mxu0 0.0
    %727 = vmatmul.mubr.f32.gmra.mxu0 %v611
    %v728 = vpop.f32.mrf.mxu0
    %v729 = vadd.f32 %v593, %v728
    %v730 = vpop.f32.mrf.mxu0
    %731 = vmatprep.mubr.f32.mxu0 0.0
    %732 = vmatmul.mubr.f32.gmra.mxu0 %v614
    %v733 = vpop.f32.mrf.mxu0
    %v734 = vadd.f32 %v593, %v733
    %v735 = vpop.f32.mrf.mxu0
    %736 = vmatprep.mubr.f32.mxu0 0.0
    %737 = vmatmul.mubr.f32.gmra.mxu0 %v617
    %v738 = vpop.f32.mrf.mxu0
    %v739 = vadd.f32 %v593, %v738
    %v740 = vpop.f32.mrf.mxu0
    %741 = vmatprep.mubr.f32.mxu0 0.0
    %742 = vmatmul.mubr.f32.gmra.mxu0 %v620
    %v743 = vpop.f32.mrf.mxu0
    %v744 = vadd.f32 %v593, %v743
    %v745 = vpop.f32.mrf.mxu0
    %746 = vmatprep.mubr.f32.mxu0 0.0
    %747 = vmatmul.mubr.f32.gmra.mxu0 %v623
    %v748 = vpop.f32.mrf.mxu0
    %v749 = vadd.f32 %v593, %v748
    %v750 = vpop.f32.mrf.mxu0
    %751 = vmatprep.mubr.f32.mxu0 0.0
    %752 = vmatmul.mubr.f32.gmra.mxu0 %v626
    %v753 = vpop.f32.mrf.mxu0
    %v754 = vadd.f32 %v593, %v753
    %v755 = vpop.f32.mrf.mxu0
    %756 = vmatprep.mubr.f32.mxu0 0.0
    %757 = vmatmul.mubr.f32.gmra.mxu0 %v629
    %v758 = vpop.f32.mrf.mxu0
    %v759 = vadd.f32 %v593, %v758
    %v760 = vpop.f32.mrf.mxu0
    %761 = vmatprep.mubr.f32.mxu0 0.0
    %762 = vmatmul.mubr.f32.gmra.mxu0 %v632
    %v763 = vpop.f32.mrf.mxu0
    %v764 = vadd.f32 %v593, %v763
    %v765 = vpop.f32.mrf.mxu0
    %766 = vmatprep.mubr.f32.mxu0 0.0
    %767 = vmatmul.mubr.f32.gmra.mxu0 %v635
    %v768 = vpop.f32.mrf.mxu0
    %v769 = vadd.f32 %v593, %v768
    %v770 = vpop.f32.mrf.mxu0
    %771 = vdwg.mxu0
    %779 = vrot.lane.b32.xlu0 %v704, 120
    %v780 = vpop.permute.xlu0 %779
    %781 = vrot.lane.b32.xlu0 %v709, 120
    %v782 = vpop.permute.xlu0 %781
    %783 = vrot.lane.b32.xlu0 %v714, 120
    %v784 = vpop.permute.xlu0 %783
    %785 = vrot.lane.b32.xlu0 %v719, 120
    %v786 = vpop.permute.xlu0 %785
    %787 = vrot.lane.b32.xlu0 %v724, 120
    %v788 = vpop.permute.xlu0 %787
    %789 = vrot.lane.b32.xlu0 %v729, 120
    %v790 = vpop.permute.xlu0 %789
    %791 = vrot.lane.b32.xlu0 %v734, 120
    %v792 = vpop.permute.xlu0 %791
    %vm793 = vcmask 31744
    %v794 = vsel %vm793, %v704, 0
    %v796 = vsel %vm793, %v709, 0
    %v798 = vsel %vm793, %v714, 0
    %v800 = vsel %vm793, %v719, 0
    %v802 = vsel %vm793, %v724, 0
    %v804 = vsel %vm793, %v729, 0
    %v806 = vsel %vm793, %v734, 0
    %v808 = vsel %vm793, %v780, 0
    %v810 = vsel %vm793, %v782, 0
    %v812 = vsel %vm793, %v784, 0
    %v814 = vsel %vm793, %v786, 0
    %v816 = vsel %vm793, %v788, 0
    %v818 = vsel %vm793, %v790, 0
    %v820 = vsel %vm793, %v792, 0
    %822 = vmatprep.subr.mxu0 0.0
    %823 = vmatpush1.xpose.msra.mxu0 0.0
    %824 = vmatprep.subr.mxu0 0.0
    %825 = vmatpush1.xpose.msra.mxu0 0.0
    %826 = vmatprep.subr.mxu0 0.0
    %827 = vmatpush1.xpose.msra.mxu0 0.0
    %828 = vmatprep.subr.mxu0 0.0
    %829 = vmatpush1.xpose.msra.mxu0 0.0
    %830 = vmatprep.subr.mxu0 0.0
    %831 = vmatpush1.xpose.msra.mxu0 0.0
    %832 = vmatprep.subr.mxu0 0.0
    %833 = vmatpush1.xpose.msra.mxu0 0.0
    %834 = vmatprep.subr.mxu0 0.0
    %835 = vmatpush1.xpose.msra.mxu0 0.0
    %836 = vmatprep.subr.mxu0 0.0
    %837 = vmatpush1.xpose.msra.mxu0 0.0
    %838 = vmatprep.subr.mxu0 0.0
    %839 = vmatpush1.xpose.msra.mxu0 0.0
    %840 = vmatprep.subr.mxu0 0.0
    %841 = vmatpush1.xpose.msra.mxu0 %v820
    %842 = vmatprep.subr.mxu0 0.0
    %843 = vmatpush1.xpose.msra.mxu0 %v818
    %844 = vmatprep.subr.mxu0 0.0
    %845 = vmatpush1.xpose.msra.mxu0 %v816
    %846 = vmatprep.subr.mxu0 0.0
    %847 = vmatpush1.xpose.msra.mxu0 %v814
    %848 = vmatprep.subr.mxu0 0.0
    %849 = vmatpush1.xpose.msra.mxu0 %v812
    %850 = vmatprep.subr.mxu0 0.0
    %851 = vmatpush1.xpose.msra.mxu0 %v810
    %852 = vmatprep.subr.mxu0 0.0
    %853 = vmatpush1.xpose.msra.mxu0 %v808
    %854 = vmatprep.subr.mxu0 0.0
    %855 = vmatpush2.xpose.msra.mxu0 0.0
    %856 = vmatprep.subr.mxu0 0.0
    %857 = vmatpush2.xpose.msra.mxu0 0.0
    %858 = vmatprep.subr.mxu0 0.0
    %859 = vmatpush2.xpose.msra.mxu0 0.0
    %860 = vmatprep.subr.mxu0 0.0
    %861 = vmatpush2.xpose.msra.mxu0 0.0
    %862 = vmatprep.subr.mxu0 0.0
    %863 = vmatpush2.xpose.msra.mxu0 0.0
    %864 = vmatprep.subr.mxu0 0.0
    %865 = vmatpush2.xpose.msra.mxu0 0.0
    %866 = vmatprep.subr.mxu0 0.0
    %867 = vmatpush2.xpose.msra.mxu0 0.0
    %868 = vmatprep.subr.mxu0 0.0
    %869 = vmatpush2.xpose.msra.mxu0 0.0
    %870 = vmatprep.subr.mxu0 0.0
    %871 = vmatpush2.xpose.msra.mxu0 0.0
    %872 = vmatprep.subr.mxu0 0.0
    %873 = vmatpush2.xpose.msra.mxu0 0.0
    %874 = vmatprep.subr.mxu0 0.0
    %875 = vmatpush2.xpose.msra.mxu0 0.0
    %876 = vmatprep.subr.mxu0 0.0
    %877 = vmatpush2.xpose.msra.mxu0 0.0
    %878 = vmatprep.subr.mxu0 0.0
    %879 = vmatpush2.xpose.msra.mxu0 0.0
    %880 = vmatprep.subr.mxu0 0.0
    %881 = vmatpush2.xpose.msra.mxu0 0.0
    %882 = vmatprep.subr.mxu0 0.0
    %883 = vmatpush2.xpose.msra.mxu0 0.0
    %884 = vmatprep.subr.mxu0 0.0
    %885 = vmatpush2.xpose.msra.mxu0 0.0
    %886 = vmatprep.mubr.f32.mxu0 0.0
    %887 = vmatmul.mubr.f32.gmra.mxu0 %v794
    %v888 = vpop.f32.mrf.mxu0
    %v889 = vadd.f32 0.0, %v888
    %v890 = vpop.f32.mrf.mxu0
    %891 = vmatprep.mubr.f32.mxu0 0.0
    %892 = vmatmul.mubr.f32.gmra.mxu0 %v796
    %v893 = vpop.f32.mrf.mxu0
    %v894 = vadd.f32 0.0, %v893
    %v895 = vpop.f32.mrf.mxu0
    %896 = vmatprep.mubr.f32.mxu0 0.0
    %897 = vmatmul.mubr.f32.gmra.mxu0 %v798
    %v898 = vpop.f32.mrf.mxu0
    %v899 = vadd.f32 0.0, %v898
    %v900 = vpop.f32.mrf.mxu0
    %901 = vmatprep.mubr.f32.mxu0 0.0
    %902 = vmatmul.mubr.f32.gmra.mxu0 %v800
    %v903 = vpop.f32.mrf.mxu0
    %v904 = vadd.f32 0.0, %v903
    %v905 = vpop.f32.mrf.mxu0
    %906 = vmatprep.mubr.f32.mxu0 0.0
    %907 = vmatmul.mubr.f32.gmra.mxu0 %v802
    %v908 = vpop.f32.mrf.mxu0
    %v909 = vadd.f32 0.0, %v908
    %v910 = vpop.f32.mrf.mxu0
    %911 = vmatprep.mubr.f32.mxu0 0.0
    %912 = vmatmul.mubr.f32.gmra.mxu0 %v804
    %v913 = vpop.f32.mrf.mxu0
    %v914 = vadd.f32 0.0, %v913
    %v915 = vpop.f32.mrf.mxu0
    %916 = vmatprep.mubr.f32.mxu0 0.0
    %917 = vmatmul.mubr.f32.gmra.mxu0 %v806
    %v918 = vpop.f32.mrf.mxu0
    %v919 = vadd.f32 0.0, %v918
    %v920 = vpop.f32.mrf.mxu0
    %921 = vdwg.mxu0
    %929 = vrot.lane.b32.xlu0 %v739, 120
    %v930 = vpop.permute.xlu0 %929
    %931 = vrot.lane.b32.xlu0 %v744, 120
    %v932 = vpop.permute.xlu0 %931
    %933 = vrot.lane.b32.xlu0 %v749, 120
    %v934 = vpop.permute.xlu0 %933
    %935 = vrot.lane.b32.xlu0 %v754, 120
    %v936 = vpop.permute.xlu0 %935
    %937 = vrot.lane.b32.xlu0 %v759, 120
    %v938 = vpop.permute.xlu0 %937
    %939 = vrot.lane.b32.xlu0 %v764, 120
    %v940 = vpop.permute.xlu0 %939
    %941 = vrot.lane.b32.xlu0 %v769, 120
    %v942 = vpop.permute.xlu0 %941
    %v943 = vsel %vm793, %v739, 0
    %v945 = vsel %vm793, %v744, 0
    %v947 = vsel %vm793, %v749, 0
    %v949 = vsel %vm793, %v754, 0
    %v951 = vsel %vm793, %v759, 0
    %v953 = vsel %vm793, %v764, 0
    %v955 = vsel %vm793, %v769, 0
    %v957 = vsel %vm793, %v930, 0
    %v959 = vsel %vm793, %v932, 0
    %v961 = vsel %vm793, %v934, 0
    %v963 = vsel %vm793, %v936, 0
    %v965 = vsel %vm793, %v938, 0
    %v967 = vsel %vm793, %v940, 0
    %v969 = vsel %vm793, %v942, 0
    %971 = vmatprep.subr.mxu0 0.0
    %972 = vmatpush1.xpose.msra.mxu0 0.0
    %973 = vmatprep.subr.mxu0 0.0
    %974 = vmatpush1.xpose.msra.mxu0 0.0
    %975 = vmatprep.subr.mxu0 0.0
    %976 = vmatpush1.xpose.msra.mxu0 0.0
    %977 = vmatprep.subr.mxu0 0.0
    %978 = vmatpush1.xpose.msra.mxu0 0.0
    %979 = vmatprep.subr.mxu0 0.0
    %980 = vmatpush1.xpose.msra.mxu0 0.0
    %981 = vmatprep.subr.mxu0 0.0
    %982 = vmatpush1.xpose.msra.mxu0 0.0
    %983 = vmatprep.subr.mxu0 0.0
    %984 = vmatpush1.xpose.msra.mxu0 0.0
    %985 = vmatprep.subr.mxu0 0.0
    %986 = vmatpush1.xpose.msra.mxu0 0.0
    %987 = vmatprep.subr.mxu0 0.0
    %988 = vmatpush1.xpose.msra.mxu0 0.0
    %989 = vmatprep.subr.mxu0 0.0
    %990 = vmatpush1.xpose.msra.mxu0 %v969
    %991 = vmatprep.subr.mxu0 0.0
    %992 = vmatpush1.xpose.msra.mxu0 %v967
    %993 = vmatprep.subr.mxu0 0.0
    %994 = vmatpush1.xpose.msra.mxu0 %v965
    %995 = vmatprep.subr.mxu0 0.0
    %996 = vmatpush1.xpose.msra.mxu0 %v963
    %997 = vmatprep.subr.mxu0 0.0
    %998 = vmatpush1.xpose.msra.mxu0 %v961
    %999 = vmatprep.subr.mxu0 0.0
    %1000 = vmatpush1.xpose.msra.mxu0 %v959
    %1001 = vmatprep.subr.mxu0 0.0
    %1002 = vmatpush1.xpose.msra.mxu0 %v957
    %1003 = vmatprep.subr.mxu0 0.0
    %1004 = vmatpush2.xpose.msra.mxu0 0.0
    %1005 = vmatprep.subr.mxu0 0.0
    %1006 = vmatpush2.xpose.msra.mxu0 0.0
    %1007 = vmatprep.subr.mxu0 0.0
    %1008 = vmatpush2.xpose.msra.mxu0 0.0
    %1009 = vmatprep.subr.mxu0 0.0
    %1010 = vmatpush2.xpose.msra.mxu0 0.0
    %1011 = vmatprep.subr.mxu0 0.0
    %1012 = vmatpush2.xpose.msra.mxu0 0.0
    %1013 = vmatprep.subr.mxu0 0.0
    %1014 = vmatpush2.xpose.msra.mxu0 0.0
    %1015 = vmatprep.subr.mxu0 0.0
    %1016 = vmatpush2.xpose.msra.mxu0 0.0
    %1017 = vmatprep.subr.mxu0 0.0
    %1018 = vmatpush2.xpose.msra.mxu0 0.0
    %1019 = vmatprep.subr.mxu0 0.0
    %1020 = vmatpush2.xpose.msra.mxu0 0.0
    %1021 = vmatprep.subr.mxu0 0.0
    %1022 = vmatpush2.xpose.msra.mxu0 0.0
    %1023 = vmatprep.subr.mxu0 0.0
    %1024 = vmatpush2.xpose.msra.mxu0 0.0
    %1025 = vmatprep.subr.mxu0 0.0
    %1026 = vmatpush2.xpose.msra.mxu0 0.0
    %1027 = vmatprep.subr.mxu0 0.0
    %1028 = vmatpush2.xpose.msra.mxu0 0.0
    %1029 = vmatprep.subr.mxu0 0.0
    %1030 = vmatpush2.xpose.msra.mxu0 0.0
    %1031 = vmatprep.subr.mxu0 0.0
    %1032 = vmatpush2.xpose.msra.mxu0 0.0
    %1033 = vmatprep.subr.mxu0 0.0
    %1034 = vmatpush2.xpose.msra.mxu0 0.0
    %1035 = vmatprep.mubr.f32.mxu0 0.0
    %1036 = vmatmul.mubr.f32.gmra.mxu0 %v943
    %v1037 = vpop.f32.mrf.mxu0
    %v1038 = vadd.f32 0.0, %v1037
    %v1039 = vpop.f32.mrf.mxu0
    %1040 = vmatprep.mubr.f32.mxu0 0.0
    %1041 = vmatmul.mubr.f32.gmra.mxu0 %v945
    %v1042 = vpop.f32.mrf.mxu0
    %v1043 = vadd.f32 0.0, %v1042
    %v1044 = vpop.f32.mrf.mxu0
    %1045 = vmatprep.mubr.f32.mxu0 0.0
    %1046 = vmatmul.mubr.f32.gmra.mxu0 %v947
    %v1047 = vpop.f32.mrf.mxu0
    %v1048 = vadd.f32 0.0, %v1047
    %v1049 = vpop.f32.mrf.mxu0
    %1050 = vmatprep.mubr.f32.mxu0 0.0
    %1051 = vmatmul.mubr.f32.gmra.mxu0 %v949
    %v1052 = vpop.f32.mrf.mxu0
    %v1053 = vadd.f32 0.0, %v1052
    %v1054 = vpop.f32.mrf.mxu0
    %1055 = vmatprep.mubr.f32.mxu0 0.0
    %1056 = vmatmul.mubr.f32.gmra.mxu0 %v951
    %v1057 = vpop.f32.mrf.mxu0
    %v1058 = vadd.f32 0.0, %v1057
    %v1059 = vpop.f32.mrf.mxu0
    %1060 = vmatprep.mubr.f32.mxu0 0.0
    %1061 = vmatmul.mubr.f32.gmra.mxu0 %v953
    %v1062 = vpop.f32.mrf.mxu0
    %v1063 = vadd.f32 0.0, %v1062
    %v1064 = vpop.f32.mrf.mxu0
    %1065 = vmatprep.mubr.f32.mxu0 0.0
    %1066 = vmatmul.mubr.f32.gmra.mxu0 %v955
    %v1067 = vpop.f32.mrf.mxu0
    %v1068 = vadd.f32 0.0, %v1067
    %v1069 = vpop.f32.mrf.mxu0
    %1070 = vdwg.mxu0
    %v1071 = vmul.f32 %v889, 0.5
    %v1072 = vmul.f32 %v894, 0.5
    %v1073 = vmul.f32 %v899, 0.5
    %v1074 = vmul.f32 %v904, 0.5
    %v1075 = vmul.f32 %v909, 0.5
    %v1076 = vmul.f32 %v914, 0.5
    %v1077 = vmul.f32 %v919, 0.5
    %v1078 = vmul.f32 %v1038, 0.5
    %v1079 = vmul.f32 %v1043, 0.5
    %v1080 = vmul.f32 %v1048, 0.5
    %v1081 = vmul.f32 %v1053, 0.5
    %v1082 = vmul.f32 %v1058, 0.5
    %v1083 = vmul.f32 %v1063, 0.5
    %v1084 = vmul.f32 %v1068, 0.5
    %v1085 = vadd.f32 %v1071, %v262
    %v1086 = vadd.f32 %v1072, %v262
    %v1087 = vadd.f32 %v1073, %v262
    %v1088 = vadd.f32 %v1074, %v262
    %v1089 = vadd.f32 %v1075, %v262
    %v1090 = vadd.f32 %v1076, %v262
    %v1091 = vadd.f32 %v1077, %v262
    %v1092 = vadd.f32 %v1078, %v262
    %v1093 = vadd.f32 %v1079, %v262
    %v1094 = vadd.f32 %v1080, %v262
    %v1095 = vadd.f32 %v1081, %v262
    %v1096 = vadd.f32 %v1082, %v262
    %v1097 = vadd.f32 %v1083, %v262
    %v1098 = vadd.f32 %v1084, %v262
    %vm1099 = vcmask 457728
    %v1100 = vsel %vm1099, %v1085, -inf
    %1101 = vmax.xlane.f32.xlu0 %v1100
    %v1102 = vpop.xlane.xlu0 %1101
    %v1103 = vsel %vm1099, %v1086, -inf
    %1104 = vmax.xlane.f32.xlu0 %v1103
    %v1105 = vpop.xlane.xlu0 %1104
    %v1106 = vsel %vm1099, %v1087, -inf
    %1107 = vmax.xlane.f32.xlu0 %v1106
    %v1108 = vpop.xlane.xlu0 %1107
    %v1109 = vsel %vm1099, %v1088, -inf
    %1110 = vmax.xlane.f32.xlu0 %v1109
    %v1111 = vpop.xlane.xlu0 %1110
    %v1112 = vsel %vm1099, %v1089, -inf
    %1113 = vmax.xlane.f32.xlu0 %v1112
    %v1114 = vpop.xlane.xlu0 %1113
    %v1115 = vsel %vm1099, %v1090, -inf
    %1116 = vmax.xlane.f32.xlu0 %v1115
    %v1117 = vpop.xlane.xlu0 %1116
    %v1118 = vsel %vm1099, %v1091, -inf
    %1119 = vmax.xlane.f32.xlu0 %v1118
    %v1120 = vpop.xlane.xlu0 %1119
    %v1121 = vsel %vm1099, %v1092, -inf
    %1122 = vmax.xlane.f32.xlu0 %v1121
    %v1123 = vpop.xlane.xlu0 %1122
    %v1124 = vsel %vm1099, %v1093, -inf
    %1125 = vmax.xlane.f32.xlu0 %v1124
    %v1126 = vpop.xlane.xlu0 %1125
    %v1127 = vsel %vm1099, %v1094, -inf
    %1128 = vmax.xlane.f32.xlu0 %v1127
    %v1129 = vpop.xlane.xlu0 %1128
    %v1130 = vsel %vm1099, %v1095, -inf
    %1131 = vmax.xlane.f32.xlu0 %v1130
    %v1132 = vpop.xlane.xlu0 %1131
    %v1133 = vsel %vm1099, %v1096, -inf
    %1134 = vmax.xlane.f32.xlu0 %v1133
    %v1135 = vpop.xlane.xlu0 %1134
    %v1136 = vsel %vm1099, %v1097, -inf
    %1137 = vmax.xlane.f32.xlu0 %v1136
    %v1138 = vpop.xlane.xlu0 %1137
    %v1139 = vsel %vm1099, %v1098, -inf
    %1140 = vmax.xlane.f32.xlu0 %v1139
    %v1141 = vpop.xlane.xlu0 %1140
    %v1142 = vsub.f32 %v1085, %v1102
    %v1143 = vsub.f32 %v1086, %v1105
    %v1144 = vsub.f32 %v1087, %v1108
    %v1145 = vsub.f32 %v1088, %v1111
    %v1146 = vsub.f32 %v1089, %v1114
    %v1147 = vsub.f32 %v1090, %v1117
    %v1148 = vsub.f32 %v1091, %v1120
    %v1149 = vsub.f32 %v1092, %v1123
    %v1150 = vsub.f32 %v1093, %v1126
    %v1151 = vsub.f32 %v1094, %v1129
    %v1152 = vsub.f32 %v1095, %v1132
    %v1153 = vsub.f32 %v1096, %v1135
    %v1154 = vsub.f32 %v1097, %v1138
    %v1155 = vsub.f32 %v1098, %v1141
    %v1156 = vmul.f32 %v1142, 1.442695
    %v1157 = vpow.pop %v1156
    %v1158 = vmul.f32 %v1143, 1.442695
    %v1159 = vpow.pop %v1158
    %v1160 = vmul.f32 %v1144, 1.442695
    %v1161 = vpow.pop %v1160
    %v1162 = vmul.f32 %v1145, 1.442695
    %v1163 = vpow.pop %v1162
    %v1164 = vmul.f32 %v1146, 1.442695
    %v1165 = vpow.pop %v1164
    %v1166 = vmul.f32 %v1147, 1.442695
    %v1167 = vpow.pop %v1166
    %v1168 = vmul.f32 %v1148, 1.442695
    %v1169 = vpow.pop %v1168
    %v1170 = vmul.f32 %v1149, 1.442695
    %v1171 = vpow.pop %v1170
    %v1172 = vmul.f32 %v1150, 1.442695
    %v1173 = vpow.pop %v1172
    %v1174 = vmul.f32 %v1151, 1.442695
    %v1175 = vpow.pop %v1174
    %v1176 = vmul.f32 %v1152, 1.442695
    %v1177 = vpow.pop %v1176
    %v1178 = vmul.f32 %v1153, 1.442695
    %v1179 = vpow.pop %v1178
    %v1180 = vmul.f32 %v1154, 1.442695
    %v1181 = vpow.pop %v1180
    %v1182 = vmul.f32 %v1155, 1.442695
    %v1183 = vpow.pop %v1182
    %v1184 = vsel %vm1099, %v1157, 0.0
    %1185 = vadd.xlane.f32.xlu0 %v1184
    %v1186 = vpop.xlane.xlu0 %1185
    %v1187 = vsel %vm1099, %v1159, 0.0
    %1188 = vadd.xlane.f32.xlu0 %v1187
    %v1189 = vpop.xlane.xlu0 %1188
    %v1190 = vsel %vm1099, %v1161, 0.0
    %1191 = vadd.xlane.f32.xlu0 %v1190
    %v1192 = vpop.xlane.xlu0 %1191
    %v1193 = vsel %vm1099, %v1163, 0.0
    %1194 = vadd.xlane.f32.xlu0 %v1193
    %v1195 = vpop.xlane.xlu0 %1194
    %v1196 = vsel %vm1099, %v1165, 0.0
    %1197 = vadd.xlane.f32.xlu0 %v1196
    %v1198 = vpop.xlane.xlu0 %1197
    %v1199 = vsel %vm1099, %v1167, 0.0
    %1200 = vadd.xlane.f32.xlu0 %v1199
    %v1201 = vpop.xlane.xlu0 %1200
    %v1202 = vsel %vm1099, %v1169, 0.0
    %1203 = vadd.xlane.f32.xlu0 %v1202
    %v1204 = vpop.xlane.xlu0 %1203
    %v1205 = vsel %vm1099, %v1171, 0.0
    %1206 = vadd.xlane.f32.xlu0 %v1205
    %v1207 = vpop.xlane.xlu0 %1206
    %v1208 = vsel %vm1099, %v1173, 0.0
    %1209 = vadd.xlane.f32.xlu0 %v1208
    %v1210 = vpop.xlane.xlu0 %1209
    %v1211 = vsel %vm1099, %v1175, 0.0
    %1212 = vadd.xlane.f32.xlu0 %v1211
    %v1213 = vpop.xlane.xlu0 %1212
    %v1214 = vsel %vm1099, %v1177, 0.0
    %1215 = vadd.xlane.f32.xlu0 %v1214
    %v1216 = vpop.xlane.xlu0 %1215
    %v1217 = vsel %vm1099, %v1179, 0.0
    %1218 = vadd.xlane.f32.xlu0 %v1217
    %v1219 = vpop.xlane.xlu0 %1218
    %v1220 = vsel %vm1099, %v1181, 0.0
    %1221 = vadd.xlane.f32.xlu0 %v1220
    %v1222 = vpop.xlane.xlu0 %1221
    %v1223 = vsel %vm1099, %v1183, 0.0
    %1224 = vadd.xlane.f32.xlu0 %v1223
    %v1225 = vpop.xlane.xlu0 %1224
    %v1226 = vrcp.pop %v1186
    %v1227 = vmul.f32 %v1157, %v1226
    %v1228 = vrcp.pop %v1189
    %v1229 = vmul.f32 %v1159, %v1228
    %v1230 = vrcp.pop %v1192
    %v1231 = vmul.f32 %v1161, %v1230
    %v1232 = vrcp.pop %v1195
    %v1233 = vmul.f32 %v1163, %v1232
    %v1234 = vrcp.pop %v1198
    %v1235 = vmul.f32 %v1165, %v1234
    %v1236 = vrcp.pop %v1201
    %v1237 = vmul.f32 %v1167, %v1236
    %v1238 = vrcp.pop %v1204
    %v1239 = vmul.f32 %v1169, %v1238
    %v1240 = vrcp.pop %v1207
    %v1241 = vmul.f32 %v1171, %v1240
    %v1242 = vrcp.pop %v1210
    %v1243 = vmul.f32 %v1173, %v1242
    %v1244 = vrcp.pop %v1213
    %v1245 = vmul.f32 %v1175, %v1244
    %v1246 = vrcp.pop %v1216
    %v1247 = vmul.f32 %v1177, %v1246
    %v1248 = vrcp.pop %v1219
    %v1249 = vmul.f32 %v1179, %v1248
    %v1250 = vrcp.pop %v1222
    %v1251 = vmul.f32 %v1181, %v1250
    %v1252 = vrcp.pop %v1225
    %v1253 = vmul.f32 %v1183, %v1252
    %1254 = vrot.lane.b32.xlu0 %v704, 112
    %v1255 = vpop.permute.xlu0 %1254
    %1256 = vrot.lane.b32.xlu0 %v709, 112
    %v1257 = vpop.permute.xlu0 %1256
    %1258 = vrot.lane.b32.xlu0 %v714, 112
    %v1259 = vpop.permute.xlu0 %1258
    %1260 = vrot.lane.b32.xlu0 %v719, 112
    %v1261 = vpop.permute.xlu0 %1260
    %1262 = vrot.lane.b32.xlu0 %v724, 112
    %v1263 = vpop.permute.xlu0 %1262
    %1264 = vrot.lane.b32.xlu0 %v729, 112
    %v1265 = vpop.permute.xlu0 %1264
    %1266 = vrot.lane.b32.xlu0 %v734, 112
    %v1267 = vpop.permute.xlu0 %1266
    %v1276 = vsel %vm1099, %v1227, 0
    %v1279 = vsel %vm1099, %v1229, 0
    %v1282 = vsel %vm1099, %v1231, 0
    %v1285 = vsel %vm1099, %v1233, 0
    %v1288 = vsel %vm1099, %v1235, 0
    %v1291 = vsel %vm1099, %v1237, 0
    %v1294 = vsel %vm1099, %v1239, 0
    %1296 = vmatprep.subr.mxu0 0.0
    %1297 = vmatpush1.msra.mxu0 0.0
    %1298 = vmatprep.subr.mxu0 0.0
    %1299 = vmatpush1.msra.mxu0 0.0
    %1300 = vmatprep.subr.mxu0 0.0
    %1301 = vmatpush1.msra.mxu0 0.0
    %1302 = vmatprep.subr.mxu0 0.0
    %1303 = vmatpush1.msra.mxu0 0.0
    %1304 = vmatprep.subr.mxu0 0.0
    %1305 = vmatpush1.msra.mxu0 0.0
    %1306 = vmatprep.subr.mxu0 0.0
    %1307 = vmatpush1.msra.mxu0 0.0
    %1308 = vmatprep.subr.mxu0 0.0
    %1309 = vmatpush1.msra.mxu0 0.0
    %1310 = vmatprep.subr.mxu0 0.0
    %1311 = vmatpush1.msra.mxu0 0.0
    %1312 = vmatprep.subr.mxu0 0.0
    %1313 = vmatpush1.msra.mxu0 0.0
    %1314 = vmatprep.subr.mxu0 0.0
    %1315 = vmatpush1.msra.mxu0 %v1267
    %1316 = vmatprep.subr.mxu0 0.0
    %1317 = vmatpush1.msra.mxu0 %v1265
    %1318 = vmatprep.subr.mxu0 0.0
    %1319 = vmatpush1.msra.mxu0 %v1263
    %1320 = vmatprep.subr.mxu0 0.0
    %1321 = vmatpush1.msra.mxu0 %v1261
    %1322 = vmatprep.subr.mxu0 0.0
    %1323 = vmatpush1.msra.mxu0 %v1259
    %1324 = vmatprep.subr.mxu0 0.0
    %1325 = vmatpush1.msra.mxu0 %v1257
    %1326 = vmatprep.subr.mxu0 0.0
    %1327 = vmatpush1.msra.mxu0 %v1255
    %1328 = vmatprep.subr.mxu0 0.0
    %1329 = vmatpush2.msra.mxu0 0.0
    %1330 = vmatprep.subr.mxu0 0.0
    %1331 = vmatpush2.msra.mxu0 0.0
    %1332 = vmatprep.subr.mxu0 0.0
    %1333 = vmatpush2.msra.mxu0 0.0
    %1334 = vmatprep.subr.mxu0 0.0
    %1335 = vmatpush2.msra.mxu0 0.0
    %1336 = vmatprep.subr.mxu0 0.0
    %1337 = vmatpush2.msra.mxu0 0.0
    %1338 = vmatprep.subr.mxu0 0.0
    %1339 = vmatpush2.msra.mxu0 0.0
    %1340 = vmatprep.subr.mxu0 0.0
    %1341 = vmatpush2.msra.mxu0 0.0
    %1342 = vmatprep.subr.mxu0 0.0
    %1343 = vmatpush2.msra.mxu0 0.0
    %1344 = vmatprep.subr.mxu0 0.0
    %1345 = vmatpush2.msra.mxu0 0.0
    %1346 = vmatprep.subr.mxu0 0.0
    %1347 = vmatpush2.msra.mxu0 0.0
    %1348 = vmatprep.subr.mxu0 0.0
    %1349 = vmatpush2.msra.mxu0 0.0
    %1350 = vmatprep.subr.mxu0 0.0
    %1351 = vmatpush2.msra.mxu0 0.0
    %1352 = vmatprep.subr.mxu0 0.0
    %1353 = vmatpush2.msra.mxu0 0.0
    %1354 = vmatprep.subr.mxu0 0.0
    %1355 = vmatpush2.msra.mxu0 0.0
    %1356 = vmatprep.subr.mxu0 0.0
    %1357 = vmatpush2.msra.mxu0 0.0
    %1358 = vmatprep.subr.mxu0 0.0
    %1359 = vmatpush2.msra.mxu0 0.0
    %1360 = vmatprep.mubr.f32.mxu0 0.0
    %1361 = vmatmul.mubr.f32.gmra.mxu0 %v1276
    %v1362 = vpop.f32.mrf.mxu0
    %v1363 = vadd.f32 0.0, %v1362
    %v1364 = vpop.f32.mrf.mxu0
    %1365 = vmatprep.mubr.f32.mxu0 0.0
    %1366 = vmatmul.mubr.f32.gmra.mxu0 %v1279
    %v1367 = vpop.f32.mrf.mxu0
    %v1368 = vadd.f32 0.0, %v1367
    %v1369 = vpop.f32.mrf.mxu0
    %1370 = vmatprep.mubr.f32.mxu0 0.0
    %1371 = vmatmul.mubr.f32.gmra.mxu0 %v1282
    %v1372 = vpop.f32.mrf.mxu0
    %v1373 = vadd.f32 0.0, %v1372
    %v1374 = vpop.f32.mrf.mxu0
    %1375 = vmatprep.mubr.f32.mxu0 0.0
    %1376 = vmatmul.mubr.f32.gmra.mxu0 %v1285
    %v1377 = vpop.f32.mrf.mxu0
    %v1378 = vadd.f32 0.0, %v1377
    %v1379 = vpop.f32.mrf.mxu0
    %1380 = vmatprep.mubr.f32.mxu0 0.0
    %1381 = vmatmul.mubr.f32.gmra.mxu0 %v1288
    %v1382 = vpop.f32.mrf.mxu0
    %v1383 = vadd.f32 0.0, %v1382
    %v1384 = vpop.f32.mrf.mxu0
    %1385 = vmatprep.mubr.f32.mxu0 0.0
    %1386 = vmatmul.mubr.f32.gmra.mxu0 %v1291
    %v1387 = vpop.f32.mrf.mxu0
    %v1388 = vadd.f32 0.0, %v1387
    %v1389 = vpop.f32.mrf.mxu0
    %1390 = vmatprep.mubr.f32.mxu0 0.0
    %1391 = vmatmul.mubr.f32.gmra.mxu0 %v1294
    %v1392 = vpop.f32.mrf.mxu0
    %v1393 = vadd.f32 0.0, %v1392
    %v1394 = vpop.f32.mrf.mxu0
    %1395 = vdwg.mxu0
    %1396 = vrot.lane.b32.xlu0 %v739, 112
    %v1397 = vpop.permute.xlu0 %1396
    %1398 = vrot.lane.b32.xlu0 %v744, 112
    %v1399 = vpop.permute.xlu0 %1398
    %1400 = vrot.lane.b32.xlu0 %v749, 112
    %v1401 = vpop.permute.xlu0 %1400
    %1402 = vrot.lane.b32.xlu0 %v754, 112
    %v1403 = vpop.permute.xlu0 %1402
    %1404 = vrot.lane.b32.xlu0 %v759, 112
    %v1405 = vpop.permute.xlu0 %1404
    %1406 = vrot.lane.b32.xlu0 %v764, 112
    %v1407 = vpop.permute.xlu0 %1406
    %1408 = vrot.lane.b32.xlu0 %v769, 112
    %v1409 = vpop.permute.xlu0 %1408
    %v1418 = vsel %vm1099, %v1241, 0
    %v1421 = vsel %vm1099, %v1243, 0
    %v1424 = vsel %vm1099, %v1245, 0
    %v1427 = vsel %vm1099, %v1247, 0
    %v1430 = vsel %vm1099, %v1249, 0
    %v1433 = vsel %vm1099, %v1251, 0
    %v1436 = vsel %vm1099, %v1253, 0
    %1438 = vmatprep.subr.mxu0 0.0
    %1439 = vmatpush1.msra.mxu0 0.0
    %1440 = vmatprep.subr.mxu0 0.0
    %1441 = vmatpush1.msra.mxu0 0.0
    %1442 = vmatprep.subr.mxu0 0.0
    %1443 = vmatpush1.msra.mxu0 0.0
    %1444 = vmatprep.subr.mxu0 0.0
    %1445 = vmatpush1.msra.mxu0 0.0
    %1446 = vmatprep.subr.mxu0 0.0
    %1447 = vmatpush1.msra.mxu0 0.0
    %1448 = vmatprep.subr.mxu0 0.0
    %1449 = vmatpush1.msra.mxu0 0.0
    %1450 = vmatprep.subr.mxu0 0.0
    %1451 = vmatpush1.msra.mxu0 0.0
    %1452 = vmatprep.subr.mxu0 0.0
    %1453 = vmatpush1.msra.mxu0 0.0
    %1454 = vmatprep.subr.mxu0 0.0
    %1455 = vmatpush1.msra.mxu0 0.0
    %1456 = vmatprep.subr.mxu0 0.0
    %1457 = vmatpush1.msra.mxu0 %v1409
    %1458 = vmatprep.subr.mxu0 0.0
    %1459 = vmatpush1.msra.mxu0 %v1407
    %1460 = vmatprep.subr.mxu0 0.0
    %1461 = vmatpush1.msra.mxu0 %v1405
    %1462 = vmatprep.subr.mxu0 0.0
    %1463 = vmatpush1.msra.mxu0 %v1403
    %1464 = vmatprep.subr.mxu0 0.0
    %1465 = vmatpush1.msra.mxu0 %v1401
    %1466 = vmatprep.subr.mxu0 0.0
    %1467 = vmatpush1.msra.mxu0 %v1399
    %1468 = vmatprep.subr.mxu0 0.0
    %1469 = vmatpush1.msra.mxu0 %v1397
    %1470 = vmatprep.subr.mxu0 0.0
    %1471 = vmatpush2.msra.mxu0 0.0
    %1472 = vmatprep.subr.mxu0 0.0
    %1473 = vmatpush2.msra.mxu0 0.0
    %1474 = vmatprep.subr.mxu0 0.0
    %1475 = vmatpush2.msra.mxu0 0.0
    %1476 = vmatprep.subr.mxu0 0.0
    %1477 = vmatpush2.msra.mxu0 0.0
    %1478 = vmatprep.subr.mxu0 0.0
    %1479 = vmatpush2.msra.mxu0 0.0
    %1480 = vmatprep.subr.mxu0 0.0
    %1481 = vmatpush2.msra.mxu0 0.0
    %1482 = vmatprep.subr.mxu0 0.0
    %1483 = vmatpush2.msra.mxu0 0.0
    %1484 = vmatprep.subr.mxu0 0.0
    %1485 = vmatpush2.msra.mxu0 0.0
    %1486 = vmatprep.subr.mxu0 0.0
    %1487 = vmatpush2.msra.mxu0 0.0
    %1488 = vmatprep.subr.mxu0 0.0
    %1489 = vmatpush2.msra.mxu0 0.0
    %1490 = vmatprep.subr.mxu0 0.0
    %1491 = vmatpush2.msra.mxu0 0.0
    %1492 = vmatprep.subr.mxu0 0.0
    %1493 = vmatpush2.msra.mxu0 0.0
    %1494 = vmatprep.subr.mxu0 0.0
    %1495 = vmatpush2.msra.mxu0 0.0
    %1496 = vmatprep.subr.mxu0 0.0
    %1497 = vmatpush2.msra.mxu0 0.0
    %1498 = vmatprep.subr.mxu0 0.0
    %1499 = vmatpush2.msra.mxu0 0.0
    %1500 = vmatprep.subr.mxu0 0.0
    %1501 = vmatpush2.msra.mxu0 0.0
    %1502 = vmatprep.mubr.f32.mxu0 0.0
    %1503 = vmatmul.mubr.f32.gmra.mxu0 %v1418
    %v1504 = vpop.f32.mrf.mxu0
    %v1505 = vadd.f32 0.0, %v1504
    %v1506 = vpop.f32.mrf.mxu0
    %1507 = vmatprep.mubr.f32.mxu0 0.0
    %1508 = vmatmul.mubr.f32.gmra.mxu0 %v1421
    %v1509 = vpop.f32.mrf.mxu0
    %v1510 = vadd.f32 0.0, %v1509
    %v1511 = vpop.f32.mrf.mxu0
    %1512 = vmatprep.mubr.f32.mxu0 0.0
    %1513 = vmatmul.mubr.f32.gmra.mxu0 %v1424
    %v1514 = vpop.f32.mrf.mxu0
    %v1515 = vadd.f32 0.0, %v1514
    %v1516 = vpop.f32.mrf.mxu0
    %1517 = vmatprep.mubr.f32.mxu0 0.0
    %1518 = vmatmul.mubr.f32.gmra.mxu0 %v1427
    %v1519 = vpop.f32.mrf.mxu0
    %v1520 = vadd.f32 0.0, %v1519
    %v1521 = vpop.f32.mrf.mxu0
    %1522 = vmatprep.mubr.f32.mxu0 0.0
    %1523 = vmatmul.mubr.f32.gmra.mxu0 %v1430
    %v1524 = vpop.f32.mrf.mxu0
    %v1525 = vadd.f32 0.0, %v1524
    %v1526 = vpop.f32.mrf.mxu0
    %1527 = vmatprep.mubr.f32.mxu0 0.0
    %1528 = vmatmul.mubr.f32.gmra.mxu0 %v1433
    %v1529 = vpop.f32.mrf.mxu0
    %v1530 = vadd.f32 0.0, %v1529
    %v1531 = vpop.f32.mrf.mxu0
    %1532 = vmatprep.mubr.f32.mxu0 0.0
    %1533 = vmatmul.mubr.f32.gmra.mxu0 %v1436
    %v1534 = vpop.f32.mrf.mxu0
    %v1535 = vadd.f32 0.0, %v1534
    %v1536 = vpop.f32.mrf.mxu0
    %1537 = vdwg.mxu0
    %1538 = vrot.lane.b32.xlu0 %v704, 124
    %v1539 = vpop.permute.xlu0 %1538
    %1540 = vrot.lane.b32.xlu0 %v709, 124
    %v1541 = vpop.permute.xlu0 %1540
    %1542 = vrot.lane.b32.xlu0 %v714, 124
    %v1543 = vpop.permute.xlu0 %1542
    %1544 = vrot.lane.b32.xlu0 %v719, 124
    %v1545 = vpop.permute.xlu0 %1544
    %1546 = vrot.lane.b32.xlu0 %v724, 124
    %v1547 = vpop.permute.xlu0 %1546
    %1548 = vrot.lane.b32.xlu0 %v729, 124
    %v1549 = vpop.permute.xlu0 %1548
    %1550 = vrot.lane.b32.xlu0 %v734, 124
    %v1551 = vpop.permute.xlu0 %1550
    %1552 = vrot.lane.b32.xlu0 %v704, 116
    %v1553 = vpop.permute.xlu0 %1552
    %1554 = vrot.lane.b32.xlu0 %v709, 116
    %v1555 = vpop.permute.xlu0 %1554
    %1556 = vrot.lane.b32.xlu0 %v714, 116
    %v1557 = vpop.permute.xlu0 %1556
    %1558 = vrot.lane.b32.xlu0 %v719, 116
    %v1559 = vpop.permute.xlu0 %1558
    %1560 = vrot.lane.b32.xlu0 %v724, 116
    %v1561 = vpop.permute.xlu0 %1560
    %1562 = vrot.lane.b32.xlu0 %v729, 116
    %v1563 = vpop.permute.xlu0 %1562
    %1564 = vrot.lane.b32.xlu0 %v734, 116
    %v1565 = vpop.permute.xlu0 %1564
    %v1566 = vsel %vm793, %v1539, 0
    %v1568 = vsel %vm793, %v1541, 0
    %v1570 = vsel %vm793, %v1543, 0
    %v1572 = vsel %vm793, %v1545, 0
    %v1574 = vsel %vm793, %v1547, 0
    %v1576 = vsel %vm793, %v1549, 0
    %v1578 = vsel %vm793, %v1551, 0
    %v1580 = vsel %vm793, %v1553, 0
    %v1582 = vsel %vm793, %v1555, 0
    %v1584 = vsel %vm793, %v1557, 0
    %v1586 = vsel %vm793, %v1559, 0
    %v1588 = vsel %vm793, %v1561, 0
    %v1590 = vsel %vm793, %v1563, 0
    %v1592 = vsel %vm793, %v1565, 0
    %1594 = vmatprep.subr.mxu0 0.0
    %1595 = vmatpush1.xpose.msra.mxu0 0.0
    %1596 = vmatprep.subr.mxu0 0.0
    %1597 = vmatpush1.xpose.msra.mxu0 0.0
    %1598 = vmatprep.subr.mxu0 0.0
    %1599 = vmatpush1.xpose.msra.mxu0 0.0
    %1600 = vmatprep.subr.mxu0 0.0
    %1601 = vmatpush1.xpose.msra.mxu0 0.0
    %1602 = vmatprep.subr.mxu0 0.0
    %1603 = vmatpush1.xpose.msra.mxu0 0.0
    %1604 = vmatprep.subr.mxu0 0.0
    %1605 = vmatpush1.xpose.msra.mxu0 0.0
    %1606 = vmatprep.subr.mxu0 0.0
    %1607 = vmatpush1.xpose.msra.mxu0 0.0
    %1608 = vmatprep.subr.mxu0 0.0
    %1609 = vmatpush1.xpose.msra.mxu0 0.0
    %1610 = vmatprep.subr.mxu0 0.0
    %1611 = vmatpush1.xpose.msra.mxu0 0.0
    %1612 = vmatprep.subr.mxu0 0.0
    %1613 = vmatpush1.xpose.msra.mxu0 %v1592
    %1614 = vmatprep.subr.mxu0 0.0
    %1615 = vmatpush1.xpose.msra.mxu0 %v1590
    %1616 = vmatprep.subr.mxu0 0.0
    %1617 = vmatpush1.xpose.msra.mxu0 %v1588
    %1618 = vmatprep.subr.mxu0 0.0
    %1619 = vmatpush1.xpose.msra.mxu0 %v1586
    %1620 = vmatprep.subr.mxu0 0.0
    %1621 = vmatpush1.xpose.msra.mxu0 %v1584
    %1622 = vmatprep.subr.mxu0 0.0
    %1623 = vmatpush1.xpose.msra.mxu0 %v1582
    %1624 = vmatprep.subr.mxu0 0.0
    %1625 = vmatpush1.xpose.msra.mxu0 %v1580
    %1626 = vmatprep.subr.mxu0 0.0
    %1627 = vmatpush2.xpose.msra.mxu0 0.0
    %1628 = vmatprep.subr.mxu0 0.0
    %1629 = vmatpush2.xpose.msra.mxu0 0.0
    %1630 = vmatprep.subr.mxu0 0.0
    %1631 = vmatpush2.xpose.msra.mxu0 0.0
    %1632 = vmatprep.subr.mxu0 0.0
    %1633 = vmatpush2.xpose.msra.mxu0 0.0
    %1634 = vmatprep.subr.mxu0 0.0
    %1635 = vmatpush2.xpose.msra.mxu0 0.0
    %1636 = vmatprep.subr.mxu0 0.0
    %1637 = vmatpush2.xpose.msra.mxu0 0.0
    %1638 = vmatprep.subr.mxu0 0.0
    %1639 = vmatpush2.xpose.msra.mxu0 0.0
    %1640 = vmatprep.subr.mxu0 0.0
    %1641 = vmatpush2.xpose.msra.mxu0 0.0
    %1642 = vmatprep.subr.mxu0 0.0
    %1643 = vmatpush2.xpose.msra.mxu0 0.0
    %1644 = vmatprep.subr.mxu0 0.0
    %1645 = vmatpush2.xpose.msra.mxu0 0.0
    %1646 = vmatprep.subr.mxu0 0.0
    %1647 = vmatpush2.xpose.msra.mxu0 0.0
    %1648 = vmatprep.subr.mxu0 0.0
    %1649 = vmatpush2.xpose.msra.mxu0 0.0
    %1650 = vmatprep.subr.mxu0 0.0
    %1651 = vmatpush2.xpose.msra.mxu0 0.0
    %1652 = vmatprep.subr.mxu0 0.0
    %1653 = vmatpush2.xpose.msra.mxu0 0.0
    %1654 = vmatprep.subr.mxu0 0.0
    %1655 = vmatpush2.xpose.msra.mxu0 0.0
    %1656 = vmatprep.subr.mxu0 0.0
    %1657 = vmatpush2.xpose.msra.mxu0 0.0
    %1658 = vmatprep.mubr.f32.mxu0 0.0
    %1659 = vmatmul.mubr.f32.gmra.mxu0 %v1566
    %v1660 = vpop.f32.mrf.mxu0
    %v1661 = vadd.f32 0.0, %v1660
    %v1662 = vpop.f32.mrf.mxu0
    %1663 = vmatprep.mubr.f32.mxu0 0.0
    %1664 = vmatmul.mubr.f32.gmra.mxu0 %v1568
    %v1665 = vpop.f32.mrf.mxu0
    %v1666 = vadd.f32 0.0, %v1665
    %v1667 = vpop.f32.mrf.mxu0
    %1668 = vmatprep.mubr.f32.mxu0 0.0
    %1669 = vmatmul.mubr.f32.gmra.mxu0 %v1570
    %v1670 = vpop.f32.mrf.mxu0
    %v1671 = vadd.f32 0.0, %v1670
    %v1672 = vpop.f32.mrf.mxu0
    %1673 = vmatprep.mubr.f32.mxu0 0.0
    %1674 = vmatmul.mubr.f32.gmra.mxu0 %v1572
    %v1675 = vpop.f32.mrf.mxu0
    %v1676 = vadd.f32 0.0, %v1675
    %v1677 = vpop.f32.mrf.mxu0
    %1678 = vmatprep.mubr.f32.mxu0 0.0
    %1679 = vmatmul.mubr.f32.gmra.mxu0 %v1574
    %v1680 = vpop.f32.mrf.mxu0
    %v1681 = vadd.f32 0.0, %v1680
    %v1682 = vpop.f32.mrf.mxu0
    %1683 = vmatprep.mubr.f32.mxu0 0.0
    %1684 = vmatmul.mubr.f32.gmra.mxu0 %v1576
    %v1685 = vpop.f32.mrf.mxu0
    %v1686 = vadd.f32 0.0, %v1685
    %v1687 = vpop.f32.mrf.mxu0
    %1688 = vmatprep.mubr.f32.mxu0 0.0
    %1689 = vmatmul.mubr.f32.gmra.mxu0 %v1578
    %v1690 = vpop.f32.mrf.mxu0
    %v1691 = vadd.f32 0.0, %v1690
    %v1692 = vpop.f32.mrf.mxu0
    %1693 = vdwg.mxu0
    %1694 = vrot.lane.b32.xlu0 %v739, 124
    %v1695 = vpop.permute.xlu0 %1694
    %1696 = vrot.lane.b32.xlu0 %v744, 124
    %v1697 = vpop.permute.xlu0 %1696
    %1698 = vrot.lane.b32.xlu0 %v749, 124
    %v1699 = vpop.permute.xlu0 %1698
    %1700 = vrot.lane.b32.xlu0 %v754, 124
    %v1701 = vpop.permute.xlu0 %1700
    %1702 = vrot.lane.b32.xlu0 %v759, 124
    %v1703 = vpop.permute.xlu0 %1702
    %1704 = vrot.lane.b32.xlu0 %v764, 124
    %v1705 = vpop.permute.xlu0 %1704
    %1706 = vrot.lane.b32.xlu0 %v769, 124
    %v1707 = vpop.permute.xlu0 %1706
    %1708 = vrot.lane.b32.xlu0 %v739, 116
    %v1709 = vpop.permute.xlu0 %1708
    %1710 = vrot.lane.b32.xlu0 %v744, 116
    %v1711 = vpop.permute.xlu0 %1710
    %1712 = vrot.lane.b32.xlu0 %v749, 116
    %v1713 = vpop.permute.xlu0 %1712
    %1714 = vrot.lane.b32.xlu0 %v754, 116
    %v1715 = vpop.permute.xlu0 %1714
    %1716 = vrot.lane.b32.xlu0 %v759, 116
    %v1717 = vpop.permute.xlu0 %1716
    %1718 = vrot.lane.b32.xlu0 %v764, 116
    %v1719 = vpop.permute.xlu0 %1718
    %1720 = vrot.lane.b32.xlu0 %v769, 116
    %v1721 = vpop.permute.xlu0 %1720
    %v1722 = vsel %vm793, %v1695, 0
    %v1724 = vsel %vm793, %v1697, 0
    %v1726 = vsel %vm793, %v1699, 0
    %v1728 = vsel %vm793, %v1701, 0
    %v1730 = vsel %vm793, %v1703, 0
    %v1732 = vsel %vm793, %v1705, 0
    %v1734 = vsel %vm793, %v1707, 0
    %v1736 = vsel %vm793, %v1709, 0
    %v1738 = vsel %vm793, %v1711, 0
    %v1740 = vsel %vm793, %v1713, 0
    %v1742 = vsel %vm793, %v1715, 0
    %v1744 = vsel %vm793, %v1717, 0
    %v1746 = vsel %vm793, %v1719, 0
    %v1748 = vsel %vm793, %v1721, 0
    %1750 = vmatprep.subr.mxu0 0.0
    %1751 = vmatpush1.xpose.msra.mxu0 0.0
    %1752 = vmatprep.subr.mxu0 0.0
    %1753 = vmatpush1.xpose.msra.mxu0 0.0
    %1754 = vmatprep.subr.mxu0 0.0
    %1755 = vmatpush1.xpose.msra.mxu0 0.0
    %1756 = vmatprep.subr.mxu0 0.0
    %1757 = vmatpush1.xpose.msra.mxu0 0.0
    %1758 = vmatprep.subr.mxu0 0.0
    %1759 = vmatpush1.xpose.msra.mxu0 0.0
    %1760 = vmatprep.subr.mxu0 0.0
    %1761 = vmatpush1.xpose.msra.mxu0 0.0
    %1762 = vmatprep.subr.mxu0 0.0
    %1763 = vmatpush1.xpose.msra.mxu0 0.0
    %1764 = vmatprep.subr.mxu0 0.0
    %1765 = vmatpush1.xpose.msra.mxu0 0.0
    %1766 = vmatprep.subr.mxu0 0.0
    %1767 = vmatpush1.xpose.msra.mxu0 0.0
    %1768 = vmatprep.subr.mxu0 0.0
    %1769 = vmatpush1.xpose.msra.mxu0 %v1748
    %1770 = vmatprep.subr.mxu0 0.0
    %1771 = vmatpush1.xpose.msra.mxu0 %v1746
    %1772 = vmatprep.subr.mxu0 0.0
    %1773 = vmatpush1.xpose.msra.mxu0 %v1744
    %1774 = vmatprep.subr.mxu0 0.0
    %1775 = vmatpush1.xpose.msra.mxu0 %v1742
    %1776 = vmatprep.subr.mxu0 0.0
    %1777 = vmatpush1.xpose.msra.mxu0 %v1740
    %1778 = vmatprep.subr.mxu0 0.0
    %1779 = vmatpush1.xpose.msra.mxu0 %v1738
    %1780 = vmatprep.subr.mxu0 0.0
    %1781 = vmatpush1.xpose.msra.mxu0 %v1736
    %1782 = vmatprep.subr.mxu0 0.0
    %1783 = vmatpush2.xpose.msra.mxu0 0.0
    %1784 = vmatprep.subr.mxu0 0.0
    %1785 = vmatpush2.xpose.msra.mxu0 0.0
    %1786 = vmatprep.subr.mxu0 0.0
    %1787 = vmatpush2.xpose.msra.mxu0 0.0
    %1788 = vmatprep.subr.mxu0 0.0
    %1789 = vmatpush2.xpose.msra.mxu0 0.0
    %1790 = vmatprep.subr.mxu0 0.0
    %1791 = vmatpush2.xpose.msra.mxu0 0.0
    %1792 = vmatprep.subr.mxu0 0.0
    %1793 = vmatpush2.xpose.msra.mxu0 0.0
    %1794 = vmatprep.subr.mxu0 0.0
    %1795 = vmatpush2.xpose.msra.mxu0 0.0
    %1796 = vmatprep.subr.mxu0 0.0
    %1797 = vmatpush2.xpose.msra.mxu0 0.0
    %1798 = vmatprep.subr.mxu0 0.0
    %1799 = vmatpush2.xpose.msra.mxu0 0.0
    %1800 = vmatprep.subr.mxu0 0.0
    %1801 = vmatpush2.xpose.msra.mxu0 0.0
    %1802 = vmatprep.subr.mxu0 0.0
    %1803 = vmatpush2.xpose.msra.mxu0 0.0
    %1804 = vmatprep.subr.mxu0 0.0
    %1805 = vmatpush2.xpose.msra.mxu0 0.0
    %1806 = vmatprep.subr.mxu0 0.0
    %1807 = vmatpush2.xpose.msra.mxu0 0.0
    %1808 = vmatprep.subr.mxu0 0.0
    %1809 = vmatpush2.xpose.msra.mxu0 0.0
    %1810 = vmatprep.subr.mxu0 0.0
    %1811 = vmatpush2.xpose.msra.mxu0 0.0
    %1812 = vmatprep.subr.mxu0 0.0
    %1813 = vmatpush2.xpose.msra.mxu0 0.0
    %1814 = vmatprep.mubr.f32.mxu0 0.0
    %1815 = vmatmul.mubr.f32.gmra.mxu0 %v1722
    %v1816 = vpop.f32.mrf.mxu0
    %v1817 = vadd.f32 0.0, %v1816
    %v1818 = vpop.f32.mrf.mxu0
    %1819 = vmatprep.mubr.f32.mxu0 0.0
    %1820 = vmatmul.mubr.f32.gmra.mxu0 %v1724
    %v1821 = vpop.f32.mrf.mxu0
    %v1822 = vadd.f32 0.0, %v1821
    %v1823 = vpop.f32.mrf.mxu0
    %1824 = vmatprep.mubr.f32.mxu0 0.0
    %1825 = vmatmul.mubr.f32.gmra.mxu0 %v1726
    %v1826 = vpop.f32.mrf.mxu0
    %v1827 = vadd.f32 0.0, %v1826
    %v1828 = vpop.f32.mrf.mxu0
    %1829 = vmatprep.mubr.f32.mxu0 0.0
    %1830 = vmatmul.mubr.f32.gmra.mxu0 %v1728
    %v1831 = vpop.f32.mrf.mxu0
    %v1832 = vadd.f32 0.0, %v1831
    %v1833 = vpop.f32.mrf.mxu0
    %1834 = vmatprep.mubr.f32.mxu0 0.0
    %1835 = vmatmul.mubr.f32.gmra.mxu0 %v1730
    %v1836 = vpop.f32.mrf.mxu0
    %v1837 = vadd.f32 0.0, %v1836
    %v1838 = vpop.f32.mrf.mxu0
    %1839 = vmatprep.mubr.f32.mxu0 0.0
    %1840 = vmatmul.mubr.f32.gmra.mxu0 %v1732
    %v1841 = vpop.f32.mrf.mxu0
    %v1842 = vadd.f32 0.0, %v1841
    %v1843 = vpop.f32.mrf.mxu0
    %1844 = vmatprep.mubr.f32.mxu0 0.0
    %1845 = vmatmul.mubr.f32.gmra.mxu0 %v1734
    %v1846 = vpop.f32.mrf.mxu0
    %v1847 = vadd.f32 0.0, %v1846
    %v1848 = vpop.f32.mrf.mxu0
    %1849 = vdwg.mxu0
    %v1850 = vmul.f32 %v1661, 0.5
    %v1851 = vmul.f32 %v1666, 0.5
    %v1852 = vmul.f32 %v1671, 0.5
    %v1853 = vmul.f32 %v1676, 0.5
    %v1854 = vmul.f32 %v1681, 0.5
    %v1855 = vmul.f32 %v1686, 0.5
    %v1856 = vmul.f32 %v1691, 0.5
    %v1857 = vmul.f32 %v1817, 0.5
    %v1858 = vmul.f32 %v1822, 0.5
    %v1859 = vmul.f32 %v1827, 0.5
    %v1860 = vmul.f32 %v1832, 0.5
    %v1861 = vmul.f32 %v1837, 0.5
    %v1862 = vmul.f32 %v1842, 0.5
    %v1863 = vmul.f32 %v1847, 0.5
    %v1864 = vadd.f32 %v1850, %v262
    %v1865 = vadd.f32 %v1851, %v262
    %v1866 = vadd.f32 %v1852, %v262
    %v1867 = vadd.f32 %v1853, %v262
    %v1868 = vadd.f32 %v1854, %v262
    %v1869 = vadd.f32 %v1855, %v262
    %v1870 = vadd.f32 %v1856, %v262
    %v1871 = vadd.f32 %v1857, %v262
    %v1872 = vadd.f32 %v1858, %v262
    %v1873 = vadd.f32 %v1859, %v262
    %v1874 = vadd.f32 %v1860, %v262
    %v1875 = vadd.f32 %v1861, %v262
    %v1876 = vadd.f32 %v1862, %v262
    %v1877 = vadd.f32 %v1863, %v262
    %v1878 = vsel %vm1099, %v1864, -inf
    %1879 = vmax.xlane.f32.xlu0 %v1878
    %v1880 = vpop.xlane.xlu0 %1879
    %v1881 = vsel %vm1099, %v1865, -inf
    %1882 = vmax.xlane.f32.xlu0 %v1881
    %v1883 = vpop.xlane.xlu0 %1882
    %v1884 = vsel %vm1099, %v1866, -inf
    %1885 = vmax.xlane.f32.xlu0 %v1884
    %v1886 = vpop.xlane.xlu0 %1885
    %v1887 = vsel %vm1099, %v1867, -inf
    %1888 = vmax.xlane.f32.xlu0 %v1887
    %v1889 = vpop.xlane.xlu0 %1888
    %v1890 = vsel %vm1099, %v1868, -inf
    %1891 = vmax.xlane.f32.xlu0 %v1890
    %v1892 = vpop.xlane.xlu0 %1891
    %v1893 = vsel %vm1099, %v1869, -inf
    %1894 = vmax.xlane.f32.xlu0 %v1893
    %v1895 = vpop.xlane.xlu0 %1894
    %v1896 = vsel %vm1099, %v1870, -inf
    %1897 = vmax.xlane.f32.xlu0 %v1896
    %v1898 = vpop.xlane.xlu0 %1897
    %v1899 = vsel %vm1099, %v1871, -inf
    %1900 = vmax.xlane.f32.xlu0 %v1899
    %v1901 = vpop.xlane.xlu0 %1900
    %v1902 = vsel %vm1099, %v1872, -inf
    %1903 = vmax.xlane.f32.xlu0 %v1902
    %v1904 = vpop.xlane.xlu0 %1903
    %v1905 = vsel %vm1099, %v1873, -inf
    %1906 = vmax.xlane.f32.xlu0 %v1905
    %v1907 = vpop.xlane.xlu0 %1906
    %v1908 = vsel %vm1099, %v1874, -inf
    %1909 = vmax.xlane.f32.xlu0 %v1908
    %v1910 = vpop.xlane.xlu0 %1909
    %v1911 = vsel %vm1099, %v1875, -inf
    %1912 = vmax.xlane.f32.xlu0 %v1911
    %v1913 = vpop.xlane.xlu0 %1912
    %v1914 = vsel %vm1099, %v1876, -inf
    %1915 = vmax.xlane.f32.xlu0 %v1914
    %v1916 = vpop.xlane.xlu0 %1915
    %v1917 = vsel %vm1099, %v1877, -inf
    %1918 = vmax.xlane.f32.xlu0 %v1917
    %v1919 = vpop.xlane.xlu0 %1918
    %v1920 = vsub.f32 %v1864, %v1880
    %v1921 = vsub.f32 %v1865, %v1883
    %v1922 = vsub.f32 %v1866, %v1886
    %v1923 = vsub.f32 %v1867, %v1889
    %v1924 = vsub.f32 %v1868, %v1892
    %v1925 = vsub.f32 %v1869, %v1895
    %v1926 = vsub.f32 %v1870, %v1898
    %v1927 = vsub.f32 %v1871, %v1901
    %v1928 = vsub.f32 %v1872, %v1904
    %v1929 = vsub.f32 %v1873, %v1907
    %v1930 = vsub.f32 %v1874, %v1910
    %v1931 = vsub.f32 %v1875, %v1913
    %v1932 = vsub.f32 %v1876, %v1916
    %v1933 = vsub.f32 %v1877, %v1919
    %v1934 = vmul.f32 %v1920, 1.442695
    %v1935 = vpow.pop %v1934
    %v1936 = vmul.f32 %v1921, 1.442695
    %v1937 = vpow.pop %v1936
    %v1938 = vmul.f32 %v1922, 1.442695
    %v1939 = vpow.pop %v1938
    %v1940 = vmul.f32 %v1923, 1.442695
    %v1941 = vpow.pop %v1940
    %v1942 = vmul.f32 %v1924, 1.442695
    %v1943 = vpow.pop %v1942
    %v1944 = vmul.f32 %v1925, 1.442695
    %v1945 = vpow.pop %v1944
    %v1946 = vmul.f32 %v1926, 1.442695
    %v1947 = vpow.pop %v1946
    %v1948 = vmul.f32 %v1927, 1.442695
    %v1949 = vpow.pop %v1948
    %v1950 = vmul.f32 %v1928, 1.442695
    %v1951 = vpow.pop %v1950
    %v1952 = vmul.f32 %v1929, 1.442695
    %v1953 = vpow.pop %v1952
    %v1954 = vmul.f32 %v1930, 1.442695
    %v1955 = vpow.pop %v1954
    %v1956 = vmul.f32 %v1931, 1.442695
    %v1957 = vpow.pop %v1956
    %v1958 = vmul.f32 %v1932, 1.442695
    %v1959 = vpow.pop %v1958
    %v1960 = vmul.f32 %v1933, 1.442695
    %v1961 = vpow.pop %v1960
    %v1962 = vsel %vm1099, %v1935, 0.0
    %1963 = vadd.xlane.f32.xlu0 %v1962
    %v1964 = vpop.xlane.xlu0 %1963
    %v1965 = vsel %vm1099, %v1937, 0.0
    %1966 = vadd.xlane.f32.xlu0 %v1965
    %v1967 = vpop.xlane.xlu0 %1966
    %v1968 = vsel %vm1099, %v1939, 0.0
    %1969 = vadd.xlane.f32.xlu0 %v1968
    %v1970 = vpop.xlane.xlu0 %1969
    %v1971 = vsel %vm1099, %v1941, 0.0
    %1972 = vadd.xlane.f32.xlu0 %v1971
    %v1973 = vpop.xlane.xlu0 %1972
    %v1974 = vsel %vm1099, %v1943, 0.0
    %1975 = vadd.xlane.f32.xlu0 %v1974
    %v1976 = vpop.xlane.xlu0 %1975
    %v1977 = vsel %vm1099, %v1945, 0.0
    %1978 = vadd.xlane.f32.xlu0 %v1977
    %v1979 = vpop.xlane.xlu0 %1978
    %v1980 = vsel %vm1099, %v1947, 0.0
    %1981 = vadd.xlane.f32.xlu0 %v1980
    %v1982 = vpop.xlane.xlu0 %1981
    %v1983 = vsel %vm1099, %v1949, 0.0
    %1984 = vadd.xlane.f32.xlu0 %v1983
    %v1985 = vpop.xlane.xlu0 %1984
    %v1986 = vsel %vm1099, %v1951, 0.0
    %1987 = vadd.xlane.f32.xlu0 %v1986
    %v1988 = vpop.xlane.xlu0 %1987
    %v1989 = vsel %vm1099, %v1953, 0.0
    %1990 = vadd.xlane.f32.xlu0 %v1989
    %v1991 = vpop.xlane.xlu0 %1990
    %v1992 = vsel %vm1099, %v1955, 0.0
    %1993 = vadd.xlane.f32.xlu0 %v1992
    %v1994 = vpop.xlane.xlu0 %1993
    %v1995 = vsel %vm1099, %v1957, 0.0
    %1996 = vadd.xlane.f32.xlu0 %v1995
    %v1997 = vpop.xlane.xlu0 %1996
    %v1998 = vsel %vm1099, %v1959, 0.0
    %1999 = vadd.xlane.f32.xlu0 %v1998
    %v2000 = vpop.xlane.xlu0 %1999
    %v2001 = vsel %vm1099, %v1961, 0.0
    %2002 = vadd.xlane.f32.xlu0 %v2001
    %v2003 = vpop.xlane.xlu0 %2002
    %v2004 = vrcp.pop %v1964
    %v2005 = vmul.f32 %v1935, %v2004
    %v2006 = vrcp.pop %v1967
    %v2007 = vmul.f32 %v1937, %v2006
    %v2008 = vrcp.pop %v1970
    %v2009 = vmul.f32 %v1939, %v2008
    %v2010 = vrcp.pop %v1973
    %v2011 = vmul.f32 %v1941, %v2010
    %v2012 = vrcp.pop %v1976
    %v2013 = vmul.f32 %v1943, %v2012
    %v2014 = vrcp.pop %v1979
    %v2015 = vmul.f32 %v1945, %v2014
    %v2016 = vrcp.pop %v1982
    %v2017 = vmul.f32 %v1947, %v2016
    %v2018 = vrcp.pop %v1985
    %v2019 = vmul.f32 %v1949, %v2018
    %v2020 = vrcp.pop %v1988
    %v2021 = vmul.f32 %v1951, %v2020
    %v2022 = vrcp.pop %v1991
    %v2023 = vmul.f32 %v1953, %v2022
    %v2024 = vrcp.pop %v1994
    %v2025 = vmul.f32 %v1955, %v2024
    %v2026 = vrcp.pop %v1997
    %v2027 = vmul.f32 %v1957, %v2026
    %v2028 = vrcp.pop %v2000
    %v2029 = vmul.f32 %v1959, %v2028
    %v2030 = vrcp.pop %v2003
    %v2031 = vmul.f32 %v1961, %v2030
    %2032 = vrot.lane.b32.xlu0 %v704, 108
    %v2033 = vpop.permute.xlu0 %2032
    %2034 = vrot.lane.b32.xlu0 %v709, 108
    %v2035 = vpop.permute.xlu0 %2034
    %2036 = vrot.lane.b32.xlu0 %v714, 108
    %v2037 = vpop.permute.xlu0 %2036
    %2038 = vrot.lane.b32.xlu0 %v719, 108
    %v2039 = vpop.permute.xlu0 %2038
    %2040 = vrot.lane.b32.xlu0 %v724, 108
    %v2041 = vpop.permute.xlu0 %2040
    %2042 = vrot.lane.b32.xlu0 %v729, 108
    %v2043 = vpop.permute.xlu0 %2042
    %2044 = vrot.lane.b32.xlu0 %v734, 108
    %v2045 = vpop.permute.xlu0 %2044
    %v2054 = vsel %vm1099, %v2005, 0
    %v2057 = vsel %vm1099, %v2007, 0
    %v2060 = vsel %vm1099, %v2009, 0
    %v2063 = vsel %vm1099, %v2011, 0
    %v2066 = vsel %vm1099, %v2013, 0
    %v2069 = vsel %vm1099, %v2015, 0
    %v2072 = vsel %vm1099, %v2017, 0
    %2074 = vmatprep.subr.mxu0 0.0
    %2075 = vmatpush1.msra.mxu0 0.0
    %2076 = vmatprep.subr.mxu0 0.0
    %2077 = vmatpush1.msra.mxu0 0.0
    %2078 = vmatprep.subr.mxu0 0.0
    %2079 = vmatpush1.msra.mxu0 0.0
    %2080 = vmatprep.subr.mxu0 0.0
    %2081 = vmatpush1.msra.mxu0 0.0
    %2082 = vmatprep.subr.mxu0 0.0
    %2083 = vmatpush1.msra.mxu0 0.0
    %2084 = vmatprep.subr.mxu0 0.0
    %2085 = vmatpush1.msra.mxu0 0.0
    %2086 = vmatprep.subr.mxu0 0.0
    %2087 = vmatpush1.msra.mxu0 0.0
    %2088 = vmatprep.subr.mxu0 0.0
    %2089 = vmatpush1.msra.mxu0 0.0
    %2090 = vmatprep.subr.mxu0 0.0
    %2091 = vmatpush1.msra.mxu0 0.0
    %2092 = vmatprep.subr.mxu0 0.0
    %2093 = vmatpush1.msra.mxu0 %v2045
    %2094 = vmatprep.subr.mxu0 0.0
    %2095 = vmatpush1.msra.mxu0 %v2043
    %2096 = vmatprep.subr.mxu0 0.0
    %2097 = vmatpush1.msra.mxu0 %v2041
    %2098 = vmatprep.subr.mxu0 0.0
    %2099 = vmatpush1.msra.mxu0 %v2039
    %2100 = vmatprep.subr.mxu0 0.0
    %2101 = vmatpush1.msra.mxu0 %v2037
    %2102 = vmatprep.subr.mxu0 0.0
    %2103 = vmatpush1.msra.mxu0 %v2035
    %2104 = vmatprep.subr.mxu0 0.0
    %2105 = vmatpush1.msra.mxu0 %v2033
    %2106 = vmatprep.subr.mxu0 0.0
    %2107 = vmatpush2.msra.mxu0 0.0
    %2108 = vmatprep.subr.mxu0 0.0
    %2109 = vmatpush2.msra.mxu0 0.0
    %2110 = vmatprep.subr.mxu0 0.0
    %2111 = vmatpush2.msra.mxu0 0.0
    %2112 = vmatprep.subr.mxu0 0.0
    %2113 = vmatpush2.msra.mxu0 0.0
    %2114 = vmatprep.subr.mxu0 0.0
    %2115 = vmatpush2.msra.mxu0 0.0
    %2116 = vmatprep.subr.mxu0 0.0
    %2117 = vmatpush2.msra.mxu0 0.0
    %2118 = vmatprep.subr.mxu0 0.0
    %2119 = vmatpush2.msra.mxu0 0.0
    %2120 = vmatprep.subr.mxu0 0.0
    %2121 = vmatpush2.msra.mxu0 0.0
    %2122 = vmatprep.subr.mxu0 0.0
    %2123 = vmatpush2.msra.mxu0 0.0
    %2124 = vmatprep.subr.mxu0 0.0
    %2125 = vmatpush2.msra.mxu0 0.0
    %2126 = vmatprep.subr.mxu0 0.0
    %2127 = vmatpush2.msra.mxu0 0.0
    %2128 = vmatprep.subr.mxu0 0.0
    %2129 = vmatpush2.msra.mxu0 0.0
    %2130 = vmatprep.subr.mxu0 0.0
    %2131 = vmatpush2.msra.mxu0 0.0
    %2132 = vmatprep.subr.mxu0 0.0
    %2133 = vmatpush2.msra.mxu0 0.0
    %2134 = vmatprep.subr.mxu0 0.0
    %2135 = vmatpush2.msra.mxu0 0.0
    %2136 = vmatprep.subr.mxu0 0.0
    %2137 = vmatpush2.msra.mxu0 0.0
    %2138 = vmatprep.mubr.f32.mxu0 0.0
    %2139 = vmatmul.mubr.f32.gmra.mxu0 %v2054
    %v2140 = vpop.f32.mrf.mxu0
    %v2141 = vadd.f32 0.0, %v2140
    %v2142 = vpop.f32.mrf.mxu0
    %2143 = vmatprep.mubr.f32.mxu0 0.0
    %2144 = vmatmul.mubr.f32.gmra.mxu0 %v2057
    %v2145 = vpop.f32.mrf.mxu0
    %v2146 = vadd.f32 0.0, %v2145
    %v2147 = vpop.f32.mrf.mxu0
    %2148 = vmatprep.mubr.f32.mxu0 0.0
    %2149 = vmatmul.mubr.f32.gmra.mxu0 %v2060
    %v2150 = vpop.f32.mrf.mxu0
    %v2151 = vadd.f32 0.0, %v2150
    %v2152 = vpop.f32.mrf.mxu0
    %2153 = vmatprep.mubr.f32.mxu0 0.0
    %2154 = vmatmul.mubr.f32.gmra.mxu0 %v2063
    %v2155 = vpop.f32.mrf.mxu0
    %v2156 = vadd.f32 0.0, %v2155
    %v2157 = vpop.f32.mrf.mxu0
    %2158 = vmatprep.mubr.f32.mxu0 0.0
    %2159 = vmatmul.mubr.f32.gmra.mxu0 %v2066
    %v2160 = vpop.f32.mrf.mxu0
    %v2161 = vadd.f32 0.0, %v2160
    %v2162 = vpop.f32.mrf.mxu0
    %2163 = vmatprep.mubr.f32.mxu0 0.0
    %2164 = vmatmul.mubr.f32.gmra.mxu0 %v2069
    %v2165 = vpop.f32.mrf.mxu0
    %v2166 = vadd.f32 0.0, %v2165
    %v2167 = vpop.f32.mrf.mxu0
    %2168 = vmatprep.mubr.f32.mxu0 0.0
    %2169 = vmatmul.mubr.f32.gmra.mxu0 %v2072
    %v2170 = vpop.f32.mrf.mxu0
    %v2171 = vadd.f32 0.0, %v2170
    %v2172 = vpop.f32.mrf.mxu0
    %2173 = vdwg.mxu0
    %2174 = vrot.lane.b32.xlu0 %v739, 108
    %v2175 = vpop.permute.xlu0 %2174
    %2176 = vrot.lane.b32.xlu0 %v744, 108
    %v2177 = vpop.permute.xlu0 %2176
    %2178 = vrot.lane.b32.xlu0 %v749, 108
    %v2179 = vpop.permute.xlu0 %2178
    %2180 = vrot.lane.b32.xlu0 %v754, 108
    %v2181 = vpop.permute.xlu0 %2180
    %2182 = vrot.lane.b32.xlu0 %v759, 108
    %v2183 = vpop.permute.xlu0 %2182
    %2184 = vrot.lane.b32.xlu0 %v764, 108
    %v2185 = vpop.permute.xlu0 %2184
    %2186 = vrot.lane.b32.xlu0 %v769, 108
    %v2187 = vpop.permute.xlu0 %2186
    %v2196 = vsel %vm1099, %v2019, 0
    %v2199 = vsel %vm1099, %v2021, 0
    %v2202 = vsel %vm1099, %v2023, 0
    %v2205 = vsel %vm1099, %v2025, 0
    %v2208 = vsel %vm1099, %v2027, 0
    %v2211 = vsel %vm1099, %v2029, 0
    %v2214 = vsel %vm1099, %v2031, 0
    %2216 = vmatprep.subr.mxu0 0.0
    %2217 = vmatpush1.msra.mxu0 0.0
    %2218 = vmatprep.subr.mxu0 0.0
    %2219 = vmatpush1.msra.mxu0 0.0
    %2220 = vmatprep.subr.mxu0 0.0
    %2221 = vmatpush1.msra.mxu0 0.0
    %2222 = vmatprep.subr.mxu0 0.0
    %2223 = vmatpush1.msra.mxu0 0.0
    %2224 = vmatprep.subr.mxu0 0.0
    %2225 = vmatpush1.msra.mxu0 0.0
    %2226 = vmatprep.subr.mxu0 0.0
    %2227 = vmatpush1.msra.mxu0 0.0
    %2228 = vmatprep.subr.mxu0 0.0
    %2229 = vmatpush1.msra.mxu0 0.0
    %2230 = vmatprep.subr.mxu0 0.0
    %2231 = vmatpush1.msra.mxu0 0.0
    %2232 = vmatprep.subr.mxu0 0.0
    %2233 = vmatpush1.msra.mxu0 0.0
    %2234 = vmatprep.subr.mxu0 0.0
    %2235 = vmatpush1.msra.mxu0 %v2187
    %2236 = vmatprep.subr.mxu0 0.0
    %2237 = vmatpush1.msra.mxu0 %v2185
    %2238 = vmatprep.subr.mxu0 0.0
    %2239 = vmatpush1.msra.mxu0 %v2183
    %2240 = vmatprep.subr.mxu0 0.0
    %2241 = vmatpush1.msra.mxu0 %v2181
    %2242 = vmatprep.subr.mxu0 0.0
    %2243 = vmatpush1.msra.mxu0 %v2179
    %2244 = vmatprep.subr.mxu0 0.0
    %2245 = vmatpush1.msra.mxu0 %v2177
    %2246 = vmatprep.subr.mxu0 0.0
    %2247 = vmatpush1.msra.mxu0 %v2175
    %2248 = vmatprep.subr.mxu0 0.0
    %2249 = vmatpush2.msra.mxu0 0.0
    %2250 = vmatprep.subr.mxu0 0.0
    %2251 = vmatpush2.msra.mxu0 0.0
    %2252 = vmatprep.subr.mxu0 0.0
    %2253 = vmatpush2.msra.mxu0 0.0
    %2254 = vmatprep.subr.mxu0 0.0
    %2255 = vmatpush2.msra.mxu0 0.0
    %2256 = vmatprep.subr.mxu0 0.0
    %2257 = vmatpush2.msra.mxu0 0.0
    %2258 = vmatprep.subr.mxu0 0.0
    %2259 = vmatpush2.msra.mxu0 0.0
    %2260 = vmatprep.subr.mxu0 0.0
    %2261 = vmatpush2.msra.mxu0 0.0
    %2262 = vmatprep.subr.mxu0 0.0
    %2263 = vmatpush2.msra.mxu0 0.0
    %2264 = vmatprep.subr.mxu0 0.0
    %2265 = vmatpush2.msra.mxu0 0.0
    %2266 = vmatprep.subr.mxu0 0.0
    %2267 = vmatpush2.msra.mxu0 0.0
    %2268 = vmatprep.subr.mxu0 0.0
    %2269 = vmatpush2.msra.mxu0 0.0
    %2270 = vmatprep.subr.mxu0 0.0
    %2271 = vmatpush2.msra.mxu0 0.0
    %2272 = vmatprep.subr.mxu0 0.0
    %2273 = vmatpush2.msra.mxu0 0.0
    %2274 = vmatprep.subr.mxu0 0.0
    %2275 = vmatpush2.msra.mxu0 0.0
    %2276 = vmatprep.subr.mxu0 0.0
    %2277 = vmatpush2.msra.mxu0 0.0
    %2278 = vmatprep.subr.mxu0 0.0
    %2279 = vmatpush2.msra.mxu0 0.0
    %2280 = vmatprep.mubr.f32.mxu0 0.0
    %2281 = vmatmul.mubr.f32.gmra.mxu0 %v2196
    %v2282 = vpop.f32.mrf.mxu0
    %v2283 = vadd.f32 0.0, %v2282
    %v2284 = vpop.f32.mrf.mxu0
    %2285 = vmatprep.mubr.f32.mxu0 0.0
    %2286 = vmatmul.mubr.f32.gmra.mxu0 %v2199
    %v2287 = vpop.f32.mrf.mxu0
    %v2288 = vadd.f32 0.0, %v2287
    %v2289 = vpop.f32.mrf.mxu0
    %2290 = vmatprep.mubr.f32.mxu0 0.0
    %2291 = vmatmul.mubr.f32.gmra.mxu0 %v2202
    %v2292 = vpop.f32.mrf.mxu0
    %v2293 = vadd.f32 0.0, %v2292
    %v2294 = vpop.f32.mrf.mxu0
    %2295 = vmatprep.mubr.f32.mxu0 0.0
    %2296 = vmatmul.mubr.f32.gmra.mxu0 %v2205
    %v2297 = vpop.f32.mrf.mxu0
    %v2298 = vadd.f32 0.0, %v2297
    %v2299 = vpop.f32.mrf.mxu0
    %2300 = vmatprep.mubr.f32.mxu0 0.0
    %2301 = vmatmul.mubr.f32.gmra.mxu0 %v2208
    %v2302 = vpop.f32.mrf.mxu0
    %v2303 = vadd.f32 0.0, %v2302
    %v2304 = vpop.f32.mrf.mxu0
    %2305 = vmatprep.mubr.f32.mxu0 0.0
    %2306 = vmatmul.mubr.f32.gmra.mxu0 %v2211
    %v2307 = vpop.f32.mrf.mxu0
    %v2308 = vadd.f32 0.0, %v2307
    %v2309 = vpop.f32.mrf.mxu0
    %2310 = vmatprep.mubr.f32.mxu0 0.0
    %2311 = vmatmul.mubr.f32.gmra.mxu0 %v2214
    %v2312 = vpop.f32.mrf.mxu0
    %v2313 = vadd.f32 0.0, %v2312
    %v2314 = vpop.f32.mrf.mxu0
    %2315 = vdwg.mxu0
    %2330 = vrot.lane.b32.xlu0 %v2141, 4
    %v2331 = vpop.permute.xlu0 %2330
    %2332 = vrot.lane.b32.xlu0 %v2146, 4
    %v2333 = vpop.permute.xlu0 %2332
    %2334 = vrot.lane.b32.xlu0 %v2151, 4
    %v2335 = vpop.permute.xlu0 %2334
    %2336 = vrot.lane.b32.xlu0 %v2156, 4
    %v2337 = vpop.permute.xlu0 %2336
    %2338 = vrot.lane.b32.xlu0 %v2161, 4
    %v2339 = vpop.permute.xlu0 %2338
    %2340 = vrot.lane.b32.xlu0 %v2166, 4
    %v2341 = vpop.permute.xlu0 %2340
    %2342 = vrot.lane.b32.xlu0 %v2171, 4
    %v2343 = vpop.permute.xlu0 %2342
    %2344 = vrot.lane.b32.xlu0 %v2283, 4
    %v2345 = vpop.permute.xlu0 %2344
    %2346 = vrot.lane.b32.xlu0 %v2288, 4
    %v2347 = vpop.permute.xlu0 %2346
    %2348 = vrot.lane.b32.xlu0 %v2293, 4
    %v2349 = vpop.permute.xlu0 %2348
    %2350 = vrot.lane.b32.xlu0 %v2298, 4
    %v2351 = vpop.permute.xlu0 %2350
    %2352 = vrot.lane.b32.xlu0 %v2303, 4
    %v2353 = vpop.permute.xlu0 %2352
    %2354 = vrot.lane.b32.xlu0 %v2308, 4
    %v2355 = vpop.permute.xlu0 %2354
    %2356 = vrot.lane.b32.xlu0 %v2313, 4
    %v2357 = vpop.permute.xlu0 %2356
    %v2372 = vsel %vm793, %v1363, %v2331
    %v2373 = vsel %vm793, %v1368, %v2333
    %v2374 = vsel %vm793, %v1373, %v2335
    %v2375 = vsel %vm793, %v1378, %v2337
    %v2376 = vsel %vm793, %v1383, %v2339
    %v2377 = vsel %vm793, %v1388, %v2341
    %v2378 = vsel %vm793, %v1393, %v2343
    %v2379 = vsel %vm793, %v1505, %v2345
    %v2380 = vsel %vm793, %v1510, %v2347
    %v2381 = vsel %vm793, %v1515, %v2349
    %v2382 = vsel %vm793, %v1520, %v2351
    %v2383 = vsel %vm793, %v1525, %v2353
    %v2384 = vsel %vm793, %v1530, %v2355
    %v2385 = vsel %vm793, %v1535, %v2357
    %v2386 = vadd.f32 %v191, %v2372
    %v2387 = vadd.f32 %v196, %v2373
    %v2388 = vadd.f32 %v201, %v2374
    %v2389 = vadd.f32 %v206, %v2375
    %v2390 = vadd.f32 %v211, %v2376
    %v2391 = vadd.f32 %v216, %v2377
    %v2392 = vadd.f32 %v221, %v2378
    %v2393 = vadd.f32 %v226, %v2379
    %v2394 = vadd.f32 %v231, %v2380
    %v2395 = vadd.f32 %v236, %v2381
    %v2396 = vadd.f32 %v241, %v2382
    %v2397 = vadd.f32 %v246, %v2383
    %v2398 = vadd.f32 %v251, %v2384
    %v2399 = vadd.f32 %v256, %v2385
    %v2400 = vld [vmem:[%s7] sm:$0x1]
    %v2401 = vld [vmem:[%s8] sm:$0x1]
    %v2402 = vsel %vm265, %v2386, 0.0
    %2403 = vadd.xlane.f32.xlu0 %v2402
    %v2404 = vpop.xlane.xlu0 %2403
    %v2405 = vsel %vm265, %v2387, 0.0
    %2406 = vadd.xlane.f32.xlu0 %v2405
    %v2407 = vpop.xlane.xlu0 %2406
    %v2408 = vsel %vm265, %v2388, 0.0
    %2409 = vadd.xlane.f32.xlu0 %v2408
    %v2410 = vpop.xlane.xlu0 %2409
    %v2411 = vsel %vm265, %v2389, 0.0
    %2412 = vadd.xlane.f32.xlu0 %v2411
    %v2413 = vpop.xlane.xlu0 %2412
    %v2414 = vsel %vm265, %v2390, 0.0
    %2415 = vadd.xlane.f32.xlu0 %v2414
    %v2416 = vpop.xlane.xlu0 %2415
    %v2417 = vsel %vm265, %v2391, 0.0
    %2418 = vadd.xlane.f32.xlu0 %v2417
    %v2419 = vpop.xlane.xlu0 %2418
    %v2420 = vsel %vm265, %v2392, 0.0
    %2421 = vadd.xlane.f32.xlu0 %v2420
    %v2422 = vpop.xlane.xlu0 %2421
    %v2423 = vsel %vm265, %v2393, 0.0
    %2424 = vadd.xlane.f32.xlu0 %v2423
    %v2425 = vpop.xlane.xlu0 %2424
    %v2426 = vsel %vm265, %v2394, 0.0
    %2427 = vadd.xlane.f32.xlu0 %v2426
    %v2428 = vpop.xlane.xlu0 %2427
    %v2429 = vsel %vm265, %v2395, 0.0
    %2430 = vadd.xlane.f32.xlu0 %v2429
    %v2431 = vpop.xlane.xlu0 %2430
    %v2432 = vsel %vm265, %v2396, 0.0
    %2433 = vadd.xlane.f32.xlu0 %v2432
    %v2434 = vpop.xlane.xlu0 %2433
    %v2435 = vsel %vm265, %v2397, 0.0
    %2436 = vadd.xlane.f32.xlu0 %v2435
    %v2437 = vpop.xlane.xlu0 %2436
    %v2438 = vsel %vm265, %v2398, 0.0
    %2439 = vadd.xlane.f32.xlu0 %v2438
    %v2440 = vpop.xlane.xlu0 %2439
    %v2441 = vsel %vm265, %v2399, 0.0
    %2442 = vadd.xlane.f32.xlu0 %v2441
    %v2443 = vpop.xlane.xlu0 %2442
    %v2444 = vmul.f32 %v2404, %v308
    %v2445 = vmul.f32 %v2407, %v308
    %v2446 = vmul.f32 %v2410, %v308
    %v2447 = vmul.f32 %v2413, %v308
    %v2448 = vmul.f32 %v2416, %v308
    %v2449 = vmul.f32 %v2419, %v308
    %v2450 = vmul.f32 %v2422, %v308
    %v2451 = vmul.f32 %v2425, %v308
    %v2452 = vmul.f32 %v2428, %v308
    %v2453 = vmul.f32 %v2431, %v308
    %v2454 = vmul.f32 %v2434, %v308
    %v2455 = vmul.f32 %v2437, %v308
    %v2456 = vmul.f32 %v2440, %v308
    %v2457 = vmul.f32 %v2443, %v308
    %v2458 = vsub.f32 %v2386, %v2444
    %v2459 = vsub.f32 %v2387, %v2445
    %v2460 = vsub.f32 %v2388, %v2446
    %v2461 = vsub.f32 %v2389, %v2447
    %v2462 = vsub.f32 %v2390, %v2448
    %v2463 = vsub.f32 %v2391, %v2449
    %v2464 = vsub.f32 %v2392, %v2450
    %v2465 = vsub.f32 %v2393, %v2451
    %v2466 = vsub.f32 %v2394, %v2452
    %v2467 = vsub.f32 %v2395, %v2453
    %v2468 = vsub.f32 %v2396, %v2454
    %v2469 = vsub.f32 %v2397, %v2455
    %v2470 = vsub.f32 %v2398, %v2456
    %v2471 = vsub.f32 %v2399, %v2457
    %v2472 = vmul.f32 %v2458, %v2458
    %v2473 = vmul.f32 %v2459, %v2459
    %v2474 = vmul.f32 %v2460, %v2460
    %v2475 = vmul.f32 %v2461, %v2461
    %v2476 = vmul.f32 %v2462, %v2462
    %v2477 = vmul.f32 %v2463, %v2463
    %v2478 = vmul.f32 %v2464, %v2464
    %v2479 = vmul.f32 %v2465, %v2465
    %v2480 = vmul.f32 %v2466, %v2466
    %v2481 = vmul.f32 %v2467, %v2467
    %v2482 = vmul.f32 %v2468, %v2468
    %v2483 = vmul.f32 %v2469, %v2469
    %v2484 = vmul.f32 %v2470, %v2470
    %v2485 = vmul.f32 %v2471, %v2471
    %v2486 = vsel %vm265, %v2472, 0.0
    %2487 = vadd.xlane.f32.xlu0 %v2486
    %v2488 = vpop.xlane.xlu0 %2487
    %v2489 = vsel %vm265, %v2473, 0.0
    %2490 = vadd.xlane.f32.xlu0 %v2489
    %v2491 = vpop.xlane.xlu0 %2490
    %v2492 = vsel %vm265, %v2474, 0.0
    %2493 = vadd.xlane.f32.xlu0 %v2492
    %v2494 = vpop.xlane.xlu0 %2493
    %v2495 = vsel %vm265, %v2475, 0.0
    %2496 = vadd.xlane.f32.xlu0 %v2495
    %v2497 = vpop.xlane.xlu0 %2496
    %v2498 = vsel %vm265, %v2476, 0.0
    %2499 = vadd.xlane.f32.xlu0 %v2498
    %v2500 = vpop.xlane.xlu0 %2499
    %v2501 = vsel %vm265, %v2477, 0.0
    %2502 = vadd.xlane.f32.xlu0 %v2501
    %v2503 = vpop.xlane.xlu0 %2502
    %v2504 = vsel %vm265, %v2478, 0.0
    %2505 = vadd.xlane.f32.xlu0 %v2504
    %v2506 = vpop.xlane.xlu0 %2505
    %v2507 = vsel %vm265, %v2479, 0.0
    %2508 = vadd.xlane.f32.xlu0 %v2507
    %v2509 = vpop.xlane.xlu0 %2508
    %v2510 = vsel %vm265, %v2480, 0.0
    %2511 = vadd.xlane.f32.xlu0 %v2510
    %v2512 = vpop.xlane.xlu0 %2511
    %v2513 = vsel %vm265, %v2481, 0.0
    %2514 = vadd.xlane.f32.xlu0 %v2513
    %v2515 = vpop.xlane.xlu0 %2514
    %v2516 = vsel %vm265, %v2482, 0.0
    %2517 = vadd.xlane.f32.xlu0 %v2516
    %v2518 = vpop.xlane.xlu0 %2517
    %v2519 = vsel %vm265, %v2483, 0.0
    %2520 = vadd.xlane.f32.xlu0 %v2519
    %v2521 = vpop.xlane.xlu0 %2520
    %v2522 = vsel %vm265, %v2484, 0.0
    %2523 = vadd.xlane.f32.xlu0 %v2522
    %v2524 = vpop.xlane.xlu0 %2523
    %v2525 = vsel %vm265, %v2485, 0.0
    %2526 = vadd.xlane.f32.xlu0 %v2525
    %v2527 = vpop.xlane.xlu0 %2526
    %v2528 = vmul.f32 %v2488, %v308
    %v2529 = vmul.f32 %v2491, %v308
    %v2530 = vmul.f32 %v2494, %v308
    %v2531 = vmul.f32 %v2497, %v308
    %v2532 = vmul.f32 %v2500, %v308
    %v2533 = vmul.f32 %v2503, %v308
    %v2534 = vmul.f32 %v2506, %v308
    %v2535 = vmul.f32 %v2509, %v308
    %v2536 = vmul.f32 %v2512, %v308
    %v2537 = vmul.f32 %v2515, %v308
    %v2538 = vmul.f32 %v2518, %v308
    %v2539 = vmul.f32 %v2521, %v308
    %v2540 = vmul.f32 %v2524, %v308
    %v2541 = vmul.f32 %v2527, %v308
    %v2542 = vadd.f32 %v2528, 1e-05
    %v2543 = vadd.f32 %v2529, 1e-05
    %v2544 = vadd.f32 %v2530, 1e-05
    %v2545 = vadd.f32 %v2531, 1e-05
    %v2546 = vadd.f32 %v2532, 1e-05
    %v2547 = vadd.f32 %v2533, 1e-05
    %v2548 = vadd.f32 %v2534, 1e-05
    %v2549 = vadd.f32 %v2535, 1e-05
    %v2550 = vadd.f32 %v2536, 1e-05
    %v2551 = vadd.f32 %v2537, 1e-05
    %v2552 = vadd.f32 %v2538, 1e-05
    %v2553 = vadd.f32 %v2539, 1e-05
    %v2554 = vadd.f32 %v2540, 1e-05
    %v2555 = vadd.f32 %v2541, 1e-05
    %v2556 = vrsqrt.pop %v2542
    %v2557 = vmul.f32 %v2542, %v2556
    %vm2558 = vcmp.eq.f32.partialorder %v2542, inf
    %v2559 = vsel %vm2558, %v2542, %v2557
    %vm2560 = vcmp.eq.f32.partialorder %v2542, 0.0
    %v2561 = vand.u32 %v2542, 2147483648
    %v2562 = vsel %vm2560, %v2561, %v2559
    %v2563 = vrsqrt.pop %v2543
    %v2564 = vmul.f32 %v2543, %v2563
    %vm2565 = vcmp.eq.f32.partialorder %v2543, inf
    %v2566 = vsel %vm2565, %v2543, %v2564
    %vm2567 = vcmp.eq.f32.partialorder %v2543, 0.0
    %v2568 = vand.u32 %v2543, 2147483648
    %v2569 = vsel %vm2567, %v2568, %v2566
    %v2570 = vrsqrt.pop %v2544
    %v2571 = vmul.f32 %v2544, %v2570
    %vm2572 = vcmp.eq.f32.partialorder %v2544, inf
    %v2573 = vsel %vm2572, %v2544, %v2571
    %vm2574 = vcmp.eq.f32.partialorder %v2544, 0.0
    %v2575 = vand.u32 %v2544, 2147483648
    %v2576 = vsel %vm2574, %v2575, %v2573
    %v2577 = vrsqrt.pop %v2545
    %v2578 = vmul.f32 %v2545, %v2577
    %vm2579 = vcmp.eq.f32.partialorder %v2545, inf
    %v2580 = vsel %vm2579, %v2545, %v2578
    %vm2581 = vcmp.eq.f32.partialorder %v2545, 0.0
    %v2582 = vand.u32 %v2545, 2147483648
    %v2583 = vsel %vm2581, %v2582, %v2580
    %v2584 = vrsqrt.pop %v2546
    %v2585 = vmul.f32 %v2546, %v2584
    %vm2586 = vcmp.eq.f32.partialorder %v2546, inf
    %v2587 = vsel %vm2586, %v2546, %v2585
    %vm2588 = vcmp.eq.f32.partialorder %v2546, 0.0
    %v2589 = vand.u32 %v2546, 2147483648
    %v2590 = vsel %vm2588, %v2589, %v2587
    %v2591 = vrsqrt.pop %v2547
    %v2592 = vmul.f32 %v2547, %v2591
    %vm2593 = vcmp.eq.f32.partialorder %v2547, inf
    %v2594 = vsel %vm2593, %v2547, %v2592
    %vm2595 = vcmp.eq.f32.partialorder %v2547, 0.0
    %v2596 = vand.u32 %v2547, 2147483648
    %v2597 = vsel %vm2595, %v2596, %v2594
    %v2598 = vrsqrt.pop %v2548
    %v2599 = vmul.f32 %v2548, %v2598
    %vm2600 = vcmp.eq.f32.partialorder %v2548, inf
    %v2601 = vsel %vm2600, %v2548, %v2599
    %vm2602 = vcmp.eq.f32.partialorder %v2548, 0.0
    %v2603 = vand.u32 %v2548, 2147483648
    %v2604 = vsel %vm2602, %v2603, %v2601
    %v2605 = vrsqrt.pop %v2549
    %v2606 = vmul.f32 %v2549, %v2605
    %vm2607 = vcmp.eq.f32.partialorder %v2549, inf
    %v2608 = vsel %vm2607, %v2549, %v2606
    %vm2609 = vcmp.eq.f32.partialorder %v2549, 0.0
    %v2610 = vand.u32 %v2549, 2147483648
    %v2611 = vsel %vm2609, %v2610, %v2608
    %v2612 = vrsqrt.pop %v2550
    %v2613 = vmul.f32 %v2550, %v2612
    %vm2614 = vcmp.eq.f32.partialorder %v2550, inf
    %v2615 = vsel %vm2614, %v2550, %v2613
    %vm2616 = vcmp.eq.f32.partialorder %v2550, 0.0
    %v2617 = vand.u32 %v2550, 2147483648
    %v2618 = vsel %vm2616, %v2617, %v2615
    %v2619 = vrsqrt.pop %v2551
    %v2620 = vmul.f32 %v2551, %v2619
    %vm2621 = vcmp.eq.f32.partialorder %v2551, inf
    %v2622 = vsel %vm2621, %v2551, %v2620
    %vm2623 = vcmp.eq.f32.partialorder %v2551, 0.0
    %v2624 = vand.u32 %v2551, 2147483648
    %v2625 = vsel %vm2623, %v2624, %v2622
    %v2626 = vrsqrt.pop %v2552
    %v2627 = vmul.f32 %v2552, %v2626
    %vm2628 = vcmp.eq.f32.partialorder %v2552, inf
    %v2629 = vsel %vm2628, %v2552, %v2627
    %vm2630 = vcmp.eq.f32.partialorder %v2552, 0.0
    %v2631 = vand.u32 %v2552, 2147483648
    %v2632 = vsel %vm2630, %v2631, %v2629
    %v2633 = vrsqrt.pop %v2553
    %v2634 = vmul.f32 %v2553, %v2633
    %vm2635 = vcmp.eq.f32.partialorder %v2553, inf
    %v2636 = vsel %vm2635, %v2553, %v2634
    %vm2637 = vcmp.eq.f32.partialorder %v2553, 0.0
    %v2638 = vand.u32 %v2553, 2147483648
    %v2639 = vsel %vm2637, %v2638, %v2636
    %v2640 = vrsqrt.pop %v2554
    %v2641 = vmul.f32 %v2554, %v2640
    %vm2642 = vcmp.eq.f32.partialorder %v2554, inf
    %v2643 = vsel %vm2642, %v2554, %v2641
    %vm2644 = vcmp.eq.f32.partialorder %v2554, 0.0
    %v2645 = vand.u32 %v2554, 2147483648
    %v2646 = vsel %vm2644, %v2645, %v2643
    %v2647 = vrsqrt.pop %v2555
    %v2648 = vmul.f32 %v2555, %v2647
    %vm2649 = vcmp.eq.f32.partialorder %v2555, inf
    %v2650 = vsel %vm2649, %v2555, %v2648
    %vm2651 = vcmp.eq.f32.partialorder %v2555, 0.0
    %v2652 = vand.u32 %v2555, 2147483648
    %v2653 = vsel %vm2651, %v2652, %v2650
    %v2654 = vrcp.pop %v2562
    %v2655 = vmul.f32 %v2458, %v2654
    %v2656 = vrcp.pop %v2569
    %v2657 = vmul.f32 %v2459, %v2656
    %v2658 = vrcp.pop %v2576
    %v2659 = vmul.f32 %v2460, %v2658
    %v2660 = vrcp.pop %v2583
    %v2661 = vmul.f32 %v2461, %v2660
    %v2662 = vrcp.pop %v2590
    %v2663 = vmul.f32 %v2462, %v2662
    %v2664 = vrcp.pop %v2597
    %v2665 = vmul.f32 %v2463, %v2664
    %v2666 = vrcp.pop %v2604
    %v2667 = vmul.f32 %v2464, %v2666
    %v2668 = vrcp.pop %v2611
    %v2669 = vmul.f32 %v2465, %v2668
    %v2670 = vrcp.pop %v2618
    %v2671 = vmul.f32 %v2466, %v2670
    %v2672 = vrcp.pop %v2625
    %v2673 = vmul.f32 %v2467, %v2672
    %v2674 = vrcp.pop %v2632
    %v2675 = vmul.f32 %v2468, %v2674
    %v2676 = vrcp.pop %v2639
    %v2677 = vmul.f32 %v2469, %v2676
    %v2678 = vrcp.pop %v2646
    %v2679 = vmul.f32 %v2470, %v2678
    %v2680 = vrcp.pop %v2653
    %v2681 = vmul.f32 %v2471, %v2680
    %v2683 = vlaneseq
    %v2684 = vshrl.u32 %v2683, 7
    %v2685 = vsub.s32 0, %v2684
    %v2686 = vrot.slane %v2400, %v2685
    %v2688 = vmul.f32 %v2655, %v2686
    %v2689 = vmul.f32 %v2657, %v2686
    %v2690 = vmul.f32 %v2659, %v2686
    %v2691 = vmul.f32 %v2661, %v2686
    %v2692 = vmul.f32 %v2663, %v2686
    %v2693 = vmul.f32 %v2665, %v2686
    %v2694 = vmul.f32 %v2667, %v2686
    %v2695 = vmul.f32 %v2669, %v2686
    %v2696 = vmul.f32 %v2671, %v2686
    %v2697 = vmul.f32 %v2673, %v2686
    %v2698 = vmul.f32 %v2675, %v2686
    %v2699 = vmul.f32 %v2677, %v2686
    %v2700 = vmul.f32 %v2679, %v2686
    %v2701 = vmul.f32 %v2681, %v2686
    %v2703 = vlaneseq
    %v2704 = vshrl.u32 %v2703, 7
    %v2705 = vsub.s32 0, %v2704
    %v2706 = vrot.slane %v2401, %v2705
    %v2708 = vadd.f32 %v2688, %v2706
    %v2709 = vadd.f32 %v2689, %v2706
    %v2710 = vadd.f32 %v2690, %v2706
    %v2711 = vadd.f32 %v2691, %v2706
    %v2712 = vadd.f32 %v2692, %v2706
    %v2713 = vadd.f32 %v2693, %v2706
    %v2714 = vadd.f32 %v2694, %v2706
    %v2715 = vadd.f32 %v2695, %v2706
    %v2716 = vadd.f32 %v2696, %v2706
    %v2717 = vadd.f32 %v2697, %v2706
    %v2718 = vadd.f32 %v2698, %v2706
    %v2719 = vadd.f32 %v2699, %v2706
    %v2720 = vadd.f32 %v2700, %v2706
    %v2721 = vadd.f32 %v2701, %v2706
    %v2722 = vld [vmem:[%s9] sm:$0xff]
    %v2723 = vld [vmem:[%s10] sm:$0x1]
    %v2725 = vlaneseq
    %v2726 = vshrl.u32 %v2725, 7
    %v2727 = vsub.s32 0, %v2726
    %v2728 = vrot.slane %v2723, %v2727
    %v2731 = vsel %vm265, %v2708, 0
    %v2734 = vsel %vm265, %v2709, 0
    %v2737 = vsel %vm265, %v2710, 0
    %v2740 = vsel %vm265, %v2711, 0
    %v2743 = vsel %vm265, %v2712, 0
    %v2746 = vsel %vm265, %v2713, 0
    %v2749 = vsel %vm265, %v2714, 0
    %v2752 = vsel %vm265, %v2715, 0
    %v2755 = vsel %vm265, %v2716, 0
    %v2758 = vsel %vm265, %v2717, 0
    %v2761 = vsel %vm265, %v2718, 0
    %v2764 = vsel %vm265, %v2719, 0
    %v2767 = vsel %vm265, %v2720, 0
    %v2770 = vsel %vm265, %v2721, 0
    %2772 = vmatprep.subr.mxu0 0.0
    %2773 = vmatpush1.msra.mxu0 0.0
    %2774 = vmatprep.subr.mxu0 0.0
    %2775 = vmatpush1.msra.mxu0 0.0
    %2776 = vmatprep.subr.mxu0 0.0
    %2777 = vmatpush1.msra.mxu0 0.0
    %2778 = vmatprep.subr.mxu0 0.0
    %2779 = vmatpush1.msra.mxu0 0.0
    %2780 = vmatprep.subr.mxu0 0.0
    %2781 = vmatpush1.msra.mxu0 0.0
    %2782 = vmatprep.subr.mxu0 0.0
    %2783 = vmatpush1.msra.mxu0 0.0
    %2784 = vmatprep.subr.mxu0 0.0
    %2785 = vmatpush1.msra.mxu0 0.0
    %2786 = vmatprep.subr.mxu0 0.0
    %2787 = vmatpush1.msra.mxu0 0.0
    %2788 = vmatprep.subr.mxu0 0.0
    %2789 = vmatpush1.msra.mxu0 0.0
    %2790 = vmatprep.subr.mxu0 0.0
    %2791 = vmatpush1.msra.mxu0 0.0
    %2792 = vmatprep.subr.mxu0 0.0
    %2793 = vmatpush1.msra.mxu0 0.0
    %2794 = vmatprep.subr.mxu0 0.0
    %2795 = vmatpush1.msra.mxu0 0.0
    %2796 = vmatprep.subr.mxu0 0.0
    %2797 = vmatpush1.msra.mxu0 0.0
    %2798 = vmatprep.subr.mxu0 0.0
    %2799 = vmatpush1.msra.mxu0 0.0
    %2800 = vmatprep.subr.mxu0 0.0
    %2801 = vmatpush1.msra.mxu0 0.0
    %2802 = vmatprep.subr.mxu0 0.0
    %2803 = vmatpush1.msra.mxu0 %v2722
    %2804 = vmatprep.subr.mxu0 0.0
    %2805 = vmatpush2.msra.mxu0 0.0
    %2806 = vmatprep.subr.mxu0 0.0
    %2807 = vmatpush2.msra.mxu0 0.0
    %2808 = vmatprep.subr.mxu0 0.0
    %2809 = vmatpush2.msra.mxu0 0.0
    %2810 = vmatprep.subr.mxu0 0.0
    %2811 = vmatpush2.msra.mxu0 0.0
    %2812 = vmatprep.subr.mxu0 0.0
    %2813 = vmatpush2.msra.mxu0 0.0
    %2814 = vmatprep.subr.mxu0 0.0
    %2815 = vmatpush2.msra.mxu0 0.0
    %2816 = vmatprep.subr.mxu0 0.0
    %2817 = vmatpush2.msra.mxu0 0.0
    %2818 = vmatprep.subr.mxu0 0.0
    %2819 = vmatpush2.msra.mxu0 0.0
    %2820 = vmatprep.subr.mxu0 0.0
    %2821 = vmatpush2.msra.mxu0 0.0
    %2822 = vmatprep.subr.mxu0 0.0
    %2823 = vmatpush2.msra.mxu0 0.0
    %2824 = vmatprep.subr.mxu0 0.0
    %2825 = vmatpush2.msra.mxu0 0.0
    %2826 = vmatprep.subr.mxu0 0.0
    %2827 = vmatpush2.msra.mxu0 0.0
    %2828 = vmatprep.subr.mxu0 0.0
    %2829 = vmatpush2.msra.mxu0 0.0
    %2830 = vmatprep.subr.mxu0 0.0
    %2831 = vmatpush2.msra.mxu0 0.0
    %2832 = vmatprep.subr.mxu0 0.0
    %2833 = vmatpush2.msra.mxu0 0.0
    %2834 = vmatprep.subr.mxu0 0.0
    %2835 = vmatpush2.msra.mxu0 0.0
    %2836 = vmatprep.mubr.f32.mxu0 0.0
    %2837 = vmatmul.mubr.f32.gmra.mxu0 %v2731
    %v2838 = vpop.f32.mrf.mxu0
    %v2839 = vadd.f32 %v2728, %v2838
    %v2840 = vpop.f32.mrf.mxu0
    %2841 = vmatprep.mubr.f32.mxu0 0.0
    %2842 = vmatmul.mubr.f32.gmra.mxu0 %v2734
    %v2843 = vpop.f32.mrf.mxu0
    %v2844 = vadd.f32 %v2728, %v2843
    %v2845 = vpop.f32.mrf.mxu0
    %2846 = vmatprep.mubr.f32.mxu0 0.0
    %2847 = vmatmul.mubr.f32.gmra.mxu0 %v2737
    %v2848 = vpop.f32.mrf.mxu0
    %v2849 = vadd.f32 %v2728, %v2848
    %v2850 = vpop.f32.mrf.mxu0
    %2851 = vmatprep.mubr.f32.mxu0 0.0
    %2852 = vmatmul.mubr.f32.gmra.mxu0 %v2740
    %v2853 = vpop.f32.mrf.mxu0
    %v2854 = vadd.f32 %v2728, %v2853
    %v2855 = vpop.f32.mrf.mxu0
    %2856 = vmatprep.mubr.f32.mxu0 0.0
    %2857 = vmatmul.mubr.f32.gmra.mxu0 %v2743
    %v2858 = vpop.f32.mrf.mxu0
    %v2859 = vadd.f32 %v2728, %v2858
    %v2860 = vpop.f32.mrf.mxu0
    %2861 = vmatprep.mubr.f32.mxu0 0.0
    %2862 = vmatmul.mubr.f32.gmra.mxu0 %v2746
    %v2863 = vpop.f32.mrf.mxu0
    %v2864 = vadd.f32 %v2728, %v2863
    %v2865 = vpop.f32.mrf.mxu0
    %2866 = vmatprep.mubr.f32.mxu0 0.0
    %2867 = vmatmul.mubr.f32.gmra.mxu0 %v2749
    %v2868 = vpop.f32.mrf.mxu0
    %v2869 = vadd.f32 %v2728, %v2868
    %v2870 = vpop.f32.mrf.mxu0
    %2871 = vmatprep.mubr.f32.mxu0 0.0
    %2872 = vmatmul.mubr.f32.gmra.mxu0 %v2752
    %v2873 = vpop.f32.mrf.mxu0
    %v2874 = vadd.f32 %v2728, %v2873
    %v2875 = vpop.f32.mrf.mxu0
    %2876 = vmatprep.mubr.f32.mxu0 0.0
    %2877 = vmatmul.mubr.f32.gmra.mxu0 %v2755
    %v2878 = vpop.f32.mrf.mxu0
    %v2879 = vadd.f32 %v2728, %v2878
    %v2880 = vpop.f32.mrf.mxu0
    %2881 = vmatprep.mubr.f32.mxu0 0.0
    %2882 = vmatmul.mubr.f32.gmra.mxu0 %v2758
    %v2883 = vpop.f32.mrf.mxu0
    %v2884 = vadd.f32 %v2728, %v2883
    %v2885 = vpop.f32.mrf.mxu0
    %2886 = vmatprep.mubr.f32.mxu0 0.0
    %2887 = vmatmul.mubr.f32.gmra.mxu0 %v2761
    %v2888 = vpop.f32.mrf.mxu0
    %v2889 = vadd.f32 %v2728, %v2888
    %v2890 = vpop.f32.mrf.mxu0
    %2891 = vmatprep.mubr.f32.mxu0 0.0
    %2892 = vmatmul.mubr.f32.gmra.mxu0 %v2764
    %v2893 = vpop.f32.mrf.mxu0
    %v2894 = vadd.f32 %v2728, %v2893
    %v2895 = vpop.f32.mrf.mxu0
    %2896 = vmatprep.mubr.f32.mxu0 0.0
    %2897 = vmatmul.mubr.f32.gmra.mxu0 %v2767
    %v2898 = vpop.f32.mrf.mxu0
    %v2899 = vadd.f32 %v2728, %v2898
    %v2900 = vpop.f32.mrf.mxu0
    %2901 = vmatprep.mubr.f32.mxu0 0.0
    %2902 = vmatmul.mubr.f32.gmra.mxu0 %v2770
    %v2903 = vpop.f32.mrf.mxu0
    %v2904 = vadd.f32 %v2728, %v2903
    %v2905 = vpop.f32.mrf.mxu0
    %2906 = vdwg.mxu0
    %v2907 = vmul.f32 %v2839, 0.5
    %v2908 = vmul.f32 %v2844, 0.5
    %v2909 = vmul.f32 %v2849, 0.5
    %v2910 = vmul.f32 %v2854, 0.5
    %v2911 = vmul.f32 %v2859, 0.5
    %v2912 = vmul.f32 %v2864, 0.5
    %v2913 = vmul.f32 %v2869, 0.5
    %v2914 = vmul.f32 %v2874, 0.5
    %v2915 = vmul.f32 %v2879, 0.5
    %v2916 = vmul.f32 %v2884, 0.5
    %v2917 = vmul.f32 %v2889, 0.5
    %v2918 = vmul.f32 %v2894, 0.5
    %v2919 = vmul.f32 %v2899, 0.5
    %v2920 = vmul.f32 %v2904, 0.5
    %v2921 = vmul.f32 %v2839, 0.70710677
    %v2922 = vmul.f32 %v2844, 0.70710677
    %v2923 = vmul.f32 %v2849, 0.70710677
    %v2924 = vmul.f32 %v2854, 0.70710677
    %v2925 = vmul.f32 %v2859, 0.70710677
    %v2926 = vmul.f32 %v2864, 0.70710677
    %v2927 = vmul.f32 %v2869, 0.70710677
    %v2928 = vmul.f32 %v2874, 0.70710677
    %v2929 = vmul.f32 %v2879, 0.70710677
    %v2930 = vmul.f32 %v2884, 0.70710677
    %v2931 = vmul.f32 %v2889, 0.70710677
    %v2932 = vmul.f32 %v2894, 0.70710677
    %v2933 = vmul.f32 %v2899, 0.70710677
    %v2934 = vmul.f32 %v2904, 0.70710677
    %v2935 = vand.u32 2147483647, %v2921
    %v2936 = vand.u32 2147483647, %v2922
    %v2937 = vand.u32 2147483647, %v2923
    %v2938 = vand.u32 2147483647, %v2924
    %v2939 = vand.u32 2147483647, %v2925
    %v2940 = vand.u32 2147483647, %v2926
    %v2941 = vand.u32 2147483647, %v2927
    %v2942 = vand.u32 2147483647, %v2928
    %v2943 = vand.u32 2147483647, %v2929
    %v2944 = vand.u32 2147483647, %v2930
    %v2945 = vand.u32 2147483647, %v2931
    %v2946 = vand.u32 2147483647, %v2932
    %v2947 = vand.u32 2147483647, %v2933
    %v2948 = vand.u32 2147483647, %v2934
    %v2949 = vmul.f32 %v2935, 0.3275911
    %v2950 = vmul.f32 %v2936, 0.3275911
    %v2951 = vmul.f32 %v2937, 0.3275911
    %v2952 = vmul.f32 %v2938, 0.3275911
    %v2953 = vmul.f32 %v2939, 0.3275911
    %v2954 = vmul.f32 %v2940, 0.3275911
    %v2955 = vmul.f32 %v2941, 0.3275911
    %v2956 = vmul.f32 %v2942, 0.3275911
    %v2957 = vmul.f32 %v2943, 0.3275911
    %v2958 = vmul.f32 %v2944, 0.3275911
    %v2959 = vmul.f32 %v2945, 0.3275911
    %v2960 = vmul.f32 %v2946, 0.3275911
    %v2961 = vmul.f32 %v2947, 0.3275911
    %v2962 = vmul.f32 %v2948, 0.3275911
    %v2963 = vadd.f32 %v2949, 1.0
    %v2964 = vadd.f32 %v2950, 1.0
    %v2965 = vadd.f32 %v2951, 1.0
    %v2966 = vadd.f32 %v2952, 1.0
    %v2967 = vadd.f32 %v2953, 1.0
    %v2968 = vadd.f32 %v2954, 1.0
    %v2969 = vadd.f32 %v2955, 1.0
    %v2970 = vadd.f32 %v2956, 1.0
    %v2971 = vadd.f32 %v2957, 1.0
    %v2972 = vadd.f32 %v2958, 1.0
    %v2973 = vadd.f32 %v2959, 1.0
    %v2974 = vadd.f32 %v2960, 1.0
    %v2975 = vadd.f32 %v2961, 1.0
    %v2976 = vadd.f32 %v2962, 1.0
    %v2977 = vrcp.pop %v2963
    %v2978 = vmul.f32 1.0, %v2977
    %v2979 = vrcp.pop %v2964
    %v2980 = vmul.f32 1.0, %v2979
    %v2981 = vrcp.pop %v2965
    %v2982 = vmul.f32 1.0, %v2981
    %v2983 = vrcp.pop %v2966
    %v2984 = vmul.f32 1.0, %v2983
    %v2985 = vrcp.pop %v2967
    %v2986 = vmul.f32 1.0, %v2985
    %v2987 = vrcp.pop %v2968
    %v2988 = vmul.f32 1.0, %v2987
    %v2989 = vrcp.pop %v2969
    %v2990 = vmul.f32 1.0, %v2989
    %v2991 = vrcp.pop %v2970
    %v2992 = vmul.f32 1.0, %v2991
    %v2993 = vrcp.pop %v2971
    %v2994 = vmul.f32 1.0, %v2993
    %v2995 = vrcp.pop %v2972
    %v2996 = vmul.f32 1.0, %v2995
    %v2997 = vrcp.pop %v2973
    %v2998 = vmul.f32 1.0, %v2997
    %v2999 = vrcp.pop %v2974
    %v3000 = vmul.f32 1.0, %v2999
    %v3001 = vrcp.pop %v2975
    %v3002 = vmul.f32 1.0, %v3001
    %v3003 = vrcp.pop %v2976
    %v3004 = vmul.f32 1.0, %v3003
    %v3005 = vmul.f32 %v2978, 1.0614054
    %v3006 = vmul.f32 %v2980, 1.0614054
    %v3007 = vmul.f32 %v2982, 1.0614054
    %v3008 = vmul.f32 %v2984, 1.0614054
    %v3009 = vmul.f32 %v2986, 1.0614054
    %v3010 = vmul.f32 %v2988, 1.0614054
    %v3011 = vmul.f32 %v2990, 1.0614054
    %v3012 = vmul.f32 %v2992, 1.0614054
    %v3013 = vmul.f32 %v2994, 1.0614054
    %v3014 = vmul.f32 %v2996, 1.0614054
    %v3015 = vmul.f32 %v2998, 1.0614054
    %v3016 = vmul.f32 %v3000, 1.0614054
    %v3017 = vmul.f32 %v3002, 1.0614054
    %v3018 = vmul.f32 %v3004, 1.0614054
    %v3019 = vadd.f32 %v3005, -1.4531521
    %v3020 = vadd.f32 %v3006, -1.4531521
    %v3021 = vadd.f32 %v3007, -1.4531521
    %v3022 = vadd.f32 %v3008, -1.4531521
    %v3023 = vadd.f32 %v3009, -1.4531521
    %v3024 = vadd.f32 %v3010, -1.4531521
    %v3025 = vadd.f32 %v3011, -1.4531521
    %v3026 = vadd.f32 %v3012, -1.4531521
    %v3027 = vadd.f32 %v3013, -1.4531521
    %v3028 = vadd.f32 %v3014, -1.4531521
    %v3029 = vadd.f32 %v3015, -1.4531521
    %v3030 = vadd.f32 %v3016, -1.4531521
    %v3031 = vadd.f32 %v3017, -1.4531521
    %v3032 = vadd.f32 %v3018, -1.4531521
    %v3033 = vmul.f32 %v2978, %v3019
    %v3034 = vmul.f32 %v2980, %v3020
    %v3035 = vmul.f32 %v2982, %v3021
    %v3036 = vmul.f32 %v2984, %v3022
    %v3037 = vmul.f32 %v2986, %v3023
    %v3038 = vmul.f32 %v2988, %v3024
    %v3039 = vmul.f32 %v2990, %v3025
    %v3040 = vmul.f32 %v2992, %v3026
    %v3041 = vmul.f32 %v2994, %v3027
    %v3042 = vmul.f32 %v2996, %v3028
    %v3043 = vmul.f32 %v2998, %v3029
    %v3044 = vmul.f32 %v3000, %v3030
    %v3045 = vmul.f32 %v3002, %v3031
    %v3046 = vmul.f32 %v3004, %v3032
    %v3047 = vadd.f32 %v3033, 1.4214138
    %v3048 = vadd.f32 %v3034, 1.4214138
    %v3049 = vadd.f32 %v3035, 1.4214138
    %v3050 = vadd.f32 %v3036, 1.4214138
    %v3051 = vadd.f32 %v3037, 1.4214138
    %v3052 = vadd.f32 %v3038, 1.4214138
    %v3053 = vadd.f32 %v3039, 1.4214138
    %v3054 = vadd.f32 %v3040, 1.4214138
    %v3055 = vadd.f32 %v3041, 1.4214138
    %v3056 = vadd.f32 %v3042, 1.4214138
    %v3057 = vadd.f32 %v3043, 1.4214138
    %v3058 = vadd.f32 %v3044, 1.4214138
    %v3059 = vadd.f32 %v3045, 1.4214138
    %v3060 = vadd.f32 %v3046, 1.4214138
    %v3061 = vmul.f32 %v2978, %v3047
    %v3062 = vmul.f32 %v2980, %v3048
    %v3063 = vmul.f32 %v2982, %v3049
    %v3064 = vmul.f32 %v2984, %v3050
    %v3065 = vmul.f32 %v2986, %v3051
    %v3066 = vmul.f32 %v2988, %v3052
    %v3067 = vmul.f32 %v2990, %v3053
    %v3068 = vmul.f32 %v2992, %v3054
    %v3069 = vmul.f32 %v2994, %v3055
    %v3070 = vmul.f32 %v2996, %v3056
    %v3071 = vmul.f32 %v2998, %v3057
    %v3072 = vmul.f32 %v3000, %v3058
    %v3073 = vmul.f32 %v3002, %v3059
    %v3074 = vmul.f32 %v3004, %v3060
    %v3075 = vadd.f32 %v3061, -0.28449672
    %v3076 = vadd.f32 %v3062, -0.28449672
    %v3077 = vadd.f32 %v3063, -0.28449672
    %v3078 = vadd.f32 %v3064, -0.28449672
    %v3079 = vadd.f32 %v3065, -0.28449672
    %v3080 = vadd.f32 %v3066, -0.28449672
    %v3081 = vadd.f32 %v3067, -0.28449672
    %v3082 = vadd.f32 %v3068, -0.28449672
    %v3083 = vadd.f32 %v3069, -0.28449672
    %v3084 = vadd.f32 %v3070, -0.28449672
    %v3085 = vadd.f32 %v3071, -0.28449672
    %v3086 = vadd.f32 %v3072, -0.28449672
    %v3087 = vadd.f32 %v3073, -0.28449672
    %v3088 = vadd.f32 %v3074, -0.28449672
    %v3089 = vmul.f32 %v2978, %v3075
    %v3090 = vmul.f32 %v2980, %v3076
    %v3091 = vmul.f32 %v2982, %v3077
    %v3092 = vmul.f32 %v2984, %v3078
    %v3093 = vmul.f32 %v2986, %v3079
    %v3094 = vmul.f32 %v2988, %v3080
    %v3095 = vmul.f32 %v2990, %v3081
    %v3096 = vmul.f32 %v2992, %v3082
    %v3097 = vmul.f32 %v2994, %v3083
    %v3098 = vmul.f32 %v2996, %v3084
    %v3099 = vmul.f32 %v2998, %v3085
    %v3100 = vmul.f32 %v3000, %v3086
    %v3101 = vmul.f32 %v3002, %v3087
    %v3102 = vmul.f32 %v3004, %v3088
    %v3103 = vadd.f32 %v3089, 0.2548296
    %v3104 = vadd.f32 %v3090, 0.2548296
    %v3105 = vadd.f32 %v3091, 0.2548296
    %v3106 = vadd.f32 %v3092, 0.2548296
    %v3107 = vadd.f32 %v3093, 0.2548296
    %v3108 = vadd.f32 %v3094, 0.2548296
    %v3109 = vadd.f32 %v3095, 0.2548296
    %v3110 = vadd.f32 %v3096, 0.2548296
    %v3111 = vadd.f32 %v3097, 0.2548296
    %v3112 = vadd.f32 %v3098, 0.2548296
    %v3113 = vadd.f32 %v3099, 0.2548296
    %v3114 = vadd.f32 %v3100, 0.2548296
    %v3115 = vadd.f32 %v3101, 0.2548296
    %v3116 = vadd.f32 %v3102, 0.2548296
    %v3117 = vmul.f32 %v2978, %v3103
    %v3118 = vmul.f32 %v2980, %v3104
    %v3119 = vmul.f32 %v2982, %v3105
    %v3120 = vmul.f32 %v2984, %v3106
    %v3121 = vmul.f32 %v2986, %v3107
    %v3122 = vmul.f32 %v2988, %v3108
    %v3123 = vmul.f32 %v2990, %v3109
    %v3124 = vmul.f32 %v2992, %v3110
    %v3125 = vmul.f32 %v2994, %v3111
    %v3126 = vmul.f32 %v2996, %v3112
    %v3127 = vmul.f32 %v2998, %v3113
    %v3128 = vmul.f32 %v3000, %v3114
    %v3129 = vmul.f32 %v3002, %v3115
    %v3130 = vmul.f32 %v3004, %v3116
    %v3131 = vsub.f32 0.0, %v2935
    %v3132 = vsub.f32 0.0, %v2936
    %v3133 = vsub.f32 0.0, %v2937
    %v3134 = vsub.f32 0.0, %v2938
    %v3135 = vsub.f32 0.0, %v2939
    %v3136 = vsub.f32 0.0, %v2940
    %v3137 = vsub.f32 0.0, %v2941
    %v3138 = vsub.f32 0.0, %v2942
    %v3139 = vsub.f32 0.0, %v2943
    %v3140 = vsub.f32 0.0, %v2944
    %v3141 = vsub.f32 0.0, %v2945
    %v3142 = vsub.f32 0.0, %v2946
    %v3143 = vsub.f32 0.0, %v2947
    %v3144 = vsub.f32 0.0, %v2948
    %v3145 = vmul.f32 %v3131, %v2935
    %v3146 = vmul.f32 %v3132, %v2936
    %v3147 = vmul.f32 %v3133, %v2937
    %v3148 = vmul.f32 %v3134, %v2938
    %v3149 = vmul.f32 %v3135, %v2939
    %v3150 = vmul.f32 %v3136, %v2940
    %v3151 = vmul.f32 %v3137, %v2941
    %v3152 = vmul.f32 %v3138, %v2942
    %v3153 = vmul.f32 %v3139, %v2943
    %v3154 = vmul.f32 %v3140, %v2944
    %v3155 = vmul.f32 %v3141, %v2945
    %v3156 = vmul.f32 %v3142, %v2946
    %v3157 = vmul.f32 %v3143, %v2947
    %v3158 = vmul.f32 %v3144, %v2948
    %v3159 = vmul.f32 %v3145, 1.442695
    %v3160 = vpow.pop %v3159
    %v3161 = vmul.f32 %v3146, 1.442695
    %v3162 = vpow.pop %v3161
    %v3163 = vmul.f32 %v3147, 1.442695
    %v3164 = vpow.pop %v3163
    %v3165 = vmul.f32 %v3148, 1.442695
    %v3166 = vpow.pop %v3165
    %v3167 = vmul.f32 %v3149, 1.442695
    %v3168 = vpow.pop %v3167
    %v3169 = vmul.f32 %v3150, 1.442695
    %v3170 = vpow.pop %v3169
    %v3171 = vmul.f32 %v3151, 1.442695
    %v3172 = vpow.pop %v3171
    %v3173 = vmul.f32 %v3152, 1.442695
    %v3174 = vpow.pop %v3173
    %v3175 = vmul.f32 %v3153, 1.442695
    %v3176 = vpow.pop %v3175
    %v3177 = vmul.f32 %v3154, 1.442695
    %v3178 = vpow.pop %v3177
    %v3179 = vmul.f32 %v3155, 1.442695
    %v3180 = vpow.pop %v3179
    %v3181 = vmul.f32 %v3156, 1.442695
    %v3182 = vpow.pop %v3181
    %v3183 = vmul.f32 %v3157, 1.442695
    %v3184 = vpow.pop %v3183
    %v3185 = vmul.f32 %v3158, 1.442695
    %v3186 = vpow.pop %v3185
    %v3187 = vmul.f32 %v3117, %v3160
    %v3188 = vmul.f32 %v3118, %v3162
    %v3189 = vmul.f32 %v3119, %v3164
    %v3190 = vmul.f32 %v3120, %v3166
    %v3191 = vmul.f32 %v3121, %v3168
    %v3192 = vmul.f32 %v3122, %v3170
    %v3193 = vmul.f32 %v3123, %v3172
    %v3194 = vmul.f32 %v3124, %v3174
    %v3195 = vmul.f32 %v3125, %v3176
    %v3196 = vmul.f32 %v3126, %v3178
    %v3197 = vmul.f32 %v3127, %v3180
    %v3198 = vmul.f32 %v3128, %v3182
    %v3199 = vmul.f32 %v3129, %v3184
    %v3200 = vmul.f32 %v3130, %v3186
    %v3201 = vsub.f32 1.0, %v3187
    %v3202 = vsub.f32 1.0, %v3188
    %v3203 = vsub.f32 1.0, %v3189
    %v3204 = vsub.f32 1.0, %v3190
    %v3205 = vsub.f32 1.0, %v3191
    %v3206 = vsub.f32 1.0, %v3192
    %v3207 = vsub.f32 1.0, %v3193
    %v3208 = vsub.f32 1.0, %v3194
    %v3209 = vsub.f32 1.0, %v3195
    %v3210 = vsub.f32 1.0, %v3196
    %v3211 = vsub.f32 1.0, %v3197
    %v3212 = vsub.f32 1.0, %v3198
    %v3213 = vsub.f32 1.0, %v3199
    %v3214 = vsub.f32 1.0, %v3200
    %vm3215 = vcmp.lt.f32.partialorder %v2921, 0.0
    %vm3216 = vcmp.lt.f32.partialorder %v2922, 0.0
    %vm3217 = vcmp.lt.f32.partialorder %v2923, 0.0
    %vm3218 = vcmp.lt.f32.partialorder %v2924, 0.0
    %vm3219 = vcmp.lt.f32.partialorder %v2925, 0.0
    %vm3220 = vcmp.lt.f32.partialorder %v2926, 0.0
    %vm3221 = vcmp.lt.f32.partialorder %v2927, 0.0
    %vm3222 = vcmp.lt.f32.partialorder %v2928, 0.0
    %vm3223 = vcmp.lt.f32.partialorder %v2929, 0.0
    %vm3224 = vcmp.lt.f32.partialorder %v2930, 0.0
    %vm3225 = vcmp.lt.f32.partialorder %v2931, 0.0
    %vm3226 = vcmp.lt.f32.partialorder %v2932, 0.0
    %vm3227 = vcmp.lt.f32.partialorder %v2933, 0.0
    %vm3228 = vcmp.lt.f32.partialorder %v2934, 0.0
    %v3229 = vsub.f32 0.0, %v3201
    %v3230 = vsub.f32 0.0, %v3202
    %v3231 = vsub.f32 0.0, %v3203
    %v3232 = vsub.f32 0.0, %v3204
    %v3233 = vsub.f32 0.0, %v3205
    %v3234 = vsub.f32 0.0, %v3206
    %v3235 = vsub.f32 0.0, %v3207
    %v3236 = vsub.f32 0.0, %v3208
    %v3237 = vsub.f32 0.0, %v3209
    %v3238 = vsub.f32 0.0, %v3210
    %v3239 = vsub.f32 0.0, %v3211
    %v3240 = vsub.f32 0.0, %v3212
    %v3241 = vsub.f32 0.0, %v3213
    %v3242 = vsub.f32 0.0, %v3214
    %v3243 = vsel %vm3215, %v3229, %v3201
    %v3244 = vsel %vm3216, %v3230, %v3202
    %v3245 = vsel %vm3217, %v3231, %v3203
    %v3246 = vsel %vm3218, %v3232, %v3204
    %v3247 = vsel %vm3219, %v3233, %v3205
    %v3248 = vsel %vm3220, %v3234, %v3206
    %v3249 = vsel %vm3221, %v3235, %v3207
    %v3250 = vsel %vm3222, %v3236, %v3208
    %v3251 = vsel %vm3223, %v3237, %v3209
    %v3252 = vsel %vm3224, %v3238, %v3210
    %v3253 = vsel %vm3225, %v3239, %v3211
    %v3254 = vsel %vm3226, %v3240, %v3212
    %v3255 = vsel %vm3227, %v3241, %v3213
    %v3256 = vsel %vm3228, %v3242, %v3214
    %v3257 = vadd.f32 %v3243, 1.0
    %v3258 = vadd.f32 %v3244, 1.0
    %v3259 = vadd.f32 %v3245, 1.0
    %v3260 = vadd.f32 %v3246, 1.0
    %v3261 = vadd.f32 %v3247, 1.0
    %v3262 = vadd.f32 %v3248, 1.0
    %v3263 = vadd.f32 %v3249, 1.0
    %v3264 = vadd.f32 %v3250, 1.0
    %v3265 = vadd.f32 %v3251, 1.0
    %v3266 = vadd.f32 %v3252, 1.0
    %v3267 = vadd.f32 %v3253, 1.0
    %v3268 = vadd.f32 %v3254, 1.0
    %v3269 = vadd.f32 %v3255, 1.0
    %v3270 = vadd.f32 %v3256, 1.0
    %v3271 = vmul.f32 %v2907, %v3257
    %v3272 = vmul.f32 %v2908, %v3258
    %v3273 = vmul.f32 %v2909, %v3259
    %v3274 = vmul.f32 %v2910, %v3260
    %v3275 = vmul.f32 %v2911, %v3261
    %v3276 = vmul.f32 %v2912, %v3262
    %v3277 = vmul.f32 %v2913, %v3263
    %v3278 = vmul.f32 %v2914, %v3264
    %v3279 = vmul.f32 %v2915, %v3265
    %v3280 = vmul.f32 %v2916, %v3266
    %v3281 = vmul.f32 %v2917, %v3267
    %v3282 = vmul.f32 %v2918, %v3268
    %v3283 = vmul.f32 %v2919, %v3269
    %v3284 = vmul.f32 %v2920, %v3270
    %v3285 = vld [vmem:[%s11] sm:$0xff]
    %v3286 = vld [vmem:[%s11 + $0x8] sm:$0xff]
    %v3287 = vld [vmem:[%s11 + $0x10] sm:$0xff]
    %v3288 = vld [vmem:[%s11 + $0x18] sm:$0xff]
    %vm3289 = vcmask 261120
    %v3291 = vsel %vm3289, %v3271, 0
    %v3294 = vsel %vm3289, %v3272, 0
    %v3297 = vsel %vm3289, %v3273, 0
    %v3300 = vsel %vm3289, %v3274, 0
    %v3303 = vsel %vm3289, %v3275, 0
    %v3306 = vsel %vm3289, %v3276, 0
    %v3309 = vsel %vm3289, %v3277, 0
    %v3312 = vsel %vm3289, %v3278, 0
    %v3315 = vsel %vm3289, %v3279, 0
    %v3318 = vsel %vm3289, %v3280, 0
    %v3321 = vsel %vm3289, %v3281, 0
    %v3324 = vsel %vm3289, %v3282, 0
    %v3327 = vsel %vm3289, %v3283, 0
    %v3330 = vsel %vm3289, %v3284, 0
    %3332 = vmatprep.subr.mxu0 0.0
    %3333 = vmatpush1.msra.mxu0 0.0
    %3334 = vmatprep.subr.mxu0 0.0
    %3335 = vmatpush1.msra.mxu0 0.0
    %3336 = vmatprep.subr.mxu0 0.0
    %3337 = vmatpush1.msra.mxu0 0.0
    %3338 = vmatprep.subr.mxu0 0.0
    %3339 = vmatpush1.msra.mxu0 0.0
    %3340 = vmatprep.subr.mxu0 0.0
    %3341 = vmatpush1.msra.mxu0 0.0
    %3342 = vmatprep.subr.mxu0 0.0
    %3343 = vmatpush1.msra.mxu0 0.0
    %3344 = vmatprep.subr.mxu0 0.0
    %3345 = vmatpush1.msra.mxu0 0.0
    %3346 = vmatprep.subr.mxu0 0.0
    %3347 = vmatpush1.msra.mxu0 0.0
    %3348 = vmatprep.subr.mxu0 0.0
    %3349 = vmatpush1.msra.mxu0 0.0
    %3350 = vmatprep.subr.mxu0 0.0
    %3351 = vmatpush1.msra.mxu0 0.0
    %3352 = vmatprep.subr.mxu0 0.0
    %3353 = vmatpush1.msra.mxu0 0.0
    %3354 = vmatprep.subr.mxu0 0.0
    %3355 = vmatpush1.msra.mxu0 0.0
    %3356 = vmatprep.subr.mxu0 0.0
    %3357 = vmatpush1.msra.mxu0 %v3288
    %3358 = vmatprep.subr.mxu0 0.0
    %3359 = vmatpush1.msra.mxu0 %v3287
    %3360 = vmatprep.subr.mxu0 0.0
    %3361 = vmatpush1.msra.mxu0 %v3286
    %3362 = vmatprep.subr.mxu0 0.0
    %3363 = vmatpush1.msra.mxu0 %v3285
    %3364 = vmatprep.subr.mxu0 0.0
    %3365 = vmatpush2.msra.mxu0 0.0
    %3366 = vmatprep.subr.mxu0 0.0
    %3367 = vmatpush2.msra.mxu0 0.0
    %3368 = vmatprep.subr.mxu0 0.0
    %3369 = vmatpush2.msra.mxu0 0.0
    %3370 = vmatprep.subr.mxu0 0.0
    %3371 = vmatpush2.msra.mxu0 0.0
    %3372 = vmatprep.subr.mxu0 0.0
    %3373 = vmatpush2.msra.mxu0 0.0
    %3374 = vmatprep.subr.mxu0 0.0
    %3375 = vmatpush2.msra.mxu0 0.0
    %3376 = vmatprep.subr.mxu0 0.0
    %3377 = vmatpush2.msra.mxu0 0.0
    %3378 = vmatprep.subr.mxu0 0.0
    %3379 = vmatpush2.msra.mxu0 0.0
    %3380 = vmatprep.subr.mxu0 0.0
    %3381 = vmatpush2.msra.mxu0 0.0
    %3382 = vmatprep.subr.mxu0 0.0
    %3383 = vmatpush2.msra.mxu0 0.0
    %3384 = vmatprep.subr.mxu0 0.0
    %3385 = vmatpush2.msra.mxu0 0.0
    %3386 = vmatprep.subr.mxu0 0.0
    %3387 = vmatpush2.msra.mxu0 0.0
    %3388 = vmatprep.subr.mxu0 0.0
    %3389 = vmatpush2.msra.mxu0 0.0
    %3390 = vmatprep.subr.mxu0 0.0
    %3391 = vmatpush2.msra.mxu0 0.0
    %3392 = vmatprep.subr.mxu0 0.0
    %3393 = vmatpush2.msra.mxu0 0.0
    %3394 = vmatprep.subr.mxu0 0.0
    %3395 = vmatpush2.msra.mxu0 0.0
    %3396 = vmatprep.mubr.f32.mxu0 0.0
    %3397 = vmatmul.mubr.f32.gmra.mxu0 %v3291
    %v3398 = vpop.f32.mrf.mxu0
    %v3399 = vadd.f32 0.0, %v3398
    %v3400 = vpop.f32.mrf.mxu0
    %3401 = vmatprep.mubr.f32.mxu0 0.0
    %3402 = vmatmul.mubr.f32.gmra.mxu0 %v3294
    %v3403 = vpop.f32.mrf.mxu0
    %v3404 = vadd.f32 0.0, %v3403
    %v3405 = vpop.f32.mrf.mxu0
    %3406 = vmatprep.mubr.f32.mxu0 0.0
    %3407 = vmatmul.mubr.f32.gmra.mxu0 %v3297
    %v3408 = vpop.f32.mrf.mxu0
    %v3409 = vadd.f32 0.0, %v3408
    %v3410 = vpop.f32.mrf.mxu0
    %3411 = vmatprep.mubr.f32.mxu0 0.0
    %3412 = vmatmul.mubr.f32.gmra.mxu0 %v3300
    %v3413 = vpop.f32.mrf.mxu0
    %v3414 = vadd.f32 0.0, %v3413
    %v3415 = vpop.f32.mrf.mxu0
    %3416 = vmatprep.mubr.f32.mxu0 0.0
    %3417 = vmatmul.mubr.f32.gmra.mxu0 %v3303
    %v3418 = vpop.f32.mrf.mxu0
    %v3419 = vadd.f32 0.0, %v3418
    %v3420 = vpop.f32.mrf.mxu0
    %3421 = vmatprep.mubr.f32.mxu0 0.0
    %3422 = vmatmul.mubr.f32.gmra.mxu0 %v3306
    %v3423 = vpop.f32.mrf.mxu0
    %v3424 = vadd.f32 0.0, %v3423
    %v3425 = vpop.f32.mrf.mxu0
    %3426 = vmatprep.mubr.f32.mxu0 0.0
    %3427 = vmatmul.mubr.f32.gmra.mxu0 %v3309
    %v3428 = vpop.f32.mrf.mxu0
    %v3429 = vadd.f32 0.0, %v3428
    %v3430 = vpop.f32.mrf.mxu0
    %3431 = vmatprep.mubr.f32.mxu0 0.0
    %3432 = vmatmul.mubr.f32.gmra.mxu0 %v3312
    %v3433 = vpop.f32.mrf.mxu0
    %v3434 = vadd.f32 0.0, %v3433
    %v3435 = vpop.f32.mrf.mxu0
    %3436 = vmatprep.mubr.f32.mxu0 0.0
    %3437 = vmatmul.mubr.f32.gmra.mxu0 %v3315
    %v3438 = vpop.f32.mrf.mxu0
    %v3439 = vadd.f32 0.0, %v3438
    %v3440 = vpop.f32.mrf.mxu0
    %3441 = vmatprep.mubr.f32.mxu0 0.0
    %3442 = vmatmul.mubr.f32.gmra.mxu0 %v3318
    %v3443 = vpop.f32.mrf.mxu0
    %v3444 = vadd.f32 0.0, %v3443
    %v3445 = vpop.f32.mrf.mxu0
    %3446 = vmatprep.mubr.f32.mxu0 0.0
    %3447 = vmatmul.mubr.f32.gmra.mxu0 %v3321
    %v3448 = vpop.f32.mrf.mxu0
    %v3449 = vadd.f32 0.0, %v3448
    %v3450 = vpop.f32.mrf.mxu0
    %3451 = vmatprep.mubr.f32.mxu0 0.0
    %3452 = vmatmul.mubr.f32.gmra.mxu0 %v3324
    %v3453 = vpop.f32.mrf.mxu0
    %v3454 = vadd.f32 0.0, %v3453
    %v3455 = vpop.f32.mrf.mxu0
    %3456 = vmatprep.mubr.f32.mxu0 0.0
    %3457 = vmatmul.mubr.f32.gmra.mxu0 %v3327
    %v3458 = vpop.f32.mrf.mxu0
    %v3459 = vadd.f32 0.0, %v3458
    %v3460 = vpop.f32.mrf.mxu0
    %3461 = vmatprep.mubr.f32.mxu0 0.0
    %3462 = vmatmul.mubr.f32.gmra.mxu0 %v3330
    %v3463 = vpop.f32.mrf.mxu0
    %v3464 = vadd.f32 0.0, %v3463
    %v3465 = vpop.f32.mrf.mxu0
    %3466 = vdwg.mxu0
    %v3467 = vadd.f32 %v2386, %v3399
    %v3468 = vadd.f32 %v2387, %v3404
    %v3469 = vadd.f32 %v2388, %v3409
    %v3470 = vadd.f32 %v2389, %v3414
    %v3471 = vadd.f32 %v2390, %v3419
    %v3472 = vadd.f32 %v2391, %v3424
    %v3473 = vadd.f32 %v2392, %v3429
    %v3474 = vadd.f32 %v2393, %v3434
    %v3475 = vadd.f32 %v2394, %v3439
    %v3476 = vadd.f32 %v2395, %v3444
    %v3477 = vadd.f32 %v2396, %v3449
    %v3478 = vadd.f32 %v2397, %v3454
    %v3479 = vadd.f32 %v2398, %v3459
    %v3480 = vadd.f32 %v2399, %v3464
    %v3481 = vld [vmem:[%s12] sm:$0x1]
    %v3483 = vlaneseq
    %v3484 = vshrl.u32 %v3483, 7
    %v3485 = vsub.s32 0, %v3484
    %v3486 = vrot.slane %v3481, %v3485
    %v3488 = vadd.f32 %v3467, %v3486
    %v3489 = vadd.f32 %v3468, %v3486
    %v3490 = vadd.f32 %v3469, %v3486
    %v3491 = vadd.f32 %v3470, %v3486
    %v3492 = vadd.f32 %v3471, %v3486
    %v3493 = vadd.f32 %v3472, %v3486
    %v3494 = vadd.f32 %v3473, %v3486
    %v3495 = vadd.f32 %v3474, %v3486
    %v3496 = vadd.f32 %v3475, %v3486
    %v3497 = vadd.f32 %v3476, %v3486
    %v3498 = vadd.f32 %v3477, %v3486
    %v3499 = vadd.f32 %v3478, %v3486
    %v3500 = vadd.f32 %v3479, %v3486
    %v3501 = vadd.f32 %v3480, %v3486
    %s3502 = scalar_lea.vmem %s3, 1
    %v3503 = vld [vmem:[%s3502] sm:$0x1]
    %s3504 = scalar_lea.vmem %s4, 1
    %v3505 = vld [vmem:[%s3504] sm:$0x1]
    %v3506 = vsel %vm265, %v3488, 0.0
    %3507 = vadd.xlane.f32.xlu0 %v3506
    %v3508 = vpop.xlane.xlu0 %3507
    %v3509 = vsel %vm265, %v3489, 0.0
    %3510 = vadd.xlane.f32.xlu0 %v3509
    %v3511 = vpop.xlane.xlu0 %3510
    %v3512 = vsel %vm265, %v3490, 0.0
    %3513 = vadd.xlane.f32.xlu0 %v3512
    %v3514 = vpop.xlane.xlu0 %3513
    %v3515 = vsel %vm265, %v3491, 0.0
    %3516 = vadd.xlane.f32.xlu0 %v3515
    %v3517 = vpop.xlane.xlu0 %3516
    %v3518 = vsel %vm265, %v3492, 0.0
    %3519 = vadd.xlane.f32.xlu0 %v3518
    %v3520 = vpop.xlane.xlu0 %3519
    %v3521 = vsel %vm265, %v3493, 0.0
    %3522 = vadd.xlane.f32.xlu0 %v3521
    %v3523 = vpop.xlane.xlu0 %3522
    %v3524 = vsel %vm265, %v3494, 0.0
    %3525 = vadd.xlane.f32.xlu0 %v3524
    %v3526 = vpop.xlane.xlu0 %3525
    %v3527 = vsel %vm265, %v3495, 0.0
    %3528 = vadd.xlane.f32.xlu0 %v3527
    %v3529 = vpop.xlane.xlu0 %3528
    %v3530 = vsel %vm265, %v3496, 0.0
    %3531 = vadd.xlane.f32.xlu0 %v3530
    %v3532 = vpop.xlane.xlu0 %3531
    %v3533 = vsel %vm265, %v3497, 0.0
    %3534 = vadd.xlane.f32.xlu0 %v3533
    %v3535 = vpop.xlane.xlu0 %3534
    %v3536 = vsel %vm265, %v3498, 0.0
    %3537 = vadd.xlane.f32.xlu0 %v3536
    %v3538 = vpop.xlane.xlu0 %3537
    %v3539 = vsel %vm265, %v3499, 0.0
    %3540 = vadd.xlane.f32.xlu0 %v3539
    %v3541 = vpop.xlane.xlu0 %3540
    %v3542 = vsel %vm265, %v3500, 0.0
    %3543 = vadd.xlane.f32.xlu0 %v3542
    %v3544 = vpop.xlane.xlu0 %3543
    %v3545 = vsel %vm265, %v3501, 0.0
    %3546 = vadd.xlane.f32.xlu0 %v3545
    %v3547 = vpop.xlane.xlu0 %3546
    %v3548 = vmul.f32 %v3508, %v308
    %v3549 = vmul.f32 %v3511, %v308
    %v3550 = vmul.f32 %v3514, %v308
    %v3551 = vmul.f32 %v3517, %v308
    %v3552 = vmul.f32 %v3520, %v308
    %v3553 = vmul.f32 %v3523, %v308
    %v3554 = vmul.f32 %v3526, %v308
    %v3555 = vmul.f32 %v3529, %v308
    %v3556 = vmul.f32 %v3532, %v308
    %v3557 = vmul.f32 %v3535, %v308
    %v3558 = vmul.f32 %v3538, %v308
    %v3559 = vmul.f32 %v3541, %v308
    %v3560 = vmul.f32 %v3544, %v308
    %v3561 = vmul.f32 %v3547, %v308
    %v3562 = vsub.f32 %v3488, %v3548
    %v3563 = vsub.f32 %v3489, %v3549
    %v3564 = vsub.f32 %v3490, %v3550
    %v3565 = vsub.f32 %v3491, %v3551
    %v3566 = vsub.f32 %v3492, %v3552
    %v3567 = vsub.f32 %v3493, %v3553
    %v3568 = vsub.f32 %v3494, %v3554
    %v3569 = vsub.f32 %v3495, %v3555
    %v3570 = vsub.f32 %v3496, %v3556
    %v3571 = vsub.f32 %v3497, %v3557
    %v3572 = vsub.f32 %v3498, %v3558
    %v3573 = vsub.f32 %v3499, %v3559
    %v3574 = vsub.f32 %v3500, %v3560
    %v3575 = vsub.f32 %v3501, %v3561
    %v3576 = vmul.f32 %v3562, %v3562
    %v3577 = vmul.f32 %v3563, %v3563
    %v3578 = vmul.f32 %v3564, %v3564
    %v3579 = vmul.f32 %v3565, %v3565
    %v3580 = vmul.f32 %v3566, %v3566
    %v3581 = vmul.f32 %v3567, %v3567
    %v3582 = vmul.f32 %v3568, %v3568
    %v3583 = vmul.f32 %v3569, %v3569
    %v3584 = vmul.f32 %v3570, %v3570
    %v3585 = vmul.f32 %v3571, %v3571
    %v3586 = vmul.f32 %v3572, %v3572
    %v3587 = vmul.f32 %v3573, %v3573
    %v3588 = vmul.f32 %v3574, %v3574
    %v3589 = vmul.f32 %v3575, %v3575
    %v3590 = vsel %vm265, %v3576, 0.0
    %3591 = vadd.xlane.f32.xlu0 %v3590
    %v3592 = vpop.xlane.xlu0 %3591
    %v3593 = vsel %vm265, %v3577, 0.0
    %3594 = vadd.xlane.f32.xlu0 %v3593
    %v3595 = vpop.xlane.xlu0 %3594
    %v3596 = vsel %vm265, %v3578, 0.0
    %3597 = vadd.xlane.f32.xlu0 %v3596
    %v3598 = vpop.xlane.xlu0 %3597
    %v3599 = vsel %vm265, %v3579, 0.0
    %3600 = vadd.xlane.f32.xlu0 %v3599
    %v3601 = vpop.xlane.xlu0 %3600
    %v3602 = vsel %vm265, %v3580, 0.0
    %3603 = vadd.xlane.f32.xlu0 %v3602
    %v3604 = vpop.xlane.xlu0 %3603
    %v3605 = vsel %vm265, %v3581, 0.0
    %3606 = vadd.xlane.f32.xlu0 %v3605
    %v3607 = vpop.xlane.xlu0 %3606
    %v3608 = vsel %vm265, %v3582, 0.0
    %3609 = vadd.xlane.f32.xlu0 %v3608
    %v3610 = vpop.xlane.xlu0 %3609
    %v3611 = vsel %vm265, %v3583, 0.0
    %3612 = vadd.xlane.f32.xlu0 %v3611
    %v3613 = vpop.xlane.xlu0 %3612
    %v3614 = vsel %vm265, %v3584, 0.0
    %3615 = vadd.xlane.f32.xlu0 %v3614
    %v3616 = vpop.xlane.xlu0 %3615
    %v3617 = vsel %vm265, %v3585, 0.0
    %3618 = vadd.xlane.f32.xlu0 %v3617
    %v3619 = vpop.xlane.xlu0 %3618
    %v3620 = vsel %vm265, %v3586, 0.0
    %3621 = vadd.xlane.f32.xlu0 %v3620
    %v3622 = vpop.xlane.xlu0 %3621
    %v3623 = vsel %vm265, %v3587, 0.0
    %3624 = vadd.xlane.f32.xlu0 %v3623
    %v3625 = vpop.xlane.xlu0 %3624
    %v3626 = vsel %vm265, %v3588, 0.0
    %3627 = vadd.xlane.f32.xlu0 %v3626
    %v3628 = vpop.xlane.xlu0 %3627
    %v3629 = vsel %vm265, %v3589, 0.0
    %3630 = vadd.xlane.f32.xlu0 %v3629
    %v3631 = vpop.xlane.xlu0 %3630
    %v3632 = vmul.f32 %v3592, %v308
    %v3633 = vmul.f32 %v3595, %v308
    %v3634 = vmul.f32 %v3598, %v308
    %v3635 = vmul.f32 %v3601, %v308
    %v3636 = vmul.f32 %v3604, %v308
    %v3637 = vmul.f32 %v3607, %v308
    %v3638 = vmul.f32 %v3610, %v308
    %v3639 = vmul.f32 %v3613, %v308
    %v3640 = vmul.f32 %v3616, %v308
    %v3641 = vmul.f32 %v3619, %v308
    %v3642 = vmul.f32 %v3622, %v308
    %v3643 = vmul.f32 %v3625, %v308
    %v3644 = vmul.f32 %v3628, %v308
    %v3645 = vmul.f32 %v3631, %v308
    %v3646 = vadd.f32 %v3632, 1e-05
    %v3647 = vadd.f32 %v3633, 1e-05
    %v3648 = vadd.f32 %v3634, 1e-05
    %v3649 = vadd.f32 %v3635, 1e-05
    %v3650 = vadd.f32 %v3636, 1e-05
    %v3651 = vadd.f32 %v3637, 1e-05
    %v3652 = vadd.f32 %v3638, 1e-05
    %v3653 = vadd.f32 %v3639, 1e-05
    %v3654 = vadd.f32 %v3640, 1e-05
    %v3655 = vadd.f32 %v3641, 1e-05
    %v3656 = vadd.f32 %v3642, 1e-05
    %v3657 = vadd.f32 %v3643, 1e-05
    %v3658 = vadd.f32 %v3644, 1e-05
    %v3659 = vadd.f32 %v3645, 1e-05
    %v3660 = vrsqrt.pop %v3646
    %v3661 = vmul.f32 %v3646, %v3660
    %vm3662 = vcmp.eq.f32.partialorder %v3646, inf
    %v3663 = vsel %vm3662, %v3646, %v3661
    %vm3664 = vcmp.eq.f32.partialorder %v3646, 0.0
    %v3665 = vand.u32 %v3646, 2147483648
    %v3666 = vsel %vm3664, %v3665, %v3663
    %v3667 = vrsqrt.pop %v3647
    %v3668 = vmul.f32 %v3647, %v3667
    %vm3669 = vcmp.eq.f32.partialorder %v3647, inf
    %v3670 = vsel %vm3669, %v3647, %v3668
    %vm3671 = vcmp.eq.f32.partialorder %v3647, 0.0
    %v3672 = vand.u32 %v3647, 2147483648
    %v3673 = vsel %vm3671, %v3672, %v3670
    %v3674 = vrsqrt.pop %v3648
    %v3675 = vmul.f32 %v3648, %v3674
    %vm3676 = vcmp.eq.f32.partialorder %v3648, inf
    %v3677 = vsel %vm3676, %v3648, %v3675
    %vm3678 = vcmp.eq.f32.partialorder %v3648, 0.0
    %v3679 = vand.u32 %v3648, 2147483648
    %v3680 = vsel %vm3678, %v3679, %v3677
    %v3681 = vrsqrt.pop %v3649
    %v3682 = vmul.f32 %v3649, %v3681
    %vm3683 = vcmp.eq.f32.partialorder %v3649, inf
    %v3684 = vsel %vm3683, %v3649, %v3682
    %vm3685 = vcmp.eq.f32.partialorder %v3649, 0.0
    %v3686 = vand.u32 %v3649, 2147483648
    %v3687 = vsel %vm3685, %v3686, %v3684
    %v3688 = vrsqrt.pop %v3650
    %v3689 = vmul.f32 %v3650, %v3688
    %vm3690 = vcmp.eq.f32.partialorder %v3650, inf
    %v3691 = vsel %vm3690, %v3650, %v3689
    %vm3692 = vcmp.eq.f32.partialorder %v3650, 0.0
    %v3693 = vand.u32 %v3650, 2147483648
    %v3694 = vsel %vm3692, %v3693, %v3691
    %v3695 = vrsqrt.pop %v3651
    %v3696 = vmul.f32 %v3651, %v3695
    %vm3697 = vcmp.eq.f32.partialorder %v3651, inf
    %v3698 = vsel %vm3697, %v3651, %v3696
    %vm3699 = vcmp.eq.f32.partialorder %v3651, 0.0
    %v3700 = vand.u32 %v3651, 2147483648
    %v3701 = vsel %vm3699, %v3700, %v3698
    %v3702 = vrsqrt.pop %v3652
    %v3703 = vmul.f32 %v3652, %v3702
    %vm3704 = vcmp.eq.f32.partialorder %v3652, inf
    %v3705 = vsel %vm3704, %v3652, %v3703
    %vm3706 = vcmp.eq.f32.partialorder %v3652, 0.0
    %v3707 = vand.u32 %v3652, 2147483648
    %v3708 = vsel %vm3706, %v3707, %v3705
    %v3709 = vrsqrt.pop %v3653
    %v3710 = vmul.f32 %v3653, %v3709
    %vm3711 = vcmp.eq.f32.partialorder %v3653, inf
    %v3712 = vsel %vm3711, %v3653, %v3710
    %vm3713 = vcmp.eq.f32.partialorder %v3653, 0.0
    %v3714 = vand.u32 %v3653, 2147483648
    %v3715 = vsel %vm3713, %v3714, %v3712
    %v3716 = vrsqrt.pop %v3654
    %v3717 = vmul.f32 %v3654, %v3716
    %vm3718 = vcmp.eq.f32.partialorder %v3654, inf
    %v3719 = vsel %vm3718, %v3654, %v3717
    %vm3720 = vcmp.eq.f32.partialorder %v3654, 0.0
    %v3721 = vand.u32 %v3654, 2147483648
    %v3722 = vsel %vm3720, %v3721, %v3719
    %v3723 = vrsqrt.pop %v3655
    %v3724 = vmul.f32 %v3655, %v3723
    %vm3725 = vcmp.eq.f32.partialorder %v3655, inf
    %v3726 = vsel %vm3725, %v3655, %v3724
    %vm3727 = vcmp.eq.f32.partialorder %v3655, 0.0
    %v3728 = vand.u32 %v3655, 2147483648
    %v3729 = vsel %vm3727, %v3728, %v3726
    %v3730 = vrsqrt.pop %v3656
    %v3731 = vmul.f32 %v3656, %v3730
    %vm3732 = vcmp.eq.f32.partialorder %v3656, inf
    %v3733 = vsel %vm3732, %v3656, %v3731
    %vm3734 = vcmp.eq.f32.partialorder %v3656, 0.0
    %v3735 = vand.u32 %v3656, 2147483648
    %v3736 = vsel %vm3734, %v3735, %v3733
    %v3737 = vrsqrt.pop %v3657
    %v3738 = vmul.f32 %v3657, %v3737
    %vm3739 = vcmp.eq.f32.partialorder %v3657, inf
    %v3740 = vsel %vm3739, %v3657, %v3738
    %vm3741 = vcmp.eq.f32.partialorder %v3657, 0.0
    %v3742 = vand.u32 %v3657, 2147483648
    %v3743 = vsel %vm3741, %v3742, %v3740
    %v3744 = vrsqrt.pop %v3658
    %v3745 = vmul.f32 %v3658, %v3744
    %vm3746 = vcmp.eq.f32.partialorder %v3658, inf
    %v3747 = vsel %vm3746, %v3658, %v3745
    %vm3748 = vcmp.eq.f32.partialorder %v3658, 0.0
    %v3749 = vand.u32 %v3658, 2147483648
    %v3750 = vsel %vm3748, %v3749, %v3747
    %v3751 = vrsqrt.pop %v3659
    %v3752 = vmul.f32 %v3659, %v3751
    %vm3753 = vcmp.eq.f32.partialorder %v3659, inf
    %v3754 = vsel %vm3753, %v3659, %v3752
    %vm3755 = vcmp.eq.f32.partialorder %v3659, 0.0
    %v3756 = vand.u32 %v3659, 2147483648
    %v3757 = vsel %vm3755, %v3756, %v3754
    %v3758 = vrcp.pop %v3666
    %v3759 = vmul.f32 %v3562, %v3758
    %v3760 = vrcp.pop %v3673
    %v3761 = vmul.f32 %v3563, %v3760
    %v3762 = vrcp.pop %v3680
    %v3763 = vmul.f32 %v3564, %v3762
    %v3764 = vrcp.pop %v3687
    %v3765 = vmul.f32 %v3565, %v3764
    %v3766 = vrcp.pop %v3694
    %v3767 = vmul.f32 %v3566, %v3766
    %v3768 = vrcp.pop %v3701
    %v3769 = vmul.f32 %v3567, %v3768
    %v3770 = vrcp.pop %v3708
    %v3771 = vmul.f32 %v3568, %v3770
    %v3772 = vrcp.pop %v3715
    %v3773 = vmul.f32 %v3569, %v3772
    %v3774 = vrcp.pop %v3722
    %v3775 = vmul.f32 %v3570, %v3774
    %v3776 = vrcp.pop %v3729
    %v3777 = vmul.f32 %v3571, %v3776
    %v3778 = vrcp.pop %v3736
    %v3779 = vmul.f32 %v3572, %v3778
    %v3780 = vrcp.pop %v3743
    %v3781 = vmul.f32 %v3573, %v3780
    %v3782 = vrcp.pop %v3750
    %v3783 = vmul.f32 %v3574, %v3782
    %v3784 = vrcp.pop %v3757
    %v3785 = vmul.f32 %v3575, %v3784
    %v3787 = vlaneseq
    %v3788 = vshrl.u32 %v3787, 7
    %v3789 = vsub.s32 0, %v3788
    %v3790 = vrot.slane %v3503, %v3789
    %v3792 = vmul.f32 %v3759, %v3790
    %v3793 = vmul.f32 %v3761, %v3790
    %v3794 = vmul.f32 %v3763, %v3790
    %v3795 = vmul.f32 %v3765, %v3790
    %v3796 = vmul.f32 %v3767, %v3790
    %v3797 = vmul.f32 %v3769, %v3790
    %v3798 = vmul.f32 %v3771, %v3790
    %v3799 = vmul.f32 %v3773, %v3790
    %v3800 = vmul.f32 %v3775, %v3790
    %v3801 = vmul.f32 %v3777, %v3790
    %v3802 = vmul.f32 %v3779, %v3790
    %v3803 = vmul.f32 %v3781, %v3790
    %v3804 = vmul.f32 %v3783, %v3790
    %v3805 = vmul.f32 %v3785, %v3790
    %v3807 = vlaneseq
    %v3808 = vshrl.u32 %v3807, 7
    %v3809 = vsub.s32 0, %v3808
    %v3810 = vrot.slane %v3505, %v3809
    %v3812 = vadd.f32 %v3792, %v3810
    %v3813 = vadd.f32 %v3793, %v3810
    %v3814 = vadd.f32 %v3794, %v3810
    %v3815 = vadd.f32 %v3795, %v3810
    %v3816 = vadd.f32 %v3796, %v3810
    %v3817 = vadd.f32 %v3797, %v3810
    %v3818 = vadd.f32 %v3798, %v3810
    %v3819 = vadd.f32 %v3799, %v3810
    %v3820 = vadd.f32 %v3800, %v3810
    %v3821 = vadd.f32 %v3801, %v3810
    %v3822 = vadd.f32 %v3802, %v3810
    %v3823 = vadd.f32 %v3803, %v3810
    %v3824 = vadd.f32 %v3804, %v3810
    %v3825 = vadd.f32 %v3805, %v3810
    %s3826 = scalar_lea.vmem %s5, 8
    %v3827 = vld [vmem:[%s3826] sm:$0xff]
    %s3828 = scalar_lea.vmem %s6, 1
    %v3829 = vld [vmem:[%s3828] sm:$0x1]
    %v3831 = vlaneseq
    %v3832 = vshrl.u32 %v3831, 7
    %v3833 = vsub.s32 0, %v3832
    %v3834 = vrot.slane %v3829, %v3833
    %v3837 = vsel %vm265, %v3812, 0
    %v3840 = vsel %vm265, %v3813, 0
    %v3843 = vsel %vm265, %v3814, 0
    %v3846 = vsel %vm265, %v3815, 0
    %v3849 = vsel %vm265, %v3816, 0
    %v3852 = vsel %vm265, %v3817, 0
    %v3855 = vsel %vm265, %v3818, 0
    %v3858 = vsel %vm265, %v3819, 0
    %v3861 = vsel %vm265, %v3820, 0
    %v3864 = vsel %vm265, %v3821, 0
    %v3867 = vsel %vm265, %v3822, 0
    %v3870 = vsel %vm265, %v3823, 0
    %v3873 = vsel %vm265, %v3824, 0
    %v3876 = vsel %vm265, %v3825, 0
    %3878 = vmatprep.subr.mxu0 0.0
    %3879 = vmatpush1.msra.mxu0 0.0
    %3880 = vmatprep.subr.mxu0 0.0
    %3881 = vmatpush1.msra.mxu0 0.0
    %3882 = vmatprep.subr.mxu0 0.0
    %3883 = vmatpush1.msra.mxu0 0.0
    %3884 = vmatprep.subr.mxu0 0.0
    %3885 = vmatpush1.msra.mxu0 0.0
    %3886 = vmatprep.subr.mxu0 0.0
    %3887 = vmatpush1.msra.mxu0 0.0
    %3888 = vmatprep.subr.mxu0 0.0
    %3889 = vmatpush1.msra.mxu0 0.0
    %3890 = vmatprep.subr.mxu0 0.0
    %3891 = vmatpush1.msra.mxu0 0.0
    %3892 = vmatprep.subr.mxu0 0.0
    %3893 = vmatpush1.msra.mxu0 0.0
    %3894 = vmatprep.subr.mxu0 0.0
    %3895 = vmatpush1.msra.mxu0 0.0
    %3896 = vmatprep.subr.mxu0 0.0
    %3897 = vmatpush1.msra.mxu0 0.0
    %3898 = vmatprep.subr.mxu0 0.0
    %3899 = vmatpush1.msra.mxu0 0.0
    %3900 = vmatprep.subr.mxu0 0.0
    %3901 = vmatpush1.msra.mxu0 0.0
    %3902 = vmatprep.subr.mxu0 0.0
    %3903 = vmatpush1.msra.mxu0 0.0
    %3904 = vmatprep.subr.mxu0 0.0
    %3905 = vmatpush1.msra.mxu0 0.0
    %3906 = vmatprep.subr.mxu0 0.0
    %3907 = vmatpush1.msra.mxu0 0.0
    %3908 = vmatprep.subr.mxu0 0.0
    %3909 = vmatpush1.msra.mxu0 %v3827
    %3910 = vmatprep.subr.mxu0 0.0
    %3911 = vmatpush2.msra.mxu0 0.0
    %3912 = vmatprep.subr.mxu0 0.0
    %3913 = vmatpush2.msra.mxu0 0.0
    %3914 = vmatprep.subr.mxu0 0.0
    %3915 = vmatpush2.msra.mxu0 0.0
    %3916 = vmatprep.subr.mxu0 0.0
    %3917 = vmatpush2.msra.mxu0 0.0
    %3918 = vmatprep.subr.mxu0 0.0
    %3919 = vmatpush2.msra.mxu0 0.0
    %3920 = vmatprep.subr.mxu0 0.0
    %3921 = vmatpush2.msra.mxu0 0.0
    %3922 = vmatprep.subr.mxu0 0.0
    %3923 = vmatpush2.msra.mxu0 0.0
    %3924 = vmatprep.subr.mxu0 0.0
    %3925 = vmatpush2.msra.mxu0 0.0
    %3926 = vmatprep.subr.mxu0 0.0
    %3927 = vmatpush2.msra.mxu0 0.0
    %3928 = vmatprep.subr.mxu0 0.0
    %3929 = vmatpush2.msra.mxu0 0.0
    %3930 = vmatprep.subr.mxu0 0.0
    %3931 = vmatpush2.msra.mxu0 0.0
    %3932 = vmatprep.subr.mxu0 0.0
    %3933 = vmatpush2.msra.mxu0 0.0
    %3934 = vmatprep.subr.mxu0 0.0
    %3935 = vmatpush2.msra.mxu0 0.0
    %3936 = vmatprep.subr.mxu0 0.0
    %3937 = vmatpush2.msra.mxu0 0.0
    %3938 = vmatprep.subr.mxu0 0.0
    %3939 = vmatpush2.msra.mxu0 0.0
    %3940 = vmatprep.subr.mxu0 0.0
    %3941 = vmatpush2.msra.mxu0 0.0
    %3942 = vmatprep.mubr.f32.mxu0 0.0
    %3943 = vmatmul.mubr.f32.gmra.mxu0 %v3837
    %v3944 = vpop.f32.mrf.mxu0
    %v3945 = vadd.f32 %v3834, %v3944
    %v3946 = vpop.f32.mrf.mxu0
    %3947 = vmatprep.mubr.f32.mxu0 0.0
    %3948 = vmatmul.mubr.f32.gmra.mxu0 %v3840
    %v3949 = vpop.f32.mrf.mxu0
    %v3950 = vadd.f32 %v3834, %v3949
    %v3951 = vpop.f32.mrf.mxu0
    %3952 = vmatprep.mubr.f32.mxu0 0.0
    %3953 = vmatmul.mubr.f32.gmra.mxu0 %v3843
    %v3954 = vpop.f32.mrf.mxu0
    %v3955 = vadd.f32 %v3834, %v3954
    %v3956 = vpop.f32.mrf.mxu0
    %3957 = vmatprep.mubr.f32.mxu0 0.0
    %3958 = vmatmul.mubr.f32.gmra.mxu0 %v3846
    %v3959 = vpop.f32.mrf.mxu0
    %v3960 = vadd.f32 %v3834, %v3959
    %v3961 = vpop.f32.mrf.mxu0
    %3962 = vmatprep.mubr.f32.mxu0 0.0
    %3963 = vmatmul.mubr.f32.gmra.mxu0 %v3849
    %v3964 = vpop.f32.mrf.mxu0
    %v3965 = vadd.f32 %v3834, %v3964
    %v3966 = vpop.f32.mrf.mxu0
    %3967 = vmatprep.mubr.f32.mxu0 0.0
    %3968 = vmatmul.mubr.f32.gmra.mxu0 %v3852
    %v3969 = vpop.f32.mrf.mxu0
    %v3970 = vadd.f32 %v3834, %v3969
    %v3971 = vpop.f32.mrf.mxu0
    %3972 = vmatprep.mubr.f32.mxu0 0.0
    %3973 = vmatmul.mubr.f32.gmra.mxu0 %v3855
    %v3974 = vpop.f32.mrf.mxu0
    %v3975 = vadd.f32 %v3834, %v3974
    %v3976 = vpop.f32.mrf.mxu0
    %3977 = vmatprep.mubr.f32.mxu0 0.0
    %3978 = vmatmul.mubr.f32.gmra.mxu0 %v3858
    %v3979 = vpop.f32.mrf.mxu0
    %v3980 = vadd.f32 %v3834, %v3979
    %v3981 = vpop.f32.mrf.mxu0
    %3982 = vmatprep.mubr.f32.mxu0 0.0
    %3983 = vmatmul.mubr.f32.gmra.mxu0 %v3861
    %v3984 = vpop.f32.mrf.mxu0
    %v3985 = vadd.f32 %v3834, %v3984
    %v3986 = vpop.f32.mrf.mxu0
    %3987 = vmatprep.mubr.f32.mxu0 0.0
    %3988 = vmatmul.mubr.f32.gmra.mxu0 %v3864
    %v3989 = vpop.f32.mrf.mxu0
    %v3990 = vadd.f32 %v3834, %v3989
    %v3991 = vpop.f32.mrf.mxu0
    %3992 = vmatprep.mubr.f32.mxu0 0.0
    %3993 = vmatmul.mubr.f32.gmra.mxu0 %v3867
    %v3994 = vpop.f32.mrf.mxu0
    %v3995 = vadd.f32 %v3834, %v3994
    %v3996 = vpop.f32.mrf.mxu0
    %3997 = vmatprep.mubr.f32.mxu0 0.0
    %3998 = vmatmul.mubr.f32.gmra.mxu0 %v3870
    %v3999 = vpop.f32.mrf.mxu0
    %v4000 = vadd.f32 %v3834, %v3999
    %v4001 = vpop.f32.mrf.mxu0
    %4002 = vmatprep.mubr.f32.mxu0 0.0
    %4003 = vmatmul.mubr.f32.gmra.mxu0 %v3873
    %v4004 = vpop.f32.mrf.mxu0
    %v4005 = vadd.f32 %v3834, %v4004
    %v4006 = vpop.f32.mrf.mxu0
    %4007 = vmatprep.mubr.f32.mxu0 0.0
    %4008 = vmatmul.mubr.f32.gmra.mxu0 %v3876
    %v4009 = vpop.f32.mrf.mxu0
    %v4010 = vadd.f32 %v3834, %v4009
    %v4011 = vpop.f32.mrf.mxu0
    %4012 = vdwg.mxu0
    %4020 = vrot.lane.b32.xlu0 %v3945, 120
    %v4021 = vpop.permute.xlu0 %4020
    %4022 = vrot.lane.b32.xlu0 %v3950, 120
    %v4023 = vpop.permute.xlu0 %4022
    %4024 = vrot.lane.b32.xlu0 %v3955, 120
    %v4025 = vpop.permute.xlu0 %4024
    %4026 = vrot.lane.b32.xlu0 %v3960, 120
    %v4027 = vpop.permute.xlu0 %4026
    %4028 = vrot.lane.b32.xlu0 %v3965, 120
    %v4029 = vpop.permute.xlu0 %4028
    %4030 = vrot.lane.b32.xlu0 %v3970, 120
    %v4031 = vpop.permute.xlu0 %4030
    %4032 = vrot.lane.b32.xlu0 %v3975, 120
    %v4033 = vpop.permute.xlu0 %4032
    %v4034 = vsel %vm793, %v3945, 0
    %v4036 = vsel %vm793, %v3950, 0
    %v4038 = vsel %vm793, %v3955, 0
    %v4040 = vsel %vm793, %v3960, 0
    %v4042 = vsel %vm793, %v3965, 0
    %v4044 = vsel %vm793, %v3970, 0
    %v4046 = vsel %vm793, %v3975, 0
    %v4048 = vsel %vm793, %v4021, 0
    %v4050 = vsel %vm793, %v4023, 0
    %v4052 = vsel %vm793, %v4025, 0
    %v4054 = vsel %vm793, %v4027, 0
    %v4056 = vsel %vm793, %v4029, 0
    %v4058 = vsel %vm793, %v4031, 0
    %v4060 = vsel %vm793, %v4033, 0
    %4062 = vmatprep.subr.mxu0 0.0
    %4063 = vmatpush1.xpose.msra.mxu0 0.0
    %4064 = vmatprep.subr.mxu0 0.0
    %4065 = vmatpush1.xpose.msra.mxu0 0.0
    %4066 = vmatprep.subr.mxu0 0.0
    %4067 = vmatpush1.xpose.msra.mxu0 0.0
    %4068 = vmatprep.subr.mxu0 0.0
    %4069 = vmatpush1.xpose.msra.mxu0 0.0
    %4070 = vmatprep.subr.mxu0 0.0
    %4071 = vmatpush1.xpose.msra.mxu0 0.0
    %4072 = vmatprep.subr.mxu0 0.0
    %4073 = vmatpush1.xpose.msra.mxu0 0.0
    %4074 = vmatprep.subr.mxu0 0.0
    %4075 = vmatpush1.xpose.msra.mxu0 0.0
    %4076 = vmatprep.subr.mxu0 0.0
    %4077 = vmatpush1.xpose.msra.mxu0 0.0
    %4078 = vmatprep.subr.mxu0 0.0
    %4079 = vmatpush1.xpose.msra.mxu0 0.0
    %4080 = vmatprep.subr.mxu0 0.0
    %4081 = vmatpush1.xpose.msra.mxu0 %v4060
    %4082 = vmatprep.subr.mxu0 0.0
    %4083 = vmatpush1.xpose.msra.mxu0 %v4058
    %4084 = vmatprep.subr.mxu0 0.0
    %4085 = vmatpush1.xpose.msra.mxu0 %v4056
    %4086 = vmatprep.subr.mxu0 0.0
    %4087 = vmatpush1.xpose.msra.mxu0 %v4054
    %4088 = vmatprep.subr.mxu0 0.0
    %4089 = vmatpush1.xpose.msra.mxu0 %v4052
    %4090 = vmatprep.subr.mxu0 0.0
    %4091 = vmatpush1.xpose.msra.mxu0 %v4050
    %4092 = vmatprep.subr.mxu0 0.0
    %4093 = vmatpush1.xpose.msra.mxu0 %v4048
    %4094 = vmatprep.subr.mxu0 0.0
    %4095 = vmatpush2.xpose.msra.mxu0 0.0
    %4096 = vmatprep.subr.mxu0 0.0
    %4097 = vmatpush2.xpose.msra.mxu0 0.0
    %4098 = vmatprep.subr.mxu0 0.0
    %4099 = vmatpush2.xpose.msra.mxu0 0.0
    %4100 = vmatprep.subr.mxu0 0.0
    %4101 = vmatpush2.xpose.msra.mxu0 0.0
    %4102 = vmatprep.subr.mxu0 0.0
    %4103 = vmatpush2.xpose.msra.mxu0 0.0
    %4104 = vmatprep.subr.mxu0 0.0
    %4105 = vmatpush2.xpose.msra.mxu0 0.0
    %4106 = vmatprep.subr.mxu0 0.0
    %4107 = vmatpush2.xpose.msra.mxu0 0.0
    %4108 = vmatprep.subr.mxu0 0.0
    %4109 = vmatpush2.xpose.msra.mxu0 0.0
    %4110 = vmatprep.subr.mxu0 0.0
    %4111 = vmatpush2.xpose.msra.mxu0 0.0
    %4112 = vmatprep.subr.mxu0 0.0
    %4113 = vmatpush2.xpose.msra.mxu0 0.0
    %4114 = vmatprep.subr.mxu0 0.0
    %4115 = vmatpush2.xpose.msra.mxu0 0.0
    %4116 = vmatprep.subr.mxu0 0.0
    %4117 = vmatpush2.xpose.msra.mxu0 0.0
    %4118 = vmatprep.subr.mxu0 0.0
    %4119 = vmatpush2.xpose.msra.mxu0 0.0
    %4120 = vmatprep.subr.mxu0 0.0
    %4121 = vmatpush2.xpose.msra.mxu0 0.0
    %4122 = vmatprep.subr.mxu0 0.0
    %4123 = vmatpush2.xpose.msra.mxu0 0.0
    %4124 = vmatprep.subr.mxu0 0.0
    %4125 = vmatpush2.xpose.msra.mxu0 0.0
    %4126 = vmatprep.mubr.f32.mxu0 0.0
    %4127 = vmatmul.mubr.f32.gmra.mxu0 %v4034
    %v4128 = vpop.f32.mrf.mxu0
    %v4129 = vadd.f32 0.0, %v4128
    %v4130 = vpop.f32.mrf.mxu0
    %4131 = vmatprep.mubr.f32.mxu0 0.0
    %4132 = vmatmul.mubr.f32.gmra.mxu0 %v4036
    %v4133 = vpop.f32.mrf.mxu0
    %v4134 = vadd.f32 0.0, %v4133
    %v4135 = vpop.f32.mrf.mxu0
    %4136 = vmatprep.mubr.f32.mxu0 0.0
    %4137 = vmatmul.mubr.f32.gmra.mxu0 %v4038
    %v4138 = vpop.f32.mrf.mxu0
    %v4139 = vadd.f32 0.0, %v4138
    %v4140 = vpop.f32.mrf.mxu0
    %4141 = vmatprep.mubr.f32.mxu0 0.0
    %4142 = vmatmul.mubr.f32.gmra.mxu0 %v4040
    %v4143 = vpop.f32.mrf.mxu0
    %v4144 = vadd.f32 0.0, %v4143
    %v4145 = vpop.f32.mrf.mxu0
    %4146 = vmatprep.mubr.f32.mxu0 0.0
    %4147 = vmatmul.mubr.f32.gmra.mxu0 %v4042
    %v4148 = vpop.f32.mrf.mxu0
    %v4149 = vadd.f32 0.0, %v4148
    %v4150 = vpop.f32.mrf.mxu0
    %4151 = vmatprep.mubr.f32.mxu0 0.0
    %4152 = vmatmul.mubr.f32.gmra.mxu0 %v4044
    %v4153 = vpop.f32.mrf.mxu0
    %v4154 = vadd.f32 0.0, %v4153
    %v4155 = vpop.f32.mrf.mxu0
    %4156 = vmatprep.mubr.f32.mxu0 0.0
    %4157 = vmatmul.mubr.f32.gmra.mxu0 %v4046
    %v4158 = vpop.f32.mrf.mxu0
    %v4159 = vadd.f32 0.0, %v4158
    %v4160 = vpop.f32.mrf.mxu0
    %4161 = vdwg.mxu0
    %4169 = vrot.lane.b32.xlu0 %v3980, 120
    %v4170 = vpop.permute.xlu0 %4169
    %4171 = vrot.lane.b32.xlu0 %v3985, 120
    %v4172 = vpop.permute.xlu0 %4171
    %4173 = vrot.lane.b32.xlu0 %v3990, 120
    %v4174 = vpop.permute.xlu0 %4173
    %4175 = vrot.lane.b32.xlu0 %v3995, 120
    %v4176 = vpop.permute.xlu0 %4175
    %4177 = vrot.lane.b32.xlu0 %v4000, 120
    %v4178 = vpop.permute.xlu0 %4177
    %4179 = vrot.lane.b32.xlu0 %v4005, 120
    %v4180 = vpop.permute.xlu0 %4179
    %4181 = vrot.lane.b32.xlu0 %v4010, 120
    %v4182 = vpop.permute.xlu0 %4181
    %v4183 = vsel %vm793, %v3980, 0
    %v4185 = vsel %vm793, %v3985, 0
    %v4187 = vsel %vm793, %v3990, 0
    %v4189 = vsel %vm793, %v3995, 0
    %v4191 = vsel %vm793, %v4000, 0
    %v4193 = vsel %vm793, %v4005, 0
    %v4195 = vsel %vm793, %v4010, 0
    %v4197 = vsel %vm793, %v4170, 0
    %v4199 = vsel %vm793, %v4172, 0
    %v4201 = vsel %vm793, %v4174, 0
    %v4203 = vsel %vm793, %v4176, 0
    %v4205 = vsel %vm793, %v4178, 0
    %v4207 = vsel %vm793, %v4180, 0
    %v4209 = vsel %vm793, %v4182, 0
    %4211 = vmatprep.subr.mxu0 0.0
    %4212 = vmatpush1.xpose.msra.mxu0 0.0
    %4213 = vmatprep.subr.mxu0 0.0
    %4214 = vmatpush1.xpose.msra.mxu0 0.0
    %4215 = vmatprep.subr.mxu0 0.0
    %4216 = vmatpush1.xpose.msra.mxu0 0.0
    %4217 = vmatprep.subr.mxu0 0.0
    %4218 = vmatpush1.xpose.msra.mxu0 0.0
    %4219 = vmatprep.subr.mxu0 0.0
    %4220 = vmatpush1.xpose.msra.mxu0 0.0
    %4221 = vmatprep.subr.mxu0 0.0
    %4222 = vmatpush1.xpose.msra.mxu0 0.0
    %4223 = vmatprep.subr.mxu0 0.0
    %4224 = vmatpush1.xpose.msra.mxu0 0.0
    %4225 = vmatprep.subr.mxu0 0.0
    %4226 = vmatpush1.xpose.msra.mxu0 0.0
    %4227 = vmatprep.subr.mxu0 0.0
    %4228 = vmatpush1.xpose.msra.mxu0 0.0
    %4229 = vmatprep.subr.mxu0 0.0
    %4230 = vmatpush1.xpose.msra.mxu0 %v4209
    %4231 = vmatprep.subr.mxu0 0.0
    %4232 = vmatpush1.xpose.msra.mxu0 %v4207
    %4233 = vmatprep.subr.mxu0 0.0
    %4234 = vmatpush1.xpose.msra.mxu0 %v4205
    %4235 = vmatprep.subr.mxu0 0.0
    %4236 = vmatpush1.xpose.msra.mxu0 %v4203
    %4237 = vmatprep.subr.mxu0 0.0
    %4238 = vmatpush1.xpose.msra.mxu0 %v4201
    %4239 = vmatprep.subr.mxu0 0.0
    %4240 = vmatpush1.xpose.msra.mxu0 %v4199
    %4241 = vmatprep.subr.mxu0 0.0
    %4242 = vmatpush1.xpose.msra.mxu0 %v4197
    %4243 = vmatprep.subr.mxu0 0.0
    %4244 = vmatpush2.xpose.msra.mxu0 0.0
    %4245 = vmatprep.subr.mxu0 0.0
    %4246 = vmatpush2.xpose.msra.mxu0 0.0
    %4247 = vmatprep.subr.mxu0 0.0
    %4248 = vmatpush2.xpose.msra.mxu0 0.0
    %4249 = vmatprep.subr.mxu0 0.0
    %4250 = vmatpush2.xpose.msra.mxu0 0.0
    %4251 = vmatprep.subr.mxu0 0.0
    %4252 = vmatpush2.xpose.msra.mxu0 0.0
    %4253 = vmatprep.subr.mxu0 0.0
    %4254 = vmatpush2.xpose.msra.mxu0 0.0
    %4255 = vmatprep.subr.mxu0 0.0
    %4256 = vmatpush2.xpose.msra.mxu0 0.0
    %4257 = vmatprep.subr.mxu0 0.0
    %4258 = vmatpush2.xpose.msra.mxu0 0.0
    %4259 = vmatprep.subr.mxu0 0.0
    %4260 = vmatpush2.xpose.msra.mxu0 0.0
    %4261 = vmatprep.subr.mxu0 0.0
    %4262 = vmatpush2.xpose.msra.mxu0 0.0
    %4263 = vmatprep.subr.mxu0 0.0
    %4264 = vmatpush2.xpose.msra.mxu0 0.0
    %4265 = vmatprep.subr.mxu0 0.0
    %4266 = vmatpush2.xpose.msra.mxu0 0.0
    %4267 = vmatprep.subr.mxu0 0.0
    %4268 = vmatpush2.xpose.msra.mxu0 0.0
    %4269 = vmatprep.subr.mxu0 0.0
    %4270 = vmatpush2.xpose.msra.mxu0 0.0
    %4271 = vmatprep.subr.mxu0 0.0
    %4272 = vmatpush2.xpose.msra.mxu0 0.0
    %4273 = vmatprep.subr.mxu0 0.0
    %4274 = vmatpush2.xpose.msra.mxu0 0.0
    %4275 = vmatprep.mubr.f32.mxu0 0.0
    %4276 = vmatmul.mubr.f32.gmra.mxu0 %v4183
    %v4277 = vpop.f32.mrf.mxu0
    %v4278 = vadd.f32 0.0, %v4277
    %v4279 = vpop.f32.mrf.mxu0
    %4280 = vmatprep.mubr.f32.mxu0 0.0
    %4281 = vmatmul.mubr.f32.gmra.mxu0 %v4185
    %v4282 = vpop.f32.mrf.mxu0
    %v4283 = vadd.f32 0.0, %v4282
    %v4284 = vpop.f32.mrf.mxu0
    %4285 = vmatprep.mubr.f32.mxu0 0.0
    %4286 = vmatmul.mubr.f32.gmra.mxu0 %v4187
    %v4287 = vpop.f32.mrf.mxu0
    %v4288 = vadd.f32 0.0, %v4287
    %v4289 = vpop.f32.mrf.mxu0
    %4290 = vmatprep.mubr.f32.mxu0 0.0
    %4291 = vmatmul.mubr.f32.gmra.mxu0 %v4189
    %v4292 = vpop.f32.mrf.mxu0
    %v4293 = vadd.f32 0.0, %v4292
    %v4294 = vpop.f32.mrf.mxu0
    %4295 = vmatprep.mubr.f32.mxu0 0.0
    %4296 = vmatmul.mubr.f32.gmra.mxu0 %v4191
    %v4297 = vpop.f32.mrf.mxu0
    %v4298 = vadd.f32 0.0, %v4297
    %v4299 = vpop.f32.mrf.mxu0
    %4300 = vmatprep.mubr.f32.mxu0 0.0
    %4301 = vmatmul.mubr.f32.gmra.mxu0 %v4193
    %v4302 = vpop.f32.mrf.mxu0
    %v4303 = vadd.f32 0.0, %v4302
    %v4304 = vpop.f32.mrf.mxu0
    %4305 = vmatprep.mubr.f32.mxu0 0.0
    %4306 = vmatmul.mubr.f32.gmra.mxu0 %v4195
    %v4307 = vpop.f32.mrf.mxu0
    %v4308 = vadd.f32 0.0, %v4307
    %v4309 = vpop.f32.mrf.mxu0
    %4310 = vdwg.mxu0
    %v4311 = vmul.f32 %v4129, 0.5
    %v4312 = vmul.f32 %v4134, 0.5
    %v4313 = vmul.f32 %v4139, 0.5
    %v4314 = vmul.f32 %v4144, 0.5
    %v4315 = vmul.f32 %v4149, 0.5
    %v4316 = vmul.f32 %v4154, 0.5
    %v4317 = vmul.f32 %v4159, 0.5
    %v4318 = vmul.f32 %v4278, 0.5
    %v4319 = vmul.f32 %v4283, 0.5
    %v4320 = vmul.f32 %v4288, 0.5
    %v4321 = vmul.f32 %v4293, 0.5
    %v4322 = vmul.f32 %v4298, 0.5
    %v4323 = vmul.f32 %v4303, 0.5
    %v4324 = vmul.f32 %v4308, 0.5
    %v4325 = vadd.f32 %v4311, %v262
    %v4326 = vadd.f32 %v4312, %v262
    %v4327 = vadd.f32 %v4313, %v262
    %v4328 = vadd.f32 %v4314, %v262
    %v4329 = vadd.f32 %v4315, %v262
    %v4330 = vadd.f32 %v4316, %v262
    %v4331 = vadd.f32 %v4317, %v262
    %v4332 = vadd.f32 %v4318, %v262
    %v4333 = vadd.f32 %v4319, %v262
    %v4334 = vadd.f32 %v4320, %v262
    %v4335 = vadd.f32 %v4321, %v262
    %v4336 = vadd.f32 %v4322, %v262
    %v4337 = vadd.f32 %v4323, %v262
    %v4338 = vadd.f32 %v4324, %v262
    %v4339 = vsel %vm1099, %v4325, -inf
    %4340 = vmax.xlane.f32.xlu0 %v4339
    %v4341 = vpop.xlane.xlu0 %4340
    %v4342 = vsel %vm1099, %v4326, -inf
    %4343 = vmax.xlane.f32.xlu0 %v4342
    %v4344 = vpop.xlane.xlu0 %4343
    %v4345 = vsel %vm1099, %v4327, -inf
    %4346 = vmax.xlane.f32.xlu0 %v4345
    %v4347 = vpop.xlane.xlu0 %4346
    %v4348 = vsel %vm1099, %v4328, -inf
    %4349 = vmax.xlane.f32.xlu0 %v4348
    %v4350 = vpop.xlane.xlu0 %4349
    %v4351 = vsel %vm1099, %v4329, -inf
    %4352 = vmax.xlane.f32.xlu0 %v4351
    %v4353 = vpop.xlane.xlu0 %4352
    %v4354 = vsel %vm1099, %v4330, -inf
    %4355 = vmax.xlane.f32.xlu0 %v4354
    %v4356 = vpop.xlane.xlu0 %4355
    %v4357 = vsel %vm1099, %v4331, -inf
    %4358 = vmax.xlane.f32.xlu0 %v4357
    %v4359 = vpop.xlane.xlu0 %4358
    %v4360 = vsel %vm1099, %v4332, -inf
    %4361 = vmax.xlane.f32.xlu0 %v4360
    %v4362 = vpop.xlane.xlu0 %4361
    %v4363 = vsel %vm1099, %v4333, -inf
    %4364 = vmax.xlane.f32.xlu0 %v4363
    %v4365 = vpop.xlane.xlu0 %4364
    %v4366 = vsel %vm1099, %v4334, -inf
    %4367 = vmax.xlane.f32.xlu0 %v4366
    %v4368 = vpop.xlane.xlu0 %4367
    %v4369 = vsel %vm1099, %v4335, -inf
    %4370 = vmax.xlane.f32.xlu0 %v4369
    %v4371 = vpop.xlane.xlu0 %4370
    %v4372 = vsel %vm1099, %v4336, -inf
    %4373 = vmax.xlane.f32.xlu0 %v4372
    %v4374 = vpop.xlane.xlu0 %4373
    %v4375 = vsel %vm1099, %v4337, -inf
    %4376 = vmax.xlane.f32.xlu0 %v4375
    %v4377 = vpop.xlane.xlu0 %4376
    %v4378 = vsel %vm1099, %v4338, -inf
    %4379 = vmax.xlane.f32.xlu0 %v4378
    %v4380 = vpop.xlane.xlu0 %4379
    %v4381 = vsub.f32 %v4325, %v4341
    %v4382 = vsub.f32 %v4326, %v4344
    %v4383 = vsub.f32 %v4327, %v4347
    %v4384 = vsub.f32 %v4328, %v4350
    %v4385 = vsub.f32 %v4329, %v4353
    %v4386 = vsub.f32 %v4330, %v4356
    %v4387 = vsub.f32 %v4331, %v4359
    %v4388 = vsub.f32 %v4332, %v4362
    %v4389 = vsub.f32 %v4333, %v4365
    %v4390 = vsub.f32 %v4334, %v4368
    %v4391 = vsub.f32 %v4335, %v4371
    %v4392 = vsub.f32 %v4336, %v4374
    %v4393 = vsub.f32 %v4337, %v4377
    %v4394 = vsub.f32 %v4338, %v4380
    %v4395 = vmul.f32 %v4381, 1.442695
    %v4396 = vpow.pop %v4395
    %v4397 = vmul.f32 %v4382, 1.442695
    %v4398 = vpow.pop %v4397
    %v4399 = vmul.f32 %v4383, 1.442695
    %v4400 = vpow.pop %v4399
    %v4401 = vmul.f32 %v4384, 1.442695
    %v4402 = vpow.pop %v4401
    %v4403 = vmul.f32 %v4385, 1.442695
    %v4404 = vpow.pop %v4403
    %v4405 = vmul.f32 %v4386, 1.442695
    %v4406 = vpow.pop %v4405
    %v4407 = vmul.f32 %v4387, 1.442695
    %v4408 = vpow.pop %v4407
    %v4409 = vmul.f32 %v4388, 1.442695
    %v4410 = vpow.pop %v4409
    %v4411 = vmul.f32 %v4389, 1.442695
    %v4412 = vpow.pop %v4411
    %v4413 = vmul.f32 %v4390, 1.442695
    %v4414 = vpow.pop %v4413
    %v4415 = vmul.f32 %v4391, 1.442695
    %v4416 = vpow.pop %v4415
    %v4417 = vmul.f32 %v4392, 1.442695
    %v4418 = vpow.pop %v4417
    %v4419 = vmul.f32 %v4393, 1.442695
    %v4420 = vpow.pop %v4419
    %v4421 = vmul.f32 %v4394, 1.442695
    %v4422 = vpow.pop %v4421
    %v4423 = vsel %vm1099, %v4396, 0.0
    %4424 = vadd.xlane.f32.xlu0 %v4423
    %v4425 = vpop.xlane.xlu0 %4424
    %v4426 = vsel %vm1099, %v4398, 0.0
    %4427 = vadd.xlane.f32.xlu0 %v4426
    %v4428 = vpop.xlane.xlu0 %4427
    %v4429 = vsel %vm1099, %v4400, 0.0
    %4430 = vadd.xlane.f32.xlu0 %v4429
    %v4431 = vpop.xlane.xlu0 %4430
    %v4432 = vsel %vm1099, %v4402, 0.0
    %4433 = vadd.xlane.f32.xlu0 %v4432
    %v4434 = vpop.xlane.xlu0 %4433
    %v4435 = vsel %vm1099, %v4404, 0.0
    %4436 = vadd.xlane.f32.xlu0 %v4435
    %v4437 = vpop.xlane.xlu0 %4436
    %v4438 = vsel %vm1099, %v4406, 0.0
    %4439 = vadd.xlane.f32.xlu0 %v4438
    %v4440 = vpop.xlane.xlu0 %4439
    %v4441 = vsel %vm1099, %v4408, 0.0
    %4442 = vadd.xlane.f32.xlu0 %v4441
    %v4443 = vpop.xlane.xlu0 %4442
    %v4444 = vsel %vm1099, %v4410, 0.0
    %4445 = vadd.xlane.f32.xlu0 %v4444
    %v4446 = vpop.xlane.xlu0 %4445
    %v4447 = vsel %vm1099, %v4412, 0.0
    %4448 = vadd.xlane.f32.xlu0 %v4447
    %v4449 = vpop.xlane.xlu0 %4448
    %v4450 = vsel %vm1099, %v4414, 0.0
    %4451 = vadd.xlane.f32.xlu0 %v4450
    %v4452 = vpop.xlane.xlu0 %4451
    %v4453 = vsel %vm1099, %v4416, 0.0
    %4454 = vadd.xlane.f32.xlu0 %v4453
    %v4455 = vpop.xlane.xlu0 %4454
    %v4456 = vsel %vm1099, %v4418, 0.0
    %4457 = vadd.xlane.f32.xlu0 %v4456
    %v4458 = vpop.xlane.xlu0 %4457
    %v4459 = vsel %vm1099, %v4420, 0.0
    %4460 = vadd.xlane.f32.xlu0 %v4459
    %v4461 = vpop.xlane.xlu0 %4460
    %v4462 = vsel %vm1099, %v4422, 0.0
    %4463 = vadd.xlane.f32.xlu0 %v4462
    %v4464 = vpop.xlane.xlu0 %4463
    %v4465 = vrcp.pop %v4425
    %v4466 = vmul.f32 %v4396, %v4465
    %v4467 = vrcp.pop %v4428
    %v4468 = vmul.f32 %v4398, %v4467
    %v4469 = vrcp.pop %v4431
    %v4470 = vmul.f32 %v4400, %v4469
    %v4471 = vrcp.pop %v4434
    %v4472 = vmul.f32 %v4402, %v4471
    %v4473 = vrcp.pop %v4437
    %v4474 = vmul.f32 %v4404, %v4473
    %v4475 = vrcp.pop %v4440
    %v4476 = vmul.f32 %v4406, %v4475
    %v4477 = vrcp.pop %v4443
    %v4478 = vmul.f32 %v4408, %v4477
    %v4479 = vrcp.pop %v4446
    %v4480 = vmul.f32 %v4410, %v4479
    %v4481 = vrcp.pop %v4449
    %v4482 = vmul.f32 %v4412, %v4481
    %v4483 = vrcp.pop %v4452
    %v4484 = vmul.f32 %v4414, %v4483
    %v4485 = vrcp.pop %v4455
    %v4486 = vmul.f32 %v4416, %v4485
    %v4487 = vrcp.pop %v4458
    %v4488 = vmul.f32 %v4418, %v4487
    %v4489 = vrcp.pop %v4461
    %v4490 = vmul.f32 %v4420, %v4489
    %v4491 = vrcp.pop %v4464
    %v4492 = vmul.f32 %v4422, %v4491
    %4493 = vrot.lane.b32.xlu0 %v3945, 112
    %v4494 = vpop.permute.xlu0 %4493
    %4495 = vrot.lane.b32.xlu0 %v3950, 112
    %v4496 = vpop.permute.xlu0 %4495
    %4497 = vrot.lane.b32.xlu0 %v3955, 112
    %v4498 = vpop.permute.xlu0 %4497
    %4499 = vrot.lane.b32.xlu0 %v3960, 112
    %v4500 = vpop.permute.xlu0 %4499
    %4501 = vrot.lane.b32.xlu0 %v3965, 112
    %v4502 = vpop.permute.xlu0 %4501
    %4503 = vrot.lane.b32.xlu0 %v3970, 112
    %v4504 = vpop.permute.xlu0 %4503
    %4505 = vrot.lane.b32.xlu0 %v3975, 112
    %v4506 = vpop.permute.xlu0 %4505
    %v4515 = vsel %vm1099, %v4466, 0
    %v4518 = vsel %vm1099, %v4468, 0
    %v4521 = vsel %vm1099, %v4470, 0
    %v4524 = vsel %vm1099, %v4472, 0
    %v4527 = vsel %vm1099, %v4474, 0
    %v4530 = vsel %vm1099, %v4476, 0
    %v4533 = vsel %vm1099, %v4478, 0
    %4535 = vmatprep.subr.mxu0 0.0
    %4536 = vmatpush1.msra.mxu0 0.0
    %4537 = vmatprep.subr.mxu0 0.0
    %4538 = vmatpush1.msra.mxu0 0.0
    %4539 = vmatprep.subr.mxu0 0.0
    %4540 = vmatpush1.msra.mxu0 0.0
    %4541 = vmatprep.subr.mxu0 0.0
    %4542 = vmatpush1.msra.mxu0 0.0
    %4543 = vmatprep.subr.mxu0 0.0
    %4544 = vmatpush1.msra.mxu0 0.0
    %4545 = vmatprep.subr.mxu0 0.0
    %4546 = vmatpush1.msra.mxu0 0.0
    %4547 = vmatprep.subr.mxu0 0.0
    %4548 = vmatpush1.msra.mxu0 0.0
    %4549 = vmatprep.subr.mxu0 0.0
    %4550 = vmatpush1.msra.mxu0 0.0
    %4551 = vmatprep.subr.mxu0 0.0
    %4552 = vmatpush1.msra.mxu0 0.0
    %4553 = vmatprep.subr.mxu0 0.0
    %4554 = vmatpush1.msra.mxu0 %v4506
    %4555 = vmatprep.subr.mxu0 0.0
    %4556 = vmatpush1.msra.mxu0 %v4504
    %4557 = vmatprep.subr.mxu0 0.0
    %4558 = vmatpush1.msra.mxu0 %v4502
    %4559 = vmatprep.subr.mxu0 0.0
    %4560 = vmatpush1.msra.mxu0 %v4500
    %4561 = vmatprep.subr.mxu0 0.0
    %4562 = vmatpush1.msra.mxu0 %v4498
    %4563 = vmatprep.subr.mxu0 0.0
    %4564 = vmatpush1.msra.mxu0 %v4496
    %4565 = vmatprep.subr.mxu0 0.0
    %4566 = vmatpush1.msra.mxu0 %v4494
    %4567 = vmatprep.subr.mxu0 0.0
    %4568 = vmatpush2.msra.mxu0 0.0
    %4569 = vmatprep.subr.mxu0 0.0
    %4570 = vmatpush2.msra.mxu0 0.0
    %4571 = vmatprep.subr.mxu0 0.0
    %4572 = vmatpush2.msra.mxu0 0.0
    %4573 = vmatprep.subr.mxu0 0.0
    %4574 = vmatpush2.msra.mxu0 0.0
    %4575 = vmatprep.subr.mxu0 0.0
    %4576 = vmatpush2.msra.mxu0 0.0
    %4577 = vmatprep.subr.mxu0 0.0
    %4578 = vmatpush2.msra.mxu0 0.0
    %4579 = vmatprep.subr.mxu0 0.0
    %4580 = vmatpush2.msra.mxu0 0.0
    %4581 = vmatprep.subr.mxu0 0.0
    %4582 = vmatpush2.msra.mxu0 0.0
    %4583 = vmatprep.subr.mxu0 0.0
    %4584 = vmatpush2.msra.mxu0 0.0
    %4585 = vmatprep.subr.mxu0 0.0
    %4586 = vmatpush2.msra.mxu0 0.0
    %4587 = vmatprep.subr.mxu0 0.0
    %4588 = vmatpush2.msra.mxu0 0.0
    %4589 = vmatprep.subr.mxu0 0.0
    %4590 = vmatpush2.msra.mxu0 0.0
    %4591 = vmatprep.subr.mxu0 0.0
    %4592 = vmatpush2.msra.mxu0 0.0
    %4593 = vmatprep.subr.mxu0 0.0
    %4594 = vmatpush2.msra.mxu0 0.0
    %4595 = vmatprep.subr.mxu0 0.0
    %4596 = vmatpush2.msra.mxu0 0.0
    %4597 = vmatprep.subr.mxu0 0.0
    %4598 = vmatpush2.msra.mxu0 0.0
    %4599 = vmatprep.mubr.f32.mxu0 0.0
    %4600 = vmatmul.mubr.f32.gmra.mxu0 %v4515
    %v4601 = vpop.f32.mrf.mxu0
    %v4602 = vadd.f32 0.0, %v4601
    %v4603 = vpop.f32.mrf.mxu0
    %4604 = vmatprep.mubr.f32.mxu0 0.0
    %4605 = vmatmul.mubr.f32.gmra.mxu0 %v4518
    %v4606 = vpop.f32.mrf.mxu0
    %v4607 = vadd.f32 0.0, %v4606
    %v4608 = vpop.f32.mrf.mxu0
    %4609 = vmatprep.mubr.f32.mxu0 0.0
    %4610 = vmatmul.mubr.f32.gmra.mxu0 %v4521
    %v4611 = vpop.f32.mrf.mxu0
    %v4612 = vadd.f32 0.0, %v4611
    %v4613 = vpop.f32.mrf.mxu0
    %4614 = vmatprep.mubr.f32.mxu0 0.0
    %4615 = vmatmul.mubr.f32.gmra.mxu0 %v4524
    %v4616 = vpop.f32.mrf.mxu0
    %v4617 = vadd.f32 0.0, %v4616
    %v4618 = vpop.f32.mrf.mxu0
    %4619 = vmatprep.mubr.f32.mxu0 0.0
    %4620 = vmatmul.mubr.f32.gmra.mxu0 %v4527
    %v4621 = vpop.f32.mrf.mxu0
    %v4622 = vadd.f32 0.0, %v4621
    %v4623 = vpop.f32.mrf.mxu0
    %4624 = vmatprep.mubr.f32.mxu0 0.0
    %4625 = vmatmul.mubr.f32.gmra.mxu0 %v4530
    %v4626 = vpop.f32.mrf.mxu0
    %v4627 = vadd.f32 0.0, %v4626
    %v4628 = vpop.f32.mrf.mxu0
    %4629 = vmatprep.mubr.f32.mxu0 0.0
    %4630 = vmatmul.mubr.f32.gmra.mxu0 %v4533
    %v4631 = vpop.f32.mrf.mxu0
    %v4632 = vadd.f32 0.0, %v4631
    %v4633 = vpop.f32.mrf.mxu0
    %4634 = vdwg.mxu0
    %4635 = vrot.lane.b32.xlu0 %v3980, 112
    %v4636 = vpop.permute.xlu0 %4635
    %4637 = vrot.lane.b32.xlu0 %v3985, 112
    %v4638 = vpop.permute.xlu0 %4637
    %4639 = vrot.lane.b32.xlu0 %v3990, 112
    %v4640 = vpop.permute.xlu0 %4639
    %4641 = vrot.lane.b32.xlu0 %v3995, 112
    %v4642 = vpop.permute.xlu0 %4641
    %4643 = vrot.lane.b32.xlu0 %v4000, 112
    %v4644 = vpop.permute.xlu0 %4643
    %4645 = vrot.lane.b32.xlu0 %v4005, 112
    %v4646 = vpop.permute.xlu0 %4645
    %4647 = vrot.lane.b32.xlu0 %v4010, 112
    %v4648 = vpop.permute.xlu0 %4647
    %v4657 = vsel %vm1099, %v4480, 0
    %v4660 = vsel %vm1099, %v4482, 0
    %v4663 = vsel %vm1099, %v4484, 0
    %v4666 = vsel %vm1099, %v4486, 0
    %v4669 = vsel %vm1099, %v4488, 0
    %v4672 = vsel %vm1099, %v4490, 0
    %v4675 = vsel %vm1099, %v4492, 0
    %4677 = vmatprep.subr.mxu0 0.0
    %4678 = vmatpush1.msra.mxu0 0.0
    %4679 = vmatprep.subr.mxu0 0.0
    %4680 = vmatpush1.msra.mxu0 0.0
    %4681 = vmatprep.subr.mxu0 0.0
    %4682 = vmatpush1.msra.mxu0 0.0
    %4683 = vmatprep.subr.mxu0 0.0
    %4684 = vmatpush1.msra.mxu0 0.0
    %4685 = vmatprep.subr.mxu0 0.0
    %4686 = vmatpush1.msra.mxu0 0.0
    %4687 = vmatprep.subr.mxu0 0.0
    %4688 = vmatpush1.msra.mxu0 0.0
    %4689 = vmatprep.subr.mxu0 0.0
    %4690 = vmatpush1.msra.mxu0 0.0
    %4691 = vmatprep.subr.mxu0 0.0
    %4692 = vmatpush1.msra.mxu0 0.0
    %4693 = vmatprep.subr.mxu0 0.0
    %4694 = vmatpush1.msra.mxu0 0.0
    %4695 = vmatprep.subr.mxu0 0.0
    %4696 = vmatpush1.msra.mxu0 %v4648
    %4697 = vmatprep.subr.mxu0 0.0
    %4698 = vmatpush1.msra.mxu0 %v4646
    %4699 = vmatprep.subr.mxu0 0.0
    %4700 = vmatpush1.msra.mxu0 %v4644
    %4701 = vmatprep.subr.mxu0 0.0
    %4702 = vmatpush1.msra.mxu0 %v4642
    %4703 = vmatprep.subr.mxu0 0.0
    %4704 = vmatpush1.msra.mxu0 %v4640
    %4705 = vmatprep.subr.mxu0 0.0
    %4706 = vmatpush1.msra.mxu0 %v4638
    %4707 = vmatprep.subr.mxu0 0.0
    %4708 = vmatpush1.msra.mxu0 %v4636
    %4709 = vmatprep.subr.mxu0 0.0
    %4710 = vmatpush2.msra.mxu0 0.0
    %4711 = vmatprep.subr.mxu0 0.0
    %4712 = vmatpush2.msra.mxu0 0.0
    %4713 = vmatprep.subr.mxu0 0.0
    %4714 = vmatpush2.msra.mxu0 0.0
    %4715 = vmatprep.subr.mxu0 0.0
    %4716 = vmatpush2.msra.mxu0 0.0
    %4717 = vmatprep.subr.mxu0 0.0
    %4718 = vmatpush2.msra.mxu0 0.0
    %4719 = vmatprep.subr.mxu0 0.0
    %4720 = vmatpush2.msra.mxu0 0.0
    %4721 = vmatprep.subr.mxu0 0.0
    %4722 = vmatpush2.msra.mxu0 0.0
    %4723 = vmatprep.subr.mxu0 0.0
    %4724 = vmatpush2.msra.mxu0 0.0
    %4725 = vmatprep.subr.mxu0 0.0
    %4726 = vmatpush2.msra.mxu0 0.0
    %4727 = vmatprep.subr.mxu0 0.0
    %4728 = vmatpush2.msra.mxu0 0.0
    %4729 = vmatprep.subr.mxu0 0.0
    %4730 = vmatpush2.msra.mxu0 0.0
    %4731 = vmatprep.subr.mxu0 0.0
    %4732 = vmatpush2.msra.mxu0 0.0
    %4733 = vmatprep.subr.mxu0 0.0
    %4734 = vmatpush2.msra.mxu0 0.0
    %4735 = vmatprep.subr.mxu0 0.0
    %4736 = vmatpush2.msra.mxu0 0.0
    %4737 = vmatprep.subr.mxu0 0.0
    %4738 = vmatpush2.msra.mxu0 0.0
    %4739 = vmatprep.subr.mxu0 0.0
    %4740 = vmatpush2.msra.mxu0 0.0
    %4741 = vmatprep.mubr.f32.mxu0 0.0
    %4742 = vmatmul.mubr.f32.gmra.mxu0 %v4657
    %v4743 = vpop.f32.mrf.mxu0
    %v4744 = vadd.f32 0.0, %v4743
    %v4745 = vpop.f32.mrf.mxu0
    %4746 = vmatprep.mubr.f32.mxu0 0.0
    %4747 = vmatmul.mubr.f32.gmra.mxu0 %v4660
    %v4748 = vpop.f32.mrf.mxu0
    %v4749 = vadd.f32 0.0, %v4748
    %v4750 = vpop.f32.mrf.mxu0
    %4751 = vmatprep.mubr.f32.mxu0 0.0
    %4752 = vmatmul.mubr.f32.gmra.mxu0 %v4663
    %v4753 = vpop.f32.mrf.mxu0
    %v4754 = vadd.f32 0.0, %v4753
    %v4755 = vpop.f32.mrf.mxu0
    %4756 = vmatprep.mubr.f32.mxu0 0.0
    %4757 = vmatmul.mubr.f32.gmra.mxu0 %v4666
    %v4758 = vpop.f32.mrf.mxu0
    %v4759 = vadd.f32 0.0, %v4758
    %v4760 = vpop.f32.mrf.mxu0
    %4761 = vmatprep.mubr.f32.mxu0 0.0
    %4762 = vmatmul.mubr.f32.gmra.mxu0 %v4669
    %v4763 = vpop.f32.mrf.mxu0
    %v4764 = vadd.f32 0.0, %v4763
    %v4765 = vpop.f32.mrf.mxu0
    %4766 = vmatprep.mubr.f32.mxu0 0.0
    %4767 = vmatmul.mubr.f32.gmra.mxu0 %v4672
    %v4768 = vpop.f32.mrf.mxu0
    %v4769 = vadd.f32 0.0, %v4768
    %v4770 = vpop.f32.mrf.mxu0
    %4771 = vmatprep.mubr.f32.mxu0 0.0
    %4772 = vmatmul.mubr.f32.gmra.mxu0 %v4675
    %v4773 = vpop.f32.mrf.mxu0
    %v4774 = vadd.f32 0.0, %v4773
    %v4775 = vpop.f32.mrf.mxu0
    %4776 = vdwg.mxu0
    %4777 = vrot.lane.b32.xlu0 %v3945, 124
    %v4778 = vpop.permute.xlu0 %4777
    %4779 = vrot.lane.b32.xlu0 %v3950, 124
    %v4780 = vpop.permute.xlu0 %4779
    %4781 = vrot.lane.b32.xlu0 %v3955, 124
    %v4782 = vpop.permute.xlu0 %4781
    %4783 = vrot.lane.b32.xlu0 %v3960, 124
    %v4784 = vpop.permute.xlu0 %4783
    %4785 = vrot.lane.b32.xlu0 %v3965, 124
    %v4786 = vpop.permute.xlu0 %4785
    %4787 = vrot.lane.b32.xlu0 %v3970, 124
    %v4788 = vpop.permute.xlu0 %4787
    %4789 = vrot.lane.b32.xlu0 %v3975, 124
    %v4790 = vpop.permute.xlu0 %4789
    %4791 = vrot.lane.b32.xlu0 %v3945, 116
    %v4792 = vpop.permute.xlu0 %4791
    %4793 = vrot.lane.b32.xlu0 %v3950, 116
    %v4794 = vpop.permute.xlu0 %4793
    %4795 = vrot.lane.b32.xlu0 %v3955, 116
    %v4796 = vpop.permute.xlu0 %4795
    %4797 = vrot.lane.b32.xlu0 %v3960, 116
    %v4798 = vpop.permute.xlu0 %4797
    %4799 = vrot.lane.b32.xlu0 %v3965, 116
    %v4800 = vpop.permute.xlu0 %4799
    %4801 = vrot.lane.b32.xlu0 %v3970, 116
    %v4802 = vpop.permute.xlu0 %4801
    %4803 = vrot.lane.b32.xlu0 %v3975, 116
    %v4804 = vpop.permute.xlu0 %4803
    %v4805 = vsel %vm793, %v4778, 0
    %v4807 = vsel %vm793, %v4780, 0
    %v4809 = vsel %vm793, %v4782, 0
    %v4811 = vsel %vm793, %v4784, 0
    %v4813 = vsel %vm793, %v4786, 0
    %v4815 = vsel %vm793, %v4788, 0
    %v4817 = vsel %vm793, %v4790, 0
    %v4819 = vsel %vm793, %v4792, 0
    %v4821 = vsel %vm793, %v4794, 0
    %v4823 = vsel %vm793, %v4796, 0
    %v4825 = vsel %vm793, %v4798, 0
    %v4827 = vsel %vm793, %v4800, 0
    %v4829 = vsel %vm793, %v4802, 0
    %v4831 = vsel %vm793, %v4804, 0
    %4833 = vmatprep.subr.mxu0 0.0
    %4834 = vmatpush1.xpose.msra.mxu0 0.0
    %4835 = vmatprep.subr.mxu0 0.0
    %4836 = vmatpush1.xpose.msra.mxu0 0.0
    %4837 = vmatprep.subr.mxu0 0.0
    %4838 = vmatpush1.xpose.msra.mxu0 0.0
    %4839 = vmatprep.subr.mxu0 0.0
    %4840 = vmatpush1.xpose.msra.mxu0 0.0
    %4841 = vmatprep.subr.mxu0 0.0
    %4842 = vmatpush1.xpose.msra.mxu0 0.0
    %4843 = vmatprep.subr.mxu0 0.0
    %4844 = vmatpush1.xpose.msra.mxu0 0.0
    %4845 = vmatprep.subr.mxu0 0.0
    %4846 = vmatpush1.xpose.msra.mxu0 0.0
    %4847 = vmatprep.subr.mxu0 0.0
    %4848 = vmatpush1.xpose.msra.mxu0 0.0
    %4849 = vmatprep.subr.mxu0 0.0
    %4850 = vmatpush1.xpose.msra.mxu0 0.0
    %4851 = vmatprep.subr.mxu0 0.0
    %4852 = vmatpush1.xpose.msra.mxu0 %v4831
    %4853 = vmatprep.subr.mxu0 0.0
    %4854 = vmatpush1.xpose.msra.mxu0 %v4829
    %4855 = vmatprep.subr.mxu0 0.0
    %4856 = vmatpush1.xpose.msra.mxu0 %v4827
    %4857 = vmatprep.subr.mxu0 0.0
    %4858 = vmatpush1.xpose.msra.mxu0 %v4825
    %4859 = vmatprep.subr.mxu0 0.0
    %4860 = vmatpush1.xpose.msra.mxu0 %v4823
    %4861 = vmatprep.subr.mxu0 0.0
    %4862 = vmatpush1.xpose.msra.mxu0 %v4821
    %4863 = vmatprep.subr.mxu0 0.0
    %4864 = vmatpush1.xpose.msra.mxu0 %v4819
    %4865 = vmatprep.subr.mxu0 0.0
    %4866 = vmatpush2.xpose.msra.mxu0 0.0
    %4867 = vmatprep.subr.mxu0 0.0
    %4868 = vmatpush2.xpose.msra.mxu0 0.0
    %4869 = vmatprep.subr.mxu0 0.0
    %4870 = vmatpush2.xpose.msra.mxu0 0.0
    %4871 = vmatprep.subr.mxu0 0.0
    %4872 = vmatpush2.xpose.msra.mxu0 0.0
    %4873 = vmatprep.subr.mxu0 0.0
    %4874 = vmatpush2.xpose.msra.mxu0 0.0
    %4875 = vmatprep.subr.mxu0 0.0
    %4876 = vmatpush2.xpose.msra.mxu0 0.0
    %4877 = vmatprep.subr.mxu0 0.0
    %4878 = vmatpush2.xpose.msra.mxu0 0.0
    %4879 = vmatprep.subr.mxu0 0.0
    %4880 = vmatpush2.xpose.msra.mxu0 0.0
    %4881 = vmatprep.subr.mxu0 0.0
    %4882 = vmatpush2.xpose.msra.mxu0 0.0
    %4883 = vmatprep.subr.mxu0 0.0
    %4884 = vmatpush2.xpose.msra.mxu0 0.0
    %4885 = vmatprep.subr.mxu0 0.0
    %4886 = vmatpush2.xpose.msra.mxu0 0.0
    %4887 = vmatprep.subr.mxu0 0.0
    %4888 = vmatpush2.xpose.msra.mxu0 0.0
    %4889 = vmatprep.subr.mxu0 0.0
    %4890 = vmatpush2.xpose.msra.mxu0 0.0
    %4891 = vmatprep.subr.mxu0 0.0
    %4892 = vmatpush2.xpose.msra.mxu0 0.0
    %4893 = vmatprep.subr.mxu0 0.0
    %4894 = vmatpush2.xpose.msra.mxu0 0.0
    %4895 = vmatprep.subr.mxu0 0.0
    %4896 = vmatpush2.xpose.msra.mxu0 0.0
    %4897 = vmatprep.mubr.f32.mxu0 0.0
    %4898 = vmatmul.mubr.f32.gmra.mxu0 %v4805
    %v4899 = vpop.f32.mrf.mxu0
    %v4900 = vadd.f32 0.0, %v4899
    %v4901 = vpop.f32.mrf.mxu0
    %4902 = vmatprep.mubr.f32.mxu0 0.0
    %4903 = vmatmul.mubr.f32.gmra.mxu0 %v4807
    %v4904 = vpop.f32.mrf.mxu0
    %v4905 = vadd.f32 0.0, %v4904
    %v4906 = vpop.f32.mrf.mxu0
    %4907 = vmatprep.mubr.f32.mxu0 0.0
    %4908 = vmatmul.mubr.f32.gmra.mxu0 %v4809
    %v4909 = vpop.f32.mrf.mxu0
    %v4910 = vadd.f32 0.0, %v4909
    %v4911 = vpop.f32.mrf.mxu0
    %4912 = vmatprep.mubr.f32.mxu0 0.0
    %4913 = vmatmul.mubr.f32.gmra.mxu0 %v4811
    %v4914 = vpop.f32.mrf.mxu0
    %v4915 = vadd.f32 0.0, %v4914
    %v4916 = vpop.f32.mrf.mxu0
    %4917 = vmatprep.mubr.f32.mxu0 0.0
    %4918 = vmatmul.mubr.f32.gmra.mxu0 %v4813
    %v4919 = vpop.f32.mrf.mxu0
    %v4920 = vadd.f32 0.0, %v4919
    %v4921 = vpop.f32.mrf.mxu0
    %4922 = vmatprep.mubr.f32.mxu0 0.0
    %4923 = vmatmul.mubr.f32.gmra.mxu0 %v4815
    %v4924 = vpop.f32.mrf.mxu0
    %v4925 = vadd.f32 0.0, %v4924
    %v4926 = vpop.f32.mrf.mxu0
    %4927 = vmatprep.mubr.f32.mxu0 0.0
    %4928 = vmatmul.mubr.f32.gmra.mxu0 %v4817
    %v4929 = vpop.f32.mrf.mxu0
    %v4930 = vadd.f32 0.0, %v4929
    %v4931 = vpop.f32.mrf.mxu0
    %4932 = vdwg.mxu0
    %4933 = vrot.lane.b32.xlu0 %v3980, 124
    %v4934 = vpop.permute.xlu0 %4933
    %4935 = vrot.lane.b32.xlu0 %v3985, 124
    %v4936 = vpop.permute.xlu0 %4935
    %4937 = vrot.lane.b32.xlu0 %v3990, 124
    %v4938 = vpop.permute.xlu0 %4937
    %4939 = vrot.lane.b32.xlu0 %v3995, 124
    %v4940 = vpop.permute.xlu0 %4939
    %4941 = vrot.lane.b32.xlu0 %v4000, 124
    %v4942 = vpop.permute.xlu0 %4941
    %4943 = vrot.lane.b32.xlu0 %v4005, 124
    %v4944 = vpop.permute.xlu0 %4943
    %4945 = vrot.lane.b32.xlu0 %v4010, 124
    %v4946 = vpop.permute.xlu0 %4945
    %4947 = vrot.lane.b32.xlu0 %v3980, 116
    %v4948 = vpop.permute.xlu0 %4947
    %4949 = vrot.lane.b32.xlu0 %v3985, 116
    %v4950 = vpop.permute.xlu0 %4949
    %4951 = vrot.lane.b32.xlu0 %v3990, 116
    %v4952 = vpop.permute.xlu0 %4951
    %4953 = vrot.lane.b32.xlu0 %v3995, 116
    %v4954 = vpop.permute.xlu0 %4953
    %4955 = vrot.lane.b32.xlu0 %v4000, 116
    %v4956 = vpop.permute.xlu0 %4955
    %4957 = vrot.lane.b32.xlu0 %v4005, 116
    %v4958 = vpop.permute.xlu0 %4957
    %4959 = vrot.lane.b32.xlu0 %v4010, 116
    %v4960 = vpop.permute.xlu0 %4959
    %v4961 = vsel %vm793, %v4934, 0
    %v4963 = vsel %vm793, %v4936, 0
    %v4965 = vsel %vm793, %v4938, 0
    %v4967 = vsel %vm793, %v4940, 0
    %v4969 = vsel %vm793, %v4942, 0
    %v4971 = vsel %vm793, %v4944, 0
    %v4973 = vsel %vm793, %v4946, 0
    %v4975 = vsel %vm793, %v4948, 0
    %v4977 = vsel %vm793, %v4950, 0
    %v4979 = vsel %vm793, %v4952, 0
    %v4981 = vsel %vm793, %v4954, 0
    %v4983 = vsel %vm793, %v4956, 0
    %v4985 = vsel %vm793, %v4958, 0
    %v4987 = vsel %vm793, %v4960, 0
    %4989 = vmatprep.subr.mxu0 0.0
    %4990 = vmatpush1.xpose.msra.mxu0 0.0
    %4991 = vmatprep.subr.mxu0 0.0
    %4992 = vmatpush1.xpose.msra.mxu0 0.0
    %4993 = vmatprep.subr.mxu0 0.0
    %4994 = vmatpush1.xpose.msra.mxu0 0.0
    %4995 = vmatprep.subr.mxu0 0.0
    %4996 = vmatpush1.xpose.msra.mxu0 0.0
    %4997 = vmatprep.subr.mxu0 0.0
    %4998 = vmatpush1.xpose.msra.mxu0 0.0
    %4999 = vmatprep.subr.mxu0 0.0
    %5000 = vmatpush1.xpose.msra.mxu0 0.0
    %5001 = vmatprep.subr.mxu0 0.0
    %5002 = vmatpush1.xpose.msra.mxu0 0.0
    %5003 = vmatprep.subr.mxu0 0.0
    %5004 = vmatpush1.xpose.msra.mxu0 0.0
    %5005 = vmatprep.subr.mxu0 0.0
    %5006 = vmatpush1.xpose.msra.mxu0 0.0
    %5007 = vmatprep.subr.mxu0 0.0
    %5008 = vmatpush1.xpose.msra.mxu0 %v4987
    %5009 = vmatprep.subr.mxu0 0.0
    %5010 = vmatpush1.xpose.msra.mxu0 %v4985
    %5011 = vmatprep.subr.mxu0 0.0
    %5012 = vmatpush1.xpose.msra.mxu0 %v4983
    %5013 = vmatprep.subr.mxu0 0.0
    %5014 = vmatpush1.xpose.msra.mxu0 %v4981
    %5015 = vmatprep.subr.mxu0 0.0
    %5016 = vmatpush1.xpose.msra.mxu0 %v4979
    %5017 = vmatprep.subr.mxu0 0.0
    %5018 = vmatpush1.xpose.msra.mxu0 %v4977
    %5019 = vmatprep.subr.mxu0 0.0
    %5020 = vmatpush1.xpose.msra.mxu0 %v4975
    %5021 = vmatprep.subr.mxu0 0.0
    %5022 = vmatpush2.xpose.msra.mxu0 0.0
    %5023 = vmatprep.subr.mxu0 0.0
    %5024 = vmatpush2.xpose.msra.mxu0 0.0
    %5025 = vmatprep.subr.mxu0 0.0
    %5026 = vmatpush2.xpose.msra.mxu0 0.0
    %5027 = vmatprep.subr.mxu0 0.0
    %5028 = vmatpush2.xpose.msra.mxu0 0.0
    %5029 = vmatprep.subr.mxu0 0.0
    %5030 = vmatpush2.xpose.msra.mxu0 0.0
    %5031 = vmatprep.subr.mxu0 0.0
    %5032 = vmatpush2.xpose.msra.mxu0 0.0
    %5033 = vmatprep.subr.mxu0 0.0
    %5034 = vmatpush2.xpose.msra.mxu0 0.0
    %5035 = vmatprep.subr.mxu0 0.0
    %5036 = vmatpush2.xpose.msra.mxu0 0.0
    %5037 = vmatprep.subr.mxu0 0.0
    %5038 = vmatpush2.xpose.msra.mxu0 0.0
    %5039 = vmatprep.subr.mxu0 0.0
    %5040 = vmatpush2.xpose.msra.mxu0 0.0
    %5041 = vmatprep.subr.mxu0 0.0
    %5042 = vmatpush2.xpose.msra.mxu0 0.0
    %5043 = vmatprep.subr.mxu0 0.0
    %5044 = vmatpush2.xpose.msra.mxu0 0.0
    %5045 = vmatprep.subr.mxu0 0.0
    %5046 = vmatpush2.xpose.msra.mxu0 0.0
    %5047 = vmatprep.subr.mxu0 0.0
    %5048 = vmatpush2.xpose.msra.mxu0 0.0
    %5049 = vmatprep.subr.mxu0 0.0
    %5050 = vmatpush2.xpose.msra.mxu0 0.0
    %5051 = vmatprep.subr.mxu0 0.0
    %5052 = vmatpush2.xpose.msra.mxu0 0.0
    %5053 = vmatprep.mubr.f32.mxu0 0.0
    %5054 = vmatmul.mubr.f32.gmra.mxu0 %v4961
    %v5055 = vpop.f32.mrf.mxu0
    %v5056 = vadd.f32 0.0, %v5055
    %v5057 = vpop.f32.mrf.mxu0
    %5058 = vmatprep.mubr.f32.mxu0 0.0
    %5059 = vmatmul.mubr.f32.gmra.mxu0 %v4963
    %v5060 = vpop.f32.mrf.mxu0
    %v5061 = vadd.f32 0.0, %v5060
    %v5062 = vpop.f32.mrf.mxu0
    %5063 = vmatprep.mubr.f32.mxu0 0.0
    %5064 = vmatmul.mubr.f32.gmra.mxu0 %v4965
    %v5065 = vpop.f32.mrf.mxu0
    %v5066 = vadd.f32 0.0, %v5065
    %v5067 = vpop.f32.mrf.mxu0
    %5068 = vmatprep.mubr.f32.mxu0 0.0
    %5069 = vmatmul.mubr.f32.gmra.mxu0 %v4967
    %v5070 = vpop.f32.mrf.mxu0
    %v5071 = vadd.f32 0.0, %v5070
    %v5072 = vpop.f32.mrf.mxu0
    %5073 = vmatprep.mubr.f32.mxu0 0.0
    %5074 = vmatmul.mubr.f32.gmra.mxu0 %v4969
    %v5075 = vpop.f32.mrf.mxu0
    %v5076 = vadd.f32 0.0, %v5075
    %v5077 = vpop.f32.mrf.mxu0
    %5078 = vmatprep.mubr.f32.mxu0 0.0
    %5079 = vmatmul.mubr.f32.gmra.mxu0 %v4971
    %v5080 = vpop.f32.mrf.mxu0
    %v5081 = vadd.f32 0.0, %v5080
    %v5082 = vpop.f32.mrf.mxu0
    %5083 = vmatprep.mubr.f32.mxu0 0.0
    %5084 = vmatmul.mubr.f32.gmra.mxu0 %v4973
    %v5085 = vpop.f32.mrf.mxu0
    %v5086 = vadd.f32 0.0, %v5085
    %v5087 = vpop.f32.mrf.mxu0
    %5088 = vdwg.mxu0
    %v5089 = vmul.f32 %v4900, 0.5
    %v5090 = vmul.f32 %v4905, 0.5
    %v5091 = vmul.f32 %v4910, 0.5
    %v5092 = vmul.f32 %v4915, 0.5
    %v5093 = vmul.f32 %v4920, 0.5
    %v5094 = vmul.f32 %v4925, 0.5
    %v5095 = vmul.f32 %v4930, 0.5
    %v5096 = vmul.f32 %v5056, 0.5
    %v5097 = vmul.f32 %v5061, 0.5
    %v5098 = vmul.f32 %v5066, 0.5
    %v5099 = vmul.f32 %v5071, 0.5
    %v5100 = vmul.f32 %v5076, 0.5
    %v5101 = vmul.f32 %v5081, 0.5
    %v5102 = vmul.f32 %v5086, 0.5
    %v5103 = vadd.f32 %v5089, %v262
    %v5104 = vadd.f32 %v5090, %v262
    %v5105 = vadd.f32 %v5091, %v262
    %v5106 = vadd.f32 %v5092, %v262
    %v5107 = vadd.f32 %v5093, %v262
    %v5108 = vadd.f32 %v5094, %v262
    %v5109 = vadd.f32 %v5095, %v262
    %v5110 = vadd.f32 %v5096, %v262
    %v5111 = vadd.f32 %v5097, %v262
    %v5112 = vadd.f32 %v5098, %v262
    %v5113 = vadd.f32 %v5099, %v262
    %v5114 = vadd.f32 %v5100, %v262
    %v5115 = vadd.f32 %v5101, %v262
    %v5116 = vadd.f32 %v5102, %v262
    %v5117 = vsel %vm1099, %v5103, -inf
    %5118 = vmax.xlane.f32.xlu0 %v5117
    %v5119 = vpop.xlane.xlu0 %5118
    %v5120 = vsel %vm1099, %v5104, -inf
    %5121 = vmax.xlane.f32.xlu0 %v5120
    %v5122 = vpop.xlane.xlu0 %5121
    %v5123 = vsel %vm1099, %v5105, -inf
    %5124 = vmax.xlane.f32.xlu0 %v5123
    %v5125 = vpop.xlane.xlu0 %5124
    %v5126 = vsel %vm1099, %v5106, -inf
    %5127 = vmax.xlane.f32.xlu0 %v5126
    %v5128 = vpop.xlane.xlu0 %5127
    %v5129 = vsel %vm1099, %v5107, -inf
    %5130 = vmax.xlane.f32.xlu0 %v5129
    %v5131 = vpop.xlane.xlu0 %5130
    %v5132 = vsel %vm1099, %v5108, -inf
    %5133 = vmax.xlane.f32.xlu0 %v5132
    %v5134 = vpop.xlane.xlu0 %5133
    %v5135 = vsel %vm1099, %v5109, -inf
    %5136 = vmax.xlane.f32.xlu0 %v5135
    %v5137 = vpop.xlane.xlu0 %5136
    %v5138 = vsel %vm1099, %v5110, -inf
    %5139 = vmax.xlane.f32.xlu0 %v5138
    %v5140 = vpop.xlane.xlu0 %5139
    %v5141 = vsel %vm1099, %v5111, -inf
    %5142 = vmax.xlane.f32.xlu0 %v5141
    %v5143 = vpop.xlane.xlu0 %5142
    %v5144 = vsel %vm1099, %v5112, -inf
    %5145 = vmax.xlane.f32.xlu0 %v5144
    %v5146 = vpop.xlane.xlu0 %5145
    %v5147 = vsel %vm1099, %v5113, -inf
    %5148 = vmax.xlane.f32.xlu0 %v5147
    %v5149 = vpop.xlane.xlu0 %5148
    %v5150 = vsel %vm1099, %v5114, -inf
    %5151 = vmax.xlane.f32.xlu0 %v5150
    %v5152 = vpop.xlane.xlu0 %5151
    %v5153 = vsel %vm1099, %v5115, -inf
    %5154 = vmax.xlane.f32.xlu0 %v5153
    %v5155 = vpop.xlane.xlu0 %5154
    %v5156 = vsel %vm1099, %v5116, -inf
    %5157 = vmax.xlane.f32.xlu0 %v5156
    %v5158 = vpop.xlane.xlu0 %5157
    %v5159 = vsub.f32 %v5103, %v5119
    %v5160 = vsub.f32 %v5104, %v5122
    %v5161 = vsub.f32 %v5105, %v5125
    %v5162 = vsub.f32 %v5106, %v5128
    %v5163 = vsub.f32 %v5107, %v5131
    %v5164 = vsub.f32 %v5108, %v5134
    %v5165 = vsub.f32 %v5109, %v5137
    %v5166 = vsub.f32 %v5110, %v5140
    %v5167 = vsub.f32 %v5111, %v5143
    %v5168 = vsub.f32 %v5112, %v5146
    %v5169 = vsub.f32 %v5113, %v5149
    %v5170 = vsub.f32 %v5114, %v5152
    %v5171 = vsub.f32 %v5115, %v5155
    %v5172 = vsub.f32 %v5116, %v5158
    %v5173 = vmul.f32 %v5159, 1.442695
    %v5174 = vpow.pop %v5173
    %v5175 = vmul.f32 %v5160, 1.442695
    %v5176 = vpow.pop %v5175
    %v5177 = vmul.f32 %v5161, 1.442695
    %v5178 = vpow.pop %v5177
    %v5179 = vmul.f32 %v5162, 1.442695
    %v5180 = vpow.pop %v5179
    %v5181 = vmul.f32 %v5163, 1.442695
    %v5182 = vpow.pop %v5181
    %v5183 = vmul.f32 %v5164, 1.442695
    %v5184 = vpow.pop %v5183
    %v5185 = vmul.f32 %v5165, 1.442695
    %v5186 = vpow.pop %v5185
    %v5187 = vmul.f32 %v5166, 1.442695
    %v5188 = vpow.pop %v5187
    %v5189 = vmul.f32 %v5167, 1.442695
    %v5190 = vpow.pop %v5189
    %v5191 = vmul.f32 %v5168, 1.442695
    %v5192 = vpow.pop %v5191
    %v5193 = vmul.f32 %v5169, 1.442695
    %v5194 = vpow.pop %v5193
    %v5195 = vmul.f32 %v5170, 1.442695
    %v5196 = vpow.pop %v5195
    %v5197 = vmul.f32 %v5171, 1.442695
    %v5198 = vpow.pop %v5197
    %v5199 = vmul.f32 %v5172, 1.442695
    %v5200 = vpow.pop %v5199
    %v5201 = vsel %vm1099, %v5174, 0.0
    %5202 = vadd.xlane.f32.xlu0 %v5201
    %v5203 = vpop.xlane.xlu0 %5202
    %v5204 = vsel %vm1099, %v5176, 0.0
    %5205 = vadd.xlane.f32.xlu0 %v5204
    %v5206 = vpop.xlane.xlu0 %5205
    %v5207 = vsel %vm1099, %v5178, 0.0
    %5208 = vadd.xlane.f32.xlu0 %v5207
    %v5209 = vpop.xlane.xlu0 %5208
    %v5210 = vsel %vm1099, %v5180, 0.0
    %5211 = vadd.xlane.f32.xlu0 %v5210
    %v5212 = vpop.xlane.xlu0 %5211
    %v5213 = vsel %vm1099, %v5182, 0.0
    %5214 = vadd.xlane.f32.xlu0 %v5213
    %v5215 = vpop.xlane.xlu0 %5214
    %v5216 = vsel %vm1099, %v5184, 0.0
    %5217 = vadd.xlane.f32.xlu0 %v5216
    %v5218 = vpop.xlane.xlu0 %5217
    %v5219 = vsel %vm1099, %v5186, 0.0
    %5220 = vadd.xlane.f32.xlu0 %v5219
    %v5221 = vpop.xlane.xlu0 %5220
    %v5222 = vsel %vm1099, %v5188, 0.0
    %5223 = vadd.xlane.f32.xlu0 %v5222
    %v5224 = vpop.xlane.xlu0 %5223
    %v5225 = vsel %vm1099, %v5190, 0.0
    %5226 = vadd.xlane.f32.xlu0 %v5225
    %v5227 = vpop.xlane.xlu0 %5226
    %v5228 = vsel %vm1099, %v5192, 0.0
    %5229 = vadd.xlane.f32.xlu0 %v5228
    %v5230 = vpop.xlane.xlu0 %5229
    %v5231 = vsel %vm1099, %v5194, 0.0
    %5232 = vadd.xlane.f32.xlu0 %v5231
    %v5233 = vpop.xlane.xlu0 %5232
    %v5234 = vsel %vm1099, %v5196, 0.0
    %5235 = vadd.xlane.f32.xlu0 %v5234
    %v5236 = vpop.xlane.xlu0 %5235
    %v5237 = vsel %vm1099, %v5198, 0.0
    %5238 = vadd.xlane.f32.xlu0 %v5237
    %v5239 = vpop.xlane.xlu0 %5238
    %v5240 = vsel %vm1099, %v5200, 0.0
    %5241 = vadd.xlane.f32.xlu0 %v5240
    %v5242 = vpop.xlane.xlu0 %5241
    %v5243 = vrcp.pop %v5203
    %v5244 = vmul.f32 %v5174, %v5243
    %v5245 = vrcp.pop %v5206
    %v5246 = vmul.f32 %v5176, %v5245
    %v5247 = vrcp.pop %v5209
    %v5248 = vmul.f32 %v5178, %v5247
    %v5249 = vrcp.pop %v5212
    %v5250 = vmul.f32 %v5180, %v5249
    %v5251 = vrcp.pop %v5215
    %v5252 = vmul.f32 %v5182, %v5251
    %v5253 = vrcp.pop %v5218
    %v5254 = vmul.f32 %v5184, %v5253
    %v5255 = vrcp.pop %v5221
    %v5256 = vmul.f32 %v5186, %v5255
    %v5257 = vrcp.pop %v5224
    %v5258 = vmul.f32 %v5188, %v5257
    %v5259 = vrcp.pop %v5227
    %v5260 = vmul.f32 %v5190, %v5259
    %v5261 = vrcp.pop %v5230
    %v5262 = vmul.f32 %v5192, %v5261
    %v5263 = vrcp.pop %v5233
    %v5264 = vmul.f32 %v5194, %v5263
    %v5265 = vrcp.pop %v5236
    %v5266 = vmul.f32 %v5196, %v5265
    %v5267 = vrcp.pop %v5239
    %v5268 = vmul.f32 %v5198, %v5267
    %v5269 = vrcp.pop %v5242
    %v5270 = vmul.f32 %v5200, %v5269
    %5271 = vrot.lane.b32.xlu0 %v3945, 108
    %v5272 = vpop.permute.xlu0 %5271
    %5273 = vrot.lane.b32.xlu0 %v3950, 108
    %v5274 = vpop.permute.xlu0 %5273
    %5275 = vrot.lane.b32.xlu0 %v3955, 108
    %v5276 = vpop.permute.xlu0 %5275
    %5277 = vrot.lane.b32.xlu0 %v3960, 108
    %v5278 = vpop.permute.xlu0 %5277
    %5279 = vrot.lane.b32.xlu0 %v3965, 108
    %v5280 = vpop.permute.xlu0 %5279
    %5281 = vrot.lane.b32.xlu0 %v3970, 108
    %v5282 = vpop.permute.xlu0 %5281
    %5283 = vrot.lane.b32.xlu0 %v3975, 108
    %v5284 = vpop.permute.xlu0 %5283
    %v5293 = vsel %vm1099, %v5244, 0
    %v5296 = vsel %vm1099, %v5246, 0
    %v5299 = vsel %vm1099, %v5248, 0
    %v5302 = vsel %vm1099, %v5250, 0
    %v5305 = vsel %vm1099, %v5252, 0
    %v5308 = vsel %vm1099, %v5254, 0
    %v5311 = vsel %vm1099, %v5256, 0
    %5313 = vmatprep.subr.mxu0 0.0
    %5314 = vmatpush1.msra.mxu0 0.0
    %5315 = vmatprep.subr.mxu0 0.0
    %5316 = vmatpush1.msra.mxu0 0.0
    %5317 = vmatprep.subr.mxu0 0.0
    %5318 = vmatpush1.msra.mxu0 0.0
    %5319 = vmatprep.subr.mxu0 0.0
    %5320 = vmatpush1.msra.mxu0 0.0
    %5321 = vmatprep.subr.mxu0 0.0
    %5322 = vmatpush1.msra.mxu0 0.0
    %5323 = vmatprep.subr.mxu0 0.0
    %5324 = vmatpush1.msra.mxu0 0.0
    %5325 = vmatprep.subr.mxu0 0.0
    %5326 = vmatpush1.msra.mxu0 0.0
    %5327 = vmatprep.subr.mxu0 0.0
    %5328 = vmatpush1.msra.mxu0 0.0
    %5329 = vmatprep.subr.mxu0 0.0
    %5330 = vmatpush1.msra.mxu0 0.0
    %5331 = vmatprep.subr.mxu0 0.0
    %5332 = vmatpush1.msra.mxu0 %v5284
    %5333 = vmatprep.subr.mxu0 0.0
    %5334 = vmatpush1.msra.mxu0 %v5282
    %5335 = vmatprep.subr.mxu0 0.0
    %5336 = vmatpush1.msra.mxu0 %v5280
    %5337 = vmatprep.subr.mxu0 0.0
    %5338 = vmatpush1.msra.mxu0 %v5278
    %5339 = vmatprep.subr.mxu0 0.0
    %5340 = vmatpush1.msra.mxu0 %v5276
    %5341 = vmatprep.subr.mxu0 0.0
    %5342 = vmatpush1.msra.mxu0 %v5274
    %5343 = vmatprep.subr.mxu0 0.0
    %5344 = vmatpush1.msra.mxu0 %v5272
    %5345 = vmatprep.subr.mxu0 0.0
    %5346 = vmatpush2.msra.mxu0 0.0
    %5347 = vmatprep.subr.mxu0 0.0
    %5348 = vmatpush2.msra.mxu0 0.0
    %5349 = vmatprep.subr.mxu0 0.0
    %5350 = vmatpush2.msra.mxu0 0.0
    %5351 = vmatprep.subr.mxu0 0.0
    %5352 = vmatpush2.msra.mxu0 0.0
    %5353 = vmatprep.subr.mxu0 0.0
    %5354 = vmatpush2.msra.mxu0 0.0
    %5355 = vmatprep.subr.mxu0 0.0
    %5356 = vmatpush2.msra.mxu0 0.0
    %5357 = vmatprep.subr.mxu0 0.0
    %5358 = vmatpush2.msra.mxu0 0.0
    %5359 = vmatprep.subr.mxu0 0.0
    %5360 = vmatpush2.msra.mxu0 0.0
    %5361 = vmatprep.subr.mxu0 0.0
    %5362 = vmatpush2.msra.mxu0 0.0
    %5363 = vmatprep.subr.mxu0 0.0
    %5364 = vmatpush2.msra.mxu0 0.0
    %5365 = vmatprep.subr.mxu0 0.0
    %5366 = vmatpush2.msra.mxu0 0.0
    %5367 = vmatprep.subr.mxu0 0.0
    %5368 = vmatpush2.msra.mxu0 0.0
    %5369 = vmatprep.subr.mxu0 0.0
    %5370 = vmatpush2.msra.mxu0 0.0
    %5371 = vmatprep.subr.mxu0 0.0
    %5372 = vmatpush2.msra.mxu0 0.0
    %5373 = vmatprep.subr.mxu0 0.0
    %5374 = vmatpush2.msra.mxu0 0.0
    %5375 = vmatprep.subr.mxu0 0.0
    %5376 = vmatpush2.msra.mxu0 0.0
    %5377 = vmatprep.mubr.f32.mxu0 0.0
    %5378 = vmatmul.mubr.f32.gmra.mxu0 %v5293
    %v5379 = vpop.f32.mrf.mxu0
    %v5380 = vadd.f32 0.0, %v5379
    %v5381 = vpop.f32.mrf.mxu0
    %5382 = vmatprep.mubr.f32.mxu0 0.0
    %5383 = vmatmul.mubr.f32.gmra.mxu0 %v5296
    %v5384 = vpop.f32.mrf.mxu0
    %v5385 = vadd.f32 0.0, %v5384
    %v5386 = vpop.f32.mrf.mxu0
    %5387 = vmatprep.mubr.f32.mxu0 0.0
    %5388 = vmatmul.mubr.f32.gmra.mxu0 %v5299
    %v5389 = vpop.f32.mrf.mxu0
    %v5390 = vadd.f32 0.0, %v5389
    %v5391 = vpop.f32.mrf.mxu0
    %5392 = vmatprep.mubr.f32.mxu0 0.0
    %5393 = vmatmul.mubr.f32.gmra.mxu0 %v5302
    %v5394 = vpop.f32.mrf.mxu0
    %v5395 = vadd.f32 0.0, %v5394
    %v5396 = vpop.f32.mrf.mxu0
    %5397 = vmatprep.mubr.f32.mxu0 0.0
    %5398 = vmatmul.mubr.f32.gmra.mxu0 %v5305
    %v5399 = vpop.f32.mrf.mxu0
    %v5400 = vadd.f32 0.0, %v5399
    %v5401 = vpop.f32.mrf.mxu0
    %5402 = vmatprep.mubr.f32.mxu0 0.0
    %5403 = vmatmul.mubr.f32.gmra.mxu0 %v5308
    %v5404 = vpop.f32.mrf.mxu0
    %v5405 = vadd.f32 0.0, %v5404
    %v5406 = vpop.f32.mrf.mxu0
    %5407 = vmatprep.mubr.f32.mxu0 0.0
    %5408 = vmatmul.mubr.f32.gmra.mxu0 %v5311
    %v5409 = vpop.f32.mrf.mxu0
    %v5410 = vadd.f32 0.0, %v5409
    %v5411 = vpop.f32.mrf.mxu0
    %5412 = vdwg.mxu0
    %5413 = vrot.lane.b32.xlu0 %v3980, 108
    %v5414 = vpop.permute.xlu0 %5413
    %5415 = vrot.lane.b32.xlu0 %v3985, 108
    %v5416 = vpop.permute.xlu0 %5415
    %5417 = vrot.lane.b32.xlu0 %v3990, 108
    %v5418 = vpop.permute.xlu0 %5417
    %5419 = vrot.lane.b32.xlu0 %v3995, 108
    %v5420 = vpop.permute.xlu0 %5419
    %5421 = vrot.lane.b32.xlu0 %v4000, 108
    %v5422 = vpop.permute.xlu0 %5421
    %5423 = vrot.lane.b32.xlu0 %v4005, 108
    %v5424 = vpop.permute.xlu0 %5423
    %5425 = vrot.lane.b32.xlu0 %v4010, 108
    %v5426 = vpop.permute.xlu0 %5425
    %v5435 = vsel %vm1099, %v5258, 0
    %v5438 = vsel %vm1099, %v5260, 0
    %v5441 = vsel %vm1099, %v5262, 0
    %v5444 = vsel %vm1099, %v5264, 0
    %v5447 = vsel %vm1099, %v5266, 0
    %v5450 = vsel %vm1099, %v5268, 0
    %v5453 = vsel %vm1099, %v5270, 0
    %5455 = vmatprep.subr.mxu0 0.0
    %5456 = vmatpush1.msra.mxu0 0.0
    %5457 = vmatprep.subr.mxu0 0.0
    %5458 = vmatpush1.msra.mxu0 0.0
    %5459 = vmatprep.subr.mxu0 0.0
    %5460 = vmatpush1.msra.mxu0 0.0
    %5461 = vmatprep.subr.mxu0 0.0
    %5462 = vmatpush1.msra.mxu0 0.0
    %5463 = vmatprep.subr.mxu0 0.0
    %5464 = vmatpush1.msra.mxu0 0.0
    %5465 = vmatprep.subr.mxu0 0.0
    %5466 = vmatpush1.msra.mxu0 0.0
    %5467 = vmatprep.subr.mxu0 0.0
    %5468 = vmatpush1.msra.mxu0 0.0
    %5469 = vmatprep.subr.mxu0 0.0
    %5470 = vmatpush1.msra.mxu0 0.0
    %5471 = vmatprep.subr.mxu0 0.0
    %5472 = vmatpush1.msra.mxu0 0.0
    %5473 = vmatprep.subr.mxu0 0.0
    %5474 = vmatpush1.msra.mxu0 %v5426
    %5475 = vmatprep.subr.mxu0 0.0
    %5476 = vmatpush1.msra.mxu0 %v5424
    %5477 = vmatprep.subr.mxu0 0.0
    %5478 = vmatpush1.msra.mxu0 %v5422
    %5479 = vmatprep.subr.mxu0 0.0
    %5480 = vmatpush1.msra.mxu0 %v5420
    %5481 = vmatprep.subr.mxu0 0.0
    %5482 = vmatpush1.msra.mxu0 %v5418
    %5483 = vmatprep.subr.mxu0 0.0
    %5484 = vmatpush1.msra.mxu0 %v5416
    %5485 = vmatprep.subr.mxu0 0.0
    %5486 = vmatpush1.msra.mxu0 %v5414
    %5487 = vmatprep.subr.mxu0 0.0
    %5488 = vmatpush2.msra.mxu0 0.0
    %5489 = vmatprep.subr.mxu0 0.0
    %5490 = vmatpush2.msra.mxu0 0.0
    %5491 = vmatprep.subr.mxu0 0.0
    %5492 = vmatpush2.msra.mxu0 0.0
    %5493 = vmatprep.subr.mxu0 0.0
    %5494 = vmatpush2.msra.mxu0 0.0
    %5495 = vmatprep.subr.mxu0 0.0
    %5496 = vmatpush2.msra.mxu0 0.0
    %5497 = vmatprep.subr.mxu0 0.0
    %5498 = vmatpush2.msra.mxu0 0.0
    %5499 = vmatprep.subr.mxu0 0.0
    %5500 = vmatpush2.msra.mxu0 0.0
    %5501 = vmatprep.subr.mxu0 0.0
    %5502 = vmatpush2.msra.mxu0 0.0
    %5503 = vmatprep.subr.mxu0 0.0
    %5504 = vmatpush2.msra.mxu0 0.0
    %5505 = vmatprep.subr.mxu0 0.0
    %5506 = vmatpush2.msra.mxu0 0.0
    %5507 = vmatprep.subr.mxu0 0.0
    %5508 = vmatpush2.msra.mxu0 0.0
    %5509 = vmatprep.subr.mxu0 0.0
    %5510 = vmatpush2.msra.mxu0 0.0
    %5511 = vmatprep.subr.mxu0 0.0
    %5512 = vmatpush2.msra.mxu0 0.0
    %5513 = vmatprep.subr.mxu0 0.0
    %5514 = vmatpush2.msra.mxu0 0.0
    %5515 = vmatprep.subr.mxu0 0.0
    %5516 = vmatpush2.msra.mxu0 0.0
    %5517 = vmatprep.subr.mxu0 0.0
    %5518 = vmatpush2.msra.mxu0 0.0
    %5519 = vmatprep.mubr.f32.mxu0 0.0
    %5520 = vmatmul.mubr.f32.gmra.mxu0 %v5435
    %v5521 = vpop.f32.mrf.mxu0
    %v5522 = vadd.f32 0.0, %v5521
    %v5523 = vpop.f32.mrf.mxu0
    %5524 = vmatprep.mubr.f32.mxu0 0.0
    %5525 = vmatmul.mubr.f32.gmra.mxu0 %v5438
    %v5526 = vpop.f32.mrf.mxu0
    %v5527 = vadd.f32 0.0, %v5526
    %v5528 = vpop.f32.mrf.mxu0
    %5529 = vmatprep.mubr.f32.mxu0 0.0
    %5530 = vmatmul.mubr.f32.gmra.mxu0 %v5441
    %v5531 = vpop.f32.mrf.mxu0
    %v5532 = vadd.f32 0.0, %v5531
    %v5533 = vpop.f32.mrf.mxu0
    %5534 = vmatprep.mubr.f32.mxu0 0.0
    %5535 = vmatmul.mubr.f32.gmra.mxu0 %v5444
    %v5536 = vpop.f32.mrf.mxu0
    %v5537 = vadd.f32 0.0, %v5536
    %v5538 = vpop.f32.mrf.mxu0
    %5539 = vmatprep.mubr.f32.mxu0 0.0
    %5540 = vmatmul.mubr.f32.gmra.mxu0 %v5447
    %v5541 = vpop.f32.mrf.mxu0
    %v5542 = vadd.f32 0.0, %v5541
    %v5543 = vpop.f32.mrf.mxu0
    %5544 = vmatprep.mubr.f32.mxu0 0.0
    %5545 = vmatmul.mubr.f32.gmra.mxu0 %v5450
    %v5546 = vpop.f32.mrf.mxu0
    %v5547 = vadd.f32 0.0, %v5546
    %v5548 = vpop.f32.mrf.mxu0
    %5549 = vmatprep.mubr.f32.mxu0 0.0
    %5550 = vmatmul.mubr.f32.gmra.mxu0 %v5453
    %v5551 = vpop.f32.mrf.mxu0
    %v5552 = vadd.f32 0.0, %v5551
    %v5553 = vpop.f32.mrf.mxu0
    %5554 = vdwg.mxu0
    %5569 = vrot.lane.b32.xlu0 %v5380, 4
    %v5570 = vpop.permute.xlu0 %5569
    %5571 = vrot.lane.b32.xlu0 %v5385, 4
    %v5572 = vpop.permute.xlu0 %5571
    %5573 = vrot.lane.b32.xlu0 %v5390, 4
    %v5574 = vpop.permute.xlu0 %5573
    %5575 = vrot.lane.b32.xlu0 %v5395, 4
    %v5576 = vpop.permute.xlu0 %5575
    %5577 = vrot.lane.b32.xlu0 %v5400, 4
    %v5578 = vpop.permute.xlu0 %5577
    %5579 = vrot.lane.b32.xlu0 %v5405, 4
    %v5580 = vpop.permute.xlu0 %5579
    %5581 = vrot.lane.b32.xlu0 %v5410, 4
    %v5582 = vpop.permute.xlu0 %5581
    %5583 = vrot.lane.b32.xlu0 %v5522, 4
    %v5584 = vpop.permute.xlu0 %5583
    %5585 = vrot.lane.b32.xlu0 %v5527, 4
    %v5586 = vpop.permute.xlu0 %5585
    %5587 = vrot.lane.b32.xlu0 %v5532, 4
    %v5588 = vpop.permute.xlu0 %5587
    %5589 = vrot.lane.b32.xlu0 %v5537, 4
    %v5590 = vpop.permute.xlu0 %5589
    %5591 = vrot.lane.b32.xlu0 %v5542, 4
    %v5592 = vpop.permute.xlu0 %5591
    %5593 = vrot.lane.b32.xlu0 %v5547, 4
    %v5594 = vpop.permute.xlu0 %5593
    %5595 = vrot.lane.b32.xlu0 %v5552, 4
    %v5596 = vpop.permute.xlu0 %5595
    %v5611 = vsel %vm793, %v4602, %v5570
    %v5612 = vsel %vm793, %v4607, %v5572
    %v5613 = vsel %vm793, %v4612, %v5574
    %v5614 = vsel %vm793, %v4617, %v5576
    %v5615 = vsel %vm793, %v4622, %v5578
    %v5616 = vsel %vm793, %v4627, %v5580
    %v5617 = vsel %vm793, %v4632, %v5582
    %v5618 = vsel %vm793, %v4744, %v5584
    %v5619 = vsel %vm793, %v4749, %v5586
    %v5620 = vsel %vm793, %v4754, %v5588
    %v5621 = vsel %vm793, %v4759, %v5590
    %v5622 = vsel %vm793, %v4764, %v5592
    %v5623 = vsel %vm793, %v4769, %v5594
    %v5624 = vsel %vm793, %v4774, %v5596
    %v5625 = vadd.f32 %v3488, %v5611
    %v5626 = vadd.f32 %v3489, %v5612
    %v5627 = vadd.f32 %v3490, %v5613
    %v5628 = vadd.f32 %v3491, %v5614
    %v5629 = vadd.f32 %v3492, %v5615
    %v5630 = vadd.f32 %v3493, %v5616
    %v5631 = vadd.f32 %v3494, %v5617
    %v5632 = vadd.f32 %v3495, %v5618
    %v5633 = vadd.f32 %v3496, %v5619
    %v5634 = vadd.f32 %v3497, %v5620
    %v5635 = vadd.f32 %v3498, %v5621
    %v5636 = vadd.f32 %v3499, %v5622
    %v5637 = vadd.f32 %v3500, %v5623
    %v5638 = vadd.f32 %v3501, %v5624
    %s5639 = scalar_lea.vmem %s7, 1
    %v5640 = vld [vmem:[%s5639] sm:$0x1]
    %s5641 = scalar_lea.vmem %s8, 1
    %v5642 = vld [vmem:[%s5641] sm:$0x1]
    %v5643 = vsel %vm265, %v5625, 0.0
    %5644 = vadd.xlane.f32.xlu0 %v5643
    %v5645 = vpop.xlane.xlu0 %5644
    %v5646 = vsel %vm265, %v5626, 0.0
    %5647 = vadd.xlane.f32.xlu0 %v5646
    %v5648 = vpop.xlane.xlu0 %5647
    %v5649 = vsel %vm265, %v5627, 0.0
    %5650 = vadd.xlane.f32.xlu0 %v5649
    %v5651 = vpop.xlane.xlu0 %5650
    %v5652 = vsel %vm265, %v5628, 0.0
    %5653 = vadd.xlane.f32.xlu0 %v5652
    %v5654 = vpop.xlane.xlu0 %5653
    %v5655 = vsel %vm265, %v5629, 0.0
    %5656 = vadd.xlane.f32.xlu0 %v5655
    %v5657 = vpop.xlane.xlu0 %5656
    %v5658 = vsel %vm265, %v5630, 0.0
    %5659 = vadd.xlane.f32.xlu0 %v5658
    %v5660 = vpop.xlane.xlu0 %5659
    %v5661 = vsel %vm265, %v5631, 0.0
    %5662 = vadd.xlane.f32.xlu0 %v5661
    %v5663 = vpop.xlane.xlu0 %5662
    %v5664 = vsel %vm265, %v5632, 0.0
    %5665 = vadd.xlane.f32.xlu0 %v5664
    %v5666 = vpop.xlane.xlu0 %5665
    %v5667 = vsel %vm265, %v5633, 0.0
    %5668 = vadd.xlane.f32.xlu0 %v5667
    %v5669 = vpop.xlane.xlu0 %5668
    %v5670 = vsel %vm265, %v5634, 0.0
    %5671 = vadd.xlane.f32.xlu0 %v5670
    %v5672 = vpop.xlane.xlu0 %5671
    %v5673 = vsel %vm265, %v5635, 0.0
    %5674 = vadd.xlane.f32.xlu0 %v5673
    %v5675 = vpop.xlane.xlu0 %5674
    %v5676 = vsel %vm265, %v5636, 0.0
    %5677 = vadd.xlane.f32.xlu0 %v5676
    %v5678 = vpop.xlane.xlu0 %5677
    %v5679 = vsel %vm265, %v5637, 0.0
    %5680 = vadd.xlane.f32.xlu0 %v5679
    %v5681 = vpop.xlane.xlu0 %5680
    %v5682 = vsel %vm265, %v5638, 0.0
    %5683 = vadd.xlane.f32.xlu0 %v5682
    %v5684 = vpop.xlane.xlu0 %5683
    %v5685 = vmul.f32 %v5645, %v308
    %v5686 = vmul.f32 %v5648, %v308
    %v5687 = vmul.f32 %v5651, %v308
    %v5688 = vmul.f32 %v5654, %v308
    %v5689 = vmul.f32 %v5657, %v308
    %v5690 = vmul.f32 %v5660, %v308
    %v5691 = vmul.f32 %v5663, %v308
    %v5692 = vmul.f32 %v5666, %v308
    %v5693 = vmul.f32 %v5669, %v308
    %v5694 = vmul.f32 %v5672, %v308
    %v5695 = vmul.f32 %v5675, %v308
    %v5696 = vmul.f32 %v5678, %v308
    %v5697 = vmul.f32 %v5681, %v308
    %v5698 = vmul.f32 %v5684, %v308
    %v5699 = vsub.f32 %v5625, %v5685
    %v5700 = vsub.f32 %v5626, %v5686
    %v5701 = vsub.f32 %v5627, %v5687
    %v5702 = vsub.f32 %v5628, %v5688
    %v5703 = vsub.f32 %v5629, %v5689
    %v5704 = vsub.f32 %v5630, %v5690
    %v5705 = vsub.f32 %v5631, %v5691
    %v5706 = vsub.f32 %v5632, %v5692
    %v5707 = vsub.f32 %v5633, %v5693
    %v5708 = vsub.f32 %v5634, %v5694
    %v5709 = vsub.f32 %v5635, %v5695
    %v5710 = vsub.f32 %v5636, %v5696
    %v5711 = vsub.f32 %v5637, %v5697
    %v5712 = vsub.f32 %v5638, %v5698
    %v5713 = vmul.f32 %v5699, %v5699
    %v5714 = vmul.f32 %v5700, %v5700
    %v5715 = vmul.f32 %v5701, %v5701
    %v5716 = vmul.f32 %v5702, %v5702
    %v5717 = vmul.f32 %v5703, %v5703
    %v5718 = vmul.f32 %v5704, %v5704
    %v5719 = vmul.f32 %v5705, %v5705
    %v5720 = vmul.f32 %v5706, %v5706
    %v5721 = vmul.f32 %v5707, %v5707
    %v5722 = vmul.f32 %v5708, %v5708
    %v5723 = vmul.f32 %v5709, %v5709
    %v5724 = vmul.f32 %v5710, %v5710
    %v5725 = vmul.f32 %v5711, %v5711
    %v5726 = vmul.f32 %v5712, %v5712
    %v5727 = vsel %vm265, %v5713, 0.0
    %5728 = vadd.xlane.f32.xlu0 %v5727
    %v5729 = vpop.xlane.xlu0 %5728
    %v5730 = vsel %vm265, %v5714, 0.0
    %5731 = vadd.xlane.f32.xlu0 %v5730
    %v5732 = vpop.xlane.xlu0 %5731
    %v5733 = vsel %vm265, %v5715, 0.0
    %5734 = vadd.xlane.f32.xlu0 %v5733
    %v5735 = vpop.xlane.xlu0 %5734
    %v5736 = vsel %vm265, %v5716, 0.0
    %5737 = vadd.xlane.f32.xlu0 %v5736
    %v5738 = vpop.xlane.xlu0 %5737
    %v5739 = vsel %vm265, %v5717, 0.0
    %5740 = vadd.xlane.f32.xlu0 %v5739
    %v5741 = vpop.xlane.xlu0 %5740
    %v5742 = vsel %vm265, %v5718, 0.0
    %5743 = vadd.xlane.f32.xlu0 %v5742
    %v5744 = vpop.xlane.xlu0 %5743
    %v5745 = vsel %vm265, %v5719, 0.0
    %5746 = vadd.xlane.f32.xlu0 %v5745
    %v5747 = vpop.xlane.xlu0 %5746
    %v5748 = vsel %vm265, %v5720, 0.0
    %5749 = vadd.xlane.f32.xlu0 %v5748
    %v5750 = vpop.xlane.xlu0 %5749
    %v5751 = vsel %vm265, %v5721, 0.0
    %5752 = vadd.xlane.f32.xlu0 %v5751
    %v5753 = vpop.xlane.xlu0 %5752
    %v5754 = vsel %vm265, %v5722, 0.0
    %5755 = vadd.xlane.f32.xlu0 %v5754
    %v5756 = vpop.xlane.xlu0 %5755
    %v5757 = vsel %vm265, %v5723, 0.0
    %5758 = vadd.xlane.f32.xlu0 %v5757
    %v5759 = vpop.xlane.xlu0 %5758
    %v5760 = vsel %vm265, %v5724, 0.0
    %5761 = vadd.xlane.f32.xlu0 %v5760
    %v5762 = vpop.xlane.xlu0 %5761
    %v5763 = vsel %vm265, %v5725, 0.0
    %5764 = vadd.xlane.f32.xlu0 %v5763
    %v5765 = vpop.xlane.xlu0 %5764
    %v5766 = vsel %vm265, %v5726, 0.0
    %5767 = vadd.xlane.f32.xlu0 %v5766
    %v5768 = vpop.xlane.xlu0 %5767
    %v5769 = vmul.f32 %v5729, %v308
    %v5770 = vmul.f32 %v5732, %v308
    %v5771 = vmul.f32 %v5735, %v308
    %v5772 = vmul.f32 %v5738, %v308
    %v5773 = vmul.f32 %v5741, %v308
    %v5774 = vmul.f32 %v5744, %v308
    %v5775 = vmul.f32 %v5747, %v308
    %v5776 = vmul.f32 %v5750, %v308
    %v5777 = vmul.f32 %v5753, %v308
    %v5778 = vmul.f32 %v5756, %v308
    %v5779 = vmul.f32 %v5759, %v308
    %v5780 = vmul.f32 %v5762, %v308
    %v5781 = vmul.f32 %v5765, %v308
    %v5782 = vmul.f32 %v5768, %v308
    %v5783 = vadd.f32 %v5769, 1e-05
    %v5784 = vadd.f32 %v5770, 1e-05
    %v5785 = vadd.f32 %v5771, 1e-05
    %v5786 = vadd.f32 %v5772, 1e-05
    %v5787 = vadd.f32 %v5773, 1e-05
    %v5788 = vadd.f32 %v5774, 1e-05
    %v5789 = vadd.f32 %v5775, 1e-05
    %v5790 = vadd.f32 %v5776, 1e-05
    %v5791 = vadd.f32 %v5777, 1e-05
    %v5792 = vadd.f32 %v5778, 1e-05
    %v5793 = vadd.f32 %v5779, 1e-05
    %v5794 = vadd.f32 %v5780, 1e-05
    %v5795 = vadd.f32 %v5781, 1e-05
    %v5796 = vadd.f32 %v5782, 1e-05
    %v5797 = vrsqrt.pop %v5783
    %v5798 = vmul.f32 %v5783, %v5797
    %vm5799 = vcmp.eq.f32.partialorder %v5783, inf
    %v5800 = vsel %vm5799, %v5783, %v5798
    %vm5801 = vcmp.eq.f32.partialorder %v5783, 0.0
    %v5802 = vand.u32 %v5783, 2147483648
    %v5803 = vsel %vm5801, %v5802, %v5800
    %v5804 = vrsqrt.pop %v5784
    %v5805 = vmul.f32 %v5784, %v5804
    %vm5806 = vcmp.eq.f32.partialorder %v5784, inf
    %v5807 = vsel %vm5806, %v5784, %v5805
    %vm5808 = vcmp.eq.f32.partialorder %v5784, 0.0
    %v5809 = vand.u32 %v5784, 2147483648
    %v5810 = vsel %vm5808, %v5809, %v5807
    %v5811 = vrsqrt.pop %v5785
    %v5812 = vmul.f32 %v5785, %v5811
    %vm5813 = vcmp.eq.f32.partialorder %v5785, inf
    %v5814 = vsel %vm5813, %v5785, %v5812
    %vm5815 = vcmp.eq.f32.partialorder %v5785, 0.0
    %v5816 = vand.u32 %v5785, 2147483648
    %v5817 = vsel %vm5815, %v5816, %v5814
    %v5818 = vrsqrt.pop %v5786
    %v5819 = vmul.f32 %v5786, %v5818
    %vm5820 = vcmp.eq.f32.partialorder %v5786, inf
    %v5821 = vsel %vm5820, %v5786, %v5819
    %vm5822 = vcmp.eq.f32.partialorder %v5786, 0.0
    %v5823 = vand.u32 %v5786, 2147483648
    %v5824 = vsel %vm5822, %v5823, %v5821
    %v5825 = vrsqrt.pop %v5787
    %v5826 = vmul.f32 %v5787, %v5825
    %vm5827 = vcmp.eq.f32.partialorder %v5787, inf
    %v5828 = vsel %vm5827, %v5787, %v5826
    %vm5829 = vcmp.eq.f32.partialorder %v5787, 0.0
    %v5830 = vand.u32 %v5787, 2147483648
    %v5831 = vsel %vm5829, %v5830, %v5828
    %v5832 = vrsqrt.pop %v5788
    %v5833 = vmul.f32 %v5788, %v5832
    %vm5834 = vcmp.eq.f32.partialorder %v5788, inf
    %v5835 = vsel %vm5834, %v5788, %v5833
    %vm5836 = vcmp.eq.f32.partialorder %v5788, 0.0
    %v5837 = vand.u32 %v5788, 2147483648
    %v5838 = vsel %vm5836, %v5837, %v5835
    %v5839 = vrsqrt.pop %v5789
    %v5840 = vmul.f32 %v5789, %v5839
    %vm5841 = vcmp.eq.f32.partialorder %v5789, inf
    %v5842 = vsel %vm5841, %v5789, %v5840
    %vm5843 = vcmp.eq.f32.partialorder %v5789, 0.0
    %v5844 = vand.u32 %v5789, 2147483648
    %v5845 = vsel %vm5843, %v5844, %v5842
    %v5846 = vrsqrt.pop %v5790
    %v5847 = vmul.f32 %v5790, %v5846
    %vm5848 = vcmp.eq.f32.partialorder %v5790, inf
    %v5849 = vsel %vm5848, %v5790, %v5847
    %vm5850 = vcmp.eq.f32.partialorder %v5790, 0.0
    %v5851 = vand.u32 %v5790, 2147483648
    %v5852 = vsel %vm5850, %v5851, %v5849
    %v5853 = vrsqrt.pop %v5791
    %v5854 = vmul.f32 %v5791, %v5853
    %vm5855 = vcmp.eq.f32.partialorder %v5791, inf
    %v5856 = vsel %vm5855, %v5791, %v5854
    %vm5857 = vcmp.eq.f32.partialorder %v5791, 0.0
    %v5858 = vand.u32 %v5791, 2147483648
    %v5859 = vsel %vm5857, %v5858, %v5856
    %v5860 = vrsqrt.pop %v5792
    %v5861 = vmul.f32 %v5792, %v5860
    %vm5862 = vcmp.eq.f32.partialorder %v5792, inf
    %v5863 = vsel %vm5862, %v5792, %v5861
    %vm5864 = vcmp.eq.f32.partialorder %v5792, 0.0
    %v5865 = vand.u32 %v5792, 2147483648
    %v5866 = vsel %vm5864, %v5865, %v5863
    %v5867 = vrsqrt.pop %v5793
    %v5868 = vmul.f32 %v5793, %v5867
    %vm5869 = vcmp.eq.f32.partialorder %v5793, inf
    %v5870 = vsel %vm5869, %v5793, %v5868
    %vm5871 = vcmp.eq.f32.partialorder %v5793, 0.0
    %v5872 = vand.u32 %v5793, 2147483648
    %v5873 = vsel %vm5871, %v5872, %v5870
    %v5874 = vrsqrt.pop %v5794
    %v5875 = vmul.f32 %v5794, %v5874
    %vm5876 = vcmp.eq.f32.partialorder %v5794, inf
    %v5877 = vsel %vm5876, %v5794, %v5875
    %vm5878 = vcmp.eq.f32.partialorder %v5794, 0.0
    %v5879 = vand.u32 %v5794, 2147483648
    %v5880 = vsel %vm5878, %v5879, %v5877
    %v5881 = vrsqrt.pop %v5795
    %v5882 = vmul.f32 %v5795, %v5881
    %vm5883 = vcmp.eq.f32.partialorder %v5795, inf
    %v5884 = vsel %vm5883, %v5795, %v5882
    %vm5885 = vcmp.eq.f32.partialorder %v5795, 0.0
    %v5886 = vand.u32 %v5795, 2147483648
    %v5887 = vsel %vm5885, %v5886, %v5884
    %v5888 = vrsqrt.pop %v5796
    %v5889 = vmul.f32 %v5796, %v5888
    %vm5890 = vcmp.eq.f32.partialorder %v5796, inf
    %v5891 = vsel %vm5890, %v5796, %v5889
    %vm5892 = vcmp.eq.f32.partialorder %v5796, 0.0
    %v5893 = vand.u32 %v5796, 2147483648
    %v5894 = vsel %vm5892, %v5893, %v5891
    %v5895 = vrcp.pop %v5803
    %v5896 = vmul.f32 %v5699, %v5895
    %v5897 = vrcp.pop %v5810
    %v5898 = vmul.f32 %v5700, %v5897
    %v5899 = vrcp.pop %v5817
    %v5900 = vmul.f32 %v5701, %v5899
    %v5901 = vrcp.pop %v5824
    %v5902 = vmul.f32 %v5702, %v5901
    %v5903 = vrcp.pop %v5831
    %v5904 = vmul.f32 %v5703, %v5903
    %v5905 = vrcp.pop %v5838
    %v5906 = vmul.f32 %v5704, %v5905
    %v5907 = vrcp.pop %v5845
    %v5908 = vmul.f32 %v5705, %v5907
    %v5909 = vrcp.pop %v5852
    %v5910 = vmul.f32 %v5706, %v5909
    %v5911 = vrcp.pop %v5859
    %v5912 = vmul.f32 %v5707, %v5911
    %v5913 = vrcp.pop %v5866
    %v5914 = vmul.f32 %v5708, %v5913
    %v5915 = vrcp.pop %v5873
    %v5916 = vmul.f32 %v5709, %v5915
    %v5917 = vrcp.pop %v5880
    %v5918 = vmul.f32 %v5710, %v5917
    %v5919 = vrcp.pop %v5887
    %v5920 = vmul.f32 %v5711, %v5919
    %v5921 = vrcp.pop %v5894
    %v5922 = vmul.f32 %v5712, %v5921
    %v5924 = vlaneseq
    %v5925 = vshrl.u32 %v5924, 7
    %v5926 = vsub.s32 0, %v5925
    %v5927 = vrot.slane %v5640, %v5926
    %v5929 = vmul.f32 %v5896, %v5927
    %v5930 = vmul.f32 %v5898, %v5927
    %v5931 = vmul.f32 %v5900, %v5927
    %v5932 = vmul.f32 %v5902, %v5927
    %v5933 = vmul.f32 %v5904, %v5927
    %v5934 = vmul.f32 %v5906, %v5927
    %v5935 = vmul.f32 %v5908, %v5927
    %v5936 = vmul.f32 %v5910, %v5927
    %v5937 = vmul.f32 %v5912, %v5927
    %v5938 = vmul.f32 %v5914, %v5927
    %v5939 = vmul.f32 %v5916, %v5927
    %v5940 = vmul.f32 %v5918, %v5927
    %v5941 = vmul.f32 %v5920, %v5927
    %v5942 = vmul.f32 %v5922, %v5927
    %v5944 = vlaneseq
    %v5945 = vshrl.u32 %v5944, 7
    %v5946 = vsub.s32 0, %v5945
    %v5947 = vrot.slane %v5642, %v5946
    %v5949 = vadd.f32 %v5929, %v5947
    %v5950 = vadd.f32 %v5930, %v5947
    %v5951 = vadd.f32 %v5931, %v5947
    %v5952 = vadd.f32 %v5932, %v5947
    %v5953 = vadd.f32 %v5933, %v5947
    %v5954 = vadd.f32 %v5934, %v5947
    %v5955 = vadd.f32 %v5935, %v5947
    %v5956 = vadd.f32 %v5936, %v5947
    %v5957 = vadd.f32 %v5937, %v5947
    %v5958 = vadd.f32 %v5938, %v5947
    %v5959 = vadd.f32 %v5939, %v5947
    %v5960 = vadd.f32 %v5940, %v5947
    %v5961 = vadd.f32 %v5941, %v5947
    %v5962 = vadd.f32 %v5942, %v5947
    %s5963 = scalar_lea.vmem %s9, 8
    %v5964 = vld [vmem:[%s5963] sm:$0xff]
    %s5965 = scalar_lea.vmem %s10, 1
    %v5966 = vld [vmem:[%s5965] sm:$0x1]
    %v5968 = vlaneseq
    %v5969 = vshrl.u32 %v5968, 7
    %v5970 = vsub.s32 0, %v5969
    %v5971 = vrot.slane %v5966, %v5970
    %v5974 = vsel %vm265, %v5949, 0
    %v5977 = vsel %vm265, %v5950, 0
    %v5980 = vsel %vm265, %v5951, 0
    %v5983 = vsel %vm265, %v5952, 0
    %v5986 = vsel %vm265, %v5953, 0
    %v5989 = vsel %vm265, %v5954, 0
    %v5992 = vsel %vm265, %v5955, 0
    %v5995 = vsel %vm265, %v5956, 0
    %v5998 = vsel %vm265, %v5957, 0
    %v6001 = vsel %vm265, %v5958, 0
    %v6004 = vsel %vm265, %v5959, 0
    %v6007 = vsel %vm265, %v5960, 0
    %v6010 = vsel %vm265, %v5961, 0
    %v6013 = vsel %vm265, %v5962, 0
    %6015 = vmatprep.subr.mxu0 0.0
    %6016 = vmatpush1.msra.mxu0 0.0
    %6017 = vmatprep.subr.mxu0 0.0
    %6018 = vmatpush1.msra.mxu0 0.0
    %6019 = vmatprep.subr.mxu0 0.0
    %6020 = vmatpush1.msra.mxu0 0.0
    %6021 = vmatprep.subr.mxu0 0.0
    %6022 = vmatpush1.msra.mxu0 0.0
    %6023 = vmatprep.subr.mxu0 0.0
    %6024 = vmatpush1.msra.mxu0 0.0
    %6025 = vmatprep.subr.mxu0 0.0
    %6026 = vmatpush1.msra.mxu0 0.0
    %6027 = vmatprep.subr.mxu0 0.0
    %6028 = vmatpush1.msra.mxu0 0.0
    %6029 = vmatprep.subr.mxu0 0.0
    %6030 = vmatpush1.msra.mxu0 0.0
    %6031 = vmatprep.subr.mxu0 0.0
    %6032 = vmatpush1.msra.mxu0 0.0
    %6033 = vmatprep.subr.mxu0 0.0
    %6034 = vmatpush1.msra.mxu0 0.0
    %6035 = vmatprep.subr.mxu0 0.0
    %6036 = vmatpush1.msra.mxu0 0.0
    %6037 = vmatprep.subr.mxu0 0.0
    %6038 = vmatpush1.msra.mxu0 0.0
    %6039 = vmatprep.subr.mxu0 0.0
    %6040 = vmatpush1.msra.mxu0 0.0
    %6041 = vmatprep.subr.mxu0 0.0
    %6042 = vmatpush1.msra.mxu0 0.0
    %6043 = vmatprep.subr.mxu0 0.0
    %6044 = vmatpush1.msra.mxu0 0.0
    %6045 = vmatprep.subr.mxu0 0.0
    %6046 = vmatpush1.msra.mxu0 %v5964
    %6047 = vmatprep.subr.mxu0 0.0
    %6048 = vmatpush2.msra.mxu0 0.0
    %6049 = vmatprep.subr.mxu0 0.0
    %6050 = vmatpush2.msra.mxu0 0.0
    %6051 = vmatprep.subr.mxu0 0.0
    %6052 = vmatpush2.msra.mxu0 0.0
    %6053 = vmatprep.subr.mxu0 0.0
    %6054 = vmatpush2.msra.mxu0 0.0
    %6055 = vmatprep.subr.mxu0 0.0
    %6056 = vmatpush2.msra.mxu0 0.0
    %6057 = vmatprep.subr.mxu0 0.0
    %6058 = vmatpush2.msra.mxu0 0.0
    %6059 = vmatprep.subr.mxu0 0.0
    %6060 = vmatpush2.msra.mxu0 0.0
    %6061 = vmatprep.subr.mxu0 0.0
    %6062 = vmatpush2.msra.mxu0 0.0
    %6063 = vmatprep.subr.mxu0 0.0
    %6064 = vmatpush2.msra.mxu0 0.0
    %6065 = vmatprep.subr.mxu0 0.0
    %6066 = vmatpush2.msra.mxu0 0.0
    %6067 = vmatprep.subr.mxu0 0.0
    %6068 = vmatpush2.msra.mxu0 0.0
    %6069 = vmatprep.subr.mxu0 0.0
    %6070 = vmatpush2.msra.mxu0 0.0
    %6071 = vmatprep.subr.mxu0 0.0
    %6072 = vmatpush2.msra.mxu0 0.0
    %6073 = vmatprep.subr.mxu0 0.0
    %6074 = vmatpush2.msra.mxu0 0.0
    %6075 = vmatprep.subr.mxu0 0.0
    %6076 = vmatpush2.msra.mxu0 0.0
    %6077 = vmatprep.subr.mxu0 0.0
    %6078 = vmatpush2.msra.mxu0 0.0
    %6079 = vmatprep.mubr.f32.mxu0 0.0
    %6080 = vmatmul.mubr.f32.gmra.mxu0 %v5974
    %v6081 = vpop.f32.mrf.mxu0
    %v6082 = vadd.f32 %v5971, %v6081
    %v6083 = vpop.f32.mrf.mxu0
    %6084 = vmatprep.mubr.f32.mxu0 0.0
    %6085 = vmatmul.mubr.f32.gmra.mxu0 %v5977
    %v6086 = vpop.f32.mrf.mxu0
    %v6087 = vadd.f32 %v5971, %v6086
    %v6088 = vpop.f32.mrf.mxu0
    %6089 = vmatprep.mubr.f32.mxu0 0.0
    %6090 = vmatmul.mubr.f32.gmra.mxu0 %v5980
    %v6091 = vpop.f32.mrf.mxu0
    %v6092 = vadd.f32 %v5971, %v6091
    %v6093 = vpop.f32.mrf.mxu0
    %6094 = vmatprep.mubr.f32.mxu0 0.0
    %6095 = vmatmul.mubr.f32.gmra.mxu0 %v5983
    %v6096 = vpop.f32.mrf.mxu0
    %v6097 = vadd.f32 %v5971, %v6096
    %v6098 = vpop.f32.mrf.mxu0
    %6099 = vmatprep.mubr.f32.mxu0 0.0
    %6100 = vmatmul.mubr.f32.gmra.mxu0 %v5986
    %v6101 = vpop.f32.mrf.mxu0
    %v6102 = vadd.f32 %v5971, %v6101
    %v6103 = vpop.f32.mrf.mxu0
    %6104 = vmatprep.mubr.f32.mxu0 0.0
    %6105 = vmatmul.mubr.f32.gmra.mxu0 %v5989
    %v6106 = vpop.f32.mrf.mxu0
    %v6107 = vadd.f32 %v5971, %v6106
    %v6108 = vpop.f32.mrf.mxu0
    %6109 = vmatprep.mubr.f32.mxu0 0.0
    %6110 = vmatmul.mubr.f32.gmra.mxu0 %v5992
    %v6111 = vpop.f32.mrf.mxu0
    %v6112 = vadd.f32 %v5971, %v6111
    %v6113 = vpop.f32.mrf.mxu0
    %6114 = vmatprep.mubr.f32.mxu0 0.0
    %6115 = vmatmul.mubr.f32.gmra.mxu0 %v5995
    %v6116 = vpop.f32.mrf.mxu0
    %v6117 = vadd.f32 %v5971, %v6116
    %v6118 = vpop.f32.mrf.mxu0
    %6119 = vmatprep.mubr.f32.mxu0 0.0
    %6120 = vmatmul.mubr.f32.gmra.mxu0 %v5998
    %v6121 = vpop.f32.mrf.mxu0
    %v6122 = vadd.f32 %v5971, %v6121
    %v6123 = vpop.f32.mrf.mxu0
    %6124 = vmatprep.mubr.f32.mxu0 0.0
    %6125 = vmatmul.mubr.f32.gmra.mxu0 %v6001
    %v6126 = vpop.f32.mrf.mxu0
    %v6127 = vadd.f32 %v5971, %v6126
    %v6128 = vpop.f32.mrf.mxu0
    %6129 = vmatprep.mubr.f32.mxu0 0.0
    %6130 = vmatmul.mubr.f32.gmra.mxu0 %v6004
    %v6131 = vpop.f32.mrf.mxu0
    %v6132 = vadd.f32 %v5971, %v6131
    %v6133 = vpop.f32.mrf.mxu0
    %6134 = vmatprep.mubr.f32.mxu0 0.0
    %6135 = vmatmul.mubr.f32.gmra.mxu0 %v6007
    %v6136 = vpop.f32.mrf.mxu0
    %v6137 = vadd.f32 %v5971, %v6136
    %v6138 = vpop.f32.mrf.mxu0
    %6139 = vmatprep.mubr.f32.mxu0 0.0
    %6140 = vmatmul.mubr.f32.gmra.mxu0 %v6010
    %v6141 = vpop.f32.mrf.mxu0
    %v6142 = vadd.f32 %v5971, %v6141
    %v6143 = vpop.f32.mrf.mxu0
    %6144 = vmatprep.mubr.f32.mxu0 0.0
    %6145 = vmatmul.mubr.f32.gmra.mxu0 %v6013
    %v6146 = vpop.f32.mrf.mxu0
    %v6147 = vadd.f32 %v5971, %v6146
    %v6148 = vpop.f32.mrf.mxu0
    %6149 = vdwg.mxu0
    %v6150 = vmul.f32 %v6082, 0.5
    %v6151 = vmul.f32 %v6087, 0.5
    %v6152 = vmul.f32 %v6092, 0.5
    %v6153 = vmul.f32 %v6097, 0.5
    %v6154 = vmul.f32 %v6102, 0.5
    %v6155 = vmul.f32 %v6107, 0.5
    %v6156 = vmul.f32 %v6112, 0.5
    %v6157 = vmul.f32 %v6117, 0.5
    %v6158 = vmul.f32 %v6122, 0.5
    %v6159 = vmul.f32 %v6127, 0.5
    %v6160 = vmul.f32 %v6132, 0.5
    %v6161 = vmul.f32 %v6137, 0.5
    %v6162 = vmul.f32 %v6142, 0.5
    %v6163 = vmul.f32 %v6147, 0.5
    %v6164 = vmul.f32 %v6082, 0.70710677
    %v6165 = vmul.f32 %v6087, 0.70710677
    %v6166 = vmul.f32 %v6092, 0.70710677
    %v6167 = vmul.f32 %v6097, 0.70710677
    %v6168 = vmul.f32 %v6102, 0.70710677
    %v6169 = vmul.f32 %v6107, 0.70710677
    %v6170 = vmul.f32 %v6112, 0.70710677
    %v6171 = vmul.f32 %v6117, 0.70710677
    %v6172 = vmul.f32 %v6122, 0.70710677
    %v6173 = vmul.f32 %v6127, 0.70710677
    %v6174 = vmul.f32 %v6132, 0.70710677
    %v6175 = vmul.f32 %v6137, 0.70710677
    %v6176 = vmul.f32 %v6142, 0.70710677
    %v6177 = vmul.f32 %v6147, 0.70710677
    %v6178 = vand.u32 2147483647, %v6164
    %v6179 = vand.u32 2147483647, %v6165
    %v6180 = vand.u32 2147483647, %v6166
    %v6181 = vand.u32 2147483647, %v6167
    %v6182 = vand.u32 2147483647, %v6168
    %v6183 = vand.u32 2147483647, %v6169
    %v6184 = vand.u32 2147483647, %v6170
    %v6185 = vand.u32 2147483647, %v6171
    %v6186 = vand.u32 2147483647, %v6172
    %v6187 = vand.u32 2147483647, %v6173
    %v6188 = vand.u32 2147483647, %v6174
    %v6189 = vand.u32 2147483647, %v6175
    %v6190 = vand.u32 2147483647, %v6176
    %v6191 = vand.u32 2147483647, %v6177
    %v6192 = vmul.f32 %v6178, 0.3275911
    %v6193 = vmul.f32 %v6179, 0.3275911
    %v6194 = vmul.f32 %v6180, 0.3275911
    %v6195 = vmul.f32 %v6181, 0.3275911
    %v6196 = vmul.f32 %v6182, 0.3275911
    %v6197 = vmul.f32 %v6183, 0.3275911
    %v6198 = vmul.f32 %v6184, 0.3275911
    %v6199 = vmul.f32 %v6185, 0.3275911
    %v6200 = vmul.f32 %v6186, 0.3275911
    %v6201 = vmul.f32 %v6187, 0.3275911
    %v6202 = vmul.f32 %v6188, 0.3275911
    %v6203 = vmul.f32 %v6189, 0.3275911
    %v6204 = vmul.f32 %v6190, 0.3275911
    %v6205 = vmul.f32 %v6191, 0.3275911
    %v6206 = vadd.f32 %v6192, 1.0
    %v6207 = vadd.f32 %v6193, 1.0
    %v6208 = vadd.f32 %v6194, 1.0
    %v6209 = vadd.f32 %v6195, 1.0
    %v6210 = vadd.f32 %v6196, 1.0
    %v6211 = vadd.f32 %v6197, 1.0
    %v6212 = vadd.f32 %v6198, 1.0
    %v6213 = vadd.f32 %v6199, 1.0
    %v6214 = vadd.f32 %v6200, 1.0
    %v6215 = vadd.f32 %v6201, 1.0
    %v6216 = vadd.f32 %v6202, 1.0
    %v6217 = vadd.f32 %v6203, 1.0
    %v6218 = vadd.f32 %v6204, 1.0
    %v6219 = vadd.f32 %v6205, 1.0
    %v6220 = vrcp.pop %v6206
    %v6221 = vmul.f32 1.0, %v6220
    %v6222 = vrcp.pop %v6207
    %v6223 = vmul.f32 1.0, %v6222
    %v6224 = vrcp.pop %v6208
    %v6225 = vmul.f32 1.0, %v6224
    %v6226 = vrcp.pop %v6209
    %v6227 = vmul.f32 1.0, %v6226
    %v6228 = vrcp.pop %v6210
    %v6229 = vmul.f32 1.0, %v6228
    %v6230 = vrcp.pop %v6211
    %v6231 = vmul.f32 1.0, %v6230
    %v6232 = vrcp.pop %v6212
    %v6233 = vmul.f32 1.0, %v6232
    %v6234 = vrcp.pop %v6213
    %v6235 = vmul.f32 1.0, %v6234
    %v6236 = vrcp.pop %v6214
    %v6237 = vmul.f32 1.0, %v6236
    %v6238 = vrcp.pop %v6215
    %v6239 = vmul.f32 1.0, %v6238
    %v6240 = vrcp.pop %v6216
    %v6241 = vmul.f32 1.0, %v6240
    %v6242 = vrcp.pop %v6217
    %v6243 = vmul.f32 1.0, %v6242
    %v6244 = vrcp.pop %v6218
    %v6245 = vmul.f32 1.0, %v6244
    %v6246 = vrcp.pop %v6219
    %v6247 = vmul.f32 1.0, %v6246
    %v6248 = vmul.f32 %v6221, 1.0614054
    %v6249 = vmul.f32 %v6223, 1.0614054
    %v6250 = vmul.f32 %v6225, 1.0614054
    %v6251 = vmul.f32 %v6227, 1.0614054
    %v6252 = vmul.f32 %v6229, 1.0614054
    %v6253 = vmul.f32 %v6231, 1.0614054
    %v6254 = vmul.f32 %v6233, 1.0614054
    %v6255 = vmul.f32 %v6235, 1.0614054
    %v6256 = vmul.f32 %v6237, 1.0614054
    %v6257 = vmul.f32 %v6239, 1.0614054
    %v6258 = vmul.f32 %v6241, 1.0614054
    %v6259 = vmul.f32 %v6243, 1.0614054
    %v6260 = vmul.f32 %v6245, 1.0614054
    %v6261 = vmul.f32 %v6247, 1.0614054
    %v6262 = vadd.f32 %v6248, -1.4531521
    %v6263 = vadd.f32 %v6249, -1.4531521
    %v6264 = vadd.f32 %v6250, -1.4531521
    %v6265 = vadd.f32 %v6251, -1.4531521
    %v6266 = vadd.f32 %v6252, -1.4531521
    %v6267 = vadd.f32 %v6253, -1.4531521
    %v6268 = vadd.f32 %v6254, -1.4531521
    %v6269 = vadd.f32 %v6255, -1.4531521
    %v6270 = vadd.f32 %v6256, -1.4531521
    %v6271 = vadd.f32 %v6257, -1.4531521
    %v6272 = vadd.f32 %v6258, -1.4531521
    %v6273 = vadd.f32 %v6259, -1.4531521
    %v6274 = vadd.f32 %v6260, -1.4531521
    %v6275 = vadd.f32 %v6261, -1.4531521
    %v6276 = vmul.f32 %v6221, %v6262
    %v6277 = vmul.f32 %v6223, %v6263
    %v6278 = vmul.f32 %v6225, %v6264
    %v6279 = vmul.f32 %v6227, %v6265
    %v6280 = vmul.f32 %v6229, %v6266
    %v6281 = vmul.f32 %v6231, %v6267
    %v6282 = vmul.f32 %v6233, %v6268
    %v6283 = vmul.f32 %v6235, %v6269
    %v6284 = vmul.f32 %v6237, %v6270
    %v6285 = vmul.f32 %v6239, %v6271
    %v6286 = vmul.f32 %v6241, %v6272
    %v6287 = vmul.f32 %v6243, %v6273
    %v6288 = vmul.f32 %v6245, %v6274
    %v6289 = vmul.f32 %v6247, %v6275
    %v6290 = vadd.f32 %v6276, 1.4214138
    %v6291 = vadd.f32 %v6277, 1.4214138
    %v6292 = vadd.f32 %v6278, 1.4214138
    %v6293 = vadd.f32 %v6279, 1.4214138
    %v6294 = vadd.f32 %v6280, 1.4214138
    %v6295 = vadd.f32 %v6281, 1.4214138
    %v6296 = vadd.f32 %v6282, 1.4214138
    %v6297 = vadd.f32 %v6283, 1.4214138
    %v6298 = vadd.f32 %v6284, 1.4214138
    %v6299 = vadd.f32 %v6285, 1.4214138
    %v6300 = vadd.f32 %v6286, 1.4214138
    %v6301 = vadd.f32 %v6287, 1.4214138
    %v6302 = vadd.f32 %v6288, 1.4214138
    %v6303 = vadd.f32 %v6289, 1.4214138
    %v6304 = vmul.f32 %v6221, %v6290
    %v6305 = vmul.f32 %v6223, %v6291
    %v6306 = vmul.f32 %v6225, %v6292
    %v6307 = vmul.f32 %v6227, %v6293
    %v6308 = vmul.f32 %v6229, %v6294
    %v6309 = vmul.f32 %v6231, %v6295
    %v6310 = vmul.f32 %v6233, %v6296
    %v6311 = vmul.f32 %v6235, %v6297
    %v6312 = vmul.f32 %v6237, %v6298
    %v6313 = vmul.f32 %v6239, %v6299
    %v6314 = vmul.f32 %v6241, %v6300
    %v6315 = vmul.f32 %v6243, %v6301
    %v6316 = vmul.f32 %v6245, %v6302
    %v6317 = vmul.f32 %v6247, %v6303
    %v6318 = vadd.f32 %v6304, -0.28449672
    %v6319 = vadd.f32 %v6305, -0.28449672
    %v6320 = vadd.f32 %v6306, -0.28449672
    %v6321 = vadd.f32 %v6307, -0.28449672
    %v6322 = vadd.f32 %v6308, -0.28449672
    %v6323 = vadd.f32 %v6309, -0.28449672
    %v6324 = vadd.f32 %v6310, -0.28449672
    %v6325 = vadd.f32 %v6311, -0.28449672
    %v6326 = vadd.f32 %v6312, -0.28449672
    %v6327 = vadd.f32 %v6313, -0.28449672
    %v6328 = vadd.f32 %v6314, -0.28449672
    %v6329 = vadd.f32 %v6315, -0.28449672
    %v6330 = vadd.f32 %v6316, -0.28449672
    %v6331 = vadd.f32 %v6317, -0.28449672
    %v6332 = vmul.f32 %v6221, %v6318
    %v6333 = vmul.f32 %v6223, %v6319
    %v6334 = vmul.f32 %v6225, %v6320
    %v6335 = vmul.f32 %v6227, %v6321
    %v6336 = vmul.f32 %v6229, %v6322
    %v6337 = vmul.f32 %v6231, %v6323
    %v6338 = vmul.f32 %v6233, %v6324
    %v6339 = vmul.f32 %v6235, %v6325
    %v6340 = vmul.f32 %v6237, %v6326
    %v6341 = vmul.f32 %v6239, %v6327
    %v6342 = vmul.f32 %v6241, %v6328
    %v6343 = vmul.f32 %v6243, %v6329
    %v6344 = vmul.f32 %v6245, %v6330
    %v6345 = vmul.f32 %v6247, %v6331
    %v6346 = vadd.f32 %v6332, 0.2548296
    %v6347 = vadd.f32 %v6333, 0.2548296
    %v6348 = vadd.f32 %v6334, 0.2548296
    %v6349 = vadd.f32 %v6335, 0.2548296
    %v6350 = vadd.f32 %v6336, 0.2548296
    %v6351 = vadd.f32 %v6337, 0.2548296
    %v6352 = vadd.f32 %v6338, 0.2548296
    %v6353 = vadd.f32 %v6339, 0.2548296
    %v6354 = vadd.f32 %v6340, 0.2548296
    %v6355 = vadd.f32 %v6341, 0.2548296
    %v6356 = vadd.f32 %v6342, 0.2548296
    %v6357 = vadd.f32 %v6343, 0.2548296
    %v6358 = vadd.f32 %v6344, 0.2548296
    %v6359 = vadd.f32 %v6345, 0.2548296
    %v6360 = vmul.f32 %v6221, %v6346
    %v6361 = vmul.f32 %v6223, %v6347
    %v6362 = vmul.f32 %v6225, %v6348
    %v6363 = vmul.f32 %v6227, %v6349
    %v6364 = vmul.f32 %v6229, %v6350
    %v6365 = vmul.f32 %v6231, %v6351
    %v6366 = vmul.f32 %v6233, %v6352
    %v6367 = vmul.f32 %v6235, %v6353
    %v6368 = vmul.f32 %v6237, %v6354
    %v6369 = vmul.f32 %v6239, %v6355
    %v6370 = vmul.f32 %v6241, %v6356
    %v6371 = vmul.f32 %v6243, %v6357
    %v6372 = vmul.f32 %v6245, %v6358
    %v6373 = vmul.f32 %v6247, %v6359
    %v6374 = vsub.f32 0.0, %v6178
    %v6375 = vsub.f32 0.0, %v6179
    %v6376 = vsub.f32 0.0, %v6180
    %v6377 = vsub.f32 0.0, %v6181
    %v6378 = vsub.f32 0.0, %v6182
    %v6379 = vsub.f32 0.0, %v6183
    %v6380 = vsub.f32 0.0, %v6184
    %v6381 = vsub.f32 0.0, %v6185
    %v6382 = vsub.f32 0.0, %v6186
    %v6383 = vsub.f32 0.0, %v6187
    %v6384 = vsub.f32 0.0, %v6188
    %v6385 = vsub.f32 0.0, %v6189
    %v6386 = vsub.f32 0.0, %v6190
    %v6387 = vsub.f32 0.0, %v6191
    %v6388 = vmul.f32 %v6374, %v6178
    %v6389 = vmul.f32 %v6375, %v6179
    %v6390 = vmul.f32 %v6376, %v6180
    %v6391 = vmul.f32 %v6377, %v6181
    %v6392 = vmul.f32 %v6378, %v6182
    %v6393 = vmul.f32 %v6379, %v6183
    %v6394 = vmul.f32 %v6380, %v6184
    %v6395 = vmul.f32 %v6381, %v6185
    %v6396 = vmul.f32 %v6382, %v6186
    %v6397 = vmul.f32 %v6383, %v6187
    %v6398 = vmul.f32 %v6384, %v6188
    %v6399 = vmul.f32 %v6385, %v6189
    %v6400 = vmul.f32 %v6386, %v6190
    %v6401 = vmul.f32 %v6387, %v6191
    %v6402 = vmul.f32 %v6388, 1.442695
    %v6403 = vpow.pop %v6402
    %v6404 = vmul.f32 %v6389, 1.442695
    %v6405 = vpow.pop %v6404
    %v6406 = vmul.f32 %v6390, 1.442695
    %v6407 = vpow.pop %v6406
    %v6408 = vmul.f32 %v6391, 1.442695
    %v6409 = vpow.pop %v6408
    %v6410 = vmul.f32 %v6392, 1.442695
    %v6411 = vpow.pop %v6410
    %v6412 = vmul.f32 %v6393, 1.442695
    %v6413 = vpow.pop %v6412
    %v6414 = vmul.f32 %v6394, 1.442695
    %v6415 = vpow.pop %v6414
    %v6416 = vmul.f32 %v6395, 1.442695
    %v6417 = vpow.pop %v6416
    %v6418 = vmul.f32 %v6396, 1.442695
    %v6419 = vpow.pop %v6418
    %v6420 = vmul.f32 %v6397, 1.442695
    %v6421 = vpow.pop %v6420
    %v6422 = vmul.f32 %v6398, 1.442695
    %v6423 = vpow.pop %v6422
    %v6424 = vmul.f32 %v6399, 1.442695
    %v6425 = vpow.pop %v6424
    %v6426 = vmul.f32 %v6400, 1.442695
    %v6427 = vpow.pop %v6426
    %v6428 = vmul.f32 %v6401, 1.442695
    %v6429 = vpow.pop %v6428
    %v6430 = vmul.f32 %v6360, %v6403
    %v6431 = vmul.f32 %v6361, %v6405
    %v6432 = vmul.f32 %v6362, %v6407
    %v6433 = vmul.f32 %v6363, %v6409
    %v6434 = vmul.f32 %v6364, %v6411
    %v6435 = vmul.f32 %v6365, %v6413
    %v6436 = vmul.f32 %v6366, %v6415
    %v6437 = vmul.f32 %v6367, %v6417
    %v6438 = vmul.f32 %v6368, %v6419
    %v6439 = vmul.f32 %v6369, %v6421
    %v6440 = vmul.f32 %v6370, %v6423
    %v6441 = vmul.f32 %v6371, %v6425
    %v6442 = vmul.f32 %v6372, %v6427
    %v6443 = vmul.f32 %v6373, %v6429
    %v6444 = vsub.f32 1.0, %v6430
    %v6445 = vsub.f32 1.0, %v6431
    %v6446 = vsub.f32 1.0, %v6432
    %v6447 = vsub.f32 1.0, %v6433
    %v6448 = vsub.f32 1.0, %v6434
    %v6449 = vsub.f32 1.0, %v6435
    %v6450 = vsub.f32 1.0, %v6436
    %v6451 = vsub.f32 1.0, %v6437
    %v6452 = vsub.f32 1.0, %v6438
    %v6453 = vsub.f32 1.0, %v6439
    %v6454 = vsub.f32 1.0, %v6440
    %v6455 = vsub.f32 1.0, %v6441
    %v6456 = vsub.f32 1.0, %v6442
    %v6457 = vsub.f32 1.0, %v6443
    %vm6458 = vcmp.lt.f32.partialorder %v6164, 0.0
    %vm6459 = vcmp.lt.f32.partialorder %v6165, 0.0
    %vm6460 = vcmp.lt.f32.partialorder %v6166, 0.0
    %vm6461 = vcmp.lt.f32.partialorder %v6167, 0.0
    %vm6462 = vcmp.lt.f32.partialorder %v6168, 0.0
    %vm6463 = vcmp.lt.f32.partialorder %v6169, 0.0
    %vm6464 = vcmp.lt.f32.partialorder %v6170, 0.0
    %vm6465 = vcmp.lt.f32.partialorder %v6171, 0.0
    %vm6466 = vcmp.lt.f32.partialorder %v6172, 0.0
    %vm6467 = vcmp.lt.f32.partialorder %v6173, 0.0
    %vm6468 = vcmp.lt.f32.partialorder %v6174, 0.0
    %vm6469 = vcmp.lt.f32.partialorder %v6175, 0.0
    %vm6470 = vcmp.lt.f32.partialorder %v6176, 0.0
    %vm6471 = vcmp.lt.f32.partialorder %v6177, 0.0
    %v6472 = vsub.f32 0.0, %v6444
    %v6473 = vsub.f32 0.0, %v6445
    %v6474 = vsub.f32 0.0, %v6446
    %v6475 = vsub.f32 0.0, %v6447
    %v6476 = vsub.f32 0.0, %v6448
    %v6477 = vsub.f32 0.0, %v6449
    %v6478 = vsub.f32 0.0, %v6450
    %v6479 = vsub.f32 0.0, %v6451
    %v6480 = vsub.f32 0.0, %v6452
    %v6481 = vsub.f32 0.0, %v6453
    %v6482 = vsub.f32 0.0, %v6454
    %v6483 = vsub.f32 0.0, %v6455
    %v6484 = vsub.f32 0.0, %v6456
    %v6485 = vsub.f32 0.0, %v6457
    %v6486 = vsel %vm6458, %v6472, %v6444
    %v6487 = vsel %vm6459, %v6473, %v6445
    %v6488 = vsel %vm6460, %v6474, %v6446
    %v6489 = vsel %vm6461, %v6475, %v6447
    %v6490 = vsel %vm6462, %v6476, %v6448
    %v6491 = vsel %vm6463, %v6477, %v6449
    %v6492 = vsel %vm6464, %v6478, %v6450
    %v6493 = vsel %vm6465, %v6479, %v6451
    %v6494 = vsel %vm6466, %v6480, %v6452
    %v6495 = vsel %vm6467, %v6481, %v6453
    %v6496 = vsel %vm6468, %v6482, %v6454
    %v6497 = vsel %vm6469, %v6483, %v6455
    %v6498 = vsel %vm6470, %v6484, %v6456
    %v6499 = vsel %vm6471, %v6485, %v6457
    %v6500 = vadd.f32 %v6486, 1.0
    %v6501 = vadd.f32 %v6487, 1.0
    %v6502 = vadd.f32 %v6488, 1.0
    %v6503 = vadd.f32 %v6489, 1.0
    %v6504 = vadd.f32 %v6490, 1.0
    %v6505 = vadd.f32 %v6491, 1.0
    %v6506 = vadd.f32 %v6492, 1.0
    %v6507 = vadd.f32 %v6493, 1.0
    %v6508 = vadd.f32 %v6494, 1.0
    %v6509 = vadd.f32 %v6495, 1.0
    %v6510 = vadd.f32 %v6496, 1.0
    %v6511 = vadd.f32 %v6497, 1.0
    %v6512 = vadd.f32 %v6498, 1.0
    %v6513 = vadd.f32 %v6499, 1.0
    %v6514 = vmul.f32 %v6150, %v6500
    %v6515 = vmul.f32 %v6151, %v6501
    %v6516 = vmul.f32 %v6152, %v6502
    %v6517 = vmul.f32 %v6153, %v6503
    %v6518 = vmul.f32 %v6154, %v6504
    %v6519 = vmul.f32 %v6155, %v6505
    %v6520 = vmul.f32 %v6156, %v6506
    %v6521 = vmul.f32 %v6157, %v6507
    %v6522 = vmul.f32 %v6158, %v6508
    %v6523 = vmul.f32 %v6159, %v6509
    %v6524 = vmul.f32 %v6160, %v6510
    %v6525 = vmul.f32 %v6161, %v6511
    %v6526 = vmul.f32 %v6162, %v6512
    %v6527 = vmul.f32 %v6163, %v6513
    %s6528 = scalar_lea.vmem %s11, 32
    %v6529 = vld [vmem:[%s6528] sm:$0xff]
    %v6530 = vld [vmem:[%s6528 + $0x8] sm:$0xff]
    %v6531 = vld [vmem:[%s6528 + $0x10] sm:$0xff]
    %v6532 = vld [vmem:[%s6528 + $0x18] sm:$0xff]
    %v6534 = vsel %vm3289, %v6514, 0
    %v6537 = vsel %vm3289, %v6515, 0
    %v6540 = vsel %vm3289, %v6516, 0
    %v6543 = vsel %vm3289, %v6517, 0
    %v6546 = vsel %vm3289, %v6518, 0
    %v6549 = vsel %vm3289, %v6519, 0
    %v6552 = vsel %vm3289, %v6520, 0
    %v6555 = vsel %vm3289, %v6521, 0
    %v6558 = vsel %vm3289, %v6522, 0
    %v6561 = vsel %vm3289, %v6523, 0
    %v6564 = vsel %vm3289, %v6524, 0
    %v6567 = vsel %vm3289, %v6525, 0
    %v6570 = vsel %vm3289, %v6526, 0
    %v6573 = vsel %vm3289, %v6527, 0
    %6575 = vmatprep.subr.mxu0 0.0
    %6576 = vmatpush1.msra.mxu0 0.0
    %6577 = vmatprep.subr.mxu0 0.0
    %6578 = vmatpush1.msra.mxu0 0.0
    %6579 = vmatprep.subr.mxu0 0.0
    %6580 = vmatpush1.msra.mxu0 0.0
    %6581 = vmatprep.subr.mxu0 0.0
    %6582 = vmatpush1.msra.mxu0 0.0
    %6583 = vmatprep.subr.mxu0 0.0
    %6584 = vmatpush1.msra.mxu0 0.0
    %6585 = vmatprep.subr.mxu0 0.0
    %6586 = vmatpush1.msra.mxu0 0.0
    %6587 = vmatprep.subr.mxu0 0.0
    %6588 = vmatpush1.msra.mxu0 0.0
    %6589 = vmatprep.subr.mxu0 0.0
    %6590 = vmatpush1.msra.mxu0 0.0
    %6591 = vmatprep.subr.mxu0 0.0
    %6592 = vmatpush1.msra.mxu0 0.0
    %6593 = vmatprep.subr.mxu0 0.0
    %6594 = vmatpush1.msra.mxu0 0.0
    %6595 = vmatprep.subr.mxu0 0.0
    %6596 = vmatpush1.msra.mxu0 0.0
    %6597 = vmatprep.subr.mxu0 0.0
    %6598 = vmatpush1.msra.mxu0 0.0
    %6599 = vmatprep.subr.mxu0 0.0
    %6600 = vmatpush1.msra.mxu0 %v6532
    %6601 = vmatprep.subr.mxu0 0.0
    %6602 = vmatpush1.msra.mxu0 %v6531
    %6603 = vmatprep.subr.mxu0 0.0
    %6604 = vmatpush1.msra.mxu0 %v6530
    %6605 = vmatprep.subr.mxu0 0.0
    %6606 = vmatpush1.msra.mxu0 %v6529
    %6607 = vmatprep.subr.mxu0 0.0
    %6608 = vmatpush2.msra.mxu0 0.0
    %6609 = vmatprep.subr.mxu0 0.0
    %6610 = vmatpush2.msra.mxu0 0.0
    %6611 = vmatprep.subr.mxu0 0.0
    %6612 = vmatpush2.msra.mxu0 0.0
    %6613 = vmatprep.subr.mxu0 0.0
    %6614 = vmatpush2.msra.mxu0 0.0
    %6615 = vmatprep.subr.mxu0 0.0
    %6616 = vmatpush2.msra.mxu0 0.0
    %6617 = vmatprep.subr.mxu0 0.0
    %6618 = vmatpush2.msra.mxu0 0.0
    %6619 = vmatprep.subr.mxu0 0.0
    %6620 = vmatpush2.msra.mxu0 0.0
    %6621 = vmatprep.subr.mxu0 0.0
    %6622 = vmatpush2.msra.mxu0 0.0
    %6623 = vmatprep.subr.mxu0 0.0
    %6624 = vmatpush2.msra.mxu0 0.0
    %6625 = vmatprep.subr.mxu0 0.0
    %6626 = vmatpush2.msra.mxu0 0.0
    %6627 = vmatprep.subr.mxu0 0.0
    %6628 = vmatpush2.msra.mxu0 0.0
    %6629 = vmatprep.subr.mxu0 0.0
    %6630 = vmatpush2.msra.mxu0 0.0
    %6631 = vmatprep.subr.mxu0 0.0
    %6632 = vmatpush2.msra.mxu0 0.0
    %6633 = vmatprep.subr.mxu0 0.0
    %6634 = vmatpush2.msra.mxu0 0.0
    %6635 = vmatprep.subr.mxu0 0.0
    %6636 = vmatpush2.msra.mxu0 0.0
    %6637 = vmatprep.subr.mxu0 0.0
    %6638 = vmatpush2.msra.mxu0 0.0
    %6639 = vmatprep.mubr.f32.mxu0 0.0
    %6640 = vmatmul.mubr.f32.gmra.mxu0 %v6534
    %v6641 = vpop.f32.mrf.mxu0
    %v6642 = vadd.f32 0.0, %v6641
    %v6643 = vpop.f32.mrf.mxu0
    %6644 = vmatprep.mubr.f32.mxu0 0.0
    %6645 = vmatmul.mubr.f32.gmra.mxu0 %v6537
    %v6646 = vpop.f32.mrf.mxu0
    %v6647 = vadd.f32 0.0, %v6646
    %v6648 = vpop.f32.mrf.mxu0
    %6649 = vmatprep.mubr.f32.mxu0 0.0
    %6650 = vmatmul.mubr.f32.gmra.mxu0 %v6540
    %v6651 = vpop.f32.mrf.mxu0
    %v6652 = vadd.f32 0.0, %v6651
    %v6653 = vpop.f32.mrf.mxu0
    %6654 = vmatprep.mubr.f32.mxu0 0.0
    %6655 = vmatmul.mubr.f32.gmra.mxu0 %v6543
    %v6656 = vpop.f32.mrf.mxu0
    %v6657 = vadd.f32 0.0, %v6656
    %v6658 = vpop.f32.mrf.mxu0
    %6659 = vmatprep.mubr.f32.mxu0 0.0
    %6660 = vmatmul.mubr.f32.gmra.mxu0 %v6546
    %v6661 = vpop.f32.mrf.mxu0
    %v6662 = vadd.f32 0.0, %v6661
    %v6663 = vpop.f32.mrf.mxu0
    %6664 = vmatprep.mubr.f32.mxu0 0.0
    %6665 = vmatmul.mubr.f32.gmra.mxu0 %v6549
    %v6666 = vpop.f32.mrf.mxu0
    %v6667 = vadd.f32 0.0, %v6666
    %v6668 = vpop.f32.mrf.mxu0
    %6669 = vmatprep.mubr.f32.mxu0 0.0
    %6670 = vmatmul.mubr.f32.gmra.mxu0 %v6552
    %v6671 = vpop.f32.mrf.mxu0
    %v6672 = vadd.f32 0.0, %v6671
    %v6673 = vpop.f32.mrf.mxu0
    %6674 = vmatprep.mubr.f32.mxu0 0.0
    %6675 = vmatmul.mubr.f32.gmra.mxu0 %v6555
    %v6676 = vpop.f32.mrf.mxu0
    %v6677 = vadd.f32 0.0, %v6676
    %v6678 = vpop.f32.mrf.mxu0
    %6679 = vmatprep.mubr.f32.mxu0 0.0
    %6680 = vmatmul.mubr.f32.gmra.mxu0 %v6558
    %v6681 = vpop.f32.mrf.mxu0
    %v6682 = vadd.f32 0.0, %v6681
    %v6683 = vpop.f32.mrf.mxu0
    %6684 = vmatprep.mubr.f32.mxu0 0.0
    %6685 = vmatmul.mubr.f32.gmra.mxu0 %v6561
    %v6686 = vpop.f32.mrf.mxu0
    %v6687 = vadd.f32 0.0, %v6686
    %v6688 = vpop.f32.mrf.mxu0
    %6689 = vmatprep.mubr.f32.mxu0 0.0
    %6690 = vmatmul.mubr.f32.gmra.mxu0 %v6564
    %v6691 = vpop.f32.mrf.mxu0
    %v6692 = vadd.f32 0.0, %v6691
    %v6693 = vpop.f32.mrf.mxu0
    %6694 = vmatprep.mubr.f32.mxu0 0.0
    %6695 = vmatmul.mubr.f32.gmra.mxu0 %v6567
    %v6696 = vpop.f32.mrf.mxu0
    %v6697 = vadd.f32 0.0, %v6696
    %v6698 = vpop.f32.mrf.mxu0
    %6699 = vmatprep.mubr.f32.mxu0 0.0
    %6700 = vmatmul.mubr.f32.gmra.mxu0 %v6570
    %v6701 = vpop.f32.mrf.mxu0
    %v6702 = vadd.f32 0.0, %v6701
    %v6703 = vpop.f32.mrf.mxu0
    %6704 = vmatprep.mubr.f32.mxu0 0.0
    %6705 = vmatmul.mubr.f32.gmra.mxu0 %v6573
    %v6706 = vpop.f32.mrf.mxu0
    %v6707 = vadd.f32 0.0, %v6706
    %v6708 = vpop.f32.mrf.mxu0
    %6709 = vdwg.mxu0
    %v6710 = vadd.f32 %v5625, %v6642
    %v6711 = vadd.f32 %v5626, %v6647
    %v6712 = vadd.f32 %v5627, %v6652
    %v6713 = vadd.f32 %v5628, %v6657
    %v6714 = vadd.f32 %v5629, %v6662
    %v6715 = vadd.f32 %v5630, %v6667
    %v6716 = vadd.f32 %v5631, %v6672
    %v6717 = vadd.f32 %v5632, %v6677
    %v6718 = vadd.f32 %v5633, %v6682
    %v6719 = vadd.f32 %v5634, %v6687
    %v6720 = vadd.f32 %v5635, %v6692
    %v6721 = vadd.f32 %v5636, %v6697
    %v6722 = vadd.f32 %v5637, %v6702
    %v6723 = vadd.f32 %v5638, %v6707
    %s6724 = scalar_lea.vmem %s12, 1
    %v6725 = vld [vmem:[%s6724] sm:$0x1]
    %v6727 = vlaneseq
    %v6728 = vshrl.u32 %v6727, 7
    %v6729 = vsub.s32 0, %v6728
    %v6730 = vrot.slane %v6725, %v6729
    %v6732 = vadd.f32 %v6710, %v6730
    %v6733 = vadd.f32 %v6711, %v6730
    %v6734 = vadd.f32 %v6712, %v6730
    %v6735 = vadd.f32 %v6713, %v6730
    %v6736 = vadd.f32 %v6714, %v6730
    %v6737 = vadd.f32 %v6715, %v6730
    %v6738 = vadd.f32 %v6716, %v6730
    %v6739 = vadd.f32 %v6717, %v6730
    %v6740 = vadd.f32 %v6718, %v6730
    %v6741 = vadd.f32 %v6719, %v6730
    %v6742 = vadd.f32 %v6720, %v6730
    %v6743 = vadd.f32 %v6721, %v6730
    %v6744 = vadd.f32 %v6722, %v6730
    %v6745 = vadd.f32 %v6723, %v6730
    %6746 = vst.msk [vmem:[#allocation2] sm:$0xff] %vm265, %v6732
    %6747 = vst.msk [vmem:[#allocation2 + $0x8] sm:$0xff] %vm265, %v6733
    %6748 = vst.msk [vmem:[#allocation2 + $0x10] sm:$0xff] %vm265, %v6734
    %6749 = vst.msk [vmem:[#allocation2 + $0x18] sm:$0xff] %vm265, %v6735
    %6750 = vst.msk [vmem:[#allocation2 + $0x20] sm:$0xff] %vm265, %v6736
    %6751 = vst.msk [vmem:[#allocation2 + $0x28] sm:$0xff] %vm265, %v6737
    %6752 = vst.msk [vmem:[#allocation2 + $0x30] sm:$0xff] %vm265, %v6738
    %6753 = vst.msk [vmem:[#allocation2 + $0x38] sm:$0xff] %vm265, %v6739
    %6754 = vst.msk [vmem:[#allocation2 + $0x40] sm:$0xff] %vm265, %v6740
    %6755 = vst.msk [vmem:[#allocation2 + $0x48] sm:$0xff] %vm265, %v6741
    %6756 = vst.msk [vmem:[#allocation2 + $0x50] sm:$0xff] %vm265, %v6742
    %6757 = vst.msk [vmem:[#allocation2 + $0x58] sm:$0xff] %vm265, %v6743
    %6758 = vst.msk [vmem:[#allocation2 + $0x60] sm:$0xff] %vm265, %v6744
    %6759 = vst.msk [vmem:[#allocation2 + $0x68] sm:$0xff] %vm265, %v6745
    %v6760 = vld [vmem:[#allocation2] sm:$0x1]
    %vm6761 = vcmask 57344
    %6762 = vst.msk [vmem:[#allocation3] sm:$0x1] %vm6761, %v6760
    %v6763 = vld [vmem:[#allocation2 + $0x38] sm:$0x1]
    %6764 = vst.msk [vmem:[#allocation3 + $0x1] sm:$0x1] %vm6761, %v6763
    %v6765 = vld [vmem:[#allocation3] sm:$0x3]
    %v6766 = vld [vmem:[%s13] sm:$0xff]
    %v6767 = vld [vmem:[%s14] sm:$0x1]
    %v6769 = vlaneseq
    %v6770 = vshrl.u32 %v6769, 7
    %v6771 = vsub.s32 0, %v6770
    %v6772 = vrot.slane %v6767, %v6771
    %v6775 = vsel %vm265, %v6765, 0
    %6777 = vmatprep.subr.mxu0 0.0
    %6778 = vmatpush1.msra.mxu0 0.0
    %6779 = vmatprep.subr.mxu0 0.0
    %6780 = vmatpush1.msra.mxu0 0.0
    %6781 = vmatprep.subr.mxu0 0.0
    %6782 = vmatpush1.msra.mxu0 0.0
    %6783 = vmatprep.subr.mxu0 0.0
    %6784 = vmatpush1.msra.mxu0 0.0
    %6785 = vmatprep.subr.mxu0 0.0
    %6786 = vmatpush1.msra.mxu0 0.0
    %6787 = vmatprep.subr.mxu0 0.0
    %6788 = vmatpush1.msra.mxu0 0.0
    %6789 = vmatprep.subr.mxu0 0.0
    %6790 = vmatpush1.msra.mxu0 0.0
    %6791 = vmatprep.subr.mxu0 0.0
    %6792 = vmatpush1.msra.mxu0 0.0
    %6793 = vmatprep.subr.mxu0 0.0
    %6794 = vmatpush1.msra.mxu0 0.0
    %6795 = vmatprep.subr.mxu0 0.0
    %6796 = vmatpush1.msra.mxu0 0.0
    %6797 = vmatprep.subr.mxu0 0.0
    %6798 = vmatpush1.msra.mxu0 0.0
    %6799 = vmatprep.subr.mxu0 0.0
    %6800 = vmatpush1.msra.mxu0 0.0
    %6801 = vmatprep.subr.mxu0 0.0
    %6802 = vmatpush1.msra.mxu0 0.0
    %6803 = vmatprep.subr.mxu0 0.0
    %6804 = vmatpush1.msra.mxu0 0.0
    %6805 = vmatprep.subr.mxu0 0.0
    %6806 = vmatpush1.msra.mxu0 0.0
    %6807 = vmatprep.subr.mxu0 0.0
    %6808 = vmatpush1.msra.mxu0 %v6766
    %6809 = vmatprep.subr.mxu0 0.0
    %6810 = vmatpush2.msra.mxu0 0.0
    %6811 = vmatprep.subr.mxu0 0.0
    %6812 = vmatpush2.msra.mxu0 0.0
    %6813 = vmatprep.subr.mxu0 0.0
    %6814 = vmatpush2.msra.mxu0 0.0
    %6815 = vmatprep.subr.mxu0 0.0
    %6816 = vmatpush2.msra.mxu0 0.0
    %6817 = vmatprep.subr.mxu0 0.0
    %6818 = vmatpush2.msra.mxu0 0.0
    %6819 = vmatprep.subr.mxu0 0.0
    %6820 = vmatpush2.msra.mxu0 0.0
    %6821 = vmatprep.subr.mxu0 0.0
    %6822 = vmatpush2.msra.mxu0 0.0
    %6823 = vmatprep.subr.mxu0 0.0
    %6824 = vmatpush2.msra.mxu0 0.0
    %6825 = vmatprep.subr.mxu0 0.0
    %6826 = vmatpush2.msra.mxu0 0.0
    %6827 = vmatprep.subr.mxu0 0.0
    %6828 = vmatpush2.msra.mxu0 0.0
    %6829 = vmatprep.subr.mxu0 0.0
    %6830 = vmatpush2.msra.mxu0 0.0
    %6831 = vmatprep.subr.mxu0 0.0
    %6832 = vmatpush2.msra.mxu0 0.0
    %6833 = vmatprep.subr.mxu0 0.0
    %6834 = vmatpush2.msra.mxu0 0.0
    %6835 = vmatprep.subr.mxu0 0.0
    %6836 = vmatpush2.msra.mxu0 0.0
    %6837 = vmatprep.subr.mxu0 0.0
    %6838 = vmatpush2.msra.mxu0 0.0
    %6839 = vmatprep.subr.mxu0 0.0
    %6840 = vmatpush2.msra.mxu0 0.0
    %6841 = vmatprep.mubr.f32.mxu0 0.0
    %6842 = vmatmul.mubr.f32.gmra.mxu0 %v6775
    %v6843 = vpop.f32.mrf.mxu0
    %v6844 = vadd.f32 %v6772, %v6843
    %v6845 = vpop.f32.mrf.mxu0
    %6846 = vdwg.mxu0
    %vm6847 = vcmask 1041408
    %v6848 = vsel %vm6847, %v6844, -inf
    %6849 = vmax.xlane.f32.xlu0 %v6848
    %v6850 = vpop.xlane.xlu0 %6849
    %v6851 = vsub.f32 %v6844, %v6850
    %v6852 = vmul.f32 %v6851, 1.442695
    %v6853 = vpow.pop %v6852
    %v6854 = vsel %vm6847, %v6853, 0.0
    %6855 = vadd.xlane.f32.xlu0 %v6854
    %v6856 = vpop.xlane.xlu0 %6855
    %v6857 = vrcp.pop %v6856
    %v6858 = vmul.f32 %v6853, %v6857
    %6859 = vst [vmem:[#allocation4] sm:$0x3] %v6858
    // Predicated region
    $region62: #{vit_pallas.1} parent=1 // pred_check
      _
    $region63: #{vit_pallas.1} parent=1 // pred_check_branch
      %6861 = sbr.rel (0) target = $region65
    $region64: #{vit_pallas.1} parent=1 // pred_region
      %s6863 = ssub.s32 32, 32
      %6864 = vsyncadd [#allocation5], %s6863
      %s6866 = sshll.u32 [#allocation4], 4
      %s6867 = int_to_ptr.vmem [resolvable:$true] %s6866
      %6869 = dma.vmem_to_hbm [thread:$0]  %s6867, 32, %s15, [#allocation5]
    $region65: #{vit_pallas.1} parent=1 // pred_fallthru
      _
    // Predicated region
    $region66: #{vit_pallas.1} parent=1 // pred_check
      _
    $region67: #{vit_pallas.1} parent=1 // pred_check_branch
      %6871 = sbr.rel (0) target = $region69
    $region68: #{vit_pallas.1} parent=1 // pred_region
      %6872 = dma.done [#allocation5], 32
    $region69: #{vit_pallas.1} parent=1 // pred_fallthru
      _
    %6873 = vsyncpa [#allocation5], 1

</llo_original>
